<compile_context>
chip_gen: v5e
topology: v5e:2x2
jax: 0.10.0
libtpu: 0.0.40
codegen_flags: <defaults>
</compile_context>

<pallas_src>
import functools

import jax
import jax.numpy as jnp
from jax.experimental import pallas as pl
from jax.experimental.pallas import tpu as pltpu

# architecture constants of DTLCDR_cellexp
D_H1, D_H2, D_H3 = 1024, 512, 256      # drug_dti branch hidden sizes
C_H1, C_H2, C_H3 = 1024, 256, 128      # cell_exp branch hidden sizes
R_H1, R_H2 = 1024, 512                 # regression hidden sizes
CAT_DIM = D_H3 + C_H3                  # 384
BIAS_ROWS, BIAS_LANES = 16, 1024       # packed-bias container (padded to (8,128) tiles)


def _round_up(n, m):
    return ((n + m - 1) // m) * m


def _elu(h):
    # ELU(alpha=1); exp argument clamped so the unselected branch never overflows.
    return jnp.where(h > 0.0, h, jnp.exp(jnp.minimum(h, 0.0)) - 1.0)


def dtlcdr_kernel(dti_ref, exp_ref,
                  wd1_ref, wd2_ref, wd3_ref,
                  wc1_ref, wc2_ref, wc3_ref,
                  wr1_ref, wr2_ref, wr3_ref,
                  bias_ref,
                  cell_ref, y_ref):
    f32 = jnp.float32
    bf16 = jnp.bfloat16

    def dense_relu(x_bf16, w_ref, b):
        h = jnp.dot(x_bf16, w_ref[...], preferred_element_type=f32) + b
        return jnp.maximum(h, 0.0)

    # --- unpack biases (rows of a single [16, 1024] f32 array) ---
    b_d1 = bias_ref[0:1, :D_H1]
    b_d2 = bias_ref[1:2, :D_H2]
    b_d3 = bias_ref[2:3, :D_H3]
    b_c1 = bias_ref[3:4, :C_H1]
    b_c2 = bias_ref[4:5, :C_H2]
    b_c3 = bias_ref[5:6, :C_H3]
    b_r1 = bias_ref[6:7, :R_H1]
    b_r2 = bias_ref[7:8, :R_H2]
    b_r3 = bias_ref[8:9, 0:1]

    # --- drug_dti branch: dti_dim -> 1024 -> 512 -> 256  (Linear+ReLU, Dropout=id) ---
    d = dense_relu(dti_ref[...].astype(bf16), wd1_ref, b_d1)
    d = dense_relu(d.astype(bf16), wd2_ref, b_d2)
    d = dense_relu(d.astype(bf16), wd3_ref, b_d3)                 # [bb, 256] f32

    # --- cell_exp branch: exp_dim -> 1024 -> 256 -> 128 ---
    c = dense_relu(exp_ref[...].astype(bf16), wc1_ref, b_c1)
    c = dense_relu(c.astype(bf16), wc2_ref, b_c2)
    c = dense_relu(c.astype(bf16), wc3_ref, b_c3)                 # [bb, 128] f32

    cell_ref[...] = c.astype(cell_ref.dtype)                      # first module output

    # --- regression head on concat([d, c]) without materializing the concat ---
    #     z @ Wr1 == d @ Wr1[:256, :] + c @ Wr1[256:, :]
    r = jnp.dot(d.astype(bf16), wr1_ref[0:D_H3, :], preferred_element_type=f32)
    r = r + jnp.dot(c.astype(bf16), wr1_ref[D_H3:CAT_DIM, :], preferred_element_type=f32)
    r = _elu(r + b_r1)                                            # [bb, 1024]
    r = _elu(jnp.dot(r.astype(bf16), wr2_ref[...], preferred_element_type=f32) + b_r2)  # [bb, 512]

    # final Linear(512, 1) as VPU multiply + lane reduction (avoids an N=1 MXU matmul)
    y = jnp.sum(r * wr3_ref[...], axis=-1, keepdims=True) + b_r3  # [bb, 1]
    # lane-dense store; wrapper slices [:, :1]
    y_ref[...] = jnp.broadcast_to(y, y_ref.shape).astype(y_ref.dtype)


def _pack_biases(p):
    """Pack the 9 bias vectors into one [16, 1024] f32 array (one row per bias)."""
    layout = [("bd1", D_H1), ("bd2", D_H2), ("bd3", D_H3),
              ("bc1", C_H1), ("bc2", C_H2), ("bc3", C_H3),
              ("br1", R_H1), ("br2", R_H2), ("br3", 1)]
    rows = []
    for name, dim in layout:
        b = p[name].reshape(1, dim).astype(jnp.float32)
        rows.append(jnp.pad(b, ((0, 0), (0, BIAS_LANES - dim))))
    pack = jnp.concatenate(rows, axis=0)                          # [9, 1024]
    return jnp.pad(pack, ((0, BIAS_ROWS - len(layout)), (0, 0)))  # [16, 1024]


_W_NAMES = ("wd1", "wd2", "wd3", "wc1", "wc2", "wc3", "wr1", "wr2", "wr3")


@functools.partial(jax.jit, static_argnames=("block_b",))
def dtlcdr_cellexp_forward(drug_dti, cell_exp, params, *, block_b=128):
    """Returns (cell_embedding [B,128] f32, y [B,1] f32)."""
    B, dti_dim = drug_dti.shape
    exp_dim = cell_exp.shape[1]

    # batch tiling: pad rows to a multiple of the batch block (sublane-aligned)
    bb = min(block_b, _round_up(B, 8))
    Bp = _round_up(B, bb)
    if Bp != B:
        drug_dti = jnp.pad(drug_dti, ((0, Bp - B), (0, 0)))
        cell_exp = jnp.pad(cell_exp, ((0, Bp - B), (0, 0)))
    nb = Bp // bb

    bias_pack = _pack_biases(params)

    batch = lambda i: (i, 0)     # x / outputs tile over the batch axis
    const = lambda i: (0, 0)     # weights stay VMEM-resident across batch blocks

    weight_specs = [pl.BlockSpec(params[k].shape, const) for k in _W_NAMES]

    flops = 2 * Bp * (dti_dim * D_H1 + D_H1 * D_H2 + D_H2 * D_H3
                      + exp_dim * C_H1 + C_H1 * C_H2 + C_H2 * C_H3
                      + CAT_DIM * R_H1 + R_H1 * R_H2 + R_H2)
    bytes_accessed = (drug_dti.size * 4 + cell_exp.size * 4
                      + sum(int(params[k].size) for k in _W_NAMES) * 2
                      + bias_pack.size * 4 + 2 * Bp * 128 * 4)
    cost = pl.CostEstimate(flops=int(flops),
                           transcendentals=int(Bp * (R_H1 + R_H2)),
                           bytes_accessed=int(bytes_accessed))

    cell_out, y_pad = pl.pallas_call(
        dtlcdr_kernel,
        out_shape=(jax.ShapeDtypeStruct((Bp, C_H3), jnp.float32),
                   jax.ShapeDtypeStruct((Bp, 128), jnp.float32)),
        grid_spec=pltpu.PrefetchScalarGridSpec(
            num_scalar_prefetch=0,
            grid=(nb,),
            in_specs=[pl.BlockSpec((bb, dti_dim), batch),
                      pl.BlockSpec((bb, exp_dim), batch)]
                     + weight_specs
                     + [pl.BlockSpec((BIAS_ROWS, BIAS_LANES), const)],
            out_specs=[pl.BlockSpec((bb, C_H3), batch),
                       pl.BlockSpec((bb, 128), batch)],
        ),
        compiler_params=pltpu.CompilerParams(dimension_semantics=("parallel",)),
        cost_estimate=cost,
    )(drug_dti, cell_exp,
      params["wd1"], params["wd2"], params["wd3"],
      params["wc1"], params["wc2"], params["wc3"],
      params["wr1"], params["wr2"], params["wr3"],
      bias_pack)

    return cell_out[:B], y_pad[:B, :1]


def init_params(key, dti_dim, exp_dim):
    """Synthetic parameters. Weights [in,out] in bf16 (except the final 512->1 row,
    kept as an f32 [1,512] row for the VPU reduction); biases in f32."""
    dims = (("wd1", dti_dim, D_H1), ("wd2", D_H1, D_H2), ("wd3", D_H2, D_H3),
            ("wc1", exp_dim, C_H1), ("wc2", C_H1, C_H2), ("wc3", C_H2, C_H3),
            ("wr1", CAT_DIM, R_H1), ("wr2", R_H1, R_H2), ("wr3", R_H2, 1))
    keys = jax.random.split(key, 2 * len(dims))
    params = {}
    for i, (name, fi, fo) in enumerate(dims):
        bound = fi ** -0.5
        w = jax.random.uniform(keys[2 * i], (fi, fo), jnp.float32, -bound, bound)
        b = jax.random.uniform(keys[2 * i + 1], (fo,), jnp.float32, -bound, bound)
        if name == "wr3":
            params[name] = w.reshape(1, R_H2)           # f32 row for VPU mul+reduce
        else:
            params[name] = w.astype(jnp.bfloat16)
        params["b" + name[1:]] = b                       # bd1 ... br3
    return params


def reference_forward(drug_dti, cell_exp, p):
    """Pure-JAX reference with matching bf16-weight / f32-accumulate precision."""
    bf16 = jnp.bfloat16

    def lin_relu(x, w, b):
        h = jnp.dot(x.astype(bf16), w.astype(bf16),
                    preferred_element_type=jnp.float32) + b
        return jnp.maximum(h, 0.0)

    d = lin_relu(drug_dti, p["wd1"], p["bd1"])
    d = lin_relu(d, p["wd2"], p["bd2"])
    d = lin_relu(d, p["wd3"], p["bd3"])

    c = lin_relu(cell_exp, p["wc1"], p["bc1"])
    c = lin_relu(c, p["wc2"], p["bc2"])
    c = lin_relu(c, p["wc3"], p["bc3"])

    z = jnp.concatenate([d, c], axis=-1)
    r = _elu(jnp.dot(z.astype(bf16), p["wr1"].astype(bf16),
                     preferred_element_type=jnp.float32) + p["br1"])
    r = _elu(jnp.dot(r.astype(bf16), p["wr2"].astype(bf16),
                     preferred_element_type=jnp.float32) + p["br2"])
    y = jnp.sum(r * p["wr3"], axis=-1, keepdims=True) + p["br3"]
    return c, y


if __name__ == "__main__":
    key = jax.random.PRNGKey(0)
    k_dti, k_exp, k_p = jax.random.split(key, 3)

    # small test shapes consistent with the module (dti_dim / exp_dim are ctor args)
    B = 4
    DTI_DIM = 256
    EXP_DIM = 512

    drug_dti = jax.random.normal(k_dti, (B, DTI_DIM), jnp.float32)
    cell_exp = jax.random.normal(k_exp, (B, EXP_DIM), jnp.float32)
    params = init_params(k_p, DTI_DIM, EXP_DIM)

    # TODO(synk): Dropout layers are treated as identity (eval mode); training-mode
    # dropout would require the in-kernel PRNG (pltpu.prng_seed / stateful_bernoulli).
    cell_out, y = dtlcdr_cellexp_forward(drug_dti, cell_exp, params)
    cell_out, y = jax.block_until_ready((cell_out, y))

    ref_cell, ref_y = reference_forward(drug_dti, cell_exp, params)
    assert cell_out.shape == (B, C_H3) and y.shape == (B, 1)
    assert jnp.allclose(cell_out, ref_cell, atol=1e-2, rtol=1e-2), "cell_exp mismatch"
    assert jnp.allclose(y, ref_y, atol=1e-2, rtol=1e-2), "regression output mismatch"

    print("KERNEL_OK")
</pallas_src>

<mosaic_0001>
module attributes {stable_mosaic.version = 11 : i64} {
  func.func @dtlcdr_kernel(%arg0: i32, %arg1: memref<8x256xf32, #tpu.memory_space<vmem>>, %arg2: memref<8x512xf32, #tpu.memory_space<vmem>>, %arg3: memref<256x1024xbf16, #tpu.memory_space<vmem>>, %arg4: memref<1024x512xbf16, #tpu.memory_space<vmem>>, %arg5: memref<512x256xbf16, #tpu.memory_space<vmem>>, %arg6: memref<512x1024xbf16, #tpu.memory_space<vmem>>, %arg7: memref<1024x256xbf16, #tpu.memory_space<vmem>>, %arg8: memref<256x128xbf16, #tpu.memory_space<vmem>>, %arg9: memref<384x1024xbf16, #tpu.memory_space<vmem>>, %arg10: memref<1024x512xbf16, #tpu.memory_space<vmem>>, %arg11: memref<1x512xf32, #tpu.memory_space<vmem>>, %arg12: memref<16x1024xf32, #tpu.memory_space<vmem>>, %arg13: memref<8x128xf32, #tpu.memory_space<vmem>>, %arg14: memref<8x128xf32, #tpu.memory_space<vmem>>) attributes {dimension_semantics = [#tpu.dimension_semantics<parallel>], iteration_bounds = array<i64: 1>, scalar_prefetch = 0 : i64, scratch_operands = 0 : i64, tpu.core_type = #tpu.core_type<tc>, window_params = [{transform_indices = @transform_0, window_bounds = array<i64: 8, 256>}, {transform_indices = @transform_1, window_bounds = array<i64: 8, 512>}, {pipeline_mode = #tpu.pipeline_mode<synchronous>, transform_indices = @transform_2, window_bounds = array<i64: 256, 1024>}, {pipeline_mode = #tpu.pipeline_mode<synchronous>, transform_indices = @transform_3, window_bounds = array<i64: 1024, 512>}, {pipeline_mode = #tpu.pipeline_mode<synchronous>, transform_indices = @transform_4, window_bounds = array<i64: 512, 256>}, {pipeline_mode = #tpu.pipeline_mode<synchronous>, transform_indices = @transform_5, window_bounds = array<i64: 512, 1024>}, {pipeline_mode = #tpu.pipeline_mode<synchronous>, transform_indices = @transform_6, window_bounds = array<i64: 1024, 256>}, {pipeline_mode = #tpu.pipeline_mode<synchronous>, transform_indices = @transform_7, window_bounds = array<i64: 256, 128>}, {pipeline_mode = #tpu.pipeline_mode<synchronous>, transform_indices = @transform_8, window_bounds = array<i64: 384, 1024>}, {pipeline_mode = #tpu.pipeline_mode<synchronous>, transform_indices = @transform_9, window_bounds = array<i64: 1024, 512>}, {pipeline_mode = #tpu.pipeline_mode<synchronous>, transform_indices = @transform_10, window_bounds = array<i64: 1, 512>}, {pipeline_mode = #tpu.pipeline_mode<synchronous>, transform_indices = @transform_11, window_bounds = array<i64: 16, 1024>}, {transform_indices = @transform_12, window_bounds = array<i64: 8, 128>}, {transform_indices = @transform_13, window_bounds = array<i64: 8, 128>}]} {
    %c0 = arith.constant 0 : index
    %c0_0 = arith.constant 0 : index
    %0 = vector.load %arg12[%c0, %c0_0] : memref<16x1024xf32, #tpu.memory_space<vmem>>, vector<1x1024xf32>
    %c1 = arith.constant 1 : index
    %c0_1 = arith.constant 0 : index
    %1 = vector.load %arg12[%c1, %c0_1] : memref<16x1024xf32, #tpu.memory_space<vmem>>, vector<1x512xf32>
    %c2 = arith.constant 2 : index
    %c0_2 = arith.constant 0 : index
    %2 = vector.load %arg12[%c2, %c0_2] : memref<16x1024xf32, #tpu.memory_space<vmem>>, vector<1x256xf32>
    %c3 = arith.constant 3 : index
    %c0_3 = arith.constant 0 : index
    %3 = vector.load %arg12[%c3, %c0_3] : memref<16x1024xf32, #tpu.memory_space<vmem>>, vector<1x1024xf32>
    %c4 = arith.constant 4 : index
    %c0_4 = arith.constant 0 : index
    %4 = vector.load %arg12[%c4, %c0_4] : memref<16x1024xf32, #tpu.memory_space<vmem>>, vector<1x256xf32>
    %c5 = arith.constant 5 : index
    %c0_5 = arith.constant 0 : index
    %5 = vector.load %arg12[%c5, %c0_5] : memref<16x1024xf32, #tpu.memory_space<vmem>>, vector<1x128xf32>
    %c6 = arith.constant 6 : index
    %c0_6 = arith.constant 0 : index
    %6 = vector.load %arg12[%c6, %c0_6] : memref<16x1024xf32, #tpu.memory_space<vmem>>, vector<1x1024xf32>
    %c7 = arith.constant 7 : index
    %c0_7 = arith.constant 0 : index
    %7 = vector.load %arg12[%c7, %c0_7] : memref<16x1024xf32, #tpu.memory_space<vmem>>, vector<1x512xf32>
    %c8 = arith.constant 8 : index
    %c0_8 = arith.constant 0 : index
    %8 = vector.load %arg12[%c8, %c0_8] : memref<16x1024xf32, #tpu.memory_space<vmem>>, vector<1x1xf32>
    %c0_9 = arith.constant 0 : index
    %c0_10 = arith.constant 0 : index
    %9 = vector.load %arg1[%c0_9, %c0_10] : memref<8x256xf32, #tpu.memory_space<vmem>>, vector<8x256xf32>
    %10 = arith.truncf %9 : vector<8x256xf32> to vector<8x256xbf16>
    %c0_11 = arith.constant 0 : index
    %c0_12 = arith.constant 0 : index
    %11 = vector.load %arg3[%c0_11, %c0_12] : memref<256x1024xbf16, #tpu.memory_space<vmem>>, vector<256x1024xbf16>
    %cst = arith.constant dense<0.000000e+00> : vector<8x1024xf32>
    %12 = tpu.matmul %10, %11, %cst {dimension_numbers = #tpu.dot_dimension_numbers<[1], [0], [0], [1], [0, 0, 1, 1], [], []>} : vector<8x256xbf16>, vector<256x1024xbf16>, vector<8x1024xf32> -> vector<8x1024xf32>
    %13 = vector.broadcast %0 : vector<1x1024xf32> to vector<8x1024xf32>
    %14 = arith.addf %12, %13 : vector<8x1024xf32>
    %cst_13 = arith.constant 0.000000e+00 : f32
    %15 = vector.broadcast %cst_13 : f32 to vector<8x1024xf32>
    %16 = arith.maximumf %14, %15 : vector<8x1024xf32>
    %17 = arith.truncf %16 : vector<8x1024xf32> to vector<8x1024xbf16>
    %c0_14 = arith.constant 0 : index
    %c0_15 = arith.constant 0 : index
    %18 = vector.load %arg4[%c0_14, %c0_15] : memref<1024x512xbf16, #tpu.memory_space<vmem>>, vector<1024x512xbf16>
    %cst_16 = arith.constant dense<0.000000e+00> : vector<8x512xf32>
    %19 = tpu.matmul %17, %18, %cst_16 {dimension_numbers = #tpu.dot_dimension_numbers<[1], [0], [0], [1], [0, 0, 1, 1], [], []>} : vector<8x1024xbf16>, vector<1024x512xbf16>, vector<8x512xf32> -> vector<8x512xf32>
    %20 = vector.broadcast %1 : vector<1x512xf32> to vector<8x512xf32>
    %21 = arith.addf %19, %20 : vector<8x512xf32>
    %cst_17 = arith.constant 0.000000e+00 : f32
    %22 = vector.broadcast %cst_17 : f32 to vector<8x512xf32>
    %23 = arith.maximumf %21, %22 : vector<8x512xf32>
    %24 = arith.truncf %23 : vector<8x512xf32> to vector<8x512xbf16>
    %c0_18 = arith.constant 0 : index
    %c0_19 = arith.constant 0 : index
    %25 = vector.load %arg5[%c0_18, %c0_19] : memref<512x256xbf16, #tpu.memory_space<vmem>>, vector<512x256xbf16>
    %cst_20 = arith.constant dense<0.000000e+00> : vector<8x256xf32>
    %26 = tpu.matmul %24, %25, %cst_20 {dimension_numbers = #tpu.dot_dimension_numbers<[1], [0], [0], [1], [0, 0, 1, 1], [], []>} : vector<8x512xbf16>, vector<512x256xbf16>, vector<8x256xf32> -> vector<8x256xf32>
    %27 = vector.broadcast %2 : vector<1x256xf32> to vector<8x256xf32>
    %28 = arith.addf %26, %27 : vector<8x256xf32>
    %cst_21 = arith.constant 0.000000e+00 : f32
    %29 = vector.broadcast %cst_21 : f32 to vector<8x256xf32>
    %30 = arith.maximumf %28, %29 : vector<8x256xf32>
    %c0_22 = arith.constant 0 : index
    %c0_23 = arith.constant 0 : index
    %31 = vector.load %arg2[%c0_22, %c0_23] : memref<8x512xf32, #tpu.memory_space<vmem>>, vector<8x512xf32>
    %32 = arith.truncf %31 : vector<8x512xf32> to vector<8x512xbf16>
    %c0_24 = arith.constant 0 : index
    %c0_25 = arith.constant 0 : index
    %33 = vector.load %arg6[%c0_24, %c0_25] : memref<512x1024xbf16, #tpu.memory_space<vmem>>, vector<512x1024xbf16>
    %cst_26 = arith.constant dense<0.000000e+00> : vector<8x1024xf32>
    %34 = tpu.matmul %32, %33, %cst_26 {dimension_numbers = #tpu.dot_dimension_numbers<[1], [0], [0], [1], [0, 0, 1, 1], [], []>} : vector<8x512xbf16>, vector<512x1024xbf16>, vector<8x1024xf32> -> vector<8x1024xf32>
    %35 = vector.broadcast %3 : vector<1x1024xf32> to vector<8x1024xf32>
    %36 = arith.addf %34, %35 : vector<8x1024xf32>
    %cst_27 = arith.constant 0.000000e+00 : f32
    %37 = vector.broadcast %cst_27 : f32 to vector<8x1024xf32>
    %38 = arith.maximumf %36, %37 : vector<8x1024xf32>
    %39 = arith.truncf %38 : vector<8x1024xf32> to vector<8x1024xbf16>
    %c0_28 = arith.constant 0 : index
    %c0_29 = arith.constant 0 : index
    %40 = vector.load %arg7[%c0_28, %c0_29] : memref<1024x256xbf16, #tpu.memory_space<vmem>>, vector<1024x256xbf16>
    %cst_30 = arith.constant dense<0.000000e+00> : vector<8x256xf32>
    %41 = tpu.matmul %39, %40, %cst_30 {dimension_numbers = #tpu.dot_dimension_numbers<[1], [0], [0], [1], [0, 0, 1, 1], [], []>} : vector<8x1024xbf16>, vector<1024x256xbf16>, vector<8x256xf32> -> vector<8x256xf32>
    %42 = vector.broadcast %4 : vector<1x256xf32> to vector<8x256xf32>
    %43 = arith.addf %41, %42 : vector<8x256xf32>
    %cst_31 = arith.constant 0.000000e+00 : f32
    %44 = vector.broadcast %cst_31 : f32 to vector<8x256xf32>
    %45 = arith.maximumf %43, %44 : vector<8x256xf32>
    %46 = arith.truncf %45 : vector<8x256xf32> to vector<8x256xbf16>
    %c0_32 = arith.constant 0 : index
    %c0_33 = arith.constant 0 : index
    %47 = vector.load %arg8[%c0_32, %c0_33] : memref<256x128xbf16, #tpu.memory_space<vmem>>, vector<256x128xbf16>
    %cst_34 = arith.constant dense<0.000000e+00> : vector<8x128xf32>
    %48 = tpu.matmul %46, %47, %cst_34 {dimension_numbers = #tpu.dot_dimension_numbers<[1], [0], [0], [1], [0, 0, 1, 1], [], []>} : vector<8x256xbf16>, vector<256x128xbf16>, vector<8x128xf32> -> vector<8x128xf32>
    %49 = vector.broadcast %5 : vector<1x128xf32> to vector<8x128xf32>
    %50 = arith.addf %48, %49 : vector<8x128xf32>
    %cst_35 = arith.constant 0.000000e+00 : f32
    %51 = vector.broadcast %cst_35 : f32 to vector<8x128xf32>
    %52 = arith.maximumf %50, %51 : vector<8x128xf32>
    %c0_36 = arith.constant 0 : index
    %c0_37 = arith.constant 0 : index
    %53 = vector.load %arg13[%c0_36, %c0_37] : memref<8x128xf32, #tpu.memory_space<vmem>>, vector<8x128xf32>
    tpu.vector_store %arg13[%c0_36, %c0_37], %52 {strides = array<i32>} : memref<8x128xf32, #tpu.memory_space<vmem>>, vector<8x128xf32>,
    %54 = arith.truncf %30 : vector<8x256xf32> to vector<8x256xbf16>
    %c0_38 = arith.constant 0 : index
    %c0_39 = arith.constant 0 : index
    %55 = vector.load %arg9[%c0_38, %c0_39] : memref<384x1024xbf16, #tpu.memory_space<vmem>>, vector<256x1024xbf16>
    %cst_40 = arith.constant dense<0.000000e+00> : vector<8x1024xf32>
    %56 = tpu.matmul %54, %55, %cst_40 {dimension_numbers = #tpu.dot_dimension_numbers<[1], [0], [0], [1], [0, 0, 1, 1], [], []>} : vector<8x256xbf16>, vector<256x1024xbf16>, vector<8x1024xf32> -> vector<8x1024xf32>
    %57 = arith.truncf %52 : vector<8x128xf32> to vector<8x128xbf16>
    %c256 = arith.constant 256 : index
    %c0_41 = arith.constant 0 : index
    %58 = vector.load %arg9[%c256, %c0_41] : memref<384x1024xbf16, #tpu.memory_space<vmem>>, vector<128x1024xbf16>
    %cst_42 = arith.constant dense<0.000000e+00> : vector<8x1024xf32>
    %59 = tpu.matmul %57, %58, %cst_42 {dimension_numbers = #tpu.dot_dimension_numbers<[1], [0], [0], [1], [0, 0, 1, 1], [], []>} : vector<8x128xbf16>, vector<128x1024xbf16>, vector<8x1024xf32> -> vector<8x1024xf32>
    %60 = arith.addf %56, %59 : vector<8x1024xf32>
    %61 = vector.broadcast %6 : vector<1x1024xf32> to vector<8x1024xf32>
    %62 = arith.addf %60, %61 : vector<8x1024xf32>
    %cst_43 = arith.constant 0.000000e+00 : f32
    %63 = vector.broadcast %cst_43 : f32 to vector<8x1024xf32>
    %64 = arith.cmpf ogt, %62, %63 : vector<8x1024xf32>
    %cst_44 = arith.constant 0.000000e+00 : f32
    %65 = vector.broadcast %cst_44 : f32 to vector<8x1024xf32>
    %66 = arith.minimumf %62, %65 : vector<8x1024xf32>
    %67 = math.exp %66 : vector<8x1024xf32>
    %cst_45 = arith.constant 1.000000e+00 : f32
    %68 = vector.broadcast %cst_45 : f32 to vector<8x1024xf32>
    %69 = arith.subf %67, %68 : vector<8x1024xf32>
    %70 = arith.select %64, %62, %69 : vector<8x1024xi1>, vector<8x1024xf32>
    %71 = arith.truncf %70 : vector<8x1024xf32> to vector<8x1024xbf16>
    %c0_46 = arith.constant 0 : index
    %c0_47 = arith.constant 0 : index
    %72 = vector.load %arg10[%c0_46, %c0_47] : memref<1024x512xbf16, #tpu.memory_space<vmem>>, vector<1024x512xbf16>
    %cst_48 = arith.constant dense<0.000000e+00> : vector<8x512xf32>
    %73 = tpu.matmul %71, %72, %cst_48 {dimension_numbers = #tpu.dot_dimension_numbers<[1], [0], [0], [1], [0, 0, 1, 1], [], []>} : vector<8x1024xbf16>, vector<1024x512xbf16>, vector<8x512xf32> -> vector<8x512xf32>
    %74 = vector.broadcast %7 : vector<1x512xf32> to vector<8x512xf32>
    %75 = arith.addf %73, %74 : vector<8x512xf32>
    %cst_49 = arith.constant 0.000000e+00 : f32
    %76 = vector.broadcast %cst_49 : f32 to vector<8x512xf32>
    %77 = arith.cmpf ogt, %75, %76 : vector<8x512xf32>
    %cst_50 = arith.constant 0.000000e+00 : f32
    %78 = vector.broadcast %cst_50 : f32 to vector<8x512xf32>
    %79 = arith.minimumf %75, %78 : vector<8x512xf32>
    %80 = math.exp %79 : vector<8x512xf32>
    %cst_51 = arith.constant 1.000000e+00 : f32
    %81 = vector.broadcast %cst_51 : f32 to vector<8x512xf32>
    %82 = arith.subf %80, %81 : vector<8x512xf32>
    %83 = arith.select %77, %75, %82 : vector<8x512xi1>, vector<8x512xf32>
    %c0_52 = arith.constant 0 : index
    %c0_53 = arith.constant 0 : index
    %84 = vector.load %arg11[%c0_52, %c0_53] : memref<1x512xf32, #tpu.memory_space<vmem>>, vector<1x512xf32>
    %85 = vector.broadcast %84 : vector<1x512xf32> to vector<8x512xf32>
    %86 = arith.mulf %83, %85 : vector<8x512xf32>
    %cst_54 = arith.constant dense<0.000000e+00> : vector<8xf32>
    %87 = vector.multi_reduction <add>, %86, %cst_54 [1] : vector<8x512xf32> to vector<8xf32>
    %88 = vector.shape_cast %87 : vector<8xf32> to vector<8x1xf32>
    %89 = vector.broadcast %8 : vector<1x1xf32> to vector<8x1xf32>
    %90 = arith.addf %88, %89 : vector<8x1xf32>
    %91 = vector.shape_cast %90 : vector<8x1xf32> to vector<8x1xf32>
    %92 = vector.broadcast %91 : vector<8x1xf32> to vector<8x128xf32>
    %c0_55 = arith.constant 0 : index
    %c0_56 = arith.constant 0 : index
    %93 = vector.load %arg14[%c0_55, %c0_56] : memref<8x128xf32, #tpu.memory_space<vmem>>, vector<8x128xf32>
    tpu.vector_store %arg14[%c0_55, %c0_56], %92 {strides = array<i32>} : memref<8x128xf32, #tpu.memory_space<vmem>>, vector<8x128xf32>,
    return
  }
  func.func @transform_0(%arg0: i32) -> (i32, i32) {
    %c0_i32 = arith.constant 0 : i32
    %c0_i32_0 = arith.constant 0 : i32
    return %arg0, %c0_i32 : i32, i32
  }
  func.func @transform_1(%arg0: i32) -> (i32, i32) {
    %c0_i32 = arith.constant 0 : i32
    %c0_i32_0 = arith.constant 0 : i32
    return %arg0, %c0_i32 : i32, i32
  }
  func.func @transform_2(%arg0: i32) -> (i32, i32) {
    %c0_i32 = arith.constant 0 : i32
    %c0_i32_0 = arith.constant 0 : i32
    %c0_i32_1 = arith.constant 0 : i32
    return %c0_i32, %c0_i32_0 : i32, i32
  }
  func.func @transform_3(%arg0: i32) -> (i32, i32) {
    %c0_i32 = arith.constant 0 : i32
    %c0_i32_0 = arith.constant 0 : i32
    %c0_i32_1 = arith.constant 0 : i32
    return %c0_i32, %c0_i32_0 : i32, i32
  }
  func.func @transform_4(%arg0: i32) -> (i32, i32) {
    %c0_i32 = arith.constant 0 : i32
    %c0_i32_0 = arith.constant 0 : i32
    %c0_i32_1 = arith.constant 0 : i32
    return %c0_i32, %c0_i32_0 : i32, i32
  }
  func.func @transform_5(%arg0: i32) -> (i32, i32) {
    %c0_i32 = arith.constant 0 : i32
    %c0_i32_0 = arith.constant 0 : i32
    %c0_i32_1 = arith.constant 0 : i32
    return %c0_i32, %c0_i32_0 : i32, i32
  }
  func.func @transform_6(%arg0: i32) -> (i32, i32) {
    %c0_i32 = arith.constant 0 : i32
    %c0_i32_0 = arith.constant 0 : i32
    %c0_i32_1 = arith.constant 0 : i32
    return %c0_i32, %c0_i32_0 : i32, i32
  }
  func.func @transform_7(%arg0: i32) -> (i32, i32) {
    %c0_i32 = arith.constant 0 : i32
    %c0_i32_0 = arith.constant 0 : i32
    %c0_i32_1 = arith.constant 0 : i32
    return %c0_i32, %c0_i32_0 : i32, i32
  }
  func.func @transform_8(%arg0: i32) -> (i32, i32) {
    %c0_i32 = arith.constant 0 : i32
    %c0_i32_0 = arith.constant 0 : i32
    %c0_i32_1 = arith.constant 0 : i32
    return %c0_i32, %c0_i32_0 : i32, i32
  }
  func.func @transform_9(%arg0: i32) -> (i32, i32) {
    %c0_i32 = arith.constant 0 : i32
    %c0_i32_0 = arith.constant 0 : i32
    %c0_i32_1 = arith.constant 0 : i32
    return %c0_i32, %c0_i32_0 : i32, i32
  }
  func.func @transform_10(%arg0: i32) -> (i32, i32) {
    %c0_i32 = arith.constant 0 : i32
    %c0_i32_0 = arith.constant 0 : i32
    %c0_i32_1 = arith.constant 0 : i32
    return %c0_i32, %c0_i32_0 : i32, i32
  }
  func.func @transform_11(%arg0: i32) -> (i32, i32) {
    %c0_i32 = arith.constant 0 : i32
    %c0_i32_0 = arith.constant 0 : i32
    %c0_i32_1 = arith.constant 0 : i32
    return %c0_i32, %c0_i32_0 : i32, i32
  }
  func.func @transform_12(%arg0: i32) -> (i32, i32) {
    %c0_i32 = arith.constant 0 : i32
    %c0_i32_0 = arith.constant 0 : i32
    return %arg0, %c0_i32 : i32, i32
  }
  func.func @transform_13(%arg0: i32) -> (i32, i32) {
    %c0_i32 = arith.constant 0 : i32
    %c0_i32_0 = arith.constant 0 : i32
    return %arg0, %c0_i32 : i32, i32
  }
}

</mosaic_0001>

<llo_original>
// kernel: dtlcdr_cellexp_forward.1
$region0: #{dtlcdr_cellexp_forward.1}
  #allocation0 [shape = 'u32[]', space=smem, size = 0x4, offset = 0x4, fixed_abs, tag = 'smem constant byte address 0x4 - core index']
  #allocation1 [shape = 'u32[72,128]{1,0:T(1,128)}', space=vmem, size = 0x9000, scoped, tag = 'internal scratch']
  %s0 = inlined_call_operand.vmem [shape: f32[8,256], index: 0, kind: input, shape index: {}]
  %s1 = inlined_call_operand.vmem [shape: f32[8,512], index: 1, kind: input, shape index: {}]
  %s2 = inlined_call_operand.hbm [shape: bf16[256,1024], index: 2, kind: input, shape index: {}]
  %s3 = inlined_call_operand.hbm [shape: bf16[1024,512], index: 3, kind: input, shape index: {}]
  %s4 = inlined_call_operand.vmem [shape: bf16[512,256], index: 4, kind: input, shape index: {}]
  %s5 = inlined_call_operand.hbm [shape: bf16[512,1024], index: 5, kind: input, shape index: {}]
  %s6 = inlined_call_operand.hbm [shape: bf16[1024,256], index: 6, kind: input, shape index: {}]
  %s7 = inlined_call_operand.hbm [shape: bf16[256,128], index: 7, kind: input, shape index: {}]
  %s8 = inlined_call_operand.hbm [shape: bf16[384,1024], index: 8, kind: input, shape index: {}]
  %s9 = inlined_call_operand.hbm [shape: bf16[1024,512], index: 9, kind: input, shape index: {}]
  %s10 = inlined_call_operand.vmem [shape: f32[1,512], index: 10, kind: input, shape index: {}]
  %s11 = inlined_call_operand.vmem [shape: f32[16,1024], index: 11, kind: input, shape index: {}]
  %s12 = inlined_call_operand.vmem [shape: f32[8,128], index: 12, kind: output, shape index: {0}]
  %s13 = inlined_call_operand.vmem [shape: f32[8,128], index: 13, kind: output, shape index: {1}]
  %14 = xla_tuple %s12, %s13
  %s15 = sld [smem:[#allocation0]]
  $region94: #{dtlcdr_cellexp_forward.1} parent=0
    _
  %s17 = ssub.s32 1, %s15
  %s18 = scalar_select 0, %s17, %s15
  $region1: #{dtlcdr_cellexp_forward.1} parent=0
    #allocation2 [shape = 'u8[524288]{0}', space=vmem, size = 0x80000, scoped, tag = 'input window, operand 2, single buffered']
    #allocation3 [shape = 's32[1]{0}', space=sflag, size = 0x4, scoped, tag = 'scoped memory for dtlcdr_cellexp_forward.1']
    #allocation4 [shape = 'u8[1048576]{0}', space=vmem, size = 0x100000, scoped, tag = 'input window, operand 3, single buffered']
    #allocation5 [shape = 's32[1]{0}', space=sflag, size = 0x4, scoped, tag = 'scoped memory for dtlcdr_cellexp_forward.1']
    #allocation6 [shape = 'u8[1048576]{0}', space=vmem, size = 0x100000, scoped, tag = 'input window, operand 5, single buffered']
    #allocation7 [shape = 'u8[524288]{0}', space=vmem, size = 0x80000, scoped, tag = 'input window, operand 6, single buffered']
    #allocation8 [shape = 's32[1]{0}', space=sflag, size = 0x4, scoped, tag = 'scoped memory for dtlcdr_cellexp_forward.1']
    #allocation9 [shape = 'u8[65536]{0}', space=vmem, size = 0x10000, scoped, tag = 'input window, operand 7, single buffered']
    #allocation10 [shape = 'u8[786432]{0}', space=vmem, size = 0xc0000, scoped, tag = 'input window, operand 8, single buffered']
    #allocation11 [shape = 's32[1]{0}', space=sflag, size = 0x4, scoped, tag = 'scoped memory for dtlcdr_cellexp_forward.1']
    #allocation12 [shape = 'u8[1048576]{0}', space=vmem, size = 0x100000, scoped, tag = 'input window, operand 9, single buffered']
    %19 = vsyncpa [#allocation3], 0
    %20 = vsyncpa [#allocation5], 0
    %21 = vsyncpa [#allocation8], 0
    %22 = vsyncpa [#allocation11], 0
    // Predicated region
    $region2: #{dtlcdr_cellexp_forward.1} parent=1 // pred_check
      _
    $region3: #{dtlcdr_cellexp_forward.1} parent=1 // pred_check_branch
      %24 = sbr.rel (0) target = $region5
    $region4: #{dtlcdr_cellexp_forward.1} parent=1 // pred_region
      _
    $region5: #{dtlcdr_cellexp_forward.1} parent=1 // pred_fallthru
      _
    // Predicated region
    $region6: #{dtlcdr_cellexp_forward.1} parent=1 // pred_check
      _
    $region7: #{dtlcdr_cellexp_forward.1} parent=1 // pred_check_branch
      %26 = sbr.rel (0) target = $region9
    $region8: #{dtlcdr_cellexp_forward.1} parent=1 // pred_region
      _
    $region9: #{dtlcdr_cellexp_forward.1} parent=1 // pred_fallthru
      _
    // Predicated region
    $region10: #{dtlcdr_cellexp_forward.1} parent=1 // pred_check
      _
    $region11: #{dtlcdr_cellexp_forward.1} parent=1 // pred_check_branch
      %28 = sbr.rel (0) target = $region13
    $region12: #{dtlcdr_cellexp_forward.1} parent=1 // pred_region
      %30 = vsyncadd [#allocation3], 0
      %s31 = sshll.u32 %s2, 4
      %s32 = int_to_ptr.hbm [resolvable:$true] %s31
      %s33 = sshll.u32 [#allocation2], 4
      %s34 = int_to_ptr.vmem [resolvable:$true] %s33
      %39 = dma.hbm_to_vmem [thread:$0]  %s32, 16384, %s34, [#allocation3], 512, 512, 32
    $region13: #{dtlcdr_cellexp_forward.1} parent=1 // pred_fallthru
      _
    // Predicated region
    $region14: #{dtlcdr_cellexp_forward.1} parent=1 // pred_check
      _
    $region15: #{dtlcdr_cellexp_forward.1} parent=1 // pred_check_branch
      %41 = sbr.rel (0) target = $region17
    $region16: #{dtlcdr_cellexp_forward.1} parent=1 // pred_region
      %43 = vsyncadd [#allocation5], 0
      %s44 = sshll.u32 %s3, 4
      %s45 = int_to_ptr.hbm [resolvable:$true] %s44
      %s46 = sshll.u32 [#allocation4], 4
      %s47 = int_to_ptr.vmem [resolvable:$true] %s46
      %52 = dma.hbm_to_vmem [thread:$0]  %s45, 32768, %s47, [#allocation5], 256, 256, 16
    $region17: #{dtlcdr_cellexp_forward.1} parent=1 // pred_fallthru
      _
    // Predicated region
    $region18: #{dtlcdr_cellexp_forward.1} parent=1 // pred_check
      _
    $region19: #{dtlcdr_cellexp_forward.1} parent=1 // pred_check_branch
      %54 = sbr.rel (0) target = $region21
    $region20: #{dtlcdr_cellexp_forward.1} parent=1 // pred_region
      _
    $region21: #{dtlcdr_cellexp_forward.1} parent=1 // pred_fallthru
      _
    // Predicated region
    $region22: #{dtlcdr_cellexp_forward.1} parent=1 // pred_check
      _
    $region23: #{dtlcdr_cellexp_forward.1} parent=1 // pred_check_branch
      %56 = sbr.rel (0) target = $region25
    $region24: #{dtlcdr_cellexp_forward.1} parent=1 // pred_region
      %58 = vsyncadd [#allocation5], 0
      %s59 = sshll.u32 %s5, 4
      %s60 = int_to_ptr.hbm [resolvable:$true] %s59
      %s61 = sshll.u32 [#allocation6], 4
      %s62 = int_to_ptr.vmem [resolvable:$true] %s61
      %67 = dma.hbm_to_vmem [thread:$0]  %s60, 32768, %s62, [#allocation5], 512, 512, 32
    $region25: #{dtlcdr_cellexp_forward.1} parent=1 // pred_fallthru
      _
    // Predicated region
    $region26: #{dtlcdr_cellexp_forward.1} parent=1 // pred_check
      _
    $region27: #{dtlcdr_cellexp_forward.1} parent=1 // pred_check_branch
      %69 = sbr.rel (0) target = $region29
    $region28: #{dtlcdr_cellexp_forward.1} parent=1 // pred_region
      %71 = vsyncadd [#allocation8], 0
      %s72 = sshll.u32 %s6, 4
      %s73 = int_to_ptr.hbm [resolvable:$true] %s72
      %s74 = sshll.u32 [#allocation7], 4
      %s75 = int_to_ptr.vmem [resolvable:$true] %s74
      %80 = dma.hbm_to_vmem [thread:$0]  %s73, 16384, %s75, [#allocation8], 128, 128, 8
    $region29: #{dtlcdr_cellexp_forward.1} parent=1 // pred_fallthru
      _
    // Predicated region
    $region30: #{dtlcdr_cellexp_forward.1} parent=1 // pred_check
      _
    $region31: #{dtlcdr_cellexp_forward.1} parent=1 // pred_check_branch
      %82 = sbr.rel (0) target = $region33
    $region32: #{dtlcdr_cellexp_forward.1} parent=1 // pred_region
      %84 = vsyncadd [#allocation8], 0
      %s85 = sshll.u32 %s7, 4
      %s86 = int_to_ptr.hbm [resolvable:$true] %s85
      %s87 = sshll.u32 [#allocation9], 4
      %s88 = int_to_ptr.vmem [resolvable:$true] %s87
      %93 = dma.hbm_to_vmem [thread:$0]  %s86, 2048, %s88, [#allocation8], 64, 64, 4
    $region33: #{dtlcdr_cellexp_forward.1} parent=1 // pred_fallthru
      _
    // Predicated region
    $region34: #{dtlcdr_cellexp_forward.1} parent=1 // pred_check
      _
    $region35: #{dtlcdr_cellexp_forward.1} parent=1 // pred_check_branch
      %95 = sbr.rel (0) target = $region37
    $region36: #{dtlcdr_cellexp_forward.1} parent=1 // pred_region
      %97 = vsyncadd [#allocation11], 0
      %s98 = sshll.u32 %s8, 4
      %s99 = int_to_ptr.hbm [resolvable:$true] %s98
      %s100 = sshll.u32 [#allocation10], 4
      %s101 = int_to_ptr.vmem [resolvable:$true] %s100
      %106 = dma.hbm_to_vmem [thread:$0]  %s99, 24576, %s101, [#allocation11], 512, 512, 32
    $region37: #{dtlcdr_cellexp_forward.1} parent=1 // pred_fallthru
      _
    // Predicated region
    $region38: #{dtlcdr_cellexp_forward.1} parent=1 // pred_check
      _
    $region39: #{dtlcdr_cellexp_forward.1} parent=1 // pred_check_branch
      %108 = sbr.rel (0) target = $region41
    $region40: #{dtlcdr_cellexp_forward.1} parent=1 // pred_region
      %110 = vsyncadd [#allocation11], 0
      %s111 = sshll.u32 %s9, 4
      %s112 = int_to_ptr.hbm [resolvable:$true] %s111
      %s113 = sshll.u32 [#allocation12], 4
      %s114 = int_to_ptr.vmem [resolvable:$true] %s113
      %119 = dma.hbm_to_vmem [thread:$0]  %s112, 32768, %s114, [#allocation11], 256, 256, 16
    $region41: #{dtlcdr_cellexp_forward.1} parent=1 // pred_fallthru
      _
    // Predicated region
    $region42: #{dtlcdr_cellexp_forward.1} parent=1 // pred_check
      _
    $region43: #{dtlcdr_cellexp_forward.1} parent=1 // pred_check_branch
      %121 = sbr.rel (0) target = $region45
    $region44: #{dtlcdr_cellexp_forward.1} parent=1 // pred_region
      _
    $region45: #{dtlcdr_cellexp_forward.1} parent=1 // pred_fallthru
      _
    // Predicated region
    $region46: #{dtlcdr_cellexp_forward.1} parent=1 // pred_check
      _
    $region47: #{dtlcdr_cellexp_forward.1} parent=1 // pred_check_branch
      %123 = sbr.rel (0) target = $region49
    $region48: #{dtlcdr_cellexp_forward.1} parent=1 // pred_region
      _
    $region49: #{dtlcdr_cellexp_forward.1} parent=1 // pred_fallthru
      _
    // Predicated region
    $region50: #{dtlcdr_cellexp_forward.1} parent=1 // pred_check
      _
    $region51: #{dtlcdr_cellexp_forward.1} parent=1 // pred_check_branch
      %125 = sbr.rel (0) target = $region53
    $region52: #{dtlcdr_cellexp_forward.1} parent=1 // pred_region
      %127 = dma.done [#allocation3], 16384
    $region53: #{dtlcdr_cellexp_forward.1} parent=1 // pred_fallthru
      _
    // Predicated region
    $region54: #{dtlcdr_cellexp_forward.1} parent=1 // pred_check
      _
    $region55: #{dtlcdr_cellexp_forward.1} parent=1 // pred_check_branch
      %129 = sbr.rel (0) target = $region57
    $region56: #{dtlcdr_cellexp_forward.1} parent=1 // pred_region
      %131 = dma.done [#allocation5], 32768
    $region57: #{dtlcdr_cellexp_forward.1} parent=1 // pred_fallthru
      _
    // Predicated region
    $region58: #{dtlcdr_cellexp_forward.1} parent=1 // pred_check
      _
    $region59: #{dtlcdr_cellexp_forward.1} parent=1 // pred_check_branch
      %133 = sbr.rel (0) target = $region61
    $region60: #{dtlcdr_cellexp_forward.1} parent=1 // pred_region
      %135 = dma.done [#allocation5], 32768
    $region61: #{dtlcdr_cellexp_forward.1} parent=1 // pred_fallthru
      _
    // Predicated region
    $region62: #{dtlcdr_cellexp_forward.1} parent=1 // pred_check
      _
    $region63: #{dtlcdr_cellexp_forward.1} parent=1 // pred_check_branch
      %137 = sbr.rel (0) target = $region65
    $region64: #{dtlcdr_cellexp_forward.1} parent=1 // pred_region
      %139 = dma.done [#allocation8], 16384
    $region65: #{dtlcdr_cellexp_forward.1} parent=1 // pred_fallthru
      _
    // Predicated region
    $region66: #{dtlcdr_cellexp_forward.1} parent=1 // pred_check
      _
    $region67: #{dtlcdr_cellexp_forward.1} parent=1 // pred_check_branch
      %141 = sbr.rel (0) target = $region69
    $region68: #{dtlcdr_cellexp_forward.1} parent=1 // pred_region
      %143 = dma.done [#allocation8], 2048
    $region69: #{dtlcdr_cellexp_forward.1} parent=1 // pred_fallthru
      _
    // Predicated region
    $region70: #{dtlcdr_cellexp_forward.1} parent=1 // pred_check
      _
    $region71: #{dtlcdr_cellexp_forward.1} parent=1 // pred_check_branch
      %145 = sbr.rel (0) target = $region73
    $region72: #{dtlcdr_cellexp_forward.1} parent=1 // pred_region
      %147 = dma.done [#allocation11], 24576
    $region73: #{dtlcdr_cellexp_forward.1} parent=1 // pred_fallthru
      _
    // Predicated region
    $region74: #{dtlcdr_cellexp_forward.1} parent=1 // pred_check
      _
    $region75: #{dtlcdr_cellexp_forward.1} parent=1 // pred_check_branch
      %149 = sbr.rel (0) target = $region77
    $region76: #{dtlcdr_cellexp_forward.1} parent=1 // pred_region
      %151 = dma.done [#allocation11], 32768
    $region77: #{dtlcdr_cellexp_forward.1} parent=1 // pred_fallthru
      _
    %v152 = vld [vmem:[%s11] ss:$8 sm:$0xf]
    %v153 = vld [vmem:[%s11] ss:$8 sm:$0xf0]
    %v154 = vor.u32 %v152, %v153
    %s155 = scalar_lea.vmem %s11, 1
    %v156 = vld [vmem:[%s155] ss:$8 sm:$0xf]
    %s157 = scalar_lea.vmem %s11, 2
    %v158 = vld [vmem:[%s157] ss:$8 sm:$0x3]
    %s159 = scalar_lea.vmem %s11, 3
    %v160 = vld [vmem:[%s159] ss:$8 sm:$0xf]
    %v161 = vld [vmem:[%s159] ss:$8 sm:$0xf0]
    %v162 = vor.u32 %v160, %v161
    %s163 = scalar_lea.vmem %s11, 4
    %v164 = vld [vmem:[%s163] ss:$8 sm:$0x3]
    %v165 = vld [vmem:[%s11 + $0x5] ss:$0 sm:$0xff]
    %s166 = scalar_lea.vmem %s11, 6
    %v167 = vld [vmem:[%s166] ss:$8 sm:$0xf]
    %v168 = vld [vmem:[%s166] ss:$8 sm:$0xf0]
    %v169 = vor.u32 %v167, %v168
    %s170 = scalar_lea.vmem %s11, 7
    %v171 = vld [vmem:[%s170] ss:$8 sm:$0xf]
    %v172 = vld [vmem:[%s11 + $0x40] ss:$0 sm:$0xff]
    %v173 = vld [vmem:[%s0] sm:$0xff]
    %v174 = vld [vmem:[%s0 + $0x8] sm:$0xff]
    %v175 = vpack.c.bf16 %v173, %v173
    %v176 = vpack.c.bf16 %v174, %v174
    %v177 = vld [vmem:[#allocation2] sm:$0xff]
    %v178 = vld [vmem:[#allocation2 + $0x8] sm:$0xff]
    %v179 = vld [vmem:[#allocation2 + $0x10] sm:$0xff]
    %v180 = vld [vmem:[#allocation2 + $0x18] sm:$0xff]
    %v181 = vld [vmem:[#allocation2 + $0x20] sm:$0xff]
    %v182 = vld [vmem:[#allocation2 + $0x28] sm:$0xff]
    %v183 = vld [vmem:[#allocation2 + $0x30] sm:$0xff]
    %v184 = vld [vmem:[#allocation2 + $0x38] sm:$0xff]
    %v185 = vld [vmem:[#allocation2 + $0x40] sm:$0xff]
    %v186 = vld [vmem:[#allocation2 + $0x48] sm:$0xff]
    %v187 = vld [vmem:[#allocation2 + $0x50] sm:$0xff]
    %v188 = vld [vmem:[#allocation2 + $0x58] sm:$0xff]
    %v189 = vld [vmem:[#allocation2 + $0x60] sm:$0xff]
    %v190 = vld [vmem:[#allocation2 + $0x68] sm:$0xff]
    %v191 = vld [vmem:[#allocation2 + $0x70] sm:$0xff]
    %v192 = vld [vmem:[#allocation2 + $0x78] sm:$0xff]
    %v193 = vld [vmem:[#allocation2 + $0x80] sm:$0xff]
    %v194 = vld [vmem:[#allocation2 + $0x88] sm:$0xff]
    %v195 = vld [vmem:[#allocation2 + $0x90] sm:$0xff]
    %v196 = vld [vmem:[#allocation2 + $0x98] sm:$0xff]
    %v197 = vld [vmem:[#allocation2 + $0xa0] sm:$0xff]
    %v198 = vld [vmem:[#allocation2 + $0xa8] sm:$0xff]
    %v199 = vld [vmem:[#allocation2 + $0xb0] sm:$0xff]
    %v200 = vld [vmem:[#allocation2 + $0xb8] sm:$0xff]
    %v201 = vld [vmem:[#allocation2 + $0xc0] sm:$0xff]
    %v202 = vld [vmem:[#allocation2 + $0xc8] sm:$0xff]
    %v203 = vld [vmem:[#allocation2 + $0xd0] sm:$0xff]
    %v204 = vld [vmem:[#allocation2 + $0xd8] sm:$0xff]
    %v205 = vld [vmem:[#allocation2 + $0xe0] sm:$0xff]
    %v206 = vld [vmem:[#allocation2 + $0xe8] sm:$0xff]
    %v207 = vld [vmem:[#allocation2 + $0xf0] sm:$0xff]
    %v208 = vld [vmem:[#allocation2 + $0xf8] sm:$0xff]
    %v209 = vld [vmem:[#allocation2 + $0x100] sm:$0xff]
    %v210 = vld [vmem:[#allocation2 + $0x108] sm:$0xff]
    %v211 = vld [vmem:[#allocation2 + $0x110] sm:$0xff]
    %v212 = vld [vmem:[#allocation2 + $0x118] sm:$0xff]
    %v213 = vld [vmem:[#allocation2 + $0x120] sm:$0xff]
    %v214 = vld [vmem:[#allocation2 + $0x128] sm:$0xff]
    %v215 = vld [vmem:[#allocation2 + $0x130] sm:$0xff]
    %v216 = vld [vmem:[#allocation2 + $0x138] sm:$0xff]
    %v217 = vld [vmem:[#allocation2 + $0x140] sm:$0xff]
    %v218 = vld [vmem:[#allocation2 + $0x148] sm:$0xff]
    %v219 = vld [vmem:[#allocation2 + $0x150] sm:$0xff]
    %v220 = vld [vmem:[#allocation2 + $0x158] sm:$0xff]
    %v221 = vld [vmem:[#allocation2 + $0x160] sm:$0xff]
    %v222 = vld [vmem:[#allocation2 + $0x168] sm:$0xff]
    %v223 = vld [vmem:[#allocation2 + $0x170] sm:$0xff]
    %v224 = vld [vmem:[#allocation2 + $0x178] sm:$0xff]
    %v225 = vld [vmem:[#allocation2 + $0x180] sm:$0xff]
    %v226 = vld [vmem:[#allocation2 + $0x188] sm:$0xff]
    %v227 = vld [vmem:[#allocation2 + $0x190] sm:$0xff]
    %v228 = vld [vmem:[#allocation2 + $0x198] sm:$0xff]
    %v229 = vld [vmem:[#allocation2 + $0x1a0] sm:$0xff]
    %v230 = vld [vmem:[#allocation2 + $0x1a8] sm:$0xff]
    %v231 = vld [vmem:[#allocation2 + $0x1b0] sm:$0xff]
    %v232 = vld [vmem:[#allocation2 + $0x1b8] sm:$0xff]
    %v233 = vld [vmem:[#allocation2 + $0x1c0] sm:$0xff]
    %v234 = vld [vmem:[#allocation2 + $0x1c8] sm:$0xff]
    %v235 = vld [vmem:[#allocation2 + $0x1d0] sm:$0xff]
    %v236 = vld [vmem:[#allocation2 + $0x1d8] sm:$0xff]
    %v237 = vld [vmem:[#allocation2 + $0x1e0] sm:$0xff]
    %v238 = vld [vmem:[#allocation2 + $0x1e8] sm:$0xff]
    %v239 = vld [vmem:[#allocation2 + $0x1f0] sm:$0xff]
    %v240 = vld [vmem:[#allocation2 + $0x1f8] sm:$0xff]
    %v241 = vld [vmem:[#allocation2 + $0x200] sm:$0xff]
    %v242 = vld [vmem:[#allocation2 + $0x208] sm:$0xff]
    %v243 = vld [vmem:[#allocation2 + $0x210] sm:$0xff]
    %v244 = vld [vmem:[#allocation2 + $0x218] sm:$0xff]
    %v245 = vld [vmem:[#allocation2 + $0x220] sm:$0xff]
    %v246 = vld [vmem:[#allocation2 + $0x228] sm:$0xff]
    %v247 = vld [vmem:[#allocation2 + $0x230] sm:$0xff]
    %v248 = vld [vmem:[#allocation2 + $0x238] sm:$0xff]
    %v249 = vld [vmem:[#allocation2 + $0x240] sm:$0xff]
    %v250 = vld [vmem:[#allocation2 + $0x248] sm:$0xff]
    %v251 = vld [vmem:[#allocation2 + $0x250] sm:$0xff]
    %v252 = vld [vmem:[#allocation2 + $0x258] sm:$0xff]
    %v253 = vld [vmem:[#allocation2 + $0x260] sm:$0xff]
    %v254 = vld [vmem:[#allocation2 + $0x268] sm:$0xff]
    %v255 = vld [vmem:[#allocation2 + $0x270] sm:$0xff]
    %v256 = vld [vmem:[#allocation2 + $0x278] sm:$0xff]
    %v257 = vld [vmem:[#allocation2 + $0x280] sm:$0xff]
    %v258 = vld [vmem:[#allocation2 + $0x288] sm:$0xff]
    %v259 = vld [vmem:[#allocation2 + $0x290] sm:$0xff]
    %v260 = vld [vmem:[#allocation2 + $0x298] sm:$0xff]
    %v261 = vld [vmem:[#allocation2 + $0x2a0] sm:$0xff]
    %v262 = vld [vmem:[#allocation2 + $0x2a8] sm:$0xff]
    %v263 = vld [vmem:[#allocation2 + $0x2b0] sm:$0xff]
    %v264 = vld [vmem:[#allocation2 + $0x2b8] sm:$0xff]
    %v265 = vld [vmem:[#allocation2 + $0x2c0] sm:$0xff]
    %v266 = vld [vmem:[#allocation2 + $0x2c8] sm:$0xff]
    %v267 = vld [vmem:[#allocation2 + $0x2d0] sm:$0xff]
    %v268 = vld [vmem:[#allocation2 + $0x2d8] sm:$0xff]
    %v269 = vld [vmem:[#allocation2 + $0x2e0] sm:$0xff]
    %v270 = vld [vmem:[#allocation2 + $0x2e8] sm:$0xff]
    %v271 = vld [vmem:[#allocation2 + $0x2f0] sm:$0xff]
    %v272 = vld [vmem:[#allocation2 + $0x2f8] sm:$0xff]
    %v273 = vld [vmem:[#allocation2 + $0x300] sm:$0xff]
    %v274 = vld [vmem:[#allocation2 + $0x308] sm:$0xff]
    %v275 = vld [vmem:[#allocation2 + $0x310] sm:$0xff]
    %v276 = vld [vmem:[#allocation2 + $0x318] sm:$0xff]
    %v277 = vld [vmem:[#allocation2 + $0x320] sm:$0xff]
    %v278 = vld [vmem:[#allocation2 + $0x328] sm:$0xff]
    %v279 = vld [vmem:[#allocation2 + $0x330] sm:$0xff]
    %v280 = vld [vmem:[#allocation2 + $0x338] sm:$0xff]
    %v281 = vld [vmem:[#allocation2 + $0x340] sm:$0xff]
    %v282 = vld [vmem:[#allocation2 + $0x348] sm:$0xff]
    %v283 = vld [vmem:[#allocation2 + $0x350] sm:$0xff]
    %v284 = vld [vmem:[#allocation2 + $0x358] sm:$0xff]
    %v285 = vld [vmem:[#allocation2 + $0x360] sm:$0xff]
    %v286 = vld [vmem:[#allocation2 + $0x368] sm:$0xff]
    %v287 = vld [vmem:[#allocation2 + $0x370] sm:$0xff]
    %v288 = vld [vmem:[#allocation2 + $0x378] sm:$0xff]
    %v289 = vld [vmem:[#allocation2 + $0x380] sm:$0xff]
    %v290 = vld [vmem:[#allocation2 + $0x388] sm:$0xff]
    %v291 = vld [vmem:[#allocation2 + $0x390] sm:$0xff]
    %v292 = vld [vmem:[#allocation2 + $0x398] sm:$0xff]
    %v293 = vld [vmem:[#allocation2 + $0x3a0] sm:$0xff]
    %v294 = vld [vmem:[#allocation2 + $0x3a8] sm:$0xff]
    %v295 = vld [vmem:[#allocation2 + $0x3b0] sm:$0xff]
    %v296 = vld [vmem:[#allocation2 + $0x3b8] sm:$0xff]
    %v297 = vld [vmem:[#allocation2 + $0x3c0] sm:$0xff]
    %v298 = vld [vmem:[#allocation2 + $0x3c8] sm:$0xff]
    %v299 = vld [vmem:[#allocation2 + $0x3d0] sm:$0xff]
    %v300 = vld [vmem:[#allocation2 + $0x3d8] sm:$0xff]
    %v301 = vld [vmem:[#allocation2 + $0x3e0] sm:$0xff]
    %v302 = vld [vmem:[#allocation2 + $0x3e8] sm:$0xff]
    %v303 = vld [vmem:[#allocation2 + $0x3f0] sm:$0xff]
    %v304 = vld [vmem:[#allocation2 + $0x3f8] sm:$0xff]
    %v306 = vperm.slane %v154, 0
    %v307 = vperm.slane %v154, 1
    %v308 = vperm.slane %v154, 2
    %v309 = vperm.slane %v154, 3
    %v310 = vperm.slane %v154, 4
    %v311 = vperm.slane %v154, 5
    %v312 = vperm.slane %v154, 6
    %v313 = vperm.slane %v154, 7
    %v450 = vunpack.c.l.b16 %v177
    %v451 = vunpack.c.h.b16 %v177
    %v452 = vunpack.c.l.b16 %v178
    %v453 = vunpack.c.h.b16 %v178
    %v454 = vunpack.c.l.b16 %v179
    %v455 = vunpack.c.h.b16 %v179
    %v456 = vunpack.c.l.b16 %v180
    %v457 = vunpack.c.h.b16 %v180
    %v458 = vunpack.c.l.b16 %v181
    %v459 = vunpack.c.h.b16 %v181
    %v460 = vunpack.c.l.b16 %v182
    %v461 = vunpack.c.h.b16 %v182
    %v462 = vunpack.c.l.b16 %v183
    %v463 = vunpack.c.h.b16 %v183
    %v464 = vunpack.c.l.b16 %v184
    %v465 = vunpack.c.h.b16 %v184
    %v466 = vunpack.c.l.b16 %v185
    %v467 = vunpack.c.h.b16 %v185
    %v468 = vunpack.c.l.b16 %v186
    %v469 = vunpack.c.h.b16 %v186
    %v470 = vunpack.c.l.b16 %v187
    %v471 = vunpack.c.h.b16 %v187
    %v472 = vunpack.c.l.b16 %v188
    %v473 = vunpack.c.h.b16 %v188
    %v474 = vunpack.c.l.b16 %v189
    %v475 = vunpack.c.h.b16 %v189
    %v476 = vunpack.c.l.b16 %v190
    %v477 = vunpack.c.h.b16 %v190
    %v478 = vunpack.c.l.b16 %v191
    %v479 = vunpack.c.h.b16 %v191
    %v480 = vunpack.c.l.b16 %v192
    %v481 = vunpack.c.h.b16 %v192
    %v482 = vunpack.c.l.b16 %v193
    %v483 = vunpack.c.h.b16 %v193
    %v484 = vunpack.c.l.b16 %v194
    %v485 = vunpack.c.h.b16 %v194
    %v486 = vunpack.c.l.b16 %v195
    %v487 = vunpack.c.h.b16 %v195
    %v488 = vunpack.c.l.b16 %v196
    %v489 = vunpack.c.h.b16 %v196
    %v490 = vunpack.c.l.b16 %v197
    %v491 = vunpack.c.h.b16 %v197
    %v492 = vunpack.c.l.b16 %v198
    %v493 = vunpack.c.h.b16 %v198
    %v494 = vunpack.c.l.b16 %v199
    %v495 = vunpack.c.h.b16 %v199
    %v496 = vunpack.c.l.b16 %v200
    %v497 = vunpack.c.h.b16 %v200
    %v498 = vunpack.c.l.b16 %v201
    %v499 = vunpack.c.h.b16 %v201
    %v500 = vunpack.c.l.b16 %v202
    %v501 = vunpack.c.h.b16 %v202
    %v502 = vunpack.c.l.b16 %v203
    %v503 = vunpack.c.h.b16 %v203
    %v504 = vunpack.c.l.b16 %v204
    %v505 = vunpack.c.h.b16 %v204
    %v506 = vunpack.c.l.b16 %v205
    %v507 = vunpack.c.h.b16 %v205
    %v508 = vunpack.c.l.b16 %v206
    %v509 = vunpack.c.h.b16 %v206
    %v510 = vunpack.c.l.b16 %v207
    %v511 = vunpack.c.h.b16 %v207
    %v512 = vunpack.c.l.b16 %v208
    %v513 = vunpack.c.h.b16 %v208
    %v514 = vunpack.c.l.b16 %v209
    %v515 = vunpack.c.h.b16 %v209
    %v516 = vunpack.c.l.b16 %v210
    %v517 = vunpack.c.h.b16 %v210
    %v518 = vunpack.c.l.b16 %v211
    %v519 = vunpack.c.h.b16 %v211
    %v520 = vunpack.c.l.b16 %v212
    %v521 = vunpack.c.h.b16 %v212
    %v522 = vunpack.c.l.b16 %v213
    %v523 = vunpack.c.h.b16 %v213
    %v524 = vunpack.c.l.b16 %v214
    %v525 = vunpack.c.h.b16 %v214
    %v526 = vunpack.c.l.b16 %v215
    %v527 = vunpack.c.h.b16 %v215
    %v528 = vunpack.c.l.b16 %v216
    %v529 = vunpack.c.h.b16 %v216
    %v530 = vunpack.c.l.b16 %v217
    %v531 = vunpack.c.h.b16 %v217
    %v532 = vunpack.c.l.b16 %v218
    %v533 = vunpack.c.h.b16 %v218
    %v534 = vunpack.c.l.b16 %v219
    %v535 = vunpack.c.h.b16 %v219
    %v536 = vunpack.c.l.b16 %v220
    %v537 = vunpack.c.h.b16 %v220
    %v538 = vunpack.c.l.b16 %v221
    %v539 = vunpack.c.h.b16 %v221
    %v540 = vunpack.c.l.b16 %v222
    %v541 = vunpack.c.h.b16 %v222
    %v542 = vunpack.c.l.b16 %v223
    %v543 = vunpack.c.h.b16 %v223
    %v544 = vunpack.c.l.b16 %v224
    %v545 = vunpack.c.h.b16 %v224
    %v546 = vunpack.c.l.b16 %v225
    %v547 = vunpack.c.h.b16 %v225
    %v548 = vunpack.c.l.b16 %v226
    %v549 = vunpack.c.h.b16 %v226
    %v550 = vunpack.c.l.b16 %v227
    %v551 = vunpack.c.h.b16 %v227
    %v552 = vunpack.c.l.b16 %v228
    %v553 = vunpack.c.h.b16 %v228
    %v554 = vunpack.c.l.b16 %v229
    %v555 = vunpack.c.h.b16 %v229
    %v556 = vunpack.c.l.b16 %v230
    %v557 = vunpack.c.h.b16 %v230
    %v558 = vunpack.c.l.b16 %v231
    %v559 = vunpack.c.h.b16 %v231
    %v560 = vunpack.c.l.b16 %v232
    %v561 = vunpack.c.h.b16 %v232
    %v562 = vunpack.c.l.b16 %v233
    %v563 = vunpack.c.h.b16 %v233
    %v564 = vunpack.c.l.b16 %v234
    %v565 = vunpack.c.h.b16 %v234
    %v566 = vunpack.c.l.b16 %v235
    %v567 = vunpack.c.h.b16 %v235
    %v568 = vunpack.c.l.b16 %v236
    %v569 = vunpack.c.h.b16 %v236
    %v570 = vunpack.c.l.b16 %v237
    %v571 = vunpack.c.h.b16 %v237
    %v572 = vunpack.c.l.b16 %v238
    %v573 = vunpack.c.h.b16 %v238
    %v574 = vunpack.c.l.b16 %v239
    %v575 = vunpack.c.h.b16 %v239
    %v576 = vunpack.c.l.b16 %v240
    %v577 = vunpack.c.h.b16 %v240
    %v578 = vunpack.c.l.b16 %v241
    %v579 = vunpack.c.h.b16 %v241
    %v580 = vunpack.c.l.b16 %v242
    %v581 = vunpack.c.h.b16 %v242
    %v582 = vunpack.c.l.b16 %v243
    %v583 = vunpack.c.h.b16 %v243
    %v584 = vunpack.c.l.b16 %v244
    %v585 = vunpack.c.h.b16 %v244
    %v586 = vunpack.c.l.b16 %v245
    %v587 = vunpack.c.h.b16 %v245
    %v588 = vunpack.c.l.b16 %v246
    %v589 = vunpack.c.h.b16 %v246
    %v590 = vunpack.c.l.b16 %v247
    %v591 = vunpack.c.h.b16 %v247
    %v592 = vunpack.c.l.b16 %v248
    %v593 = vunpack.c.h.b16 %v248
    %v594 = vunpack.c.l.b16 %v249
    %v595 = vunpack.c.h.b16 %v249
    %v596 = vunpack.c.l.b16 %v250
    %v597 = vunpack.c.h.b16 %v250
    %v598 = vunpack.c.l.b16 %v251
    %v599 = vunpack.c.h.b16 %v251
    %v600 = vunpack.c.l.b16 %v252
    %v601 = vunpack.c.h.b16 %v252
    %v602 = vunpack.c.l.b16 %v253
    %v603 = vunpack.c.h.b16 %v253
    %v604 = vunpack.c.l.b16 %v254
    %v605 = vunpack.c.h.b16 %v254
    %v606 = vunpack.c.l.b16 %v255
    %v607 = vunpack.c.h.b16 %v255
    %v608 = vunpack.c.l.b16 %v256
    %v609 = vunpack.c.h.b16 %v256
    %v610 = vunpack.c.l.b16 %v257
    %v611 = vunpack.c.h.b16 %v257
    %v612 = vunpack.c.l.b16 %v258
    %v613 = vunpack.c.h.b16 %v258
    %v614 = vunpack.c.l.b16 %v259
    %v615 = vunpack.c.h.b16 %v259
    %v616 = vunpack.c.l.b16 %v260
    %v617 = vunpack.c.h.b16 %v260
    %v618 = vunpack.c.l.b16 %v261
    %v619 = vunpack.c.h.b16 %v261
    %v620 = vunpack.c.l.b16 %v262
    %v621 = vunpack.c.h.b16 %v262
    %v622 = vunpack.c.l.b16 %v263
    %v623 = vunpack.c.h.b16 %v263
    %v624 = vunpack.c.l.b16 %v264
    %v625 = vunpack.c.h.b16 %v264
    %v626 = vunpack.c.l.b16 %v265
    %v627 = vunpack.c.h.b16 %v265
    %v628 = vunpack.c.l.b16 %v266
    %v629 = vunpack.c.h.b16 %v266
    %v630 = vunpack.c.l.b16 %v267
    %v631 = vunpack.c.h.b16 %v267
    %v632 = vunpack.c.l.b16 %v268
    %v633 = vunpack.c.h.b16 %v268
    %v634 = vunpack.c.l.b16 %v269
    %v635 = vunpack.c.h.b16 %v269
    %v636 = vunpack.c.l.b16 %v270
    %v637 = vunpack.c.h.b16 %v270
    %v638 = vunpack.c.l.b16 %v271
    %v639 = vunpack.c.h.b16 %v271
    %v640 = vunpack.c.l.b16 %v272
    %v641 = vunpack.c.h.b16 %v272
    %v642 = vunpack.c.l.b16 %v273
    %v643 = vunpack.c.h.b16 %v273
    %v644 = vunpack.c.l.b16 %v274
    %v645 = vunpack.c.h.b16 %v274
    %v646 = vunpack.c.l.b16 %v275
    %v647 = vunpack.c.h.b16 %v275
    %v648 = vunpack.c.l.b16 %v276
    %v649 = vunpack.c.h.b16 %v276
    %v650 = vunpack.c.l.b16 %v277
    %v651 = vunpack.c.h.b16 %v277
    %v652 = vunpack.c.l.b16 %v278
    %v653 = vunpack.c.h.b16 %v278
    %v654 = vunpack.c.l.b16 %v279
    %v655 = vunpack.c.h.b16 %v279
    %v656 = vunpack.c.l.b16 %v280
    %v657 = vunpack.c.h.b16 %v280
    %v658 = vunpack.c.l.b16 %v281
    %v659 = vunpack.c.h.b16 %v281
    %v660 = vunpack.c.l.b16 %v282
    %v661 = vunpack.c.h.b16 %v282
    %v662 = vunpack.c.l.b16 %v283
    %v663 = vunpack.c.h.b16 %v283
    %v664 = vunpack.c.l.b16 %v284
    %v665 = vunpack.c.h.b16 %v284
    %v666 = vunpack.c.l.b16 %v285
    %v667 = vunpack.c.h.b16 %v285
    %v668 = vunpack.c.l.b16 %v286
    %v669 = vunpack.c.h.b16 %v286
    %v670 = vunpack.c.l.b16 %v287
    %v671 = vunpack.c.h.b16 %v287
    %v672 = vunpack.c.l.b16 %v288
    %v673 = vunpack.c.h.b16 %v288
    %v674 = vunpack.c.l.b16 %v289
    %v675 = vunpack.c.h.b16 %v289
    %v676 = vunpack.c.l.b16 %v290
    %v677 = vunpack.c.h.b16 %v290
    %v678 = vunpack.c.l.b16 %v291
    %v679 = vunpack.c.h.b16 %v291
    %v680 = vunpack.c.l.b16 %v292
    %v681 = vunpack.c.h.b16 %v292
    %v682 = vunpack.c.l.b16 %v293
    %v683 = vunpack.c.h.b16 %v293
    %v684 = vunpack.c.l.b16 %v294
    %v685 = vunpack.c.h.b16 %v294
    %v686 = vunpack.c.l.b16 %v295
    %v687 = vunpack.c.h.b16 %v295
    %v688 = vunpack.c.l.b16 %v296
    %v689 = vunpack.c.h.b16 %v296
    %v690 = vunpack.c.l.b16 %v297
    %v691 = vunpack.c.h.b16 %v297
    %v692 = vunpack.c.l.b16 %v298
    %v693 = vunpack.c.h.b16 %v298
    %v694 = vunpack.c.l.b16 %v299
    %v695 = vunpack.c.h.b16 %v299
    %v696 = vunpack.c.l.b16 %v300
    %v697 = vunpack.c.h.b16 %v300
    %v698 = vunpack.c.l.b16 %v301
    %v699 = vunpack.c.h.b16 %v301
    %v700 = vunpack.c.l.b16 %v302
    %v701 = vunpack.c.h.b16 %v302
    %v702 = vunpack.c.l.b16 %v303
    %v703 = vunpack.c.h.b16 %v303
    %v704 = vunpack.c.l.b16 %v304
    %v705 = vunpack.c.h.b16 %v304
    %v706 = vpack.c.b16 %v458, %v450
    %v707 = vpack.c.b16 %v459, %v451
    %v708 = vpack.c.b16 %v460, %v452
    %v709 = vpack.c.b16 %v461, %v453
    %v710 = vpack.c.b16 %v462, %v454
    %v711 = vpack.c.b16 %v463, %v455
    %v712 = vpack.c.b16 %v464, %v456
    %v713 = vpack.c.b16 %v465, %v457
    %v714 = vpack.c.b16 %v474, %v466
    %v715 = vpack.c.b16 %v475, %v467
    %v716 = vpack.c.b16 %v476, %v468
    %v717 = vpack.c.b16 %v477, %v469
    %v718 = vpack.c.b16 %v478, %v470
    %v719 = vpack.c.b16 %v479, %v471
    %v720 = vpack.c.b16 %v480, %v472
    %v721 = vpack.c.b16 %v481, %v473
    %v722 = vpack.c.b16 %v490, %v482
    %v723 = vpack.c.b16 %v491, %v483
    %v724 = vpack.c.b16 %v492, %v484
    %v725 = vpack.c.b16 %v493, %v485
    %v726 = vpack.c.b16 %v494, %v486
    %v727 = vpack.c.b16 %v495, %v487
    %v728 = vpack.c.b16 %v496, %v488
    %v729 = vpack.c.b16 %v497, %v489
    %v730 = vpack.c.b16 %v506, %v498
    %v731 = vpack.c.b16 %v507, %v499
    %v732 = vpack.c.b16 %v508, %v500
    %v733 = vpack.c.b16 %v509, %v501
    %v734 = vpack.c.b16 %v510, %v502
    %v735 = vpack.c.b16 %v511, %v503
    %v736 = vpack.c.b16 %v512, %v504
    %v737 = vpack.c.b16 %v513, %v505
    %v738 = vpack.c.b16 %v522, %v514
    %v739 = vpack.c.b16 %v523, %v515
    %v740 = vpack.c.b16 %v524, %v516
    %v741 = vpack.c.b16 %v525, %v517
    %v742 = vpack.c.b16 %v526, %v518
    %v743 = vpack.c.b16 %v527, %v519
    %v744 = vpack.c.b16 %v528, %v520
    %v745 = vpack.c.b16 %v529, %v521
    %v746 = vpack.c.b16 %v538, %v530
    %v747 = vpack.c.b16 %v539, %v531
    %v748 = vpack.c.b16 %v540, %v532
    %v749 = vpack.c.b16 %v541, %v533
    %v750 = vpack.c.b16 %v542, %v534
    %v751 = vpack.c.b16 %v543, %v535
    %v752 = vpack.c.b16 %v544, %v536
    %v753 = vpack.c.b16 %v545, %v537
    %v754 = vpack.c.b16 %v554, %v546
    %v755 = vpack.c.b16 %v555, %v547
    %v756 = vpack.c.b16 %v556, %v548
    %v757 = vpack.c.b16 %v557, %v549
    %v758 = vpack.c.b16 %v558, %v550
    %v759 = vpack.c.b16 %v559, %v551
    %v760 = vpack.c.b16 %v560, %v552
    %v761 = vpack.c.b16 %v561, %v553
    %v762 = vpack.c.b16 %v570, %v562
    %v763 = vpack.c.b16 %v571, %v563
    %v764 = vpack.c.b16 %v572, %v564
    %v765 = vpack.c.b16 %v573, %v565
    %v766 = vpack.c.b16 %v574, %v566
    %v767 = vpack.c.b16 %v575, %v567
    %v768 = vpack.c.b16 %v576, %v568
    %v769 = vpack.c.b16 %v577, %v569
    %v770 = vpack.c.b16 %v586, %v578
    %v771 = vpack.c.b16 %v587, %v579
    %v772 = vpack.c.b16 %v588, %v580
    %v773 = vpack.c.b16 %v589, %v581
    %v774 = vpack.c.b16 %v590, %v582
    %v775 = vpack.c.b16 %v591, %v583
    %v776 = vpack.c.b16 %v592, %v584
    %v777 = vpack.c.b16 %v593, %v585
    %v778 = vpack.c.b16 %v602, %v594
    %v779 = vpack.c.b16 %v603, %v595
    %v780 = vpack.c.b16 %v604, %v596
    %v781 = vpack.c.b16 %v605, %v597
    %v782 = vpack.c.b16 %v606, %v598
    %v783 = vpack.c.b16 %v607, %v599
    %v784 = vpack.c.b16 %v608, %v600
    %v785 = vpack.c.b16 %v609, %v601
    %v786 = vpack.c.b16 %v618, %v610
    %v787 = vpack.c.b16 %v619, %v611
    %v788 = vpack.c.b16 %v620, %v612
    %v789 = vpack.c.b16 %v621, %v613
    %v790 = vpack.c.b16 %v622, %v614
    %v791 = vpack.c.b16 %v623, %v615
    %v792 = vpack.c.b16 %v624, %v616
    %v793 = vpack.c.b16 %v625, %v617
    %v794 = vpack.c.b16 %v634, %v626
    %v795 = vpack.c.b16 %v635, %v627
    %v796 = vpack.c.b16 %v636, %v628
    %v797 = vpack.c.b16 %v637, %v629
    %v798 = vpack.c.b16 %v638, %v630
    %v799 = vpack.c.b16 %v639, %v631
    %v800 = vpack.c.b16 %v640, %v632
    %v801 = vpack.c.b16 %v641, %v633
    %v802 = vpack.c.b16 %v650, %v642
    %v803 = vpack.c.b16 %v651, %v643
    %v804 = vpack.c.b16 %v652, %v644
    %v805 = vpack.c.b16 %v653, %v645
    %v806 = vpack.c.b16 %v654, %v646
    %v807 = vpack.c.b16 %v655, %v647
    %v808 = vpack.c.b16 %v656, %v648
    %v809 = vpack.c.b16 %v657, %v649
    %v810 = vpack.c.b16 %v666, %v658
    %v811 = vpack.c.b16 %v667, %v659
    %v812 = vpack.c.b16 %v668, %v660
    %v813 = vpack.c.b16 %v669, %v661
    %v814 = vpack.c.b16 %v670, %v662
    %v815 = vpack.c.b16 %v671, %v663
    %v816 = vpack.c.b16 %v672, %v664
    %v817 = vpack.c.b16 %v673, %v665
    %v818 = vpack.c.b16 %v682, %v674
    %v819 = vpack.c.b16 %v683, %v675
    %v820 = vpack.c.b16 %v684, %v676
    %v821 = vpack.c.b16 %v685, %v677
    %v822 = vpack.c.b16 %v686, %v678
    %v823 = vpack.c.b16 %v687, %v679
    %v824 = vpack.c.b16 %v688, %v680
    %v825 = vpack.c.b16 %v689, %v681
    %v826 = vpack.c.b16 %v698, %v690
    %v827 = vpack.c.b16 %v699, %v691
    %v828 = vpack.c.b16 %v700, %v692
    %v829 = vpack.c.b16 %v701, %v693
    %v830 = vpack.c.b16 %v702, %v694
    %v831 = vpack.c.b16 %v703, %v695
    %v832 = vpack.c.b16 %v704, %v696
    %v833 = vpack.c.b16 %v705, %v697
    %962 = vmatpush.bf16.msra.mxu0 %v762
    %963 = vmatpush.bf16.msra.mxu0 %v754
    %964 = vmatpush.bf16.msra.mxu0 %v746
    %965 = vmatpush.bf16.msra.mxu0 %v738
    %966 = vmatpush.bf16.msra.mxu0 %v730
    %967 = vmatpush.bf16.msra.mxu0 %v722
    %968 = vmatpush.bf16.msra.mxu0 %v714
    %969 = vmatpush.bf16.msra.mxu0 %v706
    %970 = vmatmul.bf16.gmra.mxu0 %v175
    %v971 = vpop.f32.mrf.mxu0
    %v972 = vadd.f32 %v306, %v971
    %v973 = vpop.f32.mrf.mxu0
    %974 = vdwg.mxu0
    %975 = vmatpush.bf16.msra.mxu0 %v826
    %976 = vmatpush.bf16.msra.mxu0 %v818
    %977 = vmatpush.bf16.msra.mxu0 %v810
    %978 = vmatpush.bf16.msra.mxu0 %v802
    %979 = vmatpush.bf16.msra.mxu0 %v794
    %980 = vmatpush.bf16.msra.mxu0 %v786
    %981 = vmatpush.bf16.msra.mxu0 %v778
    %982 = vmatpush.bf16.msra.mxu0 %v770
    %983 = vmatmul.bf16.gmra.mxu0 %v176
    %v984 = vpop.f32.mrf.mxu0
    %v985 = vadd.f32 %v972, %v984
    %v986 = vpop.f32.mrf.mxu0
    %987 = vdwg.mxu0
    %988 = vmatpush.bf16.msra.mxu0 %v763
    %989 = vmatpush.bf16.msra.mxu0 %v755
    %990 = vmatpush.bf16.msra.mxu0 %v747
    %991 = vmatpush.bf16.msra.mxu0 %v739
    %992 = vmatpush.bf16.msra.mxu0 %v731
    %993 = vmatpush.bf16.msra.mxu0 %v723
    %994 = vmatpush.bf16.msra.mxu0 %v715
    %995 = vmatpush.bf16.msra.mxu0 %v707
    %996 = vmatmul.bf16.gmra.mxu0 %v175
    %v997 = vpop.f32.mrf.mxu0
    %v998 = vadd.f32 %v307, %v997
    %v999 = vpop.f32.mrf.mxu0
    %1000 = vdwg.mxu0
    %1001 = vmatpush.bf16.msra.mxu0 %v827
    %1002 = vmatpush.bf16.msra.mxu0 %v819
    %1003 = vmatpush.bf16.msra.mxu0 %v811
    %1004 = vmatpush.bf16.msra.mxu0 %v803
    %1005 = vmatpush.bf16.msra.mxu0 %v795
    %1006 = vmatpush.bf16.msra.mxu0 %v787
    %1007 = vmatpush.bf16.msra.mxu0 %v779
    %1008 = vmatpush.bf16.msra.mxu0 %v771
    %1009 = vmatmul.bf16.gmra.mxu0 %v176
    %v1010 = vpop.f32.mrf.mxu0
    %v1011 = vadd.f32 %v998, %v1010
    %v1012 = vpop.f32.mrf.mxu0
    %1013 = vdwg.mxu0
    %1014 = vmatpush.bf16.msra.mxu0 %v764
    %1015 = vmatpush.bf16.msra.mxu0 %v756
    %1016 = vmatpush.bf16.msra.mxu0 %v748
    %1017 = vmatpush.bf16.msra.mxu0 %v740
    %1018 = vmatpush.bf16.msra.mxu0 %v732
    %1019 = vmatpush.bf16.msra.mxu0 %v724
    %1020 = vmatpush.bf16.msra.mxu0 %v716
    %1021 = vmatpush.bf16.msra.mxu0 %v708
    %1022 = vmatmul.bf16.gmra.mxu0 %v175
    %v1023 = vpop.f32.mrf.mxu0
    %v1024 = vadd.f32 %v308, %v1023
    %v1025 = vpop.f32.mrf.mxu0
    %1026 = vdwg.mxu0
    %1027 = vmatpush.bf16.msra.mxu0 %v828
    %1028 = vmatpush.bf16.msra.mxu0 %v820
    %1029 = vmatpush.bf16.msra.mxu0 %v812
    %1030 = vmatpush.bf16.msra.mxu0 %v804
    %1031 = vmatpush.bf16.msra.mxu0 %v796
    %1032 = vmatpush.bf16.msra.mxu0 %v788
    %1033 = vmatpush.bf16.msra.mxu0 %v780
    %1034 = vmatpush.bf16.msra.mxu0 %v772
    %1035 = vmatmul.bf16.gmra.mxu0 %v176
    %v1036 = vpop.f32.mrf.mxu0
    %v1037 = vadd.f32 %v1024, %v1036
    %v1038 = vpop.f32.mrf.mxu0
    %1039 = vdwg.mxu0
    %1040 = vmatpush.bf16.msra.mxu0 %v765
    %1041 = vmatpush.bf16.msra.mxu0 %v757
    %1042 = vmatpush.bf16.msra.mxu0 %v749
    %1043 = vmatpush.bf16.msra.mxu0 %v741
    %1044 = vmatpush.bf16.msra.mxu0 %v733
    %1045 = vmatpush.bf16.msra.mxu0 %v725
    %1046 = vmatpush.bf16.msra.mxu0 %v717
    %1047 = vmatpush.bf16.msra.mxu0 %v709
    %1048 = vmatmul.bf16.gmra.mxu0 %v175
    %v1049 = vpop.f32.mrf.mxu0
    %v1050 = vadd.f32 %v309, %v1049
    %v1051 = vpop.f32.mrf.mxu0
    %1052 = vdwg.mxu0
    %1053 = vmatpush.bf16.msra.mxu0 %v829
    %1054 = vmatpush.bf16.msra.mxu0 %v821
    %1055 = vmatpush.bf16.msra.mxu0 %v813
    %1056 = vmatpush.bf16.msra.mxu0 %v805
    %1057 = vmatpush.bf16.msra.mxu0 %v797
    %1058 = vmatpush.bf16.msra.mxu0 %v789
    %1059 = vmatpush.bf16.msra.mxu0 %v781
    %1060 = vmatpush.bf16.msra.mxu0 %v773
    %1061 = vmatmul.bf16.gmra.mxu0 %v176
    %v1062 = vpop.f32.mrf.mxu0
    %v1063 = vadd.f32 %v1050, %v1062
    %v1064 = vpop.f32.mrf.mxu0
    %1065 = vdwg.mxu0
    %1066 = vmatpush.bf16.msra.mxu0 %v766
    %1067 = vmatpush.bf16.msra.mxu0 %v758
    %1068 = vmatpush.bf16.msra.mxu0 %v750
    %1069 = vmatpush.bf16.msra.mxu0 %v742
    %1070 = vmatpush.bf16.msra.mxu0 %v734
    %1071 = vmatpush.bf16.msra.mxu0 %v726
    %1072 = vmatpush.bf16.msra.mxu0 %v718
    %1073 = vmatpush.bf16.msra.mxu0 %v710
    %1074 = vmatmul.bf16.gmra.mxu0 %v175
    %v1075 = vpop.f32.mrf.mxu0
    %v1076 = vadd.f32 %v310, %v1075
    %v1077 = vpop.f32.mrf.mxu0
    %1078 = vdwg.mxu0
    %1079 = vmatpush.bf16.msra.mxu0 %v830
    %1080 = vmatpush.bf16.msra.mxu0 %v822
    %1081 = vmatpush.bf16.msra.mxu0 %v814
    %1082 = vmatpush.bf16.msra.mxu0 %v806
    %1083 = vmatpush.bf16.msra.mxu0 %v798
    %1084 = vmatpush.bf16.msra.mxu0 %v790
    %1085 = vmatpush.bf16.msra.mxu0 %v782
    %1086 = vmatpush.bf16.msra.mxu0 %v774
    %1087 = vmatmul.bf16.gmra.mxu0 %v176
    %v1088 = vpop.f32.mrf.mxu0
    %v1089 = vadd.f32 %v1076, %v1088
    %v1090 = vpop.f32.mrf.mxu0
    %1091 = vdwg.mxu0
    %1092 = vmatpush.bf16.msra.mxu0 %v767
    %1093 = vmatpush.bf16.msra.mxu0 %v759
    %1094 = vmatpush.bf16.msra.mxu0 %v751
    %1095 = vmatpush.bf16.msra.mxu0 %v743
    %1096 = vmatpush.bf16.msra.mxu0 %v735
    %1097 = vmatpush.bf16.msra.mxu0 %v727
    %1098 = vmatpush.bf16.msra.mxu0 %v719
    %1099 = vmatpush.bf16.msra.mxu0 %v711
    %1100 = vmatmul.bf16.gmra.mxu0 %v175
    %v1101 = vpop.f32.mrf.mxu0
    %v1102 = vadd.f32 %v311, %v1101
    %v1103 = vpop.f32.mrf.mxu0
    %1104 = vdwg.mxu0
    %1105 = vmatpush.bf16.msra.mxu0 %v831
    %1106 = vmatpush.bf16.msra.mxu0 %v823
    %1107 = vmatpush.bf16.msra.mxu0 %v815
    %1108 = vmatpush.bf16.msra.mxu0 %v807
    %1109 = vmatpush.bf16.msra.mxu0 %v799
    %1110 = vmatpush.bf16.msra.mxu0 %v791
    %1111 = vmatpush.bf16.msra.mxu0 %v783
    %1112 = vmatpush.bf16.msra.mxu0 %v775
    %1113 = vmatmul.bf16.gmra.mxu0 %v176
    %v1114 = vpop.f32.mrf.mxu0
    %v1115 = vadd.f32 %v1102, %v1114
    %v1116 = vpop.f32.mrf.mxu0
    %1117 = vdwg.mxu0
    %1118 = vmatpush.bf16.msra.mxu0 %v768
    %1119 = vmatpush.bf16.msra.mxu0 %v760
    %1120 = vmatpush.bf16.msra.mxu0 %v752
    %1121 = vmatpush.bf16.msra.mxu0 %v744
    %1122 = vmatpush.bf16.msra.mxu0 %v736
    %1123 = vmatpush.bf16.msra.mxu0 %v728
    %1124 = vmatpush.bf16.msra.mxu0 %v720
    %1125 = vmatpush.bf16.msra.mxu0 %v712
    %1126 = vmatmul.bf16.gmra.mxu0 %v175
    %v1127 = vpop.f32.mrf.mxu0
    %v1128 = vadd.f32 %v312, %v1127
    %v1129 = vpop.f32.mrf.mxu0
    %1130 = vdwg.mxu0
    %1131 = vmatpush.bf16.msra.mxu0 %v832
    %1132 = vmatpush.bf16.msra.mxu0 %v824
    %1133 = vmatpush.bf16.msra.mxu0 %v816
    %1134 = vmatpush.bf16.msra.mxu0 %v808
    %1135 = vmatpush.bf16.msra.mxu0 %v800
    %1136 = vmatpush.bf16.msra.mxu0 %v792
    %1137 = vmatpush.bf16.msra.mxu0 %v784
    %1138 = vmatpush.bf16.msra.mxu0 %v776
    %1139 = vmatmul.bf16.gmra.mxu0 %v176
    %v1140 = vpop.f32.mrf.mxu0
    %v1141 = vadd.f32 %v1128, %v1140
    %v1142 = vpop.f32.mrf.mxu0
    %1143 = vdwg.mxu0
    %1144 = vmatpush.bf16.msra.mxu0 %v769
    %1145 = vmatpush.bf16.msra.mxu0 %v761
    %1146 = vmatpush.bf16.msra.mxu0 %v753
    %1147 = vmatpush.bf16.msra.mxu0 %v745
    %1148 = vmatpush.bf16.msra.mxu0 %v737
    %1149 = vmatpush.bf16.msra.mxu0 %v729
    %1150 = vmatpush.bf16.msra.mxu0 %v721
    %1151 = vmatpush.bf16.msra.mxu0 %v713
    %1152 = vmatmul.bf16.gmra.mxu0 %v175
    %v1153 = vpop.f32.mrf.mxu0
    %v1154 = vadd.f32 %v313, %v1153
    %v1155 = vpop.f32.mrf.mxu0
    %1156 = vdwg.mxu0
    %1157 = vmatpush.bf16.msra.mxu0 %v833
    %1158 = vmatpush.bf16.msra.mxu0 %v825
    %1159 = vmatpush.bf16.msra.mxu0 %v817
    %1160 = vmatpush.bf16.msra.mxu0 %v809
    %1161 = vmatpush.bf16.msra.mxu0 %v801
    %1162 = vmatpush.bf16.msra.mxu0 %v793
    %1163 = vmatpush.bf16.msra.mxu0 %v785
    %1164 = vmatpush.bf16.msra.mxu0 %v777
    %1165 = vmatmul.bf16.gmra.mxu0 %v176
    %v1166 = vpop.f32.mrf.mxu0
    %v1167 = vadd.f32 %v1154, %v1166
    %v1168 = vpop.f32.mrf.mxu0
    %1169 = vdwg.mxu0
    %v1170 = vmax.f32 %v985, 0.0
    %v1171 = vmax.f32 %v1011, 0.0
    %v1172 = vmax.f32 %v1037, 0.0
    %v1173 = vmax.f32 %v1063, 0.0
    %v1174 = vmax.f32 %v1089, 0.0
    %v1175 = vmax.f32 %v1115, 0.0
    %v1176 = vmax.f32 %v1141, 0.0
    %v1177 = vmax.f32 %v1167, 0.0
    %v1178 = vpack.c.bf16 %v1170, %v1170
    %v1179 = vpack.c.bf16 %v1171, %v1171
    %v1180 = vpack.c.bf16 %v1172, %v1172
    %v1181 = vpack.c.bf16 %v1173, %v1173
    %v1182 = vpack.c.bf16 %v1174, %v1174
    %v1183 = vpack.c.bf16 %v1175, %v1175
    %v1184 = vpack.c.bf16 %v1176, %v1176
    %v1185 = vpack.c.bf16 %v1177, %v1177
    %v1186 = vld [vmem:[#allocation4] sm:$0xff]
    %v1187 = vld [vmem:[#allocation4 + $0x8] sm:$0xff]
    %v1188 = vld [vmem:[#allocation4 + $0x10] sm:$0xff]
    %v1189 = vld [vmem:[#allocation4 + $0x18] sm:$0xff]
    %v1190 = vld [vmem:[#allocation4 + $0x20] sm:$0xff]
    %v1191 = vld [vmem:[#allocation4 + $0x28] sm:$0xff]
    %v1192 = vld [vmem:[#allocation4 + $0x30] sm:$0xff]
    %v1193 = vld [vmem:[#allocation4 + $0x38] sm:$0xff]
    %v1194 = vld [vmem:[#allocation4 + $0x40] sm:$0xff]
    %v1195 = vld [vmem:[#allocation4 + $0x48] sm:$0xff]
    %v1196 = vld [vmem:[#allocation4 + $0x50] sm:$0xff]
    %v1197 = vld [vmem:[#allocation4 + $0x58] sm:$0xff]
    %v1198 = vld [vmem:[#allocation4 + $0x60] sm:$0xff]
    %v1199 = vld [vmem:[#allocation4 + $0x68] sm:$0xff]
    %v1200 = vld [vmem:[#allocation4 + $0x70] sm:$0xff]
    %v1201 = vld [vmem:[#allocation4 + $0x78] sm:$0xff]
    %v1202 = vld [vmem:[#allocation4 + $0x80] sm:$0xff]
    %v1203 = vld [vmem:[#allocation4 + $0x88] sm:$0xff]
    %v1204 = vld [vmem:[#allocation4 + $0x90] sm:$0xff]
    %v1205 = vld [vmem:[#allocation4 + $0x98] sm:$0xff]
    %v1206 = vld [vmem:[#allocation4 + $0xa0] sm:$0xff]
    %v1207 = vld [vmem:[#allocation4 + $0xa8] sm:$0xff]
    %v1208 = vld [vmem:[#allocation4 + $0xb0] sm:$0xff]
    %v1209 = vld [vmem:[#allocation4 + $0xb8] sm:$0xff]
    %v1210 = vld [vmem:[#allocation4 + $0xc0] sm:$0xff]
    %v1211 = vld [vmem:[#allocation4 + $0xc8] sm:$0xff]
    %v1212 = vld [vmem:[#allocation4 + $0xd0] sm:$0xff]
    %v1213 = vld [vmem:[#allocation4 + $0xd8] sm:$0xff]
    %v1214 = vld [vmem:[#allocation4 + $0xe0] sm:$0xff]
    %v1215 = vld [vmem:[#allocation4 + $0xe8] sm:$0xff]
    %v1216 = vld [vmem:[#allocation4 + $0xf0] sm:$0xff]
    %v1217 = vld [vmem:[#allocation4 + $0xf8] sm:$0xff]
    %v1218 = vld [vmem:[#allocation4 + $0x100] sm:$0xff]
    %v1219 = vld [vmem:[#allocation4 + $0x108] sm:$0xff]
    %v1220 = vld [vmem:[#allocation4 + $0x110] sm:$0xff]
    %v1221 = vld [vmem:[#allocation4 + $0x118] sm:$0xff]
    %v1222 = vld [vmem:[#allocation4 + $0x120] sm:$0xff]
    %v1223 = vld [vmem:[#allocation4 + $0x128] sm:$0xff]
    %v1224 = vld [vmem:[#allocation4 + $0x130] sm:$0xff]
    %v1225 = vld [vmem:[#allocation4 + $0x138] sm:$0xff]
    %v1226 = vld [vmem:[#allocation4 + $0x140] sm:$0xff]
    %v1227 = vld [vmem:[#allocation4 + $0x148] sm:$0xff]
    %v1228 = vld [vmem:[#allocation4 + $0x150] sm:$0xff]
    %v1229 = vld [vmem:[#allocation4 + $0x158] sm:$0xff]
    %v1230 = vld [vmem:[#allocation4 + $0x160] sm:$0xff]
    %v1231 = vld [vmem:[#allocation4 + $0x168] sm:$0xff]
    %v1232 = vld [vmem:[#allocation4 + $0x170] sm:$0xff]
    %v1233 = vld [vmem:[#allocation4 + $0x178] sm:$0xff]
    %v1234 = vld [vmem:[#allocation4 + $0x180] sm:$0xff]
    %v1235 = vld [vmem:[#allocation4 + $0x188] sm:$0xff]
    %v1236 = vld [vmem:[#allocation4 + $0x190] sm:$0xff]
    %v1237 = vld [vmem:[#allocation4 + $0x198] sm:$0xff]
    %v1238 = vld [vmem:[#allocation4 + $0x1a0] sm:$0xff]
    %v1239 = vld [vmem:[#allocation4 + $0x1a8] sm:$0xff]
    %v1240 = vld [vmem:[#allocation4 + $0x1b0] sm:$0xff]
    %v1241 = vld [vmem:[#allocation4 + $0x1b8] sm:$0xff]
    %v1242 = vld [vmem:[#allocation4 + $0x1c0] sm:$0xff]
    %v1243 = vld [vmem:[#allocation4 + $0x1c8] sm:$0xff]
    %v1244 = vld [vmem:[#allocation4 + $0x1d0] sm:$0xff]
    %v1245 = vld [vmem:[#allocation4 + $0x1d8] sm:$0xff]
    %v1246 = vld [vmem:[#allocation4 + $0x1e0] sm:$0xff]
    %v1247 = vld [vmem:[#allocation4 + $0x1e8] sm:$0xff]
    %v1248 = vld [vmem:[#allocation4 + $0x1f0] sm:$0xff]
    %v1249 = vld [vmem:[#allocation4 + $0x1f8] sm:$0xff]
    %v1250 = vld [vmem:[#allocation4 + $0x200] sm:$0xff]
    %v1251 = vld [vmem:[#allocation4 + $0x208] sm:$0xff]
    %v1252 = vld [vmem:[#allocation4 + $0x210] sm:$0xff]
    %v1253 = vld [vmem:[#allocation4 + $0x218] sm:$0xff]
    %v1254 = vld [vmem:[#allocation4 + $0x220] sm:$0xff]
    %v1255 = vld [vmem:[#allocation4 + $0x228] sm:$0xff]
    %v1256 = vld [vmem:[#allocation4 + $0x230] sm:$0xff]
    %v1257 = vld [vmem:[#allocation4 + $0x238] sm:$0xff]
    %v1258 = vld [vmem:[#allocation4 + $0x240] sm:$0xff]
    %v1259 = vld [vmem:[#allocation4 + $0x248] sm:$0xff]
    %v1260 = vld [vmem:[#allocation4 + $0x250] sm:$0xff]
    %v1261 = vld [vmem:[#allocation4 + $0x258] sm:$0xff]
    %v1262 = vld [vmem:[#allocation4 + $0x260] sm:$0xff]
    %v1263 = vld [vmem:[#allocation4 + $0x268] sm:$0xff]
    %v1264 = vld [vmem:[#allocation4 + $0x270] sm:$0xff]
    %v1265 = vld [vmem:[#allocation4 + $0x278] sm:$0xff]
    %v1266 = vld [vmem:[#allocation4 + $0x280] sm:$0xff]
    %v1267 = vld [vmem:[#allocation4 + $0x288] sm:$0xff]
    %v1268 = vld [vmem:[#allocation4 + $0x290] sm:$0xff]
    %v1269 = vld [vmem:[#allocation4 + $0x298] sm:$0xff]
    %v1270 = vld [vmem:[#allocation4 + $0x2a0] sm:$0xff]
    %v1271 = vld [vmem:[#allocation4 + $0x2a8] sm:$0xff]
    %v1272 = vld [vmem:[#allocation4 + $0x2b0] sm:$0xff]
    %v1273 = vld [vmem:[#allocation4 + $0x2b8] sm:$0xff]
    %v1274 = vld [vmem:[#allocation4 + $0x2c0] sm:$0xff]
    %v1275 = vld [vmem:[#allocation4 + $0x2c8] sm:$0xff]
    %v1276 = vld [vmem:[#allocation4 + $0x2d0] sm:$0xff]
    %v1277 = vld [vmem:[#allocation4 + $0x2d8] sm:$0xff]
    %v1278 = vld [vmem:[#allocation4 + $0x2e0] sm:$0xff]
    %v1279 = vld [vmem:[#allocation4 + $0x2e8] sm:$0xff]
    %v1280 = vld [vmem:[#allocation4 + $0x2f0] sm:$0xff]
    %v1281 = vld [vmem:[#allocation4 + $0x2f8] sm:$0xff]
    %v1282 = vld [vmem:[#allocation4 + $0x300] sm:$0xff]
    %v1283 = vld [vmem:[#allocation4 + $0x308] sm:$0xff]
    %v1284 = vld [vmem:[#allocation4 + $0x310] sm:$0xff]
    %v1285 = vld [vmem:[#allocation4 + $0x318] sm:$0xff]
    %v1286 = vld [vmem:[#allocation4 + $0x320] sm:$0xff]
    %v1287 = vld [vmem:[#allocation4 + $0x328] sm:$0xff]
    %v1288 = vld [vmem:[#allocation4 + $0x330] sm:$0xff]
    %v1289 = vld [vmem:[#allocation4 + $0x338] sm:$0xff]
    %v1290 = vld [vmem:[#allocation4 + $0x340] sm:$0xff]
    %v1291 = vld [vmem:[#allocation4 + $0x348] sm:$0xff]
    %v1292 = vld [vmem:[#allocation4 + $0x350] sm:$0xff]
    %v1293 = vld [vmem:[#allocation4 + $0x358] sm:$0xff]
    %v1294 = vld [vmem:[#allocation4 + $0x360] sm:$0xff]
    %v1295 = vld [vmem:[#allocation4 + $0x368] sm:$0xff]
    %v1296 = vld [vmem:[#allocation4 + $0x370] sm:$0xff]
    %v1297 = vld [vmem:[#allocation4 + $0x378] sm:$0xff]
    %v1298 = vld [vmem:[#allocation4 + $0x380] sm:$0xff]
    %v1299 = vld [vmem:[#allocation4 + $0x388] sm:$0xff]
    %v1300 = vld [vmem:[#allocation4 + $0x390] sm:$0xff]
    %v1301 = vld [vmem:[#allocation4 + $0x398] sm:$0xff]
    %v1302 = vld [vmem:[#allocation4 + $0x3a0] sm:$0xff]
    %v1303 = vld [vmem:[#allocation4 + $0x3a8] sm:$0xff]
    %v1304 = vld [vmem:[#allocation4 + $0x3b0] sm:$0xff]
    %v1305 = vld [vmem:[#allocation4 + $0x3b8] sm:$0xff]
    %v1306 = vld [vmem:[#allocation4 + $0x3c0] sm:$0xff]
    %v1307 = vld [vmem:[#allocation4 + $0x3c8] sm:$0xff]
    %v1308 = vld [vmem:[#allocation4 + $0x3d0] sm:$0xff]
    %v1309 = vld [vmem:[#allocation4 + $0x3d8] sm:$0xff]
    %v1310 = vld [vmem:[#allocation4 + $0x3e0] sm:$0xff]
    %v1311 = vld [vmem:[#allocation4 + $0x3e8] sm:$0xff]
    %v1312 = vld [vmem:[#allocation4 + $0x3f0] sm:$0xff]
    %v1313 = vld [vmem:[#allocation4 + $0x3f8] sm:$0xff]
    %v1314 = vld [vmem:[#allocation4 + $0x400] sm:$0xff]
    %v1315 = vld [vmem:[#allocation4 + $0x408] sm:$0xff]
    %v1316 = vld [vmem:[#allocation4 + $0x410] sm:$0xff]
    %v1317 = vld [vmem:[#allocation4 + $0x418] sm:$0xff]
    %v1318 = vld [vmem:[#allocation4 + $0x420] sm:$0xff]
    %v1319 = vld [vmem:[#allocation4 + $0x428] sm:$0xff]
    %v1320 = vld [vmem:[#allocation4 + $0x430] sm:$0xff]
    %v1321 = vld [vmem:[#allocation4 + $0x438] sm:$0xff]
    %v1322 = vld [vmem:[#allocation4 + $0x440] sm:$0xff]
    %v1323 = vld [vmem:[#allocation4 + $0x448] sm:$0xff]
    %v1324 = vld [vmem:[#allocation4 + $0x450] sm:$0xff]
    %v1325 = vld [vmem:[#allocation4 + $0x458] sm:$0xff]
    %v1326 = vld [vmem:[#allocation4 + $0x460] sm:$0xff]
    %v1327 = vld [vmem:[#allocation4 + $0x468] sm:$0xff]
    %v1328 = vld [vmem:[#allocation4 + $0x470] sm:$0xff]
    %v1329 = vld [vmem:[#allocation4 + $0x478] sm:$0xff]
    %v1330 = vld [vmem:[#allocation4 + $0x480] sm:$0xff]
    %v1331 = vld [vmem:[#allocation4 + $0x488] sm:$0xff]
    %v1332 = vld [vmem:[#allocation4 + $0x490] sm:$0xff]
    %v1333 = vld [vmem:[#allocation4 + $0x498] sm:$0xff]
    %v1334 = vld [vmem:[#allocation4 + $0x4a0] sm:$0xff]
    %v1335 = vld [vmem:[#allocation4 + $0x4a8] sm:$0xff]
    %v1336 = vld [vmem:[#allocation4 + $0x4b0] sm:$0xff]
    %v1337 = vld [vmem:[#allocation4 + $0x4b8] sm:$0xff]
    %v1338 = vld [vmem:[#allocation4 + $0x4c0] sm:$0xff]
    %v1339 = vld [vmem:[#allocation4 + $0x4c8] sm:$0xff]
    %v1340 = vld [vmem:[#allocation4 + $0x4d0] sm:$0xff]
    %v1341 = vld [vmem:[#allocation4 + $0x4d8] sm:$0xff]
    %v1342 = vld [vmem:[#allocation4 + $0x4e0] sm:$0xff]
    %v1343 = vld [vmem:[#allocation4 + $0x4e8] sm:$0xff]
    %v1344 = vld [vmem:[#allocation4 + $0x4f0] sm:$0xff]
    %v1345 = vld [vmem:[#allocation4 + $0x4f8] sm:$0xff]
    %v1346 = vld [vmem:[#allocation4 + $0x500] sm:$0xff]
    %v1347 = vld [vmem:[#allocation4 + $0x508] sm:$0xff]
    %v1348 = vld [vmem:[#allocation4 + $0x510] sm:$0xff]
    %v1349 = vld [vmem:[#allocation4 + $0x518] sm:$0xff]
    %v1350 = vld [vmem:[#allocation4 + $0x520] sm:$0xff]
    %v1351 = vld [vmem:[#allocation4 + $0x528] sm:$0xff]
    %v1352 = vld [vmem:[#allocation4 + $0x530] sm:$0xff]
    %v1353 = vld [vmem:[#allocation4 + $0x538] sm:$0xff]
    %v1354 = vld [vmem:[#allocation4 + $0x540] sm:$0xff]
    %v1355 = vld [vmem:[#allocation4 + $0x548] sm:$0xff]
    %v1356 = vld [vmem:[#allocation4 + $0x550] sm:$0xff]
    %v1357 = vld [vmem:[#allocation4 + $0x558] sm:$0xff]
    %v1358 = vld [vmem:[#allocation4 + $0x560] sm:$0xff]
    %v1359 = vld [vmem:[#allocation4 + $0x568] sm:$0xff]
    %v1360 = vld [vmem:[#allocation4 + $0x570] sm:$0xff]
    %v1361 = vld [vmem:[#allocation4 + $0x578] sm:$0xff]
    %v1362 = vld [vmem:[#allocation4 + $0x580] sm:$0xff]
    %v1363 = vld [vmem:[#allocation4 + $0x588] sm:$0xff]
    %v1364 = vld [vmem:[#allocation4 + $0x590] sm:$0xff]
    %v1365 = vld [vmem:[#allocation4 + $0x598] sm:$0xff]
    %v1366 = vld [vmem:[#allocation4 + $0x5a0] sm:$0xff]
    %v1367 = vld [vmem:[#allocation4 + $0x5a8] sm:$0xff]
    %v1368 = vld [vmem:[#allocation4 + $0x5b0] sm:$0xff]
    %v1369 = vld [vmem:[#allocation4 + $0x5b8] sm:$0xff]
    %v1370 = vld [vmem:[#allocation4 + $0x5c0] sm:$0xff]
    %v1371 = vld [vmem:[#allocation4 + $0x5c8] sm:$0xff]
    %v1372 = vld [vmem:[#allocation4 + $0x5d0] sm:$0xff]
    %v1373 = vld [vmem:[#allocation4 + $0x5d8] sm:$0xff]
    %v1374 = vld [vmem:[#allocation4 + $0x5e0] sm:$0xff]
    %v1375 = vld [vmem:[#allocation4 + $0x5e8] sm:$0xff]
    %v1376 = vld [vmem:[#allocation4 + $0x5f0] sm:$0xff]
    %v1377 = vld [vmem:[#allocation4 + $0x5f8] sm:$0xff]
    %v1378 = vld [vmem:[#allocation4 + $0x600] sm:$0xff]
    %v1379 = vld [vmem:[#allocation4 + $0x608] sm:$0xff]
    %v1380 = vld [vmem:[#allocation4 + $0x610] sm:$0xff]
    %v1381 = vld [vmem:[#allocation4 + $0x618] sm:$0xff]
    %v1382 = vld [vmem:[#allocation4 + $0x620] sm:$0xff]
    %v1383 = vld [vmem:[#allocation4 + $0x628] sm:$0xff]
    %v1384 = vld [vmem:[#allocation4 + $0x630] sm:$0xff]
    %v1385 = vld [vmem:[#allocation4 + $0x638] sm:$0xff]
    %v1386 = vld [vmem:[#allocation4 + $0x640] sm:$0xff]
    %v1387 = vld [vmem:[#allocation4 + $0x648] sm:$0xff]
    %v1388 = vld [vmem:[#allocation4 + $0x650] sm:$0xff]
    %v1389 = vld [vmem:[#allocation4 + $0x658] sm:$0xff]
    %v1390 = vld [vmem:[#allocation4 + $0x660] sm:$0xff]
    %v1391 = vld [vmem:[#allocation4 + $0x668] sm:$0xff]
    %v1392 = vld [vmem:[#allocation4 + $0x670] sm:$0xff]
    %v1393 = vld [vmem:[#allocation4 + $0x678] sm:$0xff]
    %v1394 = vld [vmem:[#allocation4 + $0x680] sm:$0xff]
    %v1395 = vld [vmem:[#allocation4 + $0x688] sm:$0xff]
    %v1396 = vld [vmem:[#allocation4 + $0x690] sm:$0xff]
    %v1397 = vld [vmem:[#allocation4 + $0x698] sm:$0xff]
    %v1398 = vld [vmem:[#allocation4 + $0x6a0] sm:$0xff]
    %v1399 = vld [vmem:[#allocation4 + $0x6a8] sm:$0xff]
    %v1400 = vld [vmem:[#allocation4 + $0x6b0] sm:$0xff]
    %v1401 = vld [vmem:[#allocation4 + $0x6b8] sm:$0xff]
    %v1402 = vld [vmem:[#allocation4 + $0x6c0] sm:$0xff]
    %v1403 = vld [vmem:[#allocation4 + $0x6c8] sm:$0xff]
    %v1404 = vld [vmem:[#allocation4 + $0x6d0] sm:$0xff]
    %v1405 = vld [vmem:[#allocation4 + $0x6d8] sm:$0xff]
    %v1406 = vld [vmem:[#allocation4 + $0x6e0] sm:$0xff]
    %v1407 = vld [vmem:[#allocation4 + $0x6e8] sm:$0xff]
    %v1408 = vld [vmem:[#allocation4 + $0x6f0] sm:$0xff]
    %v1409 = vld [vmem:[#allocation4 + $0x6f8] sm:$0xff]
    %v1410 = vld [vmem:[#allocation4 + $0x700] sm:$0xff]
    %v1411 = vld [vmem:[#allocation4 + $0x708] sm:$0xff]
    %v1412 = vld [vmem:[#allocation4 + $0x710] sm:$0xff]
    %v1413 = vld [vmem:[#allocation4 + $0x718] sm:$0xff]
    %v1414 = vld [vmem:[#allocation4 + $0x720] sm:$0xff]
    %v1415 = vld [vmem:[#allocation4 + $0x728] sm:$0xff]
    %v1416 = vld [vmem:[#allocation4 + $0x730] sm:$0xff]
    %v1417 = vld [vmem:[#allocation4 + $0x738] sm:$0xff]
    %v1418 = vld [vmem:[#allocation4 + $0x740] sm:$0xff]
    %v1419 = vld [vmem:[#allocation4 + $0x748] sm:$0xff]
    %v1420 = vld [vmem:[#allocation4 + $0x750] sm:$0xff]
    %v1421 = vld [vmem:[#allocation4 + $0x758] sm:$0xff]
    %v1422 = vld [vmem:[#allocation4 + $0x760] sm:$0xff]
    %v1423 = vld [vmem:[#allocation4 + $0x768] sm:$0xff]
    %v1424 = vld [vmem:[#allocation4 + $0x770] sm:$0xff]
    %v1425 = vld [vmem:[#allocation4 + $0x778] sm:$0xff]
    %v1426 = vld [vmem:[#allocation4 + $0x780] sm:$0xff]
    %v1427 = vld [vmem:[#allocation4 + $0x788] sm:$0xff]
    %v1428 = vld [vmem:[#allocation4 + $0x790] sm:$0xff]
    %v1429 = vld [vmem:[#allocation4 + $0x798] sm:$0xff]
    %v1430 = vld [vmem:[#allocation4 + $0x7a0] sm:$0xff]
    %v1431 = vld [vmem:[#allocation4 + $0x7a8] sm:$0xff]
    %v1432 = vld [vmem:[#allocation4 + $0x7b0] sm:$0xff]
    %v1433 = vld [vmem:[#allocation4 + $0x7b8] sm:$0xff]
    %v1434 = vld [vmem:[#allocation4 + $0x7c0] sm:$0xff]
    %v1435 = vld [vmem:[#allocation4 + $0x7c8] sm:$0xff]
    %v1436 = vld [vmem:[#allocation4 + $0x7d0] sm:$0xff]
    %v1437 = vld [vmem:[#allocation4 + $0x7d8] sm:$0xff]
    %v1438 = vld [vmem:[#allocation4 + $0x7e0] sm:$0xff]
    %v1439 = vld [vmem:[#allocation4 + $0x7e8] sm:$0xff]
    %v1440 = vld [vmem:[#allocation4 + $0x7f0] sm:$0xff]
    %v1441 = vld [vmem:[#allocation4 + $0x7f8] sm:$0xff]
    %v1443 = vperm.slane %v156, 0
    %v1444 = vperm.slane %v156, 1
    %v1445 = vperm.slane %v156, 2
    %v1446 = vperm.slane %v156, 3
    %v1707 = vunpack.c.l.b16 %v1186
    %v1708 = vunpack.c.h.b16 %v1186
    %v1709 = vunpack.c.l.b16 %v1187
    %v1710 = vunpack.c.h.b16 %v1187
    %v1711 = vunpack.c.l.b16 %v1188
    %v1712 = vunpack.c.h.b16 %v1188
    %v1713 = vunpack.c.l.b16 %v1189
    %v1714 = vunpack.c.h.b16 %v1189
    %v1715 = vunpack.c.l.b16 %v1190
    %v1716 = vunpack.c.h.b16 %v1190
    %v1717 = vunpack.c.l.b16 %v1191
    %v1718 = vunpack.c.h.b16 %v1191
    %v1719 = vunpack.c.l.b16 %v1192
    %v1720 = vunpack.c.h.b16 %v1192
    %v1721 = vunpack.c.l.b16 %v1193
    %v1722 = vunpack.c.h.b16 %v1193
    %v1723 = vunpack.c.l.b16 %v1194
    %v1724 = vunpack.c.h.b16 %v1194
    %v1725 = vunpack.c.l.b16 %v1195
    %v1726 = vunpack.c.h.b16 %v1195
    %v1727 = vunpack.c.l.b16 %v1196
    %v1728 = vunpack.c.h.b16 %v1196
    %v1729 = vunpack.c.l.b16 %v1197
    %v1730 = vunpack.c.h.b16 %v1197
    %v1731 = vunpack.c.l.b16 %v1198
    %v1732 = vunpack.c.h.b16 %v1198
    %v1733 = vunpack.c.l.b16 %v1199
    %v1734 = vunpack.c.h.b16 %v1199
    %v1735 = vunpack.c.l.b16 %v1200
    %v1736 = vunpack.c.h.b16 %v1200
    %v1737 = vunpack.c.l.b16 %v1201
    %v1738 = vunpack.c.h.b16 %v1201
    %v1739 = vunpack.c.l.b16 %v1202
    %v1740 = vunpack.c.h.b16 %v1202
    %v1741 = vunpack.c.l.b16 %v1203
    %v1742 = vunpack.c.h.b16 %v1203
    %v1743 = vunpack.c.l.b16 %v1204
    %v1744 = vunpack.c.h.b16 %v1204
    %v1745 = vunpack.c.l.b16 %v1205
    %v1746 = vunpack.c.h.b16 %v1205
    %v1747 = vunpack.c.l.b16 %v1206
    %v1748 = vunpack.c.h.b16 %v1206
    %v1749 = vunpack.c.l.b16 %v1207
    %v1750 = vunpack.c.h.b16 %v1207
    %v1751 = vunpack.c.l.b16 %v1208
    %v1752 = vunpack.c.h.b16 %v1208
    %v1753 = vunpack.c.l.b16 %v1209
    %v1754 = vunpack.c.h.b16 %v1209
    %v1755 = vunpack.c.l.b16 %v1210
    %v1756 = vunpack.c.h.b16 %v1210
    %v1757 = vunpack.c.l.b16 %v1211
    %v1758 = vunpack.c.h.b16 %v1211
    %v1759 = vunpack.c.l.b16 %v1212
    %v1760 = vunpack.c.h.b16 %v1212
    %v1761 = vunpack.c.l.b16 %v1213
    %v1762 = vunpack.c.h.b16 %v1213
    %v1763 = vunpack.c.l.b16 %v1214
    %v1764 = vunpack.c.h.b16 %v1214
    %v1765 = vunpack.c.l.b16 %v1215
    %v1766 = vunpack.c.h.b16 %v1215
    %v1767 = vunpack.c.l.b16 %v1216
    %v1768 = vunpack.c.h.b16 %v1216
    %v1769 = vunpack.c.l.b16 %v1217
    %v1770 = vunpack.c.h.b16 %v1217
    %v1771 = vunpack.c.l.b16 %v1218
    %v1772 = vunpack.c.h.b16 %v1218
    %v1773 = vunpack.c.l.b16 %v1219
    %v1774 = vunpack.c.h.b16 %v1219
    %v1775 = vunpack.c.l.b16 %v1220
    %v1776 = vunpack.c.h.b16 %v1220
    %v1777 = vunpack.c.l.b16 %v1221
    %v1778 = vunpack.c.h.b16 %v1221
    %v1779 = vunpack.c.l.b16 %v1222
    %v1780 = vunpack.c.h.b16 %v1222
    %v1781 = vunpack.c.l.b16 %v1223
    %v1782 = vunpack.c.h.b16 %v1223
    %v1783 = vunpack.c.l.b16 %v1224
    %v1784 = vunpack.c.h.b16 %v1224
    %v1785 = vunpack.c.l.b16 %v1225
    %v1786 = vunpack.c.h.b16 %v1225
    %v1787 = vunpack.c.l.b16 %v1226
    %v1788 = vunpack.c.h.b16 %v1226
    %v1789 = vunpack.c.l.b16 %v1227
    %v1790 = vunpack.c.h.b16 %v1227
    %v1791 = vunpack.c.l.b16 %v1228
    %v1792 = vunpack.c.h.b16 %v1228
    %v1793 = vunpack.c.l.b16 %v1229
    %v1794 = vunpack.c.h.b16 %v1229
    %v1795 = vunpack.c.l.b16 %v1230
    %v1796 = vunpack.c.h.b16 %v1230
    %v1797 = vunpack.c.l.b16 %v1231
    %v1798 = vunpack.c.h.b16 %v1231
    %v1799 = vunpack.c.l.b16 %v1232
    %v1800 = vunpack.c.h.b16 %v1232
    %v1801 = vunpack.c.l.b16 %v1233
    %v1802 = vunpack.c.h.b16 %v1233
    %v1803 = vunpack.c.l.b16 %v1234
    %v1804 = vunpack.c.h.b16 %v1234
    %v1805 = vunpack.c.l.b16 %v1235
    %v1806 = vunpack.c.h.b16 %v1235
    %v1807 = vunpack.c.l.b16 %v1236
    %v1808 = vunpack.c.h.b16 %v1236
    %v1809 = vunpack.c.l.b16 %v1237
    %v1810 = vunpack.c.h.b16 %v1237
    %v1811 = vunpack.c.l.b16 %v1238
    %v1812 = vunpack.c.h.b16 %v1238
    %v1813 = vunpack.c.l.b16 %v1239
    %v1814 = vunpack.c.h.b16 %v1239
    %v1815 = vunpack.c.l.b16 %v1240
    %v1816 = vunpack.c.h.b16 %v1240
    %v1817 = vunpack.c.l.b16 %v1241
    %v1818 = vunpack.c.h.b16 %v1241
    %v1819 = vunpack.c.l.b16 %v1242
    %v1820 = vunpack.c.h.b16 %v1242
    %v1821 = vunpack.c.l.b16 %v1243
    %v1822 = vunpack.c.h.b16 %v1243
    %v1823 = vunpack.c.l.b16 %v1244
    %v1824 = vunpack.c.h.b16 %v1244
    %v1825 = vunpack.c.l.b16 %v1245
    %v1826 = vunpack.c.h.b16 %v1245
    %v1827 = vunpack.c.l.b16 %v1246
    %v1828 = vunpack.c.h.b16 %v1246
    %v1829 = vunpack.c.l.b16 %v1247
    %v1830 = vunpack.c.h.b16 %v1247
    %v1831 = vunpack.c.l.b16 %v1248
    %v1832 = vunpack.c.h.b16 %v1248
    %v1833 = vunpack.c.l.b16 %v1249
    %v1834 = vunpack.c.h.b16 %v1249
    %v1835 = vunpack.c.l.b16 %v1250
    %v1836 = vunpack.c.h.b16 %v1250
    %v1837 = vunpack.c.l.b16 %v1251
    %v1838 = vunpack.c.h.b16 %v1251
    %v1839 = vunpack.c.l.b16 %v1252
    %v1840 = vunpack.c.h.b16 %v1252
    %v1841 = vunpack.c.l.b16 %v1253
    %v1842 = vunpack.c.h.b16 %v1253
    %v1843 = vunpack.c.l.b16 %v1254
    %v1844 = vunpack.c.h.b16 %v1254
    %v1845 = vunpack.c.l.b16 %v1255
    %v1846 = vunpack.c.h.b16 %v1255
    %v1847 = vunpack.c.l.b16 %v1256
    %v1848 = vunpack.c.h.b16 %v1256
    %v1849 = vunpack.c.l.b16 %v1257
    %v1850 = vunpack.c.h.b16 %v1257
    %v1851 = vunpack.c.l.b16 %v1258
    %v1852 = vunpack.c.h.b16 %v1258
    %v1853 = vunpack.c.l.b16 %v1259
    %v1854 = vunpack.c.h.b16 %v1259
    %v1855 = vunpack.c.l.b16 %v1260
    %v1856 = vunpack.c.h.b16 %v1260
    %v1857 = vunpack.c.l.b16 %v1261
    %v1858 = vunpack.c.h.b16 %v1261
    %v1859 = vunpack.c.l.b16 %v1262
    %v1860 = vunpack.c.h.b16 %v1262
    %v1861 = vunpack.c.l.b16 %v1263
    %v1862 = vunpack.c.h.b16 %v1263
    %v1863 = vunpack.c.l.b16 %v1264
    %v1864 = vunpack.c.h.b16 %v1264
    %v1865 = vunpack.c.l.b16 %v1265
    %v1866 = vunpack.c.h.b16 %v1265
    %v1867 = vunpack.c.l.b16 %v1266
    %v1868 = vunpack.c.h.b16 %v1266
    %v1869 = vunpack.c.l.b16 %v1267
    %v1870 = vunpack.c.h.b16 %v1267
    %v1871 = vunpack.c.l.b16 %v1268
    %v1872 = vunpack.c.h.b16 %v1268
    %v1873 = vunpack.c.l.b16 %v1269
    %v1874 = vunpack.c.h.b16 %v1269
    %v1875 = vunpack.c.l.b16 %v1270
    %v1876 = vunpack.c.h.b16 %v1270
    %v1877 = vunpack.c.l.b16 %v1271
    %v1878 = vunpack.c.h.b16 %v1271
    %v1879 = vunpack.c.l.b16 %v1272
    %v1880 = vunpack.c.h.b16 %v1272
    %v1881 = vunpack.c.l.b16 %v1273
    %v1882 = vunpack.c.h.b16 %v1273
    %v1883 = vunpack.c.l.b16 %v1274
    %v1884 = vunpack.c.h.b16 %v1274
    %v1885 = vunpack.c.l.b16 %v1275
    %v1886 = vunpack.c.h.b16 %v1275
    %v1887 = vunpack.c.l.b16 %v1276
    %v1888 = vunpack.c.h.b16 %v1276
    %v1889 = vunpack.c.l.b16 %v1277
    %v1890 = vunpack.c.h.b16 %v1277
    %v1891 = vunpack.c.l.b16 %v1278
    %v1892 = vunpack.c.h.b16 %v1278
    %v1893 = vunpack.c.l.b16 %v1279
    %v1894 = vunpack.c.h.b16 %v1279
    %v1895 = vunpack.c.l.b16 %v1280
    %v1896 = vunpack.c.h.b16 %v1280
    %v1897 = vunpack.c.l.b16 %v1281
    %v1898 = vunpack.c.h.b16 %v1281
    %v1899 = vunpack.c.l.b16 %v1282
    %v1900 = vunpack.c.h.b16 %v1282
    %v1901 = vunpack.c.l.b16 %v1283
    %v1902 = vunpack.c.h.b16 %v1283
    %v1903 = vunpack.c.l.b16 %v1284
    %v1904 = vunpack.c.h.b16 %v1284
    %v1905 = vunpack.c.l.b16 %v1285
    %v1906 = vunpack.c.h.b16 %v1285
    %v1907 = vunpack.c.l.b16 %v1286
    %v1908 = vunpack.c.h.b16 %v1286
    %v1909 = vunpack.c.l.b16 %v1287
    %v1910 = vunpack.c.h.b16 %v1287
    %v1911 = vunpack.c.l.b16 %v1288
    %v1912 = vunpack.c.h.b16 %v1288
    %v1913 = vunpack.c.l.b16 %v1289
    %v1914 = vunpack.c.h.b16 %v1289
    %v1915 = vunpack.c.l.b16 %v1290
    %v1916 = vunpack.c.h.b16 %v1290
    %v1917 = vunpack.c.l.b16 %v1291
    %v1918 = vunpack.c.h.b16 %v1291
    %v1919 = vunpack.c.l.b16 %v1292
    %v1920 = vunpack.c.h.b16 %v1292
    %v1921 = vunpack.c.l.b16 %v1293
    %v1922 = vunpack.c.h.b16 %v1293
    %v1923 = vunpack.c.l.b16 %v1294
    %v1924 = vunpack.c.h.b16 %v1294
    %v1925 = vunpack.c.l.b16 %v1295
    %v1926 = vunpack.c.h.b16 %v1295
    %v1927 = vunpack.c.l.b16 %v1296
    %v1928 = vunpack.c.h.b16 %v1296
    %v1929 = vunpack.c.l.b16 %v1297
    %v1930 = vunpack.c.h.b16 %v1297
    %v1931 = vunpack.c.l.b16 %v1298
    %v1932 = vunpack.c.h.b16 %v1298
    %v1933 = vunpack.c.l.b16 %v1299
    %v1934 = vunpack.c.h.b16 %v1299
    %v1935 = vunpack.c.l.b16 %v1300
    %v1936 = vunpack.c.h.b16 %v1300
    %v1937 = vunpack.c.l.b16 %v1301
    %v1938 = vunpack.c.h.b16 %v1301
    %v1939 = vunpack.c.l.b16 %v1302
    %v1940 = vunpack.c.h.b16 %v1302
    %v1941 = vunpack.c.l.b16 %v1303
    %v1942 = vunpack.c.h.b16 %v1303
    %v1943 = vunpack.c.l.b16 %v1304
    %v1944 = vunpack.c.h.b16 %v1304
    %v1945 = vunpack.c.l.b16 %v1305
    %v1946 = vunpack.c.h.b16 %v1305
    %v1947 = vunpack.c.l.b16 %v1306
    %v1948 = vunpack.c.h.b16 %v1306
    %v1949 = vunpack.c.l.b16 %v1307
    %v1950 = vunpack.c.h.b16 %v1307
    %v1951 = vunpack.c.l.b16 %v1308
    %v1952 = vunpack.c.h.b16 %v1308
    %v1953 = vunpack.c.l.b16 %v1309
    %v1954 = vunpack.c.h.b16 %v1309
    %v1955 = vunpack.c.l.b16 %v1310
    %v1956 = vunpack.c.h.b16 %v1310
    %v1957 = vunpack.c.l.b16 %v1311
    %v1958 = vunpack.c.h.b16 %v1311
    %v1959 = vunpack.c.l.b16 %v1312
    %v1960 = vunpack.c.h.b16 %v1312
    %v1961 = vunpack.c.l.b16 %v1313
    %v1962 = vunpack.c.h.b16 %v1313
    %v1963 = vunpack.c.l.b16 %v1314
    %v1964 = vunpack.c.h.b16 %v1314
    %v1965 = vunpack.c.l.b16 %v1315
    %v1966 = vunpack.c.h.b16 %v1315
    %v1967 = vunpack.c.l.b16 %v1316
    %v1968 = vunpack.c.h.b16 %v1316
    %v1969 = vunpack.c.l.b16 %v1317
    %v1970 = vunpack.c.h.b16 %v1317
    %v1971 = vunpack.c.l.b16 %v1318
    %v1972 = vunpack.c.h.b16 %v1318
    %v1973 = vunpack.c.l.b16 %v1319
    %v1974 = vunpack.c.h.b16 %v1319
    %v1975 = vunpack.c.l.b16 %v1320
    %v1976 = vunpack.c.h.b16 %v1320
    %v1977 = vunpack.c.l.b16 %v1321
    %v1978 = vunpack.c.h.b16 %v1321
    %v1979 = vunpack.c.l.b16 %v1322
    %v1980 = vunpack.c.h.b16 %v1322
    %v1981 = vunpack.c.l.b16 %v1323
    %v1982 = vunpack.c.h.b16 %v1323
    %v1983 = vunpack.c.l.b16 %v1324
    %v1984 = vunpack.c.h.b16 %v1324
    %v1985 = vunpack.c.l.b16 %v1325
    %v1986 = vunpack.c.h.b16 %v1325
    %v1987 = vunpack.c.l.b16 %v1326
    %v1988 = vunpack.c.h.b16 %v1326
    %v1989 = vunpack.c.l.b16 %v1327
    %v1990 = vunpack.c.h.b16 %v1327
    %v1991 = vunpack.c.l.b16 %v1328
    %v1992 = vunpack.c.h.b16 %v1328
    %v1993 = vunpack.c.l.b16 %v1329
    %v1994 = vunpack.c.h.b16 %v1329
    %v1995 = vunpack.c.l.b16 %v1330
    %v1996 = vunpack.c.h.b16 %v1330
    %v1997 = vunpack.c.l.b16 %v1331
    %v1998 = vunpack.c.h.b16 %v1331
    %v1999 = vunpack.c.l.b16 %v1332
    %v2000 = vunpack.c.h.b16 %v1332
    %v2001 = vunpack.c.l.b16 %v1333
    %v2002 = vunpack.c.h.b16 %v1333
    %v2003 = vunpack.c.l.b16 %v1334
    %v2004 = vunpack.c.h.b16 %v1334
    %v2005 = vunpack.c.l.b16 %v1335
    %v2006 = vunpack.c.h.b16 %v1335
    %v2007 = vunpack.c.l.b16 %v1336
    %v2008 = vunpack.c.h.b16 %v1336
    %v2009 = vunpack.c.l.b16 %v1337
    %v2010 = vunpack.c.h.b16 %v1337
    %v2011 = vunpack.c.l.b16 %v1338
    %v2012 = vunpack.c.h.b16 %v1338
    %v2013 = vunpack.c.l.b16 %v1339
    %v2014 = vunpack.c.h.b16 %v1339
    %v2015 = vunpack.c.l.b16 %v1340
    %v2016 = vunpack.c.h.b16 %v1340
    %v2017 = vunpack.c.l.b16 %v1341
    %v2018 = vunpack.c.h.b16 %v1341
    %v2019 = vunpack.c.l.b16 %v1342
    %v2020 = vunpack.c.h.b16 %v1342
    %v2021 = vunpack.c.l.b16 %v1343
    %v2022 = vunpack.c.h.b16 %v1343
    %v2023 = vunpack.c.l.b16 %v1344
    %v2024 = vunpack.c.h.b16 %v1344
    %v2025 = vunpack.c.l.b16 %v1345
    %v2026 = vunpack.c.h.b16 %v1345
    %v2027 = vunpack.c.l.b16 %v1346
    %v2028 = vunpack.c.h.b16 %v1346
    %v2029 = vunpack.c.l.b16 %v1347
    %v2030 = vunpack.c.h.b16 %v1347
    %v2031 = vunpack.c.l.b16 %v1348
    %v2032 = vunpack.c.h.b16 %v1348
    %v2033 = vunpack.c.l.b16 %v1349
    %v2034 = vunpack.c.h.b16 %v1349
    %v2035 = vunpack.c.l.b16 %v1350
    %v2036 = vunpack.c.h.b16 %v1350
    %v2037 = vunpack.c.l.b16 %v1351
    %v2038 = vunpack.c.h.b16 %v1351
    %v2039 = vunpack.c.l.b16 %v1352
    %v2040 = vunpack.c.h.b16 %v1352
    %v2041 = vunpack.c.l.b16 %v1353
    %v2042 = vunpack.c.h.b16 %v1353
    %v2043 = vunpack.c.l.b16 %v1354
    %v2044 = vunpack.c.h.b16 %v1354
    %v2045 = vunpack.c.l.b16 %v1355
    %v2046 = vunpack.c.h.b16 %v1355
    %v2047 = vunpack.c.l.b16 %v1356
    %v2048 = vunpack.c.h.b16 %v1356
    %v2049 = vunpack.c.l.b16 %v1357
    %v2050 = vunpack.c.h.b16 %v1357
    %v2051 = vunpack.c.l.b16 %v1358
    %v2052 = vunpack.c.h.b16 %v1358
    %v2053 = vunpack.c.l.b16 %v1359
    %v2054 = vunpack.c.h.b16 %v1359
    %v2055 = vunpack.c.l.b16 %v1360
    %v2056 = vunpack.c.h.b16 %v1360
    %v2057 = vunpack.c.l.b16 %v1361
    %v2058 = vunpack.c.h.b16 %v1361
    %v2059 = vunpack.c.l.b16 %v1362
    %v2060 = vunpack.c.h.b16 %v1362
    %v2061 = vunpack.c.l.b16 %v1363
    %v2062 = vunpack.c.h.b16 %v1363
    %v2063 = vunpack.c.l.b16 %v1364
    %v2064 = vunpack.c.h.b16 %v1364
    %v2065 = vunpack.c.l.b16 %v1365
    %v2066 = vunpack.c.h.b16 %v1365
    %v2067 = vunpack.c.l.b16 %v1366
    %v2068 = vunpack.c.h.b16 %v1366
    %v2069 = vunpack.c.l.b16 %v1367
    %v2070 = vunpack.c.h.b16 %v1367
    %v2071 = vunpack.c.l.b16 %v1368
    %v2072 = vunpack.c.h.b16 %v1368
    %v2073 = vunpack.c.l.b16 %v1369
    %v2074 = vunpack.c.h.b16 %v1369
    %v2075 = vunpack.c.l.b16 %v1370
    %v2076 = vunpack.c.h.b16 %v1370
    %v2077 = vunpack.c.l.b16 %v1371
    %v2078 = vunpack.c.h.b16 %v1371
    %v2079 = vunpack.c.l.b16 %v1372
    %v2080 = vunpack.c.h.b16 %v1372
    %v2081 = vunpack.c.l.b16 %v1373
    %v2082 = vunpack.c.h.b16 %v1373
    %v2083 = vunpack.c.l.b16 %v1374
    %v2084 = vunpack.c.h.b16 %v1374
    %v2085 = vunpack.c.l.b16 %v1375
    %v2086 = vunpack.c.h.b16 %v1375
    %v2087 = vunpack.c.l.b16 %v1376
    %v2088 = vunpack.c.h.b16 %v1376
    %v2089 = vunpack.c.l.b16 %v1377
    %v2090 = vunpack.c.h.b16 %v1377
    %v2091 = vunpack.c.l.b16 %v1378
    %v2092 = vunpack.c.h.b16 %v1378
    %v2093 = vunpack.c.l.b16 %v1379
    %v2094 = vunpack.c.h.b16 %v1379
    %v2095 = vunpack.c.l.b16 %v1380
    %v2096 = vunpack.c.h.b16 %v1380
    %v2097 = vunpack.c.l.b16 %v1381
    %v2098 = vunpack.c.h.b16 %v1381
    %v2099 = vunpack.c.l.b16 %v1382
    %v2100 = vunpack.c.h.b16 %v1382
    %v2101 = vunpack.c.l.b16 %v1383
    %v2102 = vunpack.c.h.b16 %v1383
    %v2103 = vunpack.c.l.b16 %v1384
    %v2104 = vunpack.c.h.b16 %v1384
    %v2105 = vunpack.c.l.b16 %v1385
    %v2106 = vunpack.c.h.b16 %v1385
    %v2107 = vunpack.c.l.b16 %v1386
    %v2108 = vunpack.c.h.b16 %v1386
    %v2109 = vunpack.c.l.b16 %v1387
    %v2110 = vunpack.c.h.b16 %v1387
    %v2111 = vunpack.c.l.b16 %v1388
    %v2112 = vunpack.c.h.b16 %v1388
    %v2113 = vunpack.c.l.b16 %v1389
    %v2114 = vunpack.c.h.b16 %v1389
    %v2115 = vunpack.c.l.b16 %v1390
    %v2116 = vunpack.c.h.b16 %v1390
    %v2117 = vunpack.c.l.b16 %v1391
    %v2118 = vunpack.c.h.b16 %v1391
    %v2119 = vunpack.c.l.b16 %v1392
    %v2120 = vunpack.c.h.b16 %v1392
    %v2121 = vunpack.c.l.b16 %v1393
    %v2122 = vunpack.c.h.b16 %v1393
    %v2123 = vunpack.c.l.b16 %v1394
    %v2124 = vunpack.c.h.b16 %v1394
    %v2125 = vunpack.c.l.b16 %v1395
    %v2126 = vunpack.c.h.b16 %v1395
    %v2127 = vunpack.c.l.b16 %v1396
    %v2128 = vunpack.c.h.b16 %v1396
    %v2129 = vunpack.c.l.b16 %v1397
    %v2130 = vunpack.c.h.b16 %v1397
    %v2131 = vunpack.c.l.b16 %v1398
    %v2132 = vunpack.c.h.b16 %v1398
    %v2133 = vunpack.c.l.b16 %v1399
    %v2134 = vunpack.c.h.b16 %v1399
    %v2135 = vunpack.c.l.b16 %v1400
    %v2136 = vunpack.c.h.b16 %v1400
    %v2137 = vunpack.c.l.b16 %v1401
    %v2138 = vunpack.c.h.b16 %v1401
    %v2139 = vunpack.c.l.b16 %v1402
    %v2140 = vunpack.c.h.b16 %v1402
    %v2141 = vunpack.c.l.b16 %v1403
    %v2142 = vunpack.c.h.b16 %v1403
    %v2143 = vunpack.c.l.b16 %v1404
    %v2144 = vunpack.c.h.b16 %v1404
    %v2145 = vunpack.c.l.b16 %v1405
    %v2146 = vunpack.c.h.b16 %v1405
    %v2147 = vunpack.c.l.b16 %v1406
    %v2148 = vunpack.c.h.b16 %v1406
    %v2149 = vunpack.c.l.b16 %v1407
    %v2150 = vunpack.c.h.b16 %v1407
    %v2151 = vunpack.c.l.b16 %v1408
    %v2152 = vunpack.c.h.b16 %v1408
    %v2153 = vunpack.c.l.b16 %v1409
    %v2154 = vunpack.c.h.b16 %v1409
    %v2155 = vunpack.c.l.b16 %v1410
    %v2156 = vunpack.c.h.b16 %v1410
    %v2157 = vunpack.c.l.b16 %v1411
    %v2158 = vunpack.c.h.b16 %v1411
    %v2159 = vunpack.c.l.b16 %v1412
    %v2160 = vunpack.c.h.b16 %v1412
    %v2161 = vunpack.c.l.b16 %v1413
    %v2162 = vunpack.c.h.b16 %v1413
    %v2163 = vunpack.c.l.b16 %v1414
    %v2164 = vunpack.c.h.b16 %v1414
    %v2165 = vunpack.c.l.b16 %v1415
    %v2166 = vunpack.c.h.b16 %v1415
    %v2167 = vunpack.c.l.b16 %v1416
    %v2168 = vunpack.c.h.b16 %v1416
    %v2169 = vunpack.c.l.b16 %v1417
    %v2170 = vunpack.c.h.b16 %v1417
    %v2171 = vunpack.c.l.b16 %v1418
    %v2172 = vunpack.c.h.b16 %v1418
    %v2173 = vunpack.c.l.b16 %v1419
    %v2174 = vunpack.c.h.b16 %v1419
    %v2175 = vunpack.c.l.b16 %v1420
    %v2176 = vunpack.c.h.b16 %v1420
    %v2177 = vunpack.c.l.b16 %v1421
    %v2178 = vunpack.c.h.b16 %v1421
    %v2179 = vunpack.c.l.b16 %v1422
    %v2180 = vunpack.c.h.b16 %v1422
    %v2181 = vunpack.c.l.b16 %v1423
    %v2182 = vunpack.c.h.b16 %v1423
    %v2183 = vunpack.c.l.b16 %v1424
    %v2184 = vunpack.c.h.b16 %v1424
    %v2185 = vunpack.c.l.b16 %v1425
    %v2186 = vunpack.c.h.b16 %v1425
    %v2187 = vunpack.c.l.b16 %v1426
    %v2188 = vunpack.c.h.b16 %v1426
    %v2189 = vunpack.c.l.b16 %v1427
    %v2190 = vunpack.c.h.b16 %v1427
    %v2191 = vunpack.c.l.b16 %v1428
    %v2192 = vunpack.c.h.b16 %v1428
    %v2193 = vunpack.c.l.b16 %v1429
    %v2194 = vunpack.c.h.b16 %v1429
    %v2195 = vunpack.c.l.b16 %v1430
    %v2196 = vunpack.c.h.b16 %v1430
    %v2197 = vunpack.c.l.b16 %v1431
    %v2198 = vunpack.c.h.b16 %v1431
    %v2199 = vunpack.c.l.b16 %v1432
    %v2200 = vunpack.c.h.b16 %v1432
    %v2201 = vunpack.c.l.b16 %v1433
    %v2202 = vunpack.c.h.b16 %v1433
    %v2203 = vunpack.c.l.b16 %v1434
    %v2204 = vunpack.c.h.b16 %v1434
    %v2205 = vunpack.c.l.b16 %v1435
    %v2206 = vunpack.c.h.b16 %v1435
    %v2207 = vunpack.c.l.b16 %v1436
    %v2208 = vunpack.c.h.b16 %v1436
    %v2209 = vunpack.c.l.b16 %v1437
    %v2210 = vunpack.c.h.b16 %v1437
    %v2211 = vunpack.c.l.b16 %v1438
    %v2212 = vunpack.c.h.b16 %v1438
    %v2213 = vunpack.c.l.b16 %v1439
    %v2214 = vunpack.c.h.b16 %v1439
    %v2215 = vunpack.c.l.b16 %v1440
    %v2216 = vunpack.c.h.b16 %v1440
    %v2217 = vunpack.c.l.b16 %v1441
    %v2218 = vunpack.c.h.b16 %v1441
    %v2219 = vpack.c.b16 %v1711, %v1707
    %v2220 = vpack.c.b16 %v1712, %v1708
    %v2221 = vpack.c.b16 %v1713, %v1709
    %v2222 = vpack.c.b16 %v1714, %v1710
    %v2223 = vpack.c.b16 %v1719, %v1715
    %v2224 = vpack.c.b16 %v1720, %v1716
    %v2225 = vpack.c.b16 %v1721, %v1717
    %v2226 = vpack.c.b16 %v1722, %v1718
    %v2227 = vpack.c.b16 %v1727, %v1723
    %v2228 = vpack.c.b16 %v1728, %v1724
    %v2229 = vpack.c.b16 %v1729, %v1725
    %v2230 = vpack.c.b16 %v1730, %v1726
    %v2231 = vpack.c.b16 %v1735, %v1731
    %v2232 = vpack.c.b16 %v1736, %v1732
    %v2233 = vpack.c.b16 %v1737, %v1733
    %v2234 = vpack.c.b16 %v1738, %v1734
    %v2235 = vpack.c.b16 %v1743, %v1739
    %v2236 = vpack.c.b16 %v1744, %v1740
    %v2237 = vpack.c.b16 %v1745, %v1741
    %v2238 = vpack.c.b16 %v1746, %v1742
    %v2239 = vpack.c.b16 %v1751, %v1747
    %v2240 = vpack.c.b16 %v1752, %v1748
    %v2241 = vpack.c.b16 %v1753, %v1749
    %v2242 = vpack.c.b16 %v1754, %v1750
    %v2243 = vpack.c.b16 %v1759, %v1755
    %v2244 = vpack.c.b16 %v1760, %v1756
    %v2245 = vpack.c.b16 %v1761, %v1757
    %v2246 = vpack.c.b16 %v1762, %v1758
    %v2247 = vpack.c.b16 %v1767, %v1763
    %v2248 = vpack.c.b16 %v1768, %v1764
    %v2249 = vpack.c.b16 %v1769, %v1765
    %v2250 = vpack.c.b16 %v1770, %v1766
    %v2251 = vpack.c.b16 %v1775, %v1771
    %v2252 = vpack.c.b16 %v1776, %v1772
    %v2253 = vpack.c.b16 %v1777, %v1773
    %v2254 = vpack.c.b16 %v1778, %v1774
    %v2255 = vpack.c.b16 %v1783, %v1779
    %v2256 = vpack.c.b16 %v1784, %v1780
    %v2257 = vpack.c.b16 %v1785, %v1781
    %v2258 = vpack.c.b16 %v1786, %v1782
    %v2259 = vpack.c.b16 %v1791, %v1787
    %v2260 = vpack.c.b16 %v1792, %v1788
    %v2261 = vpack.c.b16 %v1793, %v1789
    %v2262 = vpack.c.b16 %v1794, %v1790
    %v2263 = vpack.c.b16 %v1799, %v1795
    %v2264 = vpack.c.b16 %v1800, %v1796
    %v2265 = vpack.c.b16 %v1801, %v1797
    %v2266 = vpack.c.b16 %v1802, %v1798
    %v2267 = vpack.c.b16 %v1807, %v1803
    %v2268 = vpack.c.b16 %v1808, %v1804
    %v2269 = vpack.c.b16 %v1809, %v1805
    %v2270 = vpack.c.b16 %v1810, %v1806
    %v2271 = vpack.c.b16 %v1815, %v1811
    %v2272 = vpack.c.b16 %v1816, %v1812
    %v2273 = vpack.c.b16 %v1817, %v1813
    %v2274 = vpack.c.b16 %v1818, %v1814
    %v2275 = vpack.c.b16 %v1823, %v1819
    %v2276 = vpack.c.b16 %v1824, %v1820
    %v2277 = vpack.c.b16 %v1825, %v1821
    %v2278 = vpack.c.b16 %v1826, %v1822
    %v2279 = vpack.c.b16 %v1831, %v1827
    %v2280 = vpack.c.b16 %v1832, %v1828
    %v2281 = vpack.c.b16 %v1833, %v1829
    %v2282 = vpack.c.b16 %v1834, %v1830
    %v2283 = vpack.c.b16 %v1839, %v1835
    %v2284 = vpack.c.b16 %v1840, %v1836
    %v2285 = vpack.c.b16 %v1841, %v1837
    %v2286 = vpack.c.b16 %v1842, %v1838
    %v2287 = vpack.c.b16 %v1847, %v1843
    %v2288 = vpack.c.b16 %v1848, %v1844
    %v2289 = vpack.c.b16 %v1849, %v1845
    %v2290 = vpack.c.b16 %v1850, %v1846
    %v2291 = vpack.c.b16 %v1855, %v1851
    %v2292 = vpack.c.b16 %v1856, %v1852
    %v2293 = vpack.c.b16 %v1857, %v1853
    %v2294 = vpack.c.b16 %v1858, %v1854
    %v2295 = vpack.c.b16 %v1863, %v1859
    %v2296 = vpack.c.b16 %v1864, %v1860
    %v2297 = vpack.c.b16 %v1865, %v1861
    %v2298 = vpack.c.b16 %v1866, %v1862
    %v2299 = vpack.c.b16 %v1871, %v1867
    %v2300 = vpack.c.b16 %v1872, %v1868
    %v2301 = vpack.c.b16 %v1873, %v1869
    %v2302 = vpack.c.b16 %v1874, %v1870
    %v2303 = vpack.c.b16 %v1879, %v1875
    %v2304 = vpack.c.b16 %v1880, %v1876
    %v2305 = vpack.c.b16 %v1881, %v1877
    %v2306 = vpack.c.b16 %v1882, %v1878
    %v2307 = vpack.c.b16 %v1887, %v1883
    %v2308 = vpack.c.b16 %v1888, %v1884
    %v2309 = vpack.c.b16 %v1889, %v1885
    %v2310 = vpack.c.b16 %v1890, %v1886
    %v2311 = vpack.c.b16 %v1895, %v1891
    %v2312 = vpack.c.b16 %v1896, %v1892
    %v2313 = vpack.c.b16 %v1897, %v1893
    %v2314 = vpack.c.b16 %v1898, %v1894
    %v2315 = vpack.c.b16 %v1903, %v1899
    %v2316 = vpack.c.b16 %v1904, %v1900
    %v2317 = vpack.c.b16 %v1905, %v1901
    %v2318 = vpack.c.b16 %v1906, %v1902
    %v2319 = vpack.c.b16 %v1911, %v1907
    %v2320 = vpack.c.b16 %v1912, %v1908
    %v2321 = vpack.c.b16 %v1913, %v1909
    %v2322 = vpack.c.b16 %v1914, %v1910
    %v2323 = vpack.c.b16 %v1919, %v1915
    %v2324 = vpack.c.b16 %v1920, %v1916
    %v2325 = vpack.c.b16 %v1921, %v1917
    %v2326 = vpack.c.b16 %v1922, %v1918
    %v2327 = vpack.c.b16 %v1927, %v1923
    %v2328 = vpack.c.b16 %v1928, %v1924
    %v2329 = vpack.c.b16 %v1929, %v1925
    %v2330 = vpack.c.b16 %v1930, %v1926
    %v2331 = vpack.c.b16 %v1935, %v1931
    %v2332 = vpack.c.b16 %v1936, %v1932
    %v2333 = vpack.c.b16 %v1937, %v1933
    %v2334 = vpack.c.b16 %v1938, %v1934
    %v2335 = vpack.c.b16 %v1943, %v1939
    %v2336 = vpack.c.b16 %v1944, %v1940
    %v2337 = vpack.c.b16 %v1945, %v1941
    %v2338 = vpack.c.b16 %v1946, %v1942
    %v2339 = vpack.c.b16 %v1951, %v1947
    %v2340 = vpack.c.b16 %v1952, %v1948
    %v2341 = vpack.c.b16 %v1953, %v1949
    %v2342 = vpack.c.b16 %v1954, %v1950
    %v2343 = vpack.c.b16 %v1959, %v1955
    %v2344 = vpack.c.b16 %v1960, %v1956
    %v2345 = vpack.c.b16 %v1961, %v1957
    %v2346 = vpack.c.b16 %v1962, %v1958
    %v2347 = vpack.c.b16 %v1967, %v1963
    %v2348 = vpack.c.b16 %v1968, %v1964
    %v2349 = vpack.c.b16 %v1969, %v1965
    %v2350 = vpack.c.b16 %v1970, %v1966
    %v2351 = vpack.c.b16 %v1975, %v1971
    %v2352 = vpack.c.b16 %v1976, %v1972
    %v2353 = vpack.c.b16 %v1977, %v1973
    %v2354 = vpack.c.b16 %v1978, %v1974
    %v2355 = vpack.c.b16 %v1983, %v1979
    %v2356 = vpack.c.b16 %v1984, %v1980
    %v2357 = vpack.c.b16 %v1985, %v1981
    %v2358 = vpack.c.b16 %v1986, %v1982
    %v2359 = vpack.c.b16 %v1991, %v1987
    %v2360 = vpack.c.b16 %v1992, %v1988
    %v2361 = vpack.c.b16 %v1993, %v1989
    %v2362 = vpack.c.b16 %v1994, %v1990
    %v2363 = vpack.c.b16 %v1999, %v1995
    %v2364 = vpack.c.b16 %v2000, %v1996
    %v2365 = vpack.c.b16 %v2001, %v1997
    %v2366 = vpack.c.b16 %v2002, %v1998
    %v2367 = vpack.c.b16 %v2007, %v2003
    %v2368 = vpack.c.b16 %v2008, %v2004
    %v2369 = vpack.c.b16 %v2009, %v2005
    %v2370 = vpack.c.b16 %v2010, %v2006
    %v2371 = vpack.c.b16 %v2015, %v2011
    %v2372 = vpack.c.b16 %v2016, %v2012
    %v2373 = vpack.c.b16 %v2017, %v2013
    %v2374 = vpack.c.b16 %v2018, %v2014
    %v2375 = vpack.c.b16 %v2023, %v2019
    %v2376 = vpack.c.b16 %v2024, %v2020
    %v2377 = vpack.c.b16 %v2025, %v2021
    %v2378 = vpack.c.b16 %v2026, %v2022
    %v2379 = vpack.c.b16 %v2031, %v2027
    %v2380 = vpack.c.b16 %v2032, %v2028
    %v2381 = vpack.c.b16 %v2033, %v2029
    %v2382 = vpack.c.b16 %v2034, %v2030
    %v2383 = vpack.c.b16 %v2039, %v2035
    %v2384 = vpack.c.b16 %v2040, %v2036
    %v2385 = vpack.c.b16 %v2041, %v2037
    %v2386 = vpack.c.b16 %v2042, %v2038
    %v2387 = vpack.c.b16 %v2047, %v2043
    %v2388 = vpack.c.b16 %v2048, %v2044
    %v2389 = vpack.c.b16 %v2049, %v2045
    %v2390 = vpack.c.b16 %v2050, %v2046
    %v2391 = vpack.c.b16 %v2055, %v2051
    %v2392 = vpack.c.b16 %v2056, %v2052
    %v2393 = vpack.c.b16 %v2057, %v2053
    %v2394 = vpack.c.b16 %v2058, %v2054
    %v2395 = vpack.c.b16 %v2063, %v2059
    %v2396 = vpack.c.b16 %v2064, %v2060
    %v2397 = vpack.c.b16 %v2065, %v2061
    %v2398 = vpack.c.b16 %v2066, %v2062
    %v2399 = vpack.c.b16 %v2071, %v2067
    %v2400 = vpack.c.b16 %v2072, %v2068
    %v2401 = vpack.c.b16 %v2073, %v2069
    %v2402 = vpack.c.b16 %v2074, %v2070
    %v2403 = vpack.c.b16 %v2079, %v2075
    %v2404 = vpack.c.b16 %v2080, %v2076
    %v2405 = vpack.c.b16 %v2081, %v2077
    %v2406 = vpack.c.b16 %v2082, %v2078
    %v2407 = vpack.c.b16 %v2087, %v2083
    %v2408 = vpack.c.b16 %v2088, %v2084
    %v2409 = vpack.c.b16 %v2089, %v2085
    %v2410 = vpack.c.b16 %v2090, %v2086
    %v2411 = vpack.c.b16 %v2095, %v2091
    %v2412 = vpack.c.b16 %v2096, %v2092
    %v2413 = vpack.c.b16 %v2097, %v2093
    %v2414 = vpack.c.b16 %v2098, %v2094
    %v2415 = vpack.c.b16 %v2103, %v2099
    %v2416 = vpack.c.b16 %v2104, %v2100
    %v2417 = vpack.c.b16 %v2105, %v2101
    %v2418 = vpack.c.b16 %v2106, %v2102
    %v2419 = vpack.c.b16 %v2111, %v2107
    %v2420 = vpack.c.b16 %v2112, %v2108
    %v2421 = vpack.c.b16 %v2113, %v2109
    %v2422 = vpack.c.b16 %v2114, %v2110
    %v2423 = vpack.c.b16 %v2119, %v2115
    %v2424 = vpack.c.b16 %v2120, %v2116
    %v2425 = vpack.c.b16 %v2121, %v2117
    %v2426 = vpack.c.b16 %v2122, %v2118
    %v2427 = vpack.c.b16 %v2127, %v2123
    %v2428 = vpack.c.b16 %v2128, %v2124
    %v2429 = vpack.c.b16 %v2129, %v2125
    %v2430 = vpack.c.b16 %v2130, %v2126
    %v2431 = vpack.c.b16 %v2135, %v2131
    %v2432 = vpack.c.b16 %v2136, %v2132
    %v2433 = vpack.c.b16 %v2137, %v2133
    %v2434 = vpack.c.b16 %v2138, %v2134
    %v2435 = vpack.c.b16 %v2143, %v2139
    %v2436 = vpack.c.b16 %v2144, %v2140
    %v2437 = vpack.c.b16 %v2145, %v2141
    %v2438 = vpack.c.b16 %v2146, %v2142
    %v2439 = vpack.c.b16 %v2151, %v2147
    %v2440 = vpack.c.b16 %v2152, %v2148
    %v2441 = vpack.c.b16 %v2153, %v2149
    %v2442 = vpack.c.b16 %v2154, %v2150
    %v2443 = vpack.c.b16 %v2159, %v2155
    %v2444 = vpack.c.b16 %v2160, %v2156
    %v2445 = vpack.c.b16 %v2161, %v2157
    %v2446 = vpack.c.b16 %v2162, %v2158
    %v2447 = vpack.c.b16 %v2167, %v2163
    %v2448 = vpack.c.b16 %v2168, %v2164
    %v2449 = vpack.c.b16 %v2169, %v2165
    %v2450 = vpack.c.b16 %v2170, %v2166
    %v2451 = vpack.c.b16 %v2175, %v2171
    %v2452 = vpack.c.b16 %v2176, %v2172
    %v2453 = vpack.c.b16 %v2177, %v2173
    %v2454 = vpack.c.b16 %v2178, %v2174
    %v2455 = vpack.c.b16 %v2183, %v2179
    %v2456 = vpack.c.b16 %v2184, %v2180
    %v2457 = vpack.c.b16 %v2185, %v2181
    %v2458 = vpack.c.b16 %v2186, %v2182
    %v2459 = vpack.c.b16 %v2191, %v2187
    %v2460 = vpack.c.b16 %v2192, %v2188
    %v2461 = vpack.c.b16 %v2193, %v2189
    %v2462 = vpack.c.b16 %v2194, %v2190
    %v2463 = vpack.c.b16 %v2199, %v2195
    %v2464 = vpack.c.b16 %v2200, %v2196
    %v2465 = vpack.c.b16 %v2201, %v2197
    %v2466 = vpack.c.b16 %v2202, %v2198
    %v2467 = vpack.c.b16 %v2207, %v2203
    %v2468 = vpack.c.b16 %v2208, %v2204
    %v2469 = vpack.c.b16 %v2209, %v2205
    %v2470 = vpack.c.b16 %v2210, %v2206
    %v2471 = vpack.c.b16 %v2215, %v2211
    %v2472 = vpack.c.b16 %v2216, %v2212
    %v2473 = vpack.c.b16 %v2217, %v2213
    %v2474 = vpack.c.b16 %v2218, %v2214
    %2731 = vmatpush.bf16.msra.mxu0 %v2247
    %2732 = vmatpush.bf16.msra.mxu0 %v2243
    %2733 = vmatpush.bf16.msra.mxu0 %v2239
    %2734 = vmatpush.bf16.msra.mxu0 %v2235
    %2735 = vmatpush.bf16.msra.mxu0 %v2231
    %2736 = vmatpush.bf16.msra.mxu0 %v2227
    %2737 = vmatpush.bf16.msra.mxu0 %v2223
    %2738 = vmatpush.bf16.msra.mxu0 %v2219
    %2739 = vmatmul.bf16.gmra.mxu0 %v1178
    %v2740 = vpop.f32.mrf.mxu0
    %v2741 = vadd.f32 %v1443, %v2740
    %v2742 = vpop.f32.mrf.mxu0
    %2743 = vdwg.mxu0
    %2744 = vmatpush.bf16.msra.mxu0 %v2279
    %2745 = vmatpush.bf16.msra.mxu0 %v2275
    %2746 = vmatpush.bf16.msra.mxu0 %v2271
    %2747 = vmatpush.bf16.msra.mxu0 %v2267
    %2748 = vmatpush.bf16.msra.mxu0 %v2263
    %2749 = vmatpush.bf16.msra.mxu0 %v2259
    %2750 = vmatpush.bf16.msra.mxu0 %v2255
    %2751 = vmatpush.bf16.msra.mxu0 %v2251
    %2752 = vmatmul.bf16.gmra.mxu0 %v1179
    %v2753 = vpop.f32.mrf.mxu0
    %v2754 = vadd.f32 %v2741, %v2753
    %v2755 = vpop.f32.mrf.mxu0
    %2756 = vdwg.mxu0
    %2757 = vmatpush.bf16.msra.mxu0 %v2311
    %2758 = vmatpush.bf16.msra.mxu0 %v2307
    %2759 = vmatpush.bf16.msra.mxu0 %v2303
    %2760 = vmatpush.bf16.msra.mxu0 %v2299
    %2761 = vmatpush.bf16.msra.mxu0 %v2295
    %2762 = vmatpush.bf16.msra.mxu0 %v2291
    %2763 = vmatpush.bf16.msra.mxu0 %v2287
    %2764 = vmatpush.bf16.msra.mxu0 %v2283
    %2765 = vmatmul.bf16.gmra.mxu0 %v1180
    %v2766 = vpop.f32.mrf.mxu0
    %v2767 = vadd.f32 %v2754, %v2766
    %v2768 = vpop.f32.mrf.mxu0
    %2769 = vdwg.mxu0
    %2770 = vmatpush.bf16.msra.mxu0 %v2343
    %2771 = vmatpush.bf16.msra.mxu0 %v2339
    %2772 = vmatpush.bf16.msra.mxu0 %v2335
    %2773 = vmatpush.bf16.msra.mxu0 %v2331
    %2774 = vmatpush.bf16.msra.mxu0 %v2327
    %2775 = vmatpush.bf16.msra.mxu0 %v2323
    %2776 = vmatpush.bf16.msra.mxu0 %v2319
    %2777 = vmatpush.bf16.msra.mxu0 %v2315
    %2778 = vmatmul.bf16.gmra.mxu0 %v1181
    %v2779 = vpop.f32.mrf.mxu0
    %v2780 = vadd.f32 %v2767, %v2779
    %v2781 = vpop.f32.mrf.mxu0
    %2782 = vdwg.mxu0
    %2783 = vmatpush.bf16.msra.mxu0 %v2375
    %2784 = vmatpush.bf16.msra.mxu0 %v2371
    %2785 = vmatpush.bf16.msra.mxu0 %v2367
    %2786 = vmatpush.bf16.msra.mxu0 %v2363
    %2787 = vmatpush.bf16.msra.mxu0 %v2359
    %2788 = vmatpush.bf16.msra.mxu0 %v2355
    %2789 = vmatpush.bf16.msra.mxu0 %v2351
    %2790 = vmatpush.bf16.msra.mxu0 %v2347
    %2791 = vmatmul.bf16.gmra.mxu0 %v1182
    %v2792 = vpop.f32.mrf.mxu0
    %v2793 = vadd.f32 %v2780, %v2792
    %v2794 = vpop.f32.mrf.mxu0
    %2795 = vdwg.mxu0
    %2796 = vmatpush.bf16.msra.mxu0 %v2407
    %2797 = vmatpush.bf16.msra.mxu0 %v2403
    %2798 = vmatpush.bf16.msra.mxu0 %v2399
    %2799 = vmatpush.bf16.msra.mxu0 %v2395
    %2800 = vmatpush.bf16.msra.mxu0 %v2391
    %2801 = vmatpush.bf16.msra.mxu0 %v2387
    %2802 = vmatpush.bf16.msra.mxu0 %v2383
    %2803 = vmatpush.bf16.msra.mxu0 %v2379
    %2804 = vmatmul.bf16.gmra.mxu0 %v1183
    %v2805 = vpop.f32.mrf.mxu0
    %v2806 = vadd.f32 %v2793, %v2805
    %v2807 = vpop.f32.mrf.mxu0
    %2808 = vdwg.mxu0
    %2809 = vmatpush.bf16.msra.mxu0 %v2439
    %2810 = vmatpush.bf16.msra.mxu0 %v2435
    %2811 = vmatpush.bf16.msra.mxu0 %v2431
    %2812 = vmatpush.bf16.msra.mxu0 %v2427
    %2813 = vmatpush.bf16.msra.mxu0 %v2423
    %2814 = vmatpush.bf16.msra.mxu0 %v2419
    %2815 = vmatpush.bf16.msra.mxu0 %v2415
    %2816 = vmatpush.bf16.msra.mxu0 %v2411
    %2817 = vmatmul.bf16.gmra.mxu0 %v1184
    %v2818 = vpop.f32.mrf.mxu0
    %v2819 = vadd.f32 %v2806, %v2818
    %v2820 = vpop.f32.mrf.mxu0
    %2821 = vdwg.mxu0
    %2822 = vmatpush.bf16.msra.mxu0 %v2471
    %2823 = vmatpush.bf16.msra.mxu0 %v2467
    %2824 = vmatpush.bf16.msra.mxu0 %v2463
    %2825 = vmatpush.bf16.msra.mxu0 %v2459
    %2826 = vmatpush.bf16.msra.mxu0 %v2455
    %2827 = vmatpush.bf16.msra.mxu0 %v2451
    %2828 = vmatpush.bf16.msra.mxu0 %v2447
    %2829 = vmatpush.bf16.msra.mxu0 %v2443
    %2830 = vmatmul.bf16.gmra.mxu0 %v1185
    %v2831 = vpop.f32.mrf.mxu0
    %v2832 = vadd.f32 %v2819, %v2831
    %v2833 = vpop.f32.mrf.mxu0
    %2834 = vdwg.mxu0
    %2835 = vmatpush.bf16.msra.mxu0 %v2248
    %2836 = vmatpush.bf16.msra.mxu0 %v2244
    %2837 = vmatpush.bf16.msra.mxu0 %v2240
    %2838 = vmatpush.bf16.msra.mxu0 %v2236
    %2839 = vmatpush.bf16.msra.mxu0 %v2232
    %2840 = vmatpush.bf16.msra.mxu0 %v2228
    %2841 = vmatpush.bf16.msra.mxu0 %v2224
    %2842 = vmatpush.bf16.msra.mxu0 %v2220
    %2843 = vmatmul.bf16.gmra.mxu0 %v1178
    %v2844 = vpop.f32.mrf.mxu0
    %v2845 = vadd.f32 %v1444, %v2844
    %v2846 = vpop.f32.mrf.mxu0
    %2847 = vdwg.mxu0
    %2848 = vmatpush.bf16.msra.mxu0 %v2280
    %2849 = vmatpush.bf16.msra.mxu0 %v2276
    %2850 = vmatpush.bf16.msra.mxu0 %v2272
    %2851 = vmatpush.bf16.msra.mxu0 %v2268
    %2852 = vmatpush.bf16.msra.mxu0 %v2264
    %2853 = vmatpush.bf16.msra.mxu0 %v2260
    %2854 = vmatpush.bf16.msra.mxu0 %v2256
    %2855 = vmatpush.bf16.msra.mxu0 %v2252
    %2856 = vmatmul.bf16.gmra.mxu0 %v1179
    %v2857 = vpop.f32.mrf.mxu0
    %v2858 = vadd.f32 %v2845, %v2857
    %v2859 = vpop.f32.mrf.mxu0
    %2860 = vdwg.mxu0
    %2861 = vmatpush.bf16.msra.mxu0 %v2312
    %2862 = vmatpush.bf16.msra.mxu0 %v2308
    %2863 = vmatpush.bf16.msra.mxu0 %v2304
    %2864 = vmatpush.bf16.msra.mxu0 %v2300
    %2865 = vmatpush.bf16.msra.mxu0 %v2296
    %2866 = vmatpush.bf16.msra.mxu0 %v2292
    %2867 = vmatpush.bf16.msra.mxu0 %v2288
    %2868 = vmatpush.bf16.msra.mxu0 %v2284
    %2869 = vmatmul.bf16.gmra.mxu0 %v1180
    %v2870 = vpop.f32.mrf.mxu0
    %v2871 = vadd.f32 %v2858, %v2870
    %v2872 = vpop.f32.mrf.mxu0
    %2873 = vdwg.mxu0
    %2874 = vmatpush.bf16.msra.mxu0 %v2344
    %2875 = vmatpush.bf16.msra.mxu0 %v2340
    %2876 = vmatpush.bf16.msra.mxu0 %v2336
    %2877 = vmatpush.bf16.msra.mxu0 %v2332
    %2878 = vmatpush.bf16.msra.mxu0 %v2328
    %2879 = vmatpush.bf16.msra.mxu0 %v2324
    %2880 = vmatpush.bf16.msra.mxu0 %v2320
    %2881 = vmatpush.bf16.msra.mxu0 %v2316
    %2882 = vmatmul.bf16.gmra.mxu0 %v1181
    %v2883 = vpop.f32.mrf.mxu0
    %v2884 = vadd.f32 %v2871, %v2883
    %v2885 = vpop.f32.mrf.mxu0
    %2886 = vdwg.mxu0
    %2887 = vmatpush.bf16.msra.mxu0 %v2376
    %2888 = vmatpush.bf16.msra.mxu0 %v2372
    %2889 = vmatpush.bf16.msra.mxu0 %v2368
    %2890 = vmatpush.bf16.msra.mxu0 %v2364
    %2891 = vmatpush.bf16.msra.mxu0 %v2360
    %2892 = vmatpush.bf16.msra.mxu0 %v2356
    %2893 = vmatpush.bf16.msra.mxu0 %v2352
    %2894 = vmatpush.bf16.msra.mxu0 %v2348
    %2895 = vmatmul.bf16.gmra.mxu0 %v1182
    %v2896 = vpop.f32.mrf.mxu0
    %v2897 = vadd.f32 %v2884, %v2896
    %v2898 = vpop.f32.mrf.mxu0
    %2899 = vdwg.mxu0
    %2900 = vmatpush.bf16.msra.mxu0 %v2408
    %2901 = vmatpush.bf16.msra.mxu0 %v2404
    %2902 = vmatpush.bf16.msra.mxu0 %v2400
    %2903 = vmatpush.bf16.msra.mxu0 %v2396
    %2904 = vmatpush.bf16.msra.mxu0 %v2392
    %2905 = vmatpush.bf16.msra.mxu0 %v2388
    %2906 = vmatpush.bf16.msra.mxu0 %v2384
    %2907 = vmatpush.bf16.msra.mxu0 %v2380
    %2908 = vmatmul.bf16.gmra.mxu0 %v1183
    %v2909 = vpop.f32.mrf.mxu0
    %v2910 = vadd.f32 %v2897, %v2909
    %v2911 = vpop.f32.mrf.mxu0
    %2912 = vdwg.mxu0
    %2913 = vmatpush.bf16.msra.mxu0 %v2440
    %2914 = vmatpush.bf16.msra.mxu0 %v2436
    %2915 = vmatpush.bf16.msra.mxu0 %v2432
    %2916 = vmatpush.bf16.msra.mxu0 %v2428
    %2917 = vmatpush.bf16.msra.mxu0 %v2424
    %2918 = vmatpush.bf16.msra.mxu0 %v2420
    %2919 = vmatpush.bf16.msra.mxu0 %v2416
    %2920 = vmatpush.bf16.msra.mxu0 %v2412
    %2921 = vmatmul.bf16.gmra.mxu0 %v1184
    %v2922 = vpop.f32.mrf.mxu0
    %v2923 = vadd.f32 %v2910, %v2922
    %v2924 = vpop.f32.mrf.mxu0
    %2925 = vdwg.mxu0
    %2926 = vmatpush.bf16.msra.mxu0 %v2472
    %2927 = vmatpush.bf16.msra.mxu0 %v2468
    %2928 = vmatpush.bf16.msra.mxu0 %v2464
    %2929 = vmatpush.bf16.msra.mxu0 %v2460
    %2930 = vmatpush.bf16.msra.mxu0 %v2456
    %2931 = vmatpush.bf16.msra.mxu0 %v2452
    %2932 = vmatpush.bf16.msra.mxu0 %v2448
    %2933 = vmatpush.bf16.msra.mxu0 %v2444
    %2934 = vmatmul.bf16.gmra.mxu0 %v1185
    %v2935 = vpop.f32.mrf.mxu0
    %v2936 = vadd.f32 %v2923, %v2935
    %v2937 = vpop.f32.mrf.mxu0
    %2938 = vdwg.mxu0
    %2939 = vmatpush.bf16.msra.mxu0 %v2249
    %2940 = vmatpush.bf16.msra.mxu0 %v2245
    %2941 = vmatpush.bf16.msra.mxu0 %v2241
    %2942 = vmatpush.bf16.msra.mxu0 %v2237
    %2943 = vmatpush.bf16.msra.mxu0 %v2233
    %2944 = vmatpush.bf16.msra.mxu0 %v2229
    %2945 = vmatpush.bf16.msra.mxu0 %v2225
    %2946 = vmatpush.bf16.msra.mxu0 %v2221
    %2947 = vmatmul.bf16.gmra.mxu0 %v1178
    %v2948 = vpop.f32.mrf.mxu0
    %v2949 = vadd.f32 %v1445, %v2948
    %v2950 = vpop.f32.mrf.mxu0
    %2951 = vdwg.mxu0
    %2952 = vmatpush.bf16.msra.mxu0 %v2281
    %2953 = vmatpush.bf16.msra.mxu0 %v2277
    %2954 = vmatpush.bf16.msra.mxu0 %v2273
    %2955 = vmatpush.bf16.msra.mxu0 %v2269
    %2956 = vmatpush.bf16.msra.mxu0 %v2265
    %2957 = vmatpush.bf16.msra.mxu0 %v2261
    %2958 = vmatpush.bf16.msra.mxu0 %v2257
    %2959 = vmatpush.bf16.msra.mxu0 %v2253
    %2960 = vmatmul.bf16.gmra.mxu0 %v1179
    %v2961 = vpop.f32.mrf.mxu0
    %v2962 = vadd.f32 %v2949, %v2961
    %v2963 = vpop.f32.mrf.mxu0
    %2964 = vdwg.mxu0
    %2965 = vmatpush.bf16.msra.mxu0 %v2313
    %2966 = vmatpush.bf16.msra.mxu0 %v2309
    %2967 = vmatpush.bf16.msra.mxu0 %v2305
    %2968 = vmatpush.bf16.msra.mxu0 %v2301
    %2969 = vmatpush.bf16.msra.mxu0 %v2297
    %2970 = vmatpush.bf16.msra.mxu0 %v2293
    %2971 = vmatpush.bf16.msra.mxu0 %v2289
    %2972 = vmatpush.bf16.msra.mxu0 %v2285
    %2973 = vmatmul.bf16.gmra.mxu0 %v1180
    %v2974 = vpop.f32.mrf.mxu0
    %v2975 = vadd.f32 %v2962, %v2974
    %v2976 = vpop.f32.mrf.mxu0
    %2977 = vdwg.mxu0
    %2978 = vmatpush.bf16.msra.mxu0 %v2345
    %2979 = vmatpush.bf16.msra.mxu0 %v2341
    %2980 = vmatpush.bf16.msra.mxu0 %v2337
    %2981 = vmatpush.bf16.msra.mxu0 %v2333
    %2982 = vmatpush.bf16.msra.mxu0 %v2329
    %2983 = vmatpush.bf16.msra.mxu0 %v2325
    %2984 = vmatpush.bf16.msra.mxu0 %v2321
    %2985 = vmatpush.bf16.msra.mxu0 %v2317
    %2986 = vmatmul.bf16.gmra.mxu0 %v1181
    %v2987 = vpop.f32.mrf.mxu0
    %v2988 = vadd.f32 %v2975, %v2987
    %v2989 = vpop.f32.mrf.mxu0
    %2990 = vdwg.mxu0
    %2991 = vmatpush.bf16.msra.mxu0 %v2377
    %2992 = vmatpush.bf16.msra.mxu0 %v2373
    %2993 = vmatpush.bf16.msra.mxu0 %v2369
    %2994 = vmatpush.bf16.msra.mxu0 %v2365
    %2995 = vmatpush.bf16.msra.mxu0 %v2361
    %2996 = vmatpush.bf16.msra.mxu0 %v2357
    %2997 = vmatpush.bf16.msra.mxu0 %v2353
    %2998 = vmatpush.bf16.msra.mxu0 %v2349
    %2999 = vmatmul.bf16.gmra.mxu0 %v1182
    %v3000 = vpop.f32.mrf.mxu0
    %v3001 = vadd.f32 %v2988, %v3000
    %v3002 = vpop.f32.mrf.mxu0
    %3003 = vdwg.mxu0
    %3004 = vmatpush.bf16.msra.mxu0 %v2409
    %3005 = vmatpush.bf16.msra.mxu0 %v2405
    %3006 = vmatpush.bf16.msra.mxu0 %v2401
    %3007 = vmatpush.bf16.msra.mxu0 %v2397
    %3008 = vmatpush.bf16.msra.mxu0 %v2393
    %3009 = vmatpush.bf16.msra.mxu0 %v2389
    %3010 = vmatpush.bf16.msra.mxu0 %v2385
    %3011 = vmatpush.bf16.msra.mxu0 %v2381
    %3012 = vmatmul.bf16.gmra.mxu0 %v1183
    %v3013 = vpop.f32.mrf.mxu0
    %v3014 = vadd.f32 %v3001, %v3013
    %v3015 = vpop.f32.mrf.mxu0
    %3016 = vdwg.mxu0
    %3017 = vmatpush.bf16.msra.mxu0 %v2441
    %3018 = vmatpush.bf16.msra.mxu0 %v2437
    %3019 = vmatpush.bf16.msra.mxu0 %v2433
    %3020 = vmatpush.bf16.msra.mxu0 %v2429
    %3021 = vmatpush.bf16.msra.mxu0 %v2425
    %3022 = vmatpush.bf16.msra.mxu0 %v2421
    %3023 = vmatpush.bf16.msra.mxu0 %v2417
    %3024 = vmatpush.bf16.msra.mxu0 %v2413
    %3025 = vmatmul.bf16.gmra.mxu0 %v1184
    %v3026 = vpop.f32.mrf.mxu0
    %v3027 = vadd.f32 %v3014, %v3026
    %v3028 = vpop.f32.mrf.mxu0
    %3029 = vdwg.mxu0
    %3030 = vmatpush.bf16.msra.mxu0 %v2473
    %3031 = vmatpush.bf16.msra.mxu0 %v2469
    %3032 = vmatpush.bf16.msra.mxu0 %v2465
    %3033 = vmatpush.bf16.msra.mxu0 %v2461
    %3034 = vmatpush.bf16.msra.mxu0 %v2457
    %3035 = vmatpush.bf16.msra.mxu0 %v2453
    %3036 = vmatpush.bf16.msra.mxu0 %v2449
    %3037 = vmatpush.bf16.msra.mxu0 %v2445
    %3038 = vmatmul.bf16.gmra.mxu0 %v1185
    %v3039 = vpop.f32.mrf.mxu0
    %v3040 = vadd.f32 %v3027, %v3039
    %v3041 = vpop.f32.mrf.mxu0
    %3042 = vdwg.mxu0
    %3043 = vmatpush.bf16.msra.mxu0 %v2250
    %3044 = vmatpush.bf16.msra.mxu0 %v2246
    %3045 = vmatpush.bf16.msra.mxu0 %v2242
    %3046 = vmatpush.bf16.msra.mxu0 %v2238
    %3047 = vmatpush.bf16.msra.mxu0 %v2234
    %3048 = vmatpush.bf16.msra.mxu0 %v2230
    %3049 = vmatpush.bf16.msra.mxu0 %v2226
    %3050 = vmatpush.bf16.msra.mxu0 %v2222
    %3051 = vmatmul.bf16.gmra.mxu0 %v1178
    %v3052 = vpop.f32.mrf.mxu0
    %v3053 = vadd.f32 %v1446, %v3052
    %v3054 = vpop.f32.mrf.mxu0
    %3055 = vdwg.mxu0
    %3056 = vmatpush.bf16.msra.mxu0 %v2282
    %3057 = vmatpush.bf16.msra.mxu0 %v2278
    %3058 = vmatpush.bf16.msra.mxu0 %v2274
    %3059 = vmatpush.bf16.msra.mxu0 %v2270
    %3060 = vmatpush.bf16.msra.mxu0 %v2266
    %3061 = vmatpush.bf16.msra.mxu0 %v2262
    %3062 = vmatpush.bf16.msra.mxu0 %v2258
    %3063 = vmatpush.bf16.msra.mxu0 %v2254
    %3064 = vmatmul.bf16.gmra.mxu0 %v1179
    %v3065 = vpop.f32.mrf.mxu0
    %v3066 = vadd.f32 %v3053, %v3065
    %v3067 = vpop.f32.mrf.mxu0
    %3068 = vdwg.mxu0
    %3069 = vmatpush.bf16.msra.mxu0 %v2314
    %3070 = vmatpush.bf16.msra.mxu0 %v2310
    %3071 = vmatpush.bf16.msra.mxu0 %v2306
    %3072 = vmatpush.bf16.msra.mxu0 %v2302
    %3073 = vmatpush.bf16.msra.mxu0 %v2298
    %3074 = vmatpush.bf16.msra.mxu0 %v2294
    %3075 = vmatpush.bf16.msra.mxu0 %v2290
    %3076 = vmatpush.bf16.msra.mxu0 %v2286
    %3077 = vmatmul.bf16.gmra.mxu0 %v1180
    %v3078 = vpop.f32.mrf.mxu0
    %v3079 = vadd.f32 %v3066, %v3078
    %v3080 = vpop.f32.mrf.mxu0
    %3081 = vdwg.mxu0
    %3082 = vmatpush.bf16.msra.mxu0 %v2346
    %3083 = vmatpush.bf16.msra.mxu0 %v2342
    %3084 = vmatpush.bf16.msra.mxu0 %v2338
    %3085 = vmatpush.bf16.msra.mxu0 %v2334
    %3086 = vmatpush.bf16.msra.mxu0 %v2330
    %3087 = vmatpush.bf16.msra.mxu0 %v2326
    %3088 = vmatpush.bf16.msra.mxu0 %v2322
    %3089 = vmatpush.bf16.msra.mxu0 %v2318
    %3090 = vmatmul.bf16.gmra.mxu0 %v1181
    %v3091 = vpop.f32.mrf.mxu0
    %v3092 = vadd.f32 %v3079, %v3091
    %v3093 = vpop.f32.mrf.mxu0
    %3094 = vdwg.mxu0
    %3095 = vmatpush.bf16.msra.mxu0 %v2378
    %3096 = vmatpush.bf16.msra.mxu0 %v2374
    %3097 = vmatpush.bf16.msra.mxu0 %v2370
    %3098 = vmatpush.bf16.msra.mxu0 %v2366
    %3099 = vmatpush.bf16.msra.mxu0 %v2362
    %3100 = vmatpush.bf16.msra.mxu0 %v2358
    %3101 = vmatpush.bf16.msra.mxu0 %v2354
    %3102 = vmatpush.bf16.msra.mxu0 %v2350
    %3103 = vmatmul.bf16.gmra.mxu0 %v1182
    %v3104 = vpop.f32.mrf.mxu0
    %v3105 = vadd.f32 %v3092, %v3104
    %v3106 = vpop.f32.mrf.mxu0
    %3107 = vdwg.mxu0
    %3108 = vmatpush.bf16.msra.mxu0 %v2410
    %3109 = vmatpush.bf16.msra.mxu0 %v2406
    %3110 = vmatpush.bf16.msra.mxu0 %v2402
    %3111 = vmatpush.bf16.msra.mxu0 %v2398
    %3112 = vmatpush.bf16.msra.mxu0 %v2394
    %3113 = vmatpush.bf16.msra.mxu0 %v2390
    %3114 = vmatpush.bf16.msra.mxu0 %v2386
    %3115 = vmatpush.bf16.msra.mxu0 %v2382
    %3116 = vmatmul.bf16.gmra.mxu0 %v1183
    %v3117 = vpop.f32.mrf.mxu0
    %v3118 = vadd.f32 %v3105, %v3117
    %v3119 = vpop.f32.mrf.mxu0
    %3120 = vdwg.mxu0
    %3121 = vmatpush.bf16.msra.mxu0 %v2442
    %3122 = vmatpush.bf16.msra.mxu0 %v2438
    %3123 = vmatpush.bf16.msra.mxu0 %v2434
    %3124 = vmatpush.bf16.msra.mxu0 %v2430
    %3125 = vmatpush.bf16.msra.mxu0 %v2426
    %3126 = vmatpush.bf16.msra.mxu0 %v2422
    %3127 = vmatpush.bf16.msra.mxu0 %v2418
    %3128 = vmatpush.bf16.msra.mxu0 %v2414
    %3129 = vmatmul.bf16.gmra.mxu0 %v1184
    %v3130 = vpop.f32.mrf.mxu0
    %v3131 = vadd.f32 %v3118, %v3130
    %v3132 = vpop.f32.mrf.mxu0
    %3133 = vdwg.mxu0
    %3134 = vmatpush.bf16.msra.mxu0 %v2474
    %3135 = vmatpush.bf16.msra.mxu0 %v2470
    %3136 = vmatpush.bf16.msra.mxu0 %v2466
    %3137 = vmatpush.bf16.msra.mxu0 %v2462
    %3138 = vmatpush.bf16.msra.mxu0 %v2458
    %3139 = vmatpush.bf16.msra.mxu0 %v2454
    %3140 = vmatpush.bf16.msra.mxu0 %v2450
    %3141 = vmatpush.bf16.msra.mxu0 %v2446
    %3142 = vmatmul.bf16.gmra.mxu0 %v1185
    %v3143 = vpop.f32.mrf.mxu0
    %v3144 = vadd.f32 %v3131, %v3143
    %v3145 = vpop.f32.mrf.mxu0
    %3146 = vdwg.mxu0
    %v3147 = vmax.f32 %v2832, 0.0
    %v3148 = vmax.f32 %v2936, 0.0
    %v3149 = vmax.f32 %v3040, 0.0
    %v3150 = vmax.f32 %v3144, 0.0
    %v3151 = vpack.c.bf16 %v3147, %v3147
    %v3152 = vpack.c.bf16 %v3148, %v3148
    %v3153 = vpack.c.bf16 %v3149, %v3149
    %v3154 = vpack.c.bf16 %v3150, %v3150
    %v3155 = vld [vmem:[%s4] sm:$0xff]
    %v3156 = vld [vmem:[%s4 + $0x8] sm:$0xff]
    %v3157 = vld [vmem:[%s4 + $0x10] sm:$0xff]
    %v3158 = vld [vmem:[%s4 + $0x18] sm:$0xff]
    %v3159 = vld [vmem:[%s4 + $0x20] sm:$0xff]
    %v3160 = vld [vmem:[%s4 + $0x28] sm:$0xff]
    %v3161 = vld [vmem:[%s4 + $0x30] sm:$0xff]
    %v3162 = vld [vmem:[%s4 + $0x38] sm:$0xff]
    %v3163 = vld [vmem:[%s4 + $0x40] sm:$0xff]
    %v3164 = vld [vmem:[%s4 + $0x48] sm:$0xff]
    %v3165 = vld [vmem:[%s4 + $0x50] sm:$0xff]
    %v3166 = vld [vmem:[%s4 + $0x58] sm:$0xff]
    %v3167 = vld [vmem:[%s4 + $0x60] sm:$0xff]
    %v3168 = vld [vmem:[%s4 + $0x68] sm:$0xff]
    %v3169 = vld [vmem:[%s4 + $0x70] sm:$0xff]
    %v3170 = vld [vmem:[%s4 + $0x78] sm:$0xff]
    %v3171 = vld [vmem:[%s4 + $0x80] sm:$0xff]
    %v3172 = vld [vmem:[%s4 + $0x88] sm:$0xff]
    %v3173 = vld [vmem:[%s4 + $0x90] sm:$0xff]
    %v3174 = vld [vmem:[%s4 + $0x98] sm:$0xff]
    %v3175 = vld [vmem:[%s4 + $0xa0] sm:$0xff]
    %v3176 = vld [vmem:[%s4 + $0xa8] sm:$0xff]
    %v3177 = vld [vmem:[%s4 + $0xb0] sm:$0xff]
    %v3178 = vld [vmem:[%s4 + $0xb8] sm:$0xff]
    %v3179 = vld [vmem:[%s4 + $0xc0] sm:$0xff]
    %v3180 = vld [vmem:[%s4 + $0xc8] sm:$0xff]
    %v3181 = vld [vmem:[%s4 + $0xd0] sm:$0xff]
    %v3182 = vld [vmem:[%s4 + $0xd8] sm:$0xff]
    %v3183 = vld [vmem:[%s4 + $0xe0] sm:$0xff]
    %v3184 = vld [vmem:[%s4 + $0xe8] sm:$0xff]
    %v3185 = vld [vmem:[%s4 + $0xf0] sm:$0xff]
    %v3186 = vld [vmem:[%s4 + $0xf8] sm:$0xff]
    %v3187 = vld [vmem:[%s4 + $0x100] sm:$0xff]
    %v3188 = vld [vmem:[%s4 + $0x108] sm:$0xff]
    %v3189 = vld [vmem:[%s4 + $0x110] sm:$0xff]
    %v3190 = vld [vmem:[%s4 + $0x118] sm:$0xff]
    %v3191 = vld [vmem:[%s4 + $0x120] sm:$0xff]
    %v3192 = vld [vmem:[%s4 + $0x128] sm:$0xff]
    %v3193 = vld [vmem:[%s4 + $0x130] sm:$0xff]
    %v3194 = vld [vmem:[%s4 + $0x138] sm:$0xff]
    %v3195 = vld [vmem:[%s4 + $0x140] sm:$0xff]
    %v3196 = vld [vmem:[%s4 + $0x148] sm:$0xff]
    %v3197 = vld [vmem:[%s4 + $0x150] sm:$0xff]
    %v3198 = vld [vmem:[%s4 + $0x158] sm:$0xff]
    %v3199 = vld [vmem:[%s4 + $0x160] sm:$0xff]
    %v3200 = vld [vmem:[%s4 + $0x168] sm:$0xff]
    %v3201 = vld [vmem:[%s4 + $0x170] sm:$0xff]
    %v3202 = vld [vmem:[%s4 + $0x178] sm:$0xff]
    %v3203 = vld [vmem:[%s4 + $0x180] sm:$0xff]
    %v3204 = vld [vmem:[%s4 + $0x188] sm:$0xff]
    %v3205 = vld [vmem:[%s4 + $0x190] sm:$0xff]
    %v3206 = vld [vmem:[%s4 + $0x198] sm:$0xff]
    %v3207 = vld [vmem:[%s4 + $0x1a0] sm:$0xff]
    %v3208 = vld [vmem:[%s4 + $0x1a8] sm:$0xff]
    %v3209 = vld [vmem:[%s4 + $0x1b0] sm:$0xff]
    %v3210 = vld [vmem:[%s4 + $0x1b8] sm:$0xff]
    %v3211 = vld [vmem:[%s4 + $0x1c0] sm:$0xff]
    %v3212 = vld [vmem:[%s4 + $0x1c8] sm:$0xff]
    %v3213 = vld [vmem:[%s4 + $0x1d0] sm:$0xff]
    %v3214 = vld [vmem:[%s4 + $0x1d8] sm:$0xff]
    %v3215 = vld [vmem:[%s4 + $0x1e0] sm:$0xff]
    %v3216 = vld [vmem:[%s4 + $0x1e8] sm:$0xff]
    %v3217 = vld [vmem:[%s4 + $0x1f0] sm:$0xff]
    %v3218 = vld [vmem:[%s4 + $0x1f8] sm:$0xff]
    %v3220 = vperm.slane %v158, 0
    %v3221 = vperm.slane %v158, 1
    %v3288 = vunpack.c.l.b16 %v3155
    %v3289 = vunpack.c.h.b16 %v3155
    %v3290 = vunpack.c.l.b16 %v3156
    %v3291 = vunpack.c.h.b16 %v3156
    %v3292 = vunpack.c.l.b16 %v3157
    %v3293 = vunpack.c.h.b16 %v3157
    %v3294 = vunpack.c.l.b16 %v3158
    %v3295 = vunpack.c.h.b16 %v3158
    %v3296 = vunpack.c.l.b16 %v3159
    %v3297 = vunpack.c.h.b16 %v3159
    %v3298 = vunpack.c.l.b16 %v3160
    %v3299 = vunpack.c.h.b16 %v3160
    %v3300 = vunpack.c.l.b16 %v3161
    %v3301 = vunpack.c.h.b16 %v3161
    %v3302 = vunpack.c.l.b16 %v3162
    %v3303 = vunpack.c.h.b16 %v3162
    %v3304 = vunpack.c.l.b16 %v3163
    %v3305 = vunpack.c.h.b16 %v3163
    %v3306 = vunpack.c.l.b16 %v3164
    %v3307 = vunpack.c.h.b16 %v3164
    %v3308 = vunpack.c.l.b16 %v3165
    %v3309 = vunpack.c.h.b16 %v3165
    %v3310 = vunpack.c.l.b16 %v3166
    %v3311 = vunpack.c.h.b16 %v3166
    %v3312 = vunpack.c.l.b16 %v3167
    %v3313 = vunpack.c.h.b16 %v3167
    %v3314 = vunpack.c.l.b16 %v3168
    %v3315 = vunpack.c.h.b16 %v3168
    %v3316 = vunpack.c.l.b16 %v3169
    %v3317 = vunpack.c.h.b16 %v3169
    %v3318 = vunpack.c.l.b16 %v3170
    %v3319 = vunpack.c.h.b16 %v3170
    %v3320 = vunpack.c.l.b16 %v3171
    %v3321 = vunpack.c.h.b16 %v3171
    %v3322 = vunpack.c.l.b16 %v3172
    %v3323 = vunpack.c.h.b16 %v3172
    %v3324 = vunpack.c.l.b16 %v3173
    %v3325 = vunpack.c.h.b16 %v3173
    %v3326 = vunpack.c.l.b16 %v3174
    %v3327 = vunpack.c.h.b16 %v3174
    %v3328 = vunpack.c.l.b16 %v3175
    %v3329 = vunpack.c.h.b16 %v3175
    %v3330 = vunpack.c.l.b16 %v3176
    %v3331 = vunpack.c.h.b16 %v3176
    %v3332 = vunpack.c.l.b16 %v3177
    %v3333 = vunpack.c.h.b16 %v3177
    %v3334 = vunpack.c.l.b16 %v3178
    %v3335 = vunpack.c.h.b16 %v3178
    %v3336 = vunpack.c.l.b16 %v3179
    %v3337 = vunpack.c.h.b16 %v3179
    %v3338 = vunpack.c.l.b16 %v3180
    %v3339 = vunpack.c.h.b16 %v3180
    %v3340 = vunpack.c.l.b16 %v3181
    %v3341 = vunpack.c.h.b16 %v3181
    %v3342 = vunpack.c.l.b16 %v3182
    %v3343 = vunpack.c.h.b16 %v3182
    %v3344 = vunpack.c.l.b16 %v3183
    %v3345 = vunpack.c.h.b16 %v3183
    %v3346 = vunpack.c.l.b16 %v3184
    %v3347 = vunpack.c.h.b16 %v3184
    %v3348 = vunpack.c.l.b16 %v3185
    %v3349 = vunpack.c.h.b16 %v3185
    %v3350 = vunpack.c.l.b16 %v3186
    %v3351 = vunpack.c.h.b16 %v3186
    %v3352 = vunpack.c.l.b16 %v3187
    %v3353 = vunpack.c.h.b16 %v3187
    %v3354 = vunpack.c.l.b16 %v3188
    %v3355 = vunpack.c.h.b16 %v3188
    %v3356 = vunpack.c.l.b16 %v3189
    %v3357 = vunpack.c.h.b16 %v3189
    %v3358 = vunpack.c.l.b16 %v3190
    %v3359 = vunpack.c.h.b16 %v3190
    %v3360 = vunpack.c.l.b16 %v3191
    %v3361 = vunpack.c.h.b16 %v3191
    %v3362 = vunpack.c.l.b16 %v3192
    %v3363 = vunpack.c.h.b16 %v3192
    %v3364 = vunpack.c.l.b16 %v3193
    %v3365 = vunpack.c.h.b16 %v3193
    %v3366 = vunpack.c.l.b16 %v3194
    %v3367 = vunpack.c.h.b16 %v3194
    %v3368 = vunpack.c.l.b16 %v3195
    %v3369 = vunpack.c.h.b16 %v3195
    %v3370 = vunpack.c.l.b16 %v3196
    %v3371 = vunpack.c.h.b16 %v3196
    %v3372 = vunpack.c.l.b16 %v3197
    %v3373 = vunpack.c.h.b16 %v3197
    %v3374 = vunpack.c.l.b16 %v3198
    %v3375 = vunpack.c.h.b16 %v3198
    %v3376 = vunpack.c.l.b16 %v3199
    %v3377 = vunpack.c.h.b16 %v3199
    %v3378 = vunpack.c.l.b16 %v3200
    %v3379 = vunpack.c.h.b16 %v3200
    %v3380 = vunpack.c.l.b16 %v3201
    %v3381 = vunpack.c.h.b16 %v3201
    %v3382 = vunpack.c.l.b16 %v3202
    %v3383 = vunpack.c.h.b16 %v3202
    %v3384 = vunpack.c.l.b16 %v3203
    %v3385 = vunpack.c.h.b16 %v3203
    %v3386 = vunpack.c.l.b16 %v3204
    %v3387 = vunpack.c.h.b16 %v3204
    %v3388 = vunpack.c.l.b16 %v3205
    %v3389 = vunpack.c.h.b16 %v3205
    %v3390 = vunpack.c.l.b16 %v3206
    %v3391 = vunpack.c.h.b16 %v3206
    %v3392 = vunpack.c.l.b16 %v3207
    %v3393 = vunpack.c.h.b16 %v3207
    %v3394 = vunpack.c.l.b16 %v3208
    %v3395 = vunpack.c.h.b16 %v3208
    %v3396 = vunpack.c.l.b16 %v3209
    %v3397 = vunpack.c.h.b16 %v3209
    %v3398 = vunpack.c.l.b16 %v3210
    %v3399 = vunpack.c.h.b16 %v3210
    %v3400 = vunpack.c.l.b16 %v3211
    %v3401 = vunpack.c.h.b16 %v3211
    %v3402 = vunpack.c.l.b16 %v3212
    %v3403 = vunpack.c.h.b16 %v3212
    %v3404 = vunpack.c.l.b16 %v3213
    %v3405 = vunpack.c.h.b16 %v3213
    %v3406 = vunpack.c.l.b16 %v3214
    %v3407 = vunpack.c.h.b16 %v3214
    %v3408 = vunpack.c.l.b16 %v3215
    %v3409 = vunpack.c.h.b16 %v3215
    %v3410 = vunpack.c.l.b16 %v3216
    %v3411 = vunpack.c.h.b16 %v3216
    %v3412 = vunpack.c.l.b16 %v3217
    %v3413 = vunpack.c.h.b16 %v3217
    %v3414 = vunpack.c.l.b16 %v3218
    %v3415 = vunpack.c.h.b16 %v3218
    %v3416 = vpack.c.b16 %v3290, %v3288
    %v3417 = vpack.c.b16 %v3291, %v3289
    %v3418 = vpack.c.b16 %v3294, %v3292
    %v3419 = vpack.c.b16 %v3295, %v3293
    %v3420 = vpack.c.b16 %v3298, %v3296
    %v3421 = vpack.c.b16 %v3299, %v3297
    %v3422 = vpack.c.b16 %v3302, %v3300
    %v3423 = vpack.c.b16 %v3303, %v3301
    %v3424 = vpack.c.b16 %v3306, %v3304
    %v3425 = vpack.c.b16 %v3307, %v3305
    %v3426 = vpack.c.b16 %v3310, %v3308
    %v3427 = vpack.c.b16 %v3311, %v3309
    %v3428 = vpack.c.b16 %v3314, %v3312
    %v3429 = vpack.c.b16 %v3315, %v3313
    %v3430 = vpack.c.b16 %v3318, %v3316
    %v3431 = vpack.c.b16 %v3319, %v3317
    %v3432 = vpack.c.b16 %v3322, %v3320
    %v3433 = vpack.c.b16 %v3323, %v3321
    %v3434 = vpack.c.b16 %v3326, %v3324
    %v3435 = vpack.c.b16 %v3327, %v3325
    %v3436 = vpack.c.b16 %v3330, %v3328
    %v3437 = vpack.c.b16 %v3331, %v3329
    %v3438 = vpack.c.b16 %v3334, %v3332
    %v3439 = vpack.c.b16 %v3335, %v3333
    %v3440 = vpack.c.b16 %v3338, %v3336
    %v3441 = vpack.c.b16 %v3339, %v3337
    %v3442 = vpack.c.b16 %v3342, %v3340
    %v3443 = vpack.c.b16 %v3343, %v3341
    %v3444 = vpack.c.b16 %v3346, %v3344
    %v3445 = vpack.c.b16 %v3347, %v3345
    %v3446 = vpack.c.b16 %v3350, %v3348
    %v3447 = vpack.c.b16 %v3351, %v3349
    %v3448 = vpack.c.b16 %v3354, %v3352
    %v3449 = vpack.c.b16 %v3355, %v3353
    %v3450 = vpack.c.b16 %v3358, %v3356
    %v3451 = vpack.c.b16 %v3359, %v3357
    %v3452 = vpack.c.b16 %v3362, %v3360
    %v3453 = vpack.c.b16 %v3363, %v3361
    %v3454 = vpack.c.b16 %v3366, %v3364
    %v3455 = vpack.c.b16 %v3367, %v3365
    %v3456 = vpack.c.b16 %v3370, %v3368
    %v3457 = vpack.c.b16 %v3371, %v3369
    %v3458 = vpack.c.b16 %v3374, %v3372
    %v3459 = vpack.c.b16 %v3375, %v3373
    %v3460 = vpack.c.b16 %v3378, %v3376
    %v3461 = vpack.c.b16 %v3379, %v3377
    %v3462 = vpack.c.b16 %v3382, %v3380
    %v3463 = vpack.c.b16 %v3383, %v3381
    %v3464 = vpack.c.b16 %v3386, %v3384
    %v3465 = vpack.c.b16 %v3387, %v3385
    %v3466 = vpack.c.b16 %v3390, %v3388
    %v3467 = vpack.c.b16 %v3391, %v3389
    %v3468 = vpack.c.b16 %v3394, %v3392
    %v3469 = vpack.c.b16 %v3395, %v3393
    %v3470 = vpack.c.b16 %v3398, %v3396
    %v3471 = vpack.c.b16 %v3399, %v3397
    %v3472 = vpack.c.b16 %v3402, %v3400
    %v3473 = vpack.c.b16 %v3403, %v3401
    %v3474 = vpack.c.b16 %v3406, %v3404
    %v3475 = vpack.c.b16 %v3407, %v3405
    %v3476 = vpack.c.b16 %v3410, %v3408
    %v3477 = vpack.c.b16 %v3411, %v3409
    %v3478 = vpack.c.b16 %v3414, %v3412
    %v3479 = vpack.c.b16 %v3415, %v3413
    %3544 = vmatpush.bf16.msra.mxu0 %v3430
    %3545 = vmatpush.bf16.msra.mxu0 %v3428
    %3546 = vmatpush.bf16.msra.mxu0 %v3426
    %3547 = vmatpush.bf16.msra.mxu0 %v3424
    %3548 = vmatpush.bf16.msra.mxu0 %v3422
    %3549 = vmatpush.bf16.msra.mxu0 %v3420
    %3550 = vmatpush.bf16.msra.mxu0 %v3418
    %3551 = vmatpush.bf16.msra.mxu0 %v3416
    %3552 = vmatmul.bf16.gmra.mxu0 %v3151
    %v3553 = vpop.f32.mrf.mxu0
    %v3554 = vadd.f32 %v3220, %v3553
    %v3555 = vpop.f32.mrf.mxu0
    %3556 = vdwg.mxu0
    %3557 = vmatpush.bf16.msra.mxu0 %v3446
    %3558 = vmatpush.bf16.msra.mxu0 %v3444
    %3559 = vmatpush.bf16.msra.mxu0 %v3442
    %3560 = vmatpush.bf16.msra.mxu0 %v3440
    %3561 = vmatpush.bf16.msra.mxu0 %v3438
    %3562 = vmatpush.bf16.msra.mxu0 %v3436
    %3563 = vmatpush.bf16.msra.mxu0 %v3434
    %3564 = vmatpush.bf16.msra.mxu0 %v3432
    %3565 = vmatmul.bf16.gmra.mxu0 %v3152
    %v3566 = vpop.f32.mrf.mxu0
    %v3567 = vadd.f32 %v3554, %v3566
    %v3568 = vpop.f32.mrf.mxu0
    %3569 = vdwg.mxu0
    %3570 = vmatpush.bf16.msra.mxu0 %v3462
    %3571 = vmatpush.bf16.msra.mxu0 %v3460
    %3572 = vmatpush.bf16.msra.mxu0 %v3458
    %3573 = vmatpush.bf16.msra.mxu0 %v3456
    %3574 = vmatpush.bf16.msra.mxu0 %v3454
    %3575 = vmatpush.bf16.msra.mxu0 %v3452
    %3576 = vmatpush.bf16.msra.mxu0 %v3450
    %3577 = vmatpush.bf16.msra.mxu0 %v3448
    %3578 = vmatmul.bf16.gmra.mxu0 %v3153
    %v3579 = vpop.f32.mrf.mxu0
    %v3580 = vadd.f32 %v3567, %v3579
    %v3581 = vpop.f32.mrf.mxu0
    %3582 = vdwg.mxu0
    %3583 = vmatpush.bf16.msra.mxu0 %v3478
    %3584 = vmatpush.bf16.msra.mxu0 %v3476
    %3585 = vmatpush.bf16.msra.mxu0 %v3474
    %3586 = vmatpush.bf16.msra.mxu0 %v3472
    %3587 = vmatpush.bf16.msra.mxu0 %v3470
    %3588 = vmatpush.bf16.msra.mxu0 %v3468
    %3589 = vmatpush.bf16.msra.mxu0 %v3466
    %3590 = vmatpush.bf16.msra.mxu0 %v3464
    %3591 = vmatmul.bf16.gmra.mxu0 %v3154
    %v3592 = vpop.f32.mrf.mxu0
    %v3593 = vadd.f32 %v3580, %v3592
    %v3594 = vpop.f32.mrf.mxu0
    %3595 = vdwg.mxu0
    %3596 = vmatpush.bf16.msra.mxu0 %v3431
    %3597 = vmatpush.bf16.msra.mxu0 %v3429
    %3598 = vmatpush.bf16.msra.mxu0 %v3427
    %3599 = vmatpush.bf16.msra.mxu0 %v3425
    %3600 = vmatpush.bf16.msra.mxu0 %v3423
    %3601 = vmatpush.bf16.msra.mxu0 %v3421
    %3602 = vmatpush.bf16.msra.mxu0 %v3419
    %3603 = vmatpush.bf16.msra.mxu0 %v3417
    %3604 = vmatmul.bf16.gmra.mxu0 %v3151
    %v3605 = vpop.f32.mrf.mxu0
    %v3606 = vadd.f32 %v3221, %v3605
    %v3607 = vpop.f32.mrf.mxu0
    %3608 = vdwg.mxu0
    %3609 = vmatpush.bf16.msra.mxu0 %v3447
    %3610 = vmatpush.bf16.msra.mxu0 %v3445
    %3611 = vmatpush.bf16.msra.mxu0 %v3443
    %3612 = vmatpush.bf16.msra.mxu0 %v3441
    %3613 = vmatpush.bf16.msra.mxu0 %v3439
    %3614 = vmatpush.bf16.msra.mxu0 %v3437
    %3615 = vmatpush.bf16.msra.mxu0 %v3435
    %3616 = vmatpush.bf16.msra.mxu0 %v3433
    %3617 = vmatmul.bf16.gmra.mxu0 %v3152
    %v3618 = vpop.f32.mrf.mxu0
    %v3619 = vadd.f32 %v3606, %v3618
    %v3620 = vpop.f32.mrf.mxu0
    %3621 = vdwg.mxu0
    %3622 = vmatpush.bf16.msra.mxu0 %v3463
    %3623 = vmatpush.bf16.msra.mxu0 %v3461
    %3624 = vmatpush.bf16.msra.mxu0 %v3459
    %3625 = vmatpush.bf16.msra.mxu0 %v3457
    %3626 = vmatpush.bf16.msra.mxu0 %v3455
    %3627 = vmatpush.bf16.msra.mxu0 %v3453
    %3628 = vmatpush.bf16.msra.mxu0 %v3451
    %3629 = vmatpush.bf16.msra.mxu0 %v3449
    %3630 = vmatmul.bf16.gmra.mxu0 %v3153
    %v3631 = vpop.f32.mrf.mxu0
    %v3632 = vadd.f32 %v3619, %v3631
    %v3633 = vpop.f32.mrf.mxu0
    %3634 = vdwg.mxu0
    %3635 = vmatpush.bf16.msra.mxu0 %v3479
    %3636 = vmatpush.bf16.msra.mxu0 %v3477
    %3637 = vmatpush.bf16.msra.mxu0 %v3475
    %3638 = vmatpush.bf16.msra.mxu0 %v3473
    %3639 = vmatpush.bf16.msra.mxu0 %v3471
    %3640 = vmatpush.bf16.msra.mxu0 %v3469
    %3641 = vmatpush.bf16.msra.mxu0 %v3467
    %3642 = vmatpush.bf16.msra.mxu0 %v3465
    %3643 = vmatmul.bf16.gmra.mxu0 %v3154
    %v3644 = vpop.f32.mrf.mxu0
    %v3645 = vadd.f32 %v3632, %v3644
    %v3646 = vpop.f32.mrf.mxu0
    %3647 = vdwg.mxu0
    %v3648 = vmax.f32 %v3593, 0.0
    %v3649 = vmax.f32 %v3645, 0.0
    %v3650 = vld [vmem:[%s1] sm:$0xff]
    %v3651 = vld [vmem:[%s1 + $0x8] sm:$0xff]
    %v3652 = vld [vmem:[%s1 + $0x10] sm:$0xff]
    %v3653 = vld [vmem:[%s1 + $0x18] sm:$0xff]
    %v3654 = vpack.c.bf16 %v3650, %v3650
    %v3655 = vpack.c.bf16 %v3651, %v3651
    %v3656 = vpack.c.bf16 %v3652, %v3652
    %v3657 = vpack.c.bf16 %v3653, %v3653
    %v3658 = vld [vmem:[#allocation6] sm:$0xff]
    %v3659 = vld [vmem:[#allocation6 + $0x8] sm:$0xff]
    %v3660 = vld [vmem:[#allocation6 + $0x10] sm:$0xff]
    %v3661 = vld [vmem:[#allocation6 + $0x18] sm:$0xff]
    %v3662 = vld [vmem:[#allocation6 + $0x20] sm:$0xff]
    %v3663 = vld [vmem:[#allocation6 + $0x28] sm:$0xff]
    %v3664 = vld [vmem:[#allocation6 + $0x30] sm:$0xff]
    %v3665 = vld [vmem:[#allocation6 + $0x38] sm:$0xff]
    %v3666 = vld [vmem:[#allocation6 + $0x40] sm:$0xff]
    %v3667 = vld [vmem:[#allocation6 + $0x48] sm:$0xff]
    %v3668 = vld [vmem:[#allocation6 + $0x50] sm:$0xff]
    %v3669 = vld [vmem:[#allocation6 + $0x58] sm:$0xff]
    %v3670 = vld [vmem:[#allocation6 + $0x60] sm:$0xff]
    %v3671 = vld [vmem:[#allocation6 + $0x68] sm:$0xff]
    %v3672 = vld [vmem:[#allocation6 + $0x70] sm:$0xff]
    %v3673 = vld [vmem:[#allocation6 + $0x78] sm:$0xff]
    %v3674 = vld [vmem:[#allocation6 + $0x80] sm:$0xff]
    %v3675 = vld [vmem:[#allocation6 + $0x88] sm:$0xff]
    %v3676 = vld [vmem:[#allocation6 + $0x90] sm:$0xff]
    %v3677 = vld [vmem:[#allocation6 + $0x98] sm:$0xff]
    %v3678 = vld [vmem:[#allocation6 + $0xa0] sm:$0xff]
    %v3679 = vld [vmem:[#allocation6 + $0xa8] sm:$0xff]
    %v3680 = vld [vmem:[#allocation6 + $0xb0] sm:$0xff]
    %v3681 = vld [vmem:[#allocation6 + $0xb8] sm:$0xff]
    %v3682 = vld [vmem:[#allocation6 + $0xc0] sm:$0xff]
    %v3683 = vld [vmem:[#allocation6 + $0xc8] sm:$0xff]
    %v3684 = vld [vmem:[#allocation6 + $0xd0] sm:$0xff]
    %v3685 = vld [vmem:[#allocation6 + $0xd8] sm:$0xff]
    %v3686 = vld [vmem:[#allocation6 + $0xe0] sm:$0xff]
    %v3687 = vld [vmem:[#allocation6 + $0xe8] sm:$0xff]
    %v3688 = vld [vmem:[#allocation6 + $0xf0] sm:$0xff]
    %v3689 = vld [vmem:[#allocation6 + $0xf8] sm:$0xff]
    %v3690 = vld [vmem:[#allocation6 + $0x100] sm:$0xff]
    %v3691 = vld [vmem:[#allocation6 + $0x108] sm:$0xff]
    %v3692 = vld [vmem:[#allocation6 + $0x110] sm:$0xff]
    %v3693 = vld [vmem:[#allocation6 + $0x118] sm:$0xff]
    %v3694 = vld [vmem:[#allocation6 + $0x120] sm:$0xff]
    %v3695 = vld [vmem:[#allocation6 + $0x128] sm:$0xff]
    %v3696 = vld [vmem:[#allocation6 + $0x130] sm:$0xff]
    %v3697 = vld [vmem:[#allocation6 + $0x138] sm:$0xff]
    %v3698 = vld [vmem:[#allocation6 + $0x140] sm:$0xff]
    %v3699 = vld [vmem:[#allocation6 + $0x148] sm:$0xff]
    %v3700 = vld [vmem:[#allocation6 + $0x150] sm:$0xff]
    %v3701 = vld [vmem:[#allocation6 + $0x158] sm:$0xff]
    %v3702 = vld [vmem:[#allocation6 + $0x160] sm:$0xff]
    %v3703 = vld [vmem:[#allocation6 + $0x168] sm:$0xff]
    %v3704 = vld [vmem:[#allocation6 + $0x170] sm:$0xff]
    %v3705 = vld [vmem:[#allocation6 + $0x178] sm:$0xff]
    %v3706 = vld [vmem:[#allocation6 + $0x180] sm:$0xff]
    %v3707 = vld [vmem:[#allocation6 + $0x188] sm:$0xff]
    %v3708 = vld [vmem:[#allocation6 + $0x190] sm:$0xff]
    %v3709 = vld [vmem:[#allocation6 + $0x198] sm:$0xff]
    %v3710 = vld [vmem:[#allocation6 + $0x1a0] sm:$0xff]
    %v3711 = vld [vmem:[#allocation6 + $0x1a8] sm:$0xff]
    %v3712 = vld [vmem:[#allocation6 + $0x1b0] sm:$0xff]
    %v3713 = vld [vmem:[#allocation6 + $0x1b8] sm:$0xff]
    %v3714 = vld [vmem:[#allocation6 + $0x1c0] sm:$0xff]
    %v3715 = vld [vmem:[#allocation6 + $0x1c8] sm:$0xff]
    %v3716 = vld [vmem:[#allocation6 + $0x1d0] sm:$0xff]
    %v3717 = vld [vmem:[#allocation6 + $0x1d8] sm:$0xff]
    %v3718 = vld [vmem:[#allocation6 + $0x1e0] sm:$0xff]
    %v3719 = vld [vmem:[#allocation6 + $0x1e8] sm:$0xff]
    %v3720 = vld [vmem:[#allocation6 + $0x1f0] sm:$0xff]
    %v3721 = vld [vmem:[#allocation6 + $0x1f8] sm:$0xff]
    %v3722 = vld [vmem:[#allocation6 + $0x200] sm:$0xff]
    %v3723 = vld [vmem:[#allocation6 + $0x208] sm:$0xff]
    %v3724 = vld [vmem:[#allocation6 + $0x210] sm:$0xff]
    %v3725 = vld [vmem:[#allocation6 + $0x218] sm:$0xff]
    %v3726 = vld [vmem:[#allocation6 + $0x220] sm:$0xff]
    %v3727 = vld [vmem:[#allocation6 + $0x228] sm:$0xff]
    %v3728 = vld [vmem:[#allocation6 + $0x230] sm:$0xff]
    %v3729 = vld [vmem:[#allocation6 + $0x238] sm:$0xff]
    %v3730 = vld [vmem:[#allocation6 + $0x240] sm:$0xff]
    %v3731 = vld [vmem:[#allocation6 + $0x248] sm:$0xff]
    %v3732 = vld [vmem:[#allocation6 + $0x250] sm:$0xff]
    %v3733 = vld [vmem:[#allocation6 + $0x258] sm:$0xff]
    %v3734 = vld [vmem:[#allocation6 + $0x260] sm:$0xff]
    %v3735 = vld [vmem:[#allocation6 + $0x268] sm:$0xff]
    %v3736 = vld [vmem:[#allocation6 + $0x270] sm:$0xff]
    %v3737 = vld [vmem:[#allocation6 + $0x278] sm:$0xff]
    %v3738 = vld [vmem:[#allocation6 + $0x280] sm:$0xff]
    %v3739 = vld [vmem:[#allocation6 + $0x288] sm:$0xff]
    %v3740 = vld [vmem:[#allocation6 + $0x290] sm:$0xff]
    %v3741 = vld [vmem:[#allocation6 + $0x298] sm:$0xff]
    %v3742 = vld [vmem:[#allocation6 + $0x2a0] sm:$0xff]
    %v3743 = vld [vmem:[#allocation6 + $0x2a8] sm:$0xff]
    %v3744 = vld [vmem:[#allocation6 + $0x2b0] sm:$0xff]
    %v3745 = vld [vmem:[#allocation6 + $0x2b8] sm:$0xff]
    %v3746 = vld [vmem:[#allocation6 + $0x2c0] sm:$0xff]
    %v3747 = vld [vmem:[#allocation6 + $0x2c8] sm:$0xff]
    %v3748 = vld [vmem:[#allocation6 + $0x2d0] sm:$0xff]
    %v3749 = vld [vmem:[#allocation6 + $0x2d8] sm:$0xff]
    %v3750 = vld [vmem:[#allocation6 + $0x2e0] sm:$0xff]
    %v3751 = vld [vmem:[#allocation6 + $0x2e8] sm:$0xff]
    %v3752 = vld [vmem:[#allocation6 + $0x2f0] sm:$0xff]
    %v3753 = vld [vmem:[#allocation6 + $0x2f8] sm:$0xff]
    %v3754 = vld [vmem:[#allocation6 + $0x300] sm:$0xff]
    %v3755 = vld [vmem:[#allocation6 + $0x308] sm:$0xff]
    %v3756 = vld [vmem:[#allocation6 + $0x310] sm:$0xff]
    %v3757 = vld [vmem:[#allocation6 + $0x318] sm:$0xff]
    %v3758 = vld [vmem:[#allocation6 + $0x320] sm:$0xff]
    %v3759 = vld [vmem:[#allocation6 + $0x328] sm:$0xff]
    %v3760 = vld [vmem:[#allocation6 + $0x330] sm:$0xff]
    %v3761 = vld [vmem:[#allocation6 + $0x338] sm:$0xff]
    %v3762 = vld [vmem:[#allocation6 + $0x340] sm:$0xff]
    %v3763 = vld [vmem:[#allocation6 + $0x348] sm:$0xff]
    %v3764 = vld [vmem:[#allocation6 + $0x350] sm:$0xff]
    %v3765 = vld [vmem:[#allocation6 + $0x358] sm:$0xff]
    %v3766 = vld [vmem:[#allocation6 + $0x360] sm:$0xff]
    %v3767 = vld [vmem:[#allocation6 + $0x368] sm:$0xff]
    %v3768 = vld [vmem:[#allocation6 + $0x370] sm:$0xff]
    %v3769 = vld [vmem:[#allocation6 + $0x378] sm:$0xff]
    %v3770 = vld [vmem:[#allocation6 + $0x380] sm:$0xff]
    %v3771 = vld [vmem:[#allocation6 + $0x388] sm:$0xff]
    %v3772 = vld [vmem:[#allocation6 + $0x390] sm:$0xff]
    %v3773 = vld [vmem:[#allocation6 + $0x398] sm:$0xff]
    %v3774 = vld [vmem:[#allocation6 + $0x3a0] sm:$0xff]
    %v3775 = vld [vmem:[#allocation6 + $0x3a8] sm:$0xff]
    %v3776 = vld [vmem:[#allocation6 + $0x3b0] sm:$0xff]
    %v3777 = vld [vmem:[#allocation6 + $0x3b8] sm:$0xff]
    %v3778 = vld [vmem:[#allocation6 + $0x3c0] sm:$0xff]
    %v3779 = vld [vmem:[#allocation6 + $0x3c8] sm:$0xff]
    %v3780 = vld [vmem:[#allocation6 + $0x3d0] sm:$0xff]
    %v3781 = vld [vmem:[#allocation6 + $0x3d8] sm:$0xff]
    %v3782 = vld [vmem:[#allocation6 + $0x3e0] sm:$0xff]
    %v3783 = vld [vmem:[#allocation6 + $0x3e8] sm:$0xff]
    %v3784 = vld [vmem:[#allocation6 + $0x3f0] sm:$0xff]
    %v3785 = vld [vmem:[#allocation6 + $0x3f8] sm:$0xff]
    %v3786 = vld [vmem:[#allocation6 + $0x400] sm:$0xff]
    %v3787 = vld [vmem:[#allocation6 + $0x408] sm:$0xff]
    %v3788 = vld [vmem:[#allocation6 + $0x410] sm:$0xff]
    %v3789 = vld [vmem:[#allocation6 + $0x418] sm:$0xff]
    %v3790 = vld [vmem:[#allocation6 + $0x420] sm:$0xff]
    %v3791 = vld [vmem:[#allocation6 + $0x428] sm:$0xff]
    %v3792 = vld [vmem:[#allocation6 + $0x430] sm:$0xff]
    %v3793 = vld [vmem:[#allocation6 + $0x438] sm:$0xff]
    %v3794 = vld [vmem:[#allocation6 + $0x440] sm:$0xff]
    %v3795 = vld [vmem:[#allocation6 + $0x448] sm:$0xff]
    %v3796 = vld [vmem:[#allocation6 + $0x450] sm:$0xff]
    %v3797 = vld [vmem:[#allocation6 + $0x458] sm:$0xff]
    %v3798 = vld [vmem:[#allocation6 + $0x460] sm:$0xff]
    %v3799 = vld [vmem:[#allocation6 + $0x468] sm:$0xff]
    %v3800 = vld [vmem:[#allocation6 + $0x470] sm:$0xff]
    %v3801 = vld [vmem:[#allocation6 + $0x478] sm:$0xff]
    %v3802 = vld [vmem:[#allocation6 + $0x480] sm:$0xff]
    %v3803 = vld [vmem:[#allocation6 + $0x488] sm:$0xff]
    %v3804 = vld [vmem:[#allocation6 + $0x490] sm:$0xff]
    %v3805 = vld [vmem:[#allocation6 + $0x498] sm:$0xff]
    %v3806 = vld [vmem:[#allocation6 + $0x4a0] sm:$0xff]
    %v3807 = vld [vmem:[#allocation6 + $0x4a8] sm:$0xff]
    %v3808 = vld [vmem:[#allocation6 + $0x4b0] sm:$0xff]
    %v3809 = vld [vmem:[#allocation6 + $0x4b8] sm:$0xff]
    %v3810 = vld [vmem:[#allocation6 + $0x4c0] sm:$0xff]
    %v3811 = vld [vmem:[#allocation6 + $0x4c8] sm:$0xff]
    %v3812 = vld [vmem:[#allocation6 + $0x4d0] sm:$0xff]
    %v3813 = vld [vmem:[#allocation6 + $0x4d8] sm:$0xff]
    %v3814 = vld [vmem:[#allocation6 + $0x4e0] sm:$0xff]
    %v3815 = vld [vmem:[#allocation6 + $0x4e8] sm:$0xff]
    %v3816 = vld [vmem:[#allocation6 + $0x4f0] sm:$0xff]
    %v3817 = vld [vmem:[#allocation6 + $0x4f8] sm:$0xff]
    %v3818 = vld [vmem:[#allocation6 + $0x500] sm:$0xff]
    %v3819 = vld [vmem:[#allocation6 + $0x508] sm:$0xff]
    %v3820 = vld [vmem:[#allocation6 + $0x510] sm:$0xff]
    %v3821 = vld [vmem:[#allocation6 + $0x518] sm:$0xff]
    %v3822 = vld [vmem:[#allocation6 + $0x520] sm:$0xff]
    %v3823 = vld [vmem:[#allocation6 + $0x528] sm:$0xff]
    %v3824 = vld [vmem:[#allocation6 + $0x530] sm:$0xff]
    %v3825 = vld [vmem:[#allocation6 + $0x538] sm:$0xff]
    %v3826 = vld [vmem:[#allocation6 + $0x540] sm:$0xff]
    %v3827 = vld [vmem:[#allocation6 + $0x548] sm:$0xff]
    %v3828 = vld [vmem:[#allocation6 + $0x550] sm:$0xff]
    %v3829 = vld [vmem:[#allocation6 + $0x558] sm:$0xff]
    %v3830 = vld [vmem:[#allocation6 + $0x560] sm:$0xff]
    %v3831 = vld [vmem:[#allocation6 + $0x568] sm:$0xff]
    %v3832 = vld [vmem:[#allocation6 + $0x570] sm:$0xff]
    %v3833 = vld [vmem:[#allocation6 + $0x578] sm:$0xff]
    %v3834 = vld [vmem:[#allocation6 + $0x580] sm:$0xff]
    %v3835 = vld [vmem:[#allocation6 + $0x588] sm:$0xff]
    %v3836 = vld [vmem:[#allocation6 + $0x590] sm:$0xff]
    %v3837 = vld [vmem:[#allocation6 + $0x598] sm:$0xff]
    %v3838 = vld [vmem:[#allocation6 + $0x5a0] sm:$0xff]
    %v3839 = vld [vmem:[#allocation6 + $0x5a8] sm:$0xff]
    %v3840 = vld [vmem:[#allocation6 + $0x5b0] sm:$0xff]
    %v3841 = vld [vmem:[#allocation6 + $0x5b8] sm:$0xff]
    %v3842 = vld [vmem:[#allocation6 + $0x5c0] sm:$0xff]
    %v3843 = vld [vmem:[#allocation6 + $0x5c8] sm:$0xff]
    %v3844 = vld [vmem:[#allocation6 + $0x5d0] sm:$0xff]
    %v3845 = vld [vmem:[#allocation6 + $0x5d8] sm:$0xff]
    %v3846 = vld [vmem:[#allocation6 + $0x5e0] sm:$0xff]
    %v3847 = vld [vmem:[#allocation6 + $0x5e8] sm:$0xff]
    %v3848 = vld [vmem:[#allocation6 + $0x5f0] sm:$0xff]
    %v3849 = vld [vmem:[#allocation6 + $0x5f8] sm:$0xff]
    %v3850 = vld [vmem:[#allocation6 + $0x600] sm:$0xff]
    %v3851 = vld [vmem:[#allocation6 + $0x608] sm:$0xff]
    %v3852 = vld [vmem:[#allocation6 + $0x610] sm:$0xff]
    %v3853 = vld [vmem:[#allocation6 + $0x618] sm:$0xff]
    %v3854 = vld [vmem:[#allocation6 + $0x620] sm:$0xff]
    %v3855 = vld [vmem:[#allocation6 + $0x628] sm:$0xff]
    %v3856 = vld [vmem:[#allocation6 + $0x630] sm:$0xff]
    %v3857 = vld [vmem:[#allocation6 + $0x638] sm:$0xff]
    %v3858 = vld [vmem:[#allocation6 + $0x640] sm:$0xff]
    %v3859 = vld [vmem:[#allocation6 + $0x648] sm:$0xff]
    %v3860 = vld [vmem:[#allocation6 + $0x650] sm:$0xff]
    %v3861 = vld [vmem:[#allocation6 + $0x658] sm:$0xff]
    %v3862 = vld [vmem:[#allocation6 + $0x660] sm:$0xff]
    %v3863 = vld [vmem:[#allocation6 + $0x668] sm:$0xff]
    %v3864 = vld [vmem:[#allocation6 + $0x670] sm:$0xff]
    %v3865 = vld [vmem:[#allocation6 + $0x678] sm:$0xff]
    %v3866 = vld [vmem:[#allocation6 + $0x680] sm:$0xff]
    %v3867 = vld [vmem:[#allocation6 + $0x688] sm:$0xff]
    %v3868 = vld [vmem:[#allocation6 + $0x690] sm:$0xff]
    %v3869 = vld [vmem:[#allocation6 + $0x698] sm:$0xff]
    %v3870 = vld [vmem:[#allocation6 + $0x6a0] sm:$0xff]
    %v3871 = vld [vmem:[#allocation6 + $0x6a8] sm:$0xff]
    %v3872 = vld [vmem:[#allocation6 + $0x6b0] sm:$0xff]
    %v3873 = vld [vmem:[#allocation6 + $0x6b8] sm:$0xff]
    %v3874 = vld [vmem:[#allocation6 + $0x6c0] sm:$0xff]
    %v3875 = vld [vmem:[#allocation6 + $0x6c8] sm:$0xff]
    %v3876 = vld [vmem:[#allocation6 + $0x6d0] sm:$0xff]
    %v3877 = vld [vmem:[#allocation6 + $0x6d8] sm:$0xff]
    %v3878 = vld [vmem:[#allocation6 + $0x6e0] sm:$0xff]
    %v3879 = vld [vmem:[#allocation6 + $0x6e8] sm:$0xff]
    %v3880 = vld [vmem:[#allocation6 + $0x6f0] sm:$0xff]
    %v3881 = vld [vmem:[#allocation6 + $0x6f8] sm:$0xff]
    %v3882 = vld [vmem:[#allocation6 + $0x700] sm:$0xff]
    %v3883 = vld [vmem:[#allocation6 + $0x708] sm:$0xff]
    %v3884 = vld [vmem:[#allocation6 + $0x710] sm:$0xff]
    %v3885 = vld [vmem:[#allocation6 + $0x718] sm:$0xff]
    %v3886 = vld [vmem:[#allocation6 + $0x720] sm:$0xff]
    %v3887 = vld [vmem:[#allocation6 + $0x728] sm:$0xff]
    %v3888 = vld [vmem:[#allocation6 + $0x730] sm:$0xff]
    %v3889 = vld [vmem:[#allocation6 + $0x738] sm:$0xff]
    %v3890 = vld [vmem:[#allocation6 + $0x740] sm:$0xff]
    %v3891 = vld [vmem:[#allocation6 + $0x748] sm:$0xff]
    %v3892 = vld [vmem:[#allocation6 + $0x750] sm:$0xff]
    %v3893 = vld [vmem:[#allocation6 + $0x758] sm:$0xff]
    %v3894 = vld [vmem:[#allocation6 + $0x760] sm:$0xff]
    %v3895 = vld [vmem:[#allocation6 + $0x768] sm:$0xff]
    %v3896 = vld [vmem:[#allocation6 + $0x770] sm:$0xff]
    %v3897 = vld [vmem:[#allocation6 + $0x778] sm:$0xff]
    %v3898 = vld [vmem:[#allocation6 + $0x780] sm:$0xff]
    %v3899 = vld [vmem:[#allocation6 + $0x788] sm:$0xff]
    %v3900 = vld [vmem:[#allocation6 + $0x790] sm:$0xff]
    %v3901 = vld [vmem:[#allocation6 + $0x798] sm:$0xff]
    %v3902 = vld [vmem:[#allocation6 + $0x7a0] sm:$0xff]
    %v3903 = vld [vmem:[#allocation6 + $0x7a8] sm:$0xff]
    %v3904 = vld [vmem:[#allocation6 + $0x7b0] sm:$0xff]
    %v3905 = vld [vmem:[#allocation6 + $0x7b8] sm:$0xff]
    %v3906 = vld [vmem:[#allocation6 + $0x7c0] sm:$0xff]
    %v3907 = vld [vmem:[#allocation6 + $0x7c8] sm:$0xff]
    %v3908 = vld [vmem:[#allocation6 + $0x7d0] sm:$0xff]
    %v3909 = vld [vmem:[#allocation6 + $0x7d8] sm:$0xff]
    %v3910 = vld [vmem:[#allocation6 + $0x7e0] sm:$0xff]
    %v3911 = vld [vmem:[#allocation6 + $0x7e8] sm:$0xff]
    %v3912 = vld [vmem:[#allocation6 + $0x7f0] sm:$0xff]
    %v3913 = vld [vmem:[#allocation6 + $0x7f8] sm:$0xff]
    %v3915 = vperm.slane %v162, 0
    %v3916 = vperm.slane %v162, 1
    %v3917 = vperm.slane %v162, 2
    %v3918 = vperm.slane %v162, 3
    %v3919 = vperm.slane %v162, 4
    %v3920 = vperm.slane %v162, 5
    %v3921 = vperm.slane %v162, 6
    %v3922 = vperm.slane %v162, 7
    %v4187 = vunpack.c.l.b16 %v3658
    %v4188 = vunpack.c.h.b16 %v3658
    %v4189 = vunpack.c.l.b16 %v3659
    %v4190 = vunpack.c.h.b16 %v3659
    %v4191 = vunpack.c.l.b16 %v3660
    %v4192 = vunpack.c.h.b16 %v3660
    %v4193 = vunpack.c.l.b16 %v3661
    %v4194 = vunpack.c.h.b16 %v3661
    %v4195 = vunpack.c.l.b16 %v3662
    %v4196 = vunpack.c.h.b16 %v3662
    %v4197 = vunpack.c.l.b16 %v3663
    %v4198 = vunpack.c.h.b16 %v3663
    %v4199 = vunpack.c.l.b16 %v3664
    %v4200 = vunpack.c.h.b16 %v3664
    %v4201 = vunpack.c.l.b16 %v3665
    %v4202 = vunpack.c.h.b16 %v3665
    %v4203 = vunpack.c.l.b16 %v3666
    %v4204 = vunpack.c.h.b16 %v3666
    %v4205 = vunpack.c.l.b16 %v3667
    %v4206 = vunpack.c.h.b16 %v3667
    %v4207 = vunpack.c.l.b16 %v3668
    %v4208 = vunpack.c.h.b16 %v3668
    %v4209 = vunpack.c.l.b16 %v3669
    %v4210 = vunpack.c.h.b16 %v3669
    %v4211 = vunpack.c.l.b16 %v3670
    %v4212 = vunpack.c.h.b16 %v3670
    %v4213 = vunpack.c.l.b16 %v3671
    %v4214 = vunpack.c.h.b16 %v3671
    %v4215 = vunpack.c.l.b16 %v3672
    %v4216 = vunpack.c.h.b16 %v3672
    %v4217 = vunpack.c.l.b16 %v3673
    %v4218 = vunpack.c.h.b16 %v3673
    %v4219 = vunpack.c.l.b16 %v3674
    %v4220 = vunpack.c.h.b16 %v3674
    %v4221 = vunpack.c.l.b16 %v3675
    %v4222 = vunpack.c.h.b16 %v3675
    %v4223 = vunpack.c.l.b16 %v3676
    %v4224 = vunpack.c.h.b16 %v3676
    %v4225 = vunpack.c.l.b16 %v3677
    %v4226 = vunpack.c.h.b16 %v3677
    %v4227 = vunpack.c.l.b16 %v3678
    %v4228 = vunpack.c.h.b16 %v3678
    %v4229 = vunpack.c.l.b16 %v3679
    %v4230 = vunpack.c.h.b16 %v3679
    %v4231 = vunpack.c.l.b16 %v3680
    %v4232 = vunpack.c.h.b16 %v3680
    %v4233 = vunpack.c.l.b16 %v3681
    %v4234 = vunpack.c.h.b16 %v3681
    %v4235 = vunpack.c.l.b16 %v3682
    %v4236 = vunpack.c.h.b16 %v3682
    %v4237 = vunpack.c.l.b16 %v3683
    %v4238 = vunpack.c.h.b16 %v3683
    %v4239 = vunpack.c.l.b16 %v3684
    %v4240 = vunpack.c.h.b16 %v3684
    %v4241 = vunpack.c.l.b16 %v3685
    %v4242 = vunpack.c.h.b16 %v3685
    %v4243 = vunpack.c.l.b16 %v3686
    %v4244 = vunpack.c.h.b16 %v3686
    %v4245 = vunpack.c.l.b16 %v3687
    %v4246 = vunpack.c.h.b16 %v3687
    %v4247 = vunpack.c.l.b16 %v3688
    %v4248 = vunpack.c.h.b16 %v3688
    %v4249 = vunpack.c.l.b16 %v3689
    %v4250 = vunpack.c.h.b16 %v3689
    %v4251 = vunpack.c.l.b16 %v3690
    %v4252 = vunpack.c.h.b16 %v3690
    %v4253 = vunpack.c.l.b16 %v3691
    %v4254 = vunpack.c.h.b16 %v3691
    %v4255 = vunpack.c.l.b16 %v3692
    %v4256 = vunpack.c.h.b16 %v3692
    %v4257 = vunpack.c.l.b16 %v3693
    %v4258 = vunpack.c.h.b16 %v3693
    %v4259 = vunpack.c.l.b16 %v3694
    %v4260 = vunpack.c.h.b16 %v3694
    %v4261 = vunpack.c.l.b16 %v3695
    %v4262 = vunpack.c.h.b16 %v3695
    %v4263 = vunpack.c.l.b16 %v3696
    %v4264 = vunpack.c.h.b16 %v3696
    %v4265 = vunpack.c.l.b16 %v3697
    %v4266 = vunpack.c.h.b16 %v3697
    %v4267 = vunpack.c.l.b16 %v3698
    %v4268 = vunpack.c.h.b16 %v3698
    %v4269 = vunpack.c.l.b16 %v3699
    %v4270 = vunpack.c.h.b16 %v3699
    %v4271 = vunpack.c.l.b16 %v3700
    %v4272 = vunpack.c.h.b16 %v3700
    %v4273 = vunpack.c.l.b16 %v3701
    %v4274 = vunpack.c.h.b16 %v3701
    %v4275 = vunpack.c.l.b16 %v3702
    %v4276 = vunpack.c.h.b16 %v3702
    %v4277 = vunpack.c.l.b16 %v3703
    %v4278 = vunpack.c.h.b16 %v3703
    %v4279 = vunpack.c.l.b16 %v3704
    %v4280 = vunpack.c.h.b16 %v3704
    %v4281 = vunpack.c.l.b16 %v3705
    %v4282 = vunpack.c.h.b16 %v3705
    %v4283 = vunpack.c.l.b16 %v3706
    %v4284 = vunpack.c.h.b16 %v3706
    %v4285 = vunpack.c.l.b16 %v3707
    %v4286 = vunpack.c.h.b16 %v3707
    %v4287 = vunpack.c.l.b16 %v3708
    %v4288 = vunpack.c.h.b16 %v3708
    %v4289 = vunpack.c.l.b16 %v3709
    %v4290 = vunpack.c.h.b16 %v3709
    %v4291 = vunpack.c.l.b16 %v3710
    %v4292 = vunpack.c.h.b16 %v3710
    %v4293 = vunpack.c.l.b16 %v3711
    %v4294 = vunpack.c.h.b16 %v3711
    %v4295 = vunpack.c.l.b16 %v3712
    %v4296 = vunpack.c.h.b16 %v3712
    %v4297 = vunpack.c.l.b16 %v3713
    %v4298 = vunpack.c.h.b16 %v3713
    %v4299 = vunpack.c.l.b16 %v3714
    %v4300 = vunpack.c.h.b16 %v3714
    %v4301 = vunpack.c.l.b16 %v3715
    %v4302 = vunpack.c.h.b16 %v3715
    %v4303 = vunpack.c.l.b16 %v3716
    %v4304 = vunpack.c.h.b16 %v3716
    %v4305 = vunpack.c.l.b16 %v3717
    %v4306 = vunpack.c.h.b16 %v3717
    %v4307 = vunpack.c.l.b16 %v3718
    %v4308 = vunpack.c.h.b16 %v3718
    %v4309 = vunpack.c.l.b16 %v3719
    %v4310 = vunpack.c.h.b16 %v3719
    %v4311 = vunpack.c.l.b16 %v3720
    %v4312 = vunpack.c.h.b16 %v3720
    %v4313 = vunpack.c.l.b16 %v3721
    %v4314 = vunpack.c.h.b16 %v3721
    %v4315 = vunpack.c.l.b16 %v3722
    %v4316 = vunpack.c.h.b16 %v3722
    %v4317 = vunpack.c.l.b16 %v3723
    %v4318 = vunpack.c.h.b16 %v3723
    %v4319 = vunpack.c.l.b16 %v3724
    %v4320 = vunpack.c.h.b16 %v3724
    %v4321 = vunpack.c.l.b16 %v3725
    %v4322 = vunpack.c.h.b16 %v3725
    %v4323 = vunpack.c.l.b16 %v3726
    %v4324 = vunpack.c.h.b16 %v3726
    %v4325 = vunpack.c.l.b16 %v3727
    %v4326 = vunpack.c.h.b16 %v3727
    %v4327 = vunpack.c.l.b16 %v3728
    %v4328 = vunpack.c.h.b16 %v3728
    %v4329 = vunpack.c.l.b16 %v3729
    %v4330 = vunpack.c.h.b16 %v3729
    %v4331 = vunpack.c.l.b16 %v3730
    %v4332 = vunpack.c.h.b16 %v3730
    %v4333 = vunpack.c.l.b16 %v3731
    %v4334 = vunpack.c.h.b16 %v3731
    %v4335 = vunpack.c.l.b16 %v3732
    %v4336 = vunpack.c.h.b16 %v3732
    %v4337 = vunpack.c.l.b16 %v3733
    %v4338 = vunpack.c.h.b16 %v3733
    %v4339 = vunpack.c.l.b16 %v3734
    %v4340 = vunpack.c.h.b16 %v3734
    %v4341 = vunpack.c.l.b16 %v3735
    %v4342 = vunpack.c.h.b16 %v3735
    %v4343 = vunpack.c.l.b16 %v3736
    %v4344 = vunpack.c.h.b16 %v3736
    %v4345 = vunpack.c.l.b16 %v3737
    %v4346 = vunpack.c.h.b16 %v3737
    %v4347 = vunpack.c.l.b16 %v3738
    %v4348 = vunpack.c.h.b16 %v3738
    %v4349 = vunpack.c.l.b16 %v3739
    %v4350 = vunpack.c.h.b16 %v3739
    %v4351 = vunpack.c.l.b16 %v3740
    %v4352 = vunpack.c.h.b16 %v3740
    %v4353 = vunpack.c.l.b16 %v3741
    %v4354 = vunpack.c.h.b16 %v3741
    %v4355 = vunpack.c.l.b16 %v3742
    %v4356 = vunpack.c.h.b16 %v3742
    %v4357 = vunpack.c.l.b16 %v3743
    %v4358 = vunpack.c.h.b16 %v3743
    %v4359 = vunpack.c.l.b16 %v3744
    %v4360 = vunpack.c.h.b16 %v3744
    %v4361 = vunpack.c.l.b16 %v3745
    %v4362 = vunpack.c.h.b16 %v3745
    %v4363 = vunpack.c.l.b16 %v3746
    %v4364 = vunpack.c.h.b16 %v3746
    %v4365 = vunpack.c.l.b16 %v3747
    %v4366 = vunpack.c.h.b16 %v3747
    %v4367 = vunpack.c.l.b16 %v3748
    %v4368 = vunpack.c.h.b16 %v3748
    %v4369 = vunpack.c.l.b16 %v3749
    %v4370 = vunpack.c.h.b16 %v3749
    %v4371 = vunpack.c.l.b16 %v3750
    %v4372 = vunpack.c.h.b16 %v3750
    %v4373 = vunpack.c.l.b16 %v3751
    %v4374 = vunpack.c.h.b16 %v3751
    %v4375 = vunpack.c.l.b16 %v3752
    %v4376 = vunpack.c.h.b16 %v3752
    %v4377 = vunpack.c.l.b16 %v3753
    %v4378 = vunpack.c.h.b16 %v3753
    %v4379 = vunpack.c.l.b16 %v3754
    %v4380 = vunpack.c.h.b16 %v3754
    %v4381 = vunpack.c.l.b16 %v3755
    %v4382 = vunpack.c.h.b16 %v3755
    %v4383 = vunpack.c.l.b16 %v3756
    %v4384 = vunpack.c.h.b16 %v3756
    %v4385 = vunpack.c.l.b16 %v3757
    %v4386 = vunpack.c.h.b16 %v3757
    %v4387 = vunpack.c.l.b16 %v3758
    %v4388 = vunpack.c.h.b16 %v3758
    %v4389 = vunpack.c.l.b16 %v3759
    %v4390 = vunpack.c.h.b16 %v3759
    %v4391 = vunpack.c.l.b16 %v3760
    %v4392 = vunpack.c.h.b16 %v3760
    %v4393 = vunpack.c.l.b16 %v3761
    %v4394 = vunpack.c.h.b16 %v3761
    %v4395 = vunpack.c.l.b16 %v3762
    %v4396 = vunpack.c.h.b16 %v3762
    %v4397 = vunpack.c.l.b16 %v3763
    %v4398 = vunpack.c.h.b16 %v3763
    %v4399 = vunpack.c.l.b16 %v3764
    %v4400 = vunpack.c.h.b16 %v3764
    %v4401 = vunpack.c.l.b16 %v3765
    %v4402 = vunpack.c.h.b16 %v3765
    %v4403 = vunpack.c.l.b16 %v3766
    %v4404 = vunpack.c.h.b16 %v3766
    %v4405 = vunpack.c.l.b16 %v3767
    %v4406 = vunpack.c.h.b16 %v3767
    %v4407 = vunpack.c.l.b16 %v3768
    %v4408 = vunpack.c.h.b16 %v3768
    %v4409 = vunpack.c.l.b16 %v3769
    %v4410 = vunpack.c.h.b16 %v3769
    %v4411 = vunpack.c.l.b16 %v3770
    %v4412 = vunpack.c.h.b16 %v3770
    %v4413 = vunpack.c.l.b16 %v3771
    %v4414 = vunpack.c.h.b16 %v3771
    %v4415 = vunpack.c.l.b16 %v3772
    %v4416 = vunpack.c.h.b16 %v3772
    %v4417 = vunpack.c.l.b16 %v3773
    %v4418 = vunpack.c.h.b16 %v3773
    %v4419 = vunpack.c.l.b16 %v3774
    %v4420 = vunpack.c.h.b16 %v3774
    %v4421 = vunpack.c.l.b16 %v3775
    %v4422 = vunpack.c.h.b16 %v3775
    %v4423 = vunpack.c.l.b16 %v3776
    %v4424 = vunpack.c.h.b16 %v3776
    %v4425 = vunpack.c.l.b16 %v3777
    %v4426 = vunpack.c.h.b16 %v3777
    %v4427 = vunpack.c.l.b16 %v3778
    %v4428 = vunpack.c.h.b16 %v3778
    %v4429 = vunpack.c.l.b16 %v3779
    %v4430 = vunpack.c.h.b16 %v3779
    %v4431 = vunpack.c.l.b16 %v3780
    %v4432 = vunpack.c.h.b16 %v3780
    %v4433 = vunpack.c.l.b16 %v3781
    %v4434 = vunpack.c.h.b16 %v3781
    %v4435 = vunpack.c.l.b16 %v3782
    %v4436 = vunpack.c.h.b16 %v3782
    %v4437 = vunpack.c.l.b16 %v3783
    %v4438 = vunpack.c.h.b16 %v3783
    %v4439 = vunpack.c.l.b16 %v3784
    %v4440 = vunpack.c.h.b16 %v3784
    %v4441 = vunpack.c.l.b16 %v3785
    %v4442 = vunpack.c.h.b16 %v3785
    %v4443 = vunpack.c.l.b16 %v3786
    %v4444 = vunpack.c.h.b16 %v3786
    %v4445 = vunpack.c.l.b16 %v3787
    %v4446 = vunpack.c.h.b16 %v3787
    %v4447 = vunpack.c.l.b16 %v3788
    %v4448 = vunpack.c.h.b16 %v3788
    %v4449 = vunpack.c.l.b16 %v3789
    %v4450 = vunpack.c.h.b16 %v3789
    %v4451 = vunpack.c.l.b16 %v3790
    %v4452 = vunpack.c.h.b16 %v3790
    %v4453 = vunpack.c.l.b16 %v3791
    %v4454 = vunpack.c.h.b16 %v3791
    %v4455 = vunpack.c.l.b16 %v3792
    %v4456 = vunpack.c.h.b16 %v3792
    %v4457 = vunpack.c.l.b16 %v3793
    %v4458 = vunpack.c.h.b16 %v3793
    %v4459 = vunpack.c.l.b16 %v3794
    %v4460 = vunpack.c.h.b16 %v3794
    %v4461 = vunpack.c.l.b16 %v3795
    %v4462 = vunpack.c.h.b16 %v3795
    %v4463 = vunpack.c.l.b16 %v3796
    %v4464 = vunpack.c.h.b16 %v3796
    %v4465 = vunpack.c.l.b16 %v3797
    %v4466 = vunpack.c.h.b16 %v3797
    %v4467 = vunpack.c.l.b16 %v3798
    %v4468 = vunpack.c.h.b16 %v3798
    %v4469 = vunpack.c.l.b16 %v3799
    %v4470 = vunpack.c.h.b16 %v3799
    %v4471 = vunpack.c.l.b16 %v3800
    %v4472 = vunpack.c.h.b16 %v3800
    %v4473 = vunpack.c.l.b16 %v3801
    %v4474 = vunpack.c.h.b16 %v3801
    %v4475 = vunpack.c.l.b16 %v3802
    %v4476 = vunpack.c.h.b16 %v3802
    %v4477 = vunpack.c.l.b16 %v3803
    %v4478 = vunpack.c.h.b16 %v3803
    %v4479 = vunpack.c.l.b16 %v3804
    %v4480 = vunpack.c.h.b16 %v3804
    %v4481 = vunpack.c.l.b16 %v3805
    %v4482 = vunpack.c.h.b16 %v3805
    %v4483 = vunpack.c.l.b16 %v3806
    %v4484 = vunpack.c.h.b16 %v3806
    %v4485 = vunpack.c.l.b16 %v3807
    %v4486 = vunpack.c.h.b16 %v3807
    %v4487 = vunpack.c.l.b16 %v3808
    %v4488 = vunpack.c.h.b16 %v3808
    %v4489 = vunpack.c.l.b16 %v3809
    %v4490 = vunpack.c.h.b16 %v3809
    %v4491 = vunpack.c.l.b16 %v3810
    %v4492 = vunpack.c.h.b16 %v3810
    %v4493 = vunpack.c.l.b16 %v3811
    %v4494 = vunpack.c.h.b16 %v3811
    %v4495 = vunpack.c.l.b16 %v3812
    %v4496 = vunpack.c.h.b16 %v3812
    %v4497 = vunpack.c.l.b16 %v3813
    %v4498 = vunpack.c.h.b16 %v3813
    %v4499 = vunpack.c.l.b16 %v3814
    %v4500 = vunpack.c.h.b16 %v3814
    %v4501 = vunpack.c.l.b16 %v3815
    %v4502 = vunpack.c.h.b16 %v3815
    %v4503 = vunpack.c.l.b16 %v3816
    %v4504 = vunpack.c.h.b16 %v3816
    %v4505 = vunpack.c.l.b16 %v3817
    %v4506 = vunpack.c.h.b16 %v3817
    %v4507 = vunpack.c.l.b16 %v3818
    %v4508 = vunpack.c.h.b16 %v3818
    %v4509 = vunpack.c.l.b16 %v3819
    %v4510 = vunpack.c.h.b16 %v3819
    %v4511 = vunpack.c.l.b16 %v3820
    %v4512 = vunpack.c.h.b16 %v3820
    %v4513 = vunpack.c.l.b16 %v3821
    %v4514 = vunpack.c.h.b16 %v3821
    %v4515 = vunpack.c.l.b16 %v3822
    %v4516 = vunpack.c.h.b16 %v3822
    %v4517 = vunpack.c.l.b16 %v3823
    %v4518 = vunpack.c.h.b16 %v3823
    %v4519 = vunpack.c.l.b16 %v3824
    %v4520 = vunpack.c.h.b16 %v3824
    %v4521 = vunpack.c.l.b16 %v3825
    %v4522 = vunpack.c.h.b16 %v3825
    %v4523 = vunpack.c.l.b16 %v3826
    %v4524 = vunpack.c.h.b16 %v3826
    %v4525 = vunpack.c.l.b16 %v3827
    %v4526 = vunpack.c.h.b16 %v3827
    %v4527 = vunpack.c.l.b16 %v3828
    %v4528 = vunpack.c.h.b16 %v3828
    %v4529 = vunpack.c.l.b16 %v3829
    %v4530 = vunpack.c.h.b16 %v3829
    %v4531 = vunpack.c.l.b16 %v3830
    %v4532 = vunpack.c.h.b16 %v3830
    %v4533 = vunpack.c.l.b16 %v3831
    %v4534 = vunpack.c.h.b16 %v3831
    %v4535 = vunpack.c.l.b16 %v3832
    %v4536 = vunpack.c.h.b16 %v3832
    %v4537 = vunpack.c.l.b16 %v3833
    %v4538 = vunpack.c.h.b16 %v3833
    %v4539 = vunpack.c.l.b16 %v3834
    %v4540 = vunpack.c.h.b16 %v3834
    %v4541 = vunpack.c.l.b16 %v3835
    %v4542 = vunpack.c.h.b16 %v3835
    %v4543 = vunpack.c.l.b16 %v3836
    %v4544 = vunpack.c.h.b16 %v3836
    %v4545 = vunpack.c.l.b16 %v3837
    %v4546 = vunpack.c.h.b16 %v3837
    %v4547 = vunpack.c.l.b16 %v3838
    %v4548 = vunpack.c.h.b16 %v3838
    %v4549 = vunpack.c.l.b16 %v3839
    %v4550 = vunpack.c.h.b16 %v3839
    %v4551 = vunpack.c.l.b16 %v3840
    %v4552 = vunpack.c.h.b16 %v3840
    %v4553 = vunpack.c.l.b16 %v3841
    %v4554 = vunpack.c.h.b16 %v3841
    %v4555 = vunpack.c.l.b16 %v3842
    %v4556 = vunpack.c.h.b16 %v3842
    %v4557 = vunpack.c.l.b16 %v3843
    %v4558 = vunpack.c.h.b16 %v3843
    %v4559 = vunpack.c.l.b16 %v3844
    %v4560 = vunpack.c.h.b16 %v3844
    %v4561 = vunpack.c.l.b16 %v3845
    %v4562 = vunpack.c.h.b16 %v3845
    %v4563 = vunpack.c.l.b16 %v3846
    %v4564 = vunpack.c.h.b16 %v3846
    %v4565 = vunpack.c.l.b16 %v3847
    %v4566 = vunpack.c.h.b16 %v3847
    %v4567 = vunpack.c.l.b16 %v3848
    %v4568 = vunpack.c.h.b16 %v3848
    %v4569 = vunpack.c.l.b16 %v3849
    %v4570 = vunpack.c.h.b16 %v3849
    %v4571 = vunpack.c.l.b16 %v3850
    %v4572 = vunpack.c.h.b16 %v3850
    %v4573 = vunpack.c.l.b16 %v3851
    %v4574 = vunpack.c.h.b16 %v3851
    %v4575 = vunpack.c.l.b16 %v3852
    %v4576 = vunpack.c.h.b16 %v3852
    %v4577 = vunpack.c.l.b16 %v3853
    %v4578 = vunpack.c.h.b16 %v3853
    %v4579 = vunpack.c.l.b16 %v3854
    %v4580 = vunpack.c.h.b16 %v3854
    %v4581 = vunpack.c.l.b16 %v3855
    %v4582 = vunpack.c.h.b16 %v3855
    %v4583 = vunpack.c.l.b16 %v3856
    %v4584 = vunpack.c.h.b16 %v3856
    %v4585 = vunpack.c.l.b16 %v3857
    %v4586 = vunpack.c.h.b16 %v3857
    %v4587 = vunpack.c.l.b16 %v3858
    %v4588 = vunpack.c.h.b16 %v3858
    %v4589 = vunpack.c.l.b16 %v3859
    %v4590 = vunpack.c.h.b16 %v3859
    %v4591 = vunpack.c.l.b16 %v3860
    %v4592 = vunpack.c.h.b16 %v3860
    %v4593 = vunpack.c.l.b16 %v3861
    %v4594 = vunpack.c.h.b16 %v3861
    %v4595 = vunpack.c.l.b16 %v3862
    %v4596 = vunpack.c.h.b16 %v3862
    %v4597 = vunpack.c.l.b16 %v3863
    %v4598 = vunpack.c.h.b16 %v3863
    %v4599 = vunpack.c.l.b16 %v3864
    %v4600 = vunpack.c.h.b16 %v3864
    %v4601 = vunpack.c.l.b16 %v3865
    %v4602 = vunpack.c.h.b16 %v3865
    %v4603 = vunpack.c.l.b16 %v3866
    %v4604 = vunpack.c.h.b16 %v3866
    %v4605 = vunpack.c.l.b16 %v3867
    %v4606 = vunpack.c.h.b16 %v3867
    %v4607 = vunpack.c.l.b16 %v3868
    %v4608 = vunpack.c.h.b16 %v3868
    %v4609 = vunpack.c.l.b16 %v3869
    %v4610 = vunpack.c.h.b16 %v3869
    %v4611 = vunpack.c.l.b16 %v3870
    %v4612 = vunpack.c.h.b16 %v3870
    %v4613 = vunpack.c.l.b16 %v3871
    %v4614 = vunpack.c.h.b16 %v3871
    %v4615 = vunpack.c.l.b16 %v3872
    %v4616 = vunpack.c.h.b16 %v3872
    %v4617 = vunpack.c.l.b16 %v3873
    %v4618 = vunpack.c.h.b16 %v3873
    %v4619 = vunpack.c.l.b16 %v3874
    %v4620 = vunpack.c.h.b16 %v3874
    %v4621 = vunpack.c.l.b16 %v3875
    %v4622 = vunpack.c.h.b16 %v3875
    %v4623 = vunpack.c.l.b16 %v3876
    %v4624 = vunpack.c.h.b16 %v3876
    %v4625 = vunpack.c.l.b16 %v3877
    %v4626 = vunpack.c.h.b16 %v3877
    %v4627 = vunpack.c.l.b16 %v3878
    %v4628 = vunpack.c.h.b16 %v3878
    %v4629 = vunpack.c.l.b16 %v3879
    %v4630 = vunpack.c.h.b16 %v3879
    %v4631 = vunpack.c.l.b16 %v3880
    %v4632 = vunpack.c.h.b16 %v3880
    %v4633 = vunpack.c.l.b16 %v3881
    %v4634 = vunpack.c.h.b16 %v3881
    %v4635 = vunpack.c.l.b16 %v3882
    %v4636 = vunpack.c.h.b16 %v3882
    %v4637 = vunpack.c.l.b16 %v3883
    %v4638 = vunpack.c.h.b16 %v3883
    %v4639 = vunpack.c.l.b16 %v3884
    %v4640 = vunpack.c.h.b16 %v3884
    %v4641 = vunpack.c.l.b16 %v3885
    %v4642 = vunpack.c.h.b16 %v3885
    %v4643 = vunpack.c.l.b16 %v3886
    %v4644 = vunpack.c.h.b16 %v3886
    %v4645 = vunpack.c.l.b16 %v3887
    %v4646 = vunpack.c.h.b16 %v3887
    %v4647 = vunpack.c.l.b16 %v3888
    %v4648 = vunpack.c.h.b16 %v3888
    %v4649 = vunpack.c.l.b16 %v3889
    %v4650 = vunpack.c.h.b16 %v3889
    %v4651 = vunpack.c.l.b16 %v3890
    %v4652 = vunpack.c.h.b16 %v3890
    %v4653 = vunpack.c.l.b16 %v3891
    %v4654 = vunpack.c.h.b16 %v3891
    %v4655 = vunpack.c.l.b16 %v3892
    %v4656 = vunpack.c.h.b16 %v3892
    %v4657 = vunpack.c.l.b16 %v3893
    %v4658 = vunpack.c.h.b16 %v3893
    %v4659 = vunpack.c.l.b16 %v3894
    %v4660 = vunpack.c.h.b16 %v3894
    %v4661 = vunpack.c.l.b16 %v3895
    %v4662 = vunpack.c.h.b16 %v3895
    %v4663 = vunpack.c.l.b16 %v3896
    %v4664 = vunpack.c.h.b16 %v3896
    %v4665 = vunpack.c.l.b16 %v3897
    %v4666 = vunpack.c.h.b16 %v3897
    %v4667 = vunpack.c.l.b16 %v3898
    %v4668 = vunpack.c.h.b16 %v3898
    %v4669 = vunpack.c.l.b16 %v3899
    %v4670 = vunpack.c.h.b16 %v3899
    %v4671 = vunpack.c.l.b16 %v3900
    %v4672 = vunpack.c.h.b16 %v3900
    %v4673 = vunpack.c.l.b16 %v3901
    %v4674 = vunpack.c.h.b16 %v3901
    %v4675 = vunpack.c.l.b16 %v3902
    %v4676 = vunpack.c.h.b16 %v3902
    %v4677 = vunpack.c.l.b16 %v3903
    %v4678 = vunpack.c.h.b16 %v3903
    %v4679 = vunpack.c.l.b16 %v3904
    %v4680 = vunpack.c.h.b16 %v3904
    %v4681 = vunpack.c.l.b16 %v3905
    %v4682 = vunpack.c.h.b16 %v3905
    %v4683 = vunpack.c.l.b16 %v3906
    %v4684 = vunpack.c.h.b16 %v3906
    %v4685 = vunpack.c.l.b16 %v3907
    %v4686 = vunpack.c.h.b16 %v3907
    %v4687 = vunpack.c.l.b16 %v3908
    %v4688 = vunpack.c.h.b16 %v3908
    %v4689 = vunpack.c.l.b16 %v3909
    %v4690 = vunpack.c.h.b16 %v3909
    %v4691 = vunpack.c.l.b16 %v3910
    %v4692 = vunpack.c.h.b16 %v3910
    %v4693 = vunpack.c.l.b16 %v3911
    %v4694 = vunpack.c.h.b16 %v3911
    %v4695 = vunpack.c.l.b16 %v3912
    %v4696 = vunpack.c.h.b16 %v3912
    %v4697 = vunpack.c.l.b16 %v3913
    %v4698 = vunpack.c.h.b16 %v3913
    %v4699 = vpack.c.b16 %v4195, %v4187
    %v4700 = vpack.c.b16 %v4196, %v4188
    %v4701 = vpack.c.b16 %v4197, %v4189
    %v4702 = vpack.c.b16 %v4198, %v4190
    %v4703 = vpack.c.b16 %v4199, %v4191
    %v4704 = vpack.c.b16 %v4200, %v4192
    %v4705 = vpack.c.b16 %v4201, %v4193
    %v4706 = vpack.c.b16 %v4202, %v4194
    %v4707 = vpack.c.b16 %v4211, %v4203
    %v4708 = vpack.c.b16 %v4212, %v4204
    %v4709 = vpack.c.b16 %v4213, %v4205
    %v4710 = vpack.c.b16 %v4214, %v4206
    %v4711 = vpack.c.b16 %v4215, %v4207
    %v4712 = vpack.c.b16 %v4216, %v4208
    %v4713 = vpack.c.b16 %v4217, %v4209
    %v4714 = vpack.c.b16 %v4218, %v4210
    %v4715 = vpack.c.b16 %v4227, %v4219
    %v4716 = vpack.c.b16 %v4228, %v4220
    %v4717 = vpack.c.b16 %v4229, %v4221
    %v4718 = vpack.c.b16 %v4230, %v4222
    %v4719 = vpack.c.b16 %v4231, %v4223
    %v4720 = vpack.c.b16 %v4232, %v4224
    %v4721 = vpack.c.b16 %v4233, %v4225
    %v4722 = vpack.c.b16 %v4234, %v4226
    %v4723 = vpack.c.b16 %v4243, %v4235
    %v4724 = vpack.c.b16 %v4244, %v4236
    %v4725 = vpack.c.b16 %v4245, %v4237
    %v4726 = vpack.c.b16 %v4246, %v4238
    %v4727 = vpack.c.b16 %v4247, %v4239
    %v4728 = vpack.c.b16 %v4248, %v4240
    %v4729 = vpack.c.b16 %v4249, %v4241
    %v4730 = vpack.c.b16 %v4250, %v4242
    %v4731 = vpack.c.b16 %v4259, %v4251
    %v4732 = vpack.c.b16 %v4260, %v4252
    %v4733 = vpack.c.b16 %v4261, %v4253
    %v4734 = vpack.c.b16 %v4262, %v4254
    %v4735 = vpack.c.b16 %v4263, %v4255
    %v4736 = vpack.c.b16 %v4264, %v4256
    %v4737 = vpack.c.b16 %v4265, %v4257
    %v4738 = vpack.c.b16 %v4266, %v4258
    %v4739 = vpack.c.b16 %v4275, %v4267
    %v4740 = vpack.c.b16 %v4276, %v4268
    %v4741 = vpack.c.b16 %v4277, %v4269
    %v4742 = vpack.c.b16 %v4278, %v4270
    %v4743 = vpack.c.b16 %v4279, %v4271
    %v4744 = vpack.c.b16 %v4280, %v4272
    %v4745 = vpack.c.b16 %v4281, %v4273
    %v4746 = vpack.c.b16 %v4282, %v4274
    %v4747 = vpack.c.b16 %v4291, %v4283
    %v4748 = vpack.c.b16 %v4292, %v4284
    %v4749 = vpack.c.b16 %v4293, %v4285
    %v4750 = vpack.c.b16 %v4294, %v4286
    %v4751 = vpack.c.b16 %v4295, %v4287
    %v4752 = vpack.c.b16 %v4296, %v4288
    %v4753 = vpack.c.b16 %v4297, %v4289
    %v4754 = vpack.c.b16 %v4298, %v4290
    %v4755 = vpack.c.b16 %v4307, %v4299
    %v4756 = vpack.c.b16 %v4308, %v4300
    %v4757 = vpack.c.b16 %v4309, %v4301
    %v4758 = vpack.c.b16 %v4310, %v4302
    %v4759 = vpack.c.b16 %v4311, %v4303
    %v4760 = vpack.c.b16 %v4312, %v4304
    %v4761 = vpack.c.b16 %v4313, %v4305
    %v4762 = vpack.c.b16 %v4314, %v4306
    %v4763 = vpack.c.b16 %v4323, %v4315
    %v4764 = vpack.c.b16 %v4324, %v4316
    %v4765 = vpack.c.b16 %v4325, %v4317
    %v4766 = vpack.c.b16 %v4326, %v4318
    %v4767 = vpack.c.b16 %v4327, %v4319
    %v4768 = vpack.c.b16 %v4328, %v4320
    %v4769 = vpack.c.b16 %v4329, %v4321
    %v4770 = vpack.c.b16 %v4330, %v4322
    %v4771 = vpack.c.b16 %v4339, %v4331
    %v4772 = vpack.c.b16 %v4340, %v4332
    %v4773 = vpack.c.b16 %v4341, %v4333
    %v4774 = vpack.c.b16 %v4342, %v4334
    %v4775 = vpack.c.b16 %v4343, %v4335
    %v4776 = vpack.c.b16 %v4344, %v4336
    %v4777 = vpack.c.b16 %v4345, %v4337
    %v4778 = vpack.c.b16 %v4346, %v4338
    %v4779 = vpack.c.b16 %v4355, %v4347
    %v4780 = vpack.c.b16 %v4356, %v4348
    %v4781 = vpack.c.b16 %v4357, %v4349
    %v4782 = vpack.c.b16 %v4358, %v4350
    %v4783 = vpack.c.b16 %v4359, %v4351
    %v4784 = vpack.c.b16 %v4360, %v4352
    %v4785 = vpack.c.b16 %v4361, %v4353
    %v4786 = vpack.c.b16 %v4362, %v4354
    %v4787 = vpack.c.b16 %v4371, %v4363
    %v4788 = vpack.c.b16 %v4372, %v4364
    %v4789 = vpack.c.b16 %v4373, %v4365
    %v4790 = vpack.c.b16 %v4374, %v4366
    %v4791 = vpack.c.b16 %v4375, %v4367
    %v4792 = vpack.c.b16 %v4376, %v4368
    %v4793 = vpack.c.b16 %v4377, %v4369
    %v4794 = vpack.c.b16 %v4378, %v4370
    %v4795 = vpack.c.b16 %v4387, %v4379
    %v4796 = vpack.c.b16 %v4388, %v4380
    %v4797 = vpack.c.b16 %v4389, %v4381
    %v4798 = vpack.c.b16 %v4390, %v4382
    %v4799 = vpack.c.b16 %v4391, %v4383
    %v4800 = vpack.c.b16 %v4392, %v4384
    %v4801 = vpack.c.b16 %v4393, %v4385
    %v4802 = vpack.c.b16 %v4394, %v4386
    %v4803 = vpack.c.b16 %v4403, %v4395
    %v4804 = vpack.c.b16 %v4404, %v4396
    %v4805 = vpack.c.b16 %v4405, %v4397
    %v4806 = vpack.c.b16 %v4406, %v4398
    %v4807 = vpack.c.b16 %v4407, %v4399
    %v4808 = vpack.c.b16 %v4408, %v4400
    %v4809 = vpack.c.b16 %v4409, %v4401
    %v4810 = vpack.c.b16 %v4410, %v4402
    %v4811 = vpack.c.b16 %v4419, %v4411
    %v4812 = vpack.c.b16 %v4420, %v4412
    %v4813 = vpack.c.b16 %v4421, %v4413
    %v4814 = vpack.c.b16 %v4422, %v4414
    %v4815 = vpack.c.b16 %v4423, %v4415
    %v4816 = vpack.c.b16 %v4424, %v4416
    %v4817 = vpack.c.b16 %v4425, %v4417
    %v4818 = vpack.c.b16 %v4426, %v4418
    %v4819 = vpack.c.b16 %v4435, %v4427
    %v4820 = vpack.c.b16 %v4436, %v4428
    %v4821 = vpack.c.b16 %v4437, %v4429
    %v4822 = vpack.c.b16 %v4438, %v4430
    %v4823 = vpack.c.b16 %v4439, %v4431
    %v4824 = vpack.c.b16 %v4440, %v4432
    %v4825 = vpack.c.b16 %v4441, %v4433
    %v4826 = vpack.c.b16 %v4442, %v4434
    %v4827 = vpack.c.b16 %v4451, %v4443
    %v4828 = vpack.c.b16 %v4452, %v4444
    %v4829 = vpack.c.b16 %v4453, %v4445
    %v4830 = vpack.c.b16 %v4454, %v4446
    %v4831 = vpack.c.b16 %v4455, %v4447
    %v4832 = vpack.c.b16 %v4456, %v4448
    %v4833 = vpack.c.b16 %v4457, %v4449
    %v4834 = vpack.c.b16 %v4458, %v4450
    %v4835 = vpack.c.b16 %v4467, %v4459
    %v4836 = vpack.c.b16 %v4468, %v4460
    %v4837 = vpack.c.b16 %v4469, %v4461
    %v4838 = vpack.c.b16 %v4470, %v4462
    %v4839 = vpack.c.b16 %v4471, %v4463
    %v4840 = vpack.c.b16 %v4472, %v4464
    %v4841 = vpack.c.b16 %v4473, %v4465
    %v4842 = vpack.c.b16 %v4474, %v4466
    %v4843 = vpack.c.b16 %v4483, %v4475
    %v4844 = vpack.c.b16 %v4484, %v4476
    %v4845 = vpack.c.b16 %v4485, %v4477
    %v4846 = vpack.c.b16 %v4486, %v4478
    %v4847 = vpack.c.b16 %v4487, %v4479
    %v4848 = vpack.c.b16 %v4488, %v4480
    %v4849 = vpack.c.b16 %v4489, %v4481
    %v4850 = vpack.c.b16 %v4490, %v4482
    %v4851 = vpack.c.b16 %v4499, %v4491
    %v4852 = vpack.c.b16 %v4500, %v4492
    %v4853 = vpack.c.b16 %v4501, %v4493
    %v4854 = vpack.c.b16 %v4502, %v4494
    %v4855 = vpack.c.b16 %v4503, %v4495
    %v4856 = vpack.c.b16 %v4504, %v4496
    %v4857 = vpack.c.b16 %v4505, %v4497
    %v4858 = vpack.c.b16 %v4506, %v4498
    %v4859 = vpack.c.b16 %v4515, %v4507
    %v4860 = vpack.c.b16 %v4516, %v4508
    %v4861 = vpack.c.b16 %v4517, %v4509
    %v4862 = vpack.c.b16 %v4518, %v4510
    %v4863 = vpack.c.b16 %v4519, %v4511
    %v4864 = vpack.c.b16 %v4520, %v4512
    %v4865 = vpack.c.b16 %v4521, %v4513
    %v4866 = vpack.c.b16 %v4522, %v4514
    %v4867 = vpack.c.b16 %v4531, %v4523
    %v4868 = vpack.c.b16 %v4532, %v4524
    %v4869 = vpack.c.b16 %v4533, %v4525
    %v4870 = vpack.c.b16 %v4534, %v4526
    %v4871 = vpack.c.b16 %v4535, %v4527
    %v4872 = vpack.c.b16 %v4536, %v4528
    %v4873 = vpack.c.b16 %v4537, %v4529
    %v4874 = vpack.c.b16 %v4538, %v4530
    %v4875 = vpack.c.b16 %v4547, %v4539
    %v4876 = vpack.c.b16 %v4548, %v4540
    %v4877 = vpack.c.b16 %v4549, %v4541
    %v4878 = vpack.c.b16 %v4550, %v4542
    %v4879 = vpack.c.b16 %v4551, %v4543
    %v4880 = vpack.c.b16 %v4552, %v4544
    %v4881 = vpack.c.b16 %v4553, %v4545
    %v4882 = vpack.c.b16 %v4554, %v4546
    %v4883 = vpack.c.b16 %v4563, %v4555
    %v4884 = vpack.c.b16 %v4564, %v4556
    %v4885 = vpack.c.b16 %v4565, %v4557
    %v4886 = vpack.c.b16 %v4566, %v4558
    %v4887 = vpack.c.b16 %v4567, %v4559
    %v4888 = vpack.c.b16 %v4568, %v4560
    %v4889 = vpack.c.b16 %v4569, %v4561
    %v4890 = vpack.c.b16 %v4570, %v4562
    %v4891 = vpack.c.b16 %v4579, %v4571
    %v4892 = vpack.c.b16 %v4580, %v4572
    %v4893 = vpack.c.b16 %v4581, %v4573
    %v4894 = vpack.c.b16 %v4582, %v4574
    %v4895 = vpack.c.b16 %v4583, %v4575
    %v4896 = vpack.c.b16 %v4584, %v4576
    %v4897 = vpack.c.b16 %v4585, %v4577
    %v4898 = vpack.c.b16 %v4586, %v4578
    %v4899 = vpack.c.b16 %v4595, %v4587
    %v4900 = vpack.c.b16 %v4596, %v4588
    %v4901 = vpack.c.b16 %v4597, %v4589
    %v4902 = vpack.c.b16 %v4598, %v4590
    %v4903 = vpack.c.b16 %v4599, %v4591
    %v4904 = vpack.c.b16 %v4600, %v4592
    %v4905 = vpack.c.b16 %v4601, %v4593
    %v4906 = vpack.c.b16 %v4602, %v4594
    %v4907 = vpack.c.b16 %v4611, %v4603
    %v4908 = vpack.c.b16 %v4612, %v4604
    %v4909 = vpack.c.b16 %v4613, %v4605
    %v4910 = vpack.c.b16 %v4614, %v4606
    %v4911 = vpack.c.b16 %v4615, %v4607
    %v4912 = vpack.c.b16 %v4616, %v4608
    %v4913 = vpack.c.b16 %v4617, %v4609
    %v4914 = vpack.c.b16 %v4618, %v4610
    %v4915 = vpack.c.b16 %v4627, %v4619
    %v4916 = vpack.c.b16 %v4628, %v4620
    %v4917 = vpack.c.b16 %v4629, %v4621
    %v4918 = vpack.c.b16 %v4630, %v4622
    %v4919 = vpack.c.b16 %v4631, %v4623
    %v4920 = vpack.c.b16 %v4632, %v4624
    %v4921 = vpack.c.b16 %v4633, %v4625
    %v4922 = vpack.c.b16 %v4634, %v4626
    %v4923 = vpack.c.b16 %v4643, %v4635
    %v4924 = vpack.c.b16 %v4644, %v4636
    %v4925 = vpack.c.b16 %v4645, %v4637
    %v4926 = vpack.c.b16 %v4646, %v4638
    %v4927 = vpack.c.b16 %v4647, %v4639
    %v4928 = vpack.c.b16 %v4648, %v4640
    %v4929 = vpack.c.b16 %v4649, %v4641
    %v4930 = vpack.c.b16 %v4650, %v4642
    %v4931 = vpack.c.b16 %v4659, %v4651
    %v4932 = vpack.c.b16 %v4660, %v4652
    %v4933 = vpack.c.b16 %v4661, %v4653
    %v4934 = vpack.c.b16 %v4662, %v4654
    %v4935 = vpack.c.b16 %v4663, %v4655
    %v4936 = vpack.c.b16 %v4664, %v4656
    %v4937 = vpack.c.b16 %v4665, %v4657
    %v4938 = vpack.c.b16 %v4666, %v4658
    %v4939 = vpack.c.b16 %v4675, %v4667
    %v4940 = vpack.c.b16 %v4676, %v4668
    %v4941 = vpack.c.b16 %v4677, %v4669
    %v4942 = vpack.c.b16 %v4678, %v4670
    %v4943 = vpack.c.b16 %v4679, %v4671
    %v4944 = vpack.c.b16 %v4680, %v4672
    %v4945 = vpack.c.b16 %v4681, %v4673
    %v4946 = vpack.c.b16 %v4682, %v4674
    %v4947 = vpack.c.b16 %v4691, %v4683
    %v4948 = vpack.c.b16 %v4692, %v4684
    %v4949 = vpack.c.b16 %v4693, %v4685
    %v4950 = vpack.c.b16 %v4694, %v4686
    %v4951 = vpack.c.b16 %v4695, %v4687
    %v4952 = vpack.c.b16 %v4696, %v4688
    %v4953 = vpack.c.b16 %v4697, %v4689
    %v4954 = vpack.c.b16 %v4698, %v4690
    %5211 = vmatpush.bf16.msra.mxu0 %v4755
    %5212 = vmatpush.bf16.msra.mxu0 %v4747
    %5213 = vmatpush.bf16.msra.mxu0 %v4739
    %5214 = vmatpush.bf16.msra.mxu0 %v4731
    %5215 = vmatpush.bf16.msra.mxu0 %v4723
    %5216 = vmatpush.bf16.msra.mxu0 %v4715
    %5217 = vmatpush.bf16.msra.mxu0 %v4707
    %5218 = vmatpush.bf16.msra.mxu0 %v4699
    %5219 = vmatmul.bf16.gmra.mxu0 %v3654
    %v5220 = vpop.f32.mrf.mxu0
    %v5221 = vadd.f32 %v3915, %v5220
    %v5222 = vpop.f32.mrf.mxu0
    %5223 = vdwg.mxu0
    %5224 = vmatpush.bf16.msra.mxu0 %v4819
    %5225 = vmatpush.bf16.msra.mxu0 %v4811
    %5226 = vmatpush.bf16.msra.mxu0 %v4803
    %5227 = vmatpush.bf16.msra.mxu0 %v4795
    %5228 = vmatpush.bf16.msra.mxu0 %v4787
    %5229 = vmatpush.bf16.msra.mxu0 %v4779
    %5230 = vmatpush.bf16.msra.mxu0 %v4771
    %5231 = vmatpush.bf16.msra.mxu0 %v4763
    %5232 = vmatmul.bf16.gmra.mxu0 %v3655
    %v5233 = vpop.f32.mrf.mxu0
    %v5234 = vadd.f32 %v5221, %v5233
    %v5235 = vpop.f32.mrf.mxu0
    %5236 = vdwg.mxu0
    %5237 = vmatpush.bf16.msra.mxu0 %v4883
    %5238 = vmatpush.bf16.msra.mxu0 %v4875
    %5239 = vmatpush.bf16.msra.mxu0 %v4867
    %5240 = vmatpush.bf16.msra.mxu0 %v4859
    %5241 = vmatpush.bf16.msra.mxu0 %v4851
    %5242 = vmatpush.bf16.msra.mxu0 %v4843
    %5243 = vmatpush.bf16.msra.mxu0 %v4835
    %5244 = vmatpush.bf16.msra.mxu0 %v4827
    %5245 = vmatmul.bf16.gmra.mxu0 %v3656
    %v5246 = vpop.f32.mrf.mxu0
    %v5247 = vadd.f32 %v5234, %v5246
    %v5248 = vpop.f32.mrf.mxu0
    %5249 = vdwg.mxu0
    %5250 = vmatpush.bf16.msra.mxu0 %v4947
    %5251 = vmatpush.bf16.msra.mxu0 %v4939
    %5252 = vmatpush.bf16.msra.mxu0 %v4931
    %5253 = vmatpush.bf16.msra.mxu0 %v4923
    %5254 = vmatpush.bf16.msra.mxu0 %v4915
    %5255 = vmatpush.bf16.msra.mxu0 %v4907
    %5256 = vmatpush.bf16.msra.mxu0 %v4899
    %5257 = vmatpush.bf16.msra.mxu0 %v4891
    %5258 = vmatmul.bf16.gmra.mxu0 %v3657
    %v5259 = vpop.f32.mrf.mxu0
    %v5260 = vadd.f32 %v5247, %v5259
    %v5261 = vpop.f32.mrf.mxu0
    %5262 = vdwg.mxu0
    %5263 = vmatpush.bf16.msra.mxu0 %v4756
    %5264 = vmatpush.bf16.msra.mxu0 %v4748
    %5265 = vmatpush.bf16.msra.mxu0 %v4740
    %5266 = vmatpush.bf16.msra.mxu0 %v4732
    %5267 = vmatpush.bf16.msra.mxu0 %v4724
    %5268 = vmatpush.bf16.msra.mxu0 %v4716
    %5269 = vmatpush.bf16.msra.mxu0 %v4708
    %5270 = vmatpush.bf16.msra.mxu0 %v4700
    %5271 = vmatmul.bf16.gmra.mxu0 %v3654
    %v5272 = vpop.f32.mrf.mxu0
    %v5273 = vadd.f32 %v3916, %v5272
    %v5274 = vpop.f32.mrf.mxu0
    %5275 = vdwg.mxu0
    %5276 = vmatpush.bf16.msra.mxu0 %v4820
    %5277 = vmatpush.bf16.msra.mxu0 %v4812
    %5278 = vmatpush.bf16.msra.mxu0 %v4804
    %5279 = vmatpush.bf16.msra.mxu0 %v4796
    %5280 = vmatpush.bf16.msra.mxu0 %v4788
    %5281 = vmatpush.bf16.msra.mxu0 %v4780
    %5282 = vmatpush.bf16.msra.mxu0 %v4772
    %5283 = vmatpush.bf16.msra.mxu0 %v4764
    %5284 = vmatmul.bf16.gmra.mxu0 %v3655
    %v5285 = vpop.f32.mrf.mxu0
    %v5286 = vadd.f32 %v5273, %v5285
    %v5287 = vpop.f32.mrf.mxu0
    %5288 = vdwg.mxu0
    %5289 = vmatpush.bf16.msra.mxu0 %v4884
    %5290 = vmatpush.bf16.msra.mxu0 %v4876
    %5291 = vmatpush.bf16.msra.mxu0 %v4868
    %5292 = vmatpush.bf16.msra.mxu0 %v4860
    %5293 = vmatpush.bf16.msra.mxu0 %v4852
    %5294 = vmatpush.bf16.msra.mxu0 %v4844
    %5295 = vmatpush.bf16.msra.mxu0 %v4836
    %5296 = vmatpush.bf16.msra.mxu0 %v4828
    %5297 = vmatmul.bf16.gmra.mxu0 %v3656
    %v5298 = vpop.f32.mrf.mxu0
    %v5299 = vadd.f32 %v5286, %v5298
    %v5300 = vpop.f32.mrf.mxu0
    %5301 = vdwg.mxu0
    %5302 = vmatpush.bf16.msra.mxu0 %v4948
    %5303 = vmatpush.bf16.msra.mxu0 %v4940
    %5304 = vmatpush.bf16.msra.mxu0 %v4932
    %5305 = vmatpush.bf16.msra.mxu0 %v4924
    %5306 = vmatpush.bf16.msra.mxu0 %v4916
    %5307 = vmatpush.bf16.msra.mxu0 %v4908
    %5308 = vmatpush.bf16.msra.mxu0 %v4900
    %5309 = vmatpush.bf16.msra.mxu0 %v4892
    %5310 = vmatmul.bf16.gmra.mxu0 %v3657
    %v5311 = vpop.f32.mrf.mxu0
    %v5312 = vadd.f32 %v5299, %v5311
    %v5313 = vpop.f32.mrf.mxu0
    %5314 = vdwg.mxu0
    %5315 = vmatpush.bf16.msra.mxu0 %v4757
    %5316 = vmatpush.bf16.msra.mxu0 %v4749
    %5317 = vmatpush.bf16.msra.mxu0 %v4741
    %5318 = vmatpush.bf16.msra.mxu0 %v4733
    %5319 = vmatpush.bf16.msra.mxu0 %v4725
    %5320 = vmatpush.bf16.msra.mxu0 %v4717
    %5321 = vmatpush.bf16.msra.mxu0 %v4709
    %5322 = vmatpush.bf16.msra.mxu0 %v4701
    %5323 = vmatmul.bf16.gmra.mxu0 %v3654
    %v5324 = vpop.f32.mrf.mxu0
    %v5325 = vadd.f32 %v3917, %v5324
    %v5326 = vpop.f32.mrf.mxu0
    %5327 = vdwg.mxu0
    %5328 = vmatpush.bf16.msra.mxu0 %v4821
    %5329 = vmatpush.bf16.msra.mxu0 %v4813
    %5330 = vmatpush.bf16.msra.mxu0 %v4805
    %5331 = vmatpush.bf16.msra.mxu0 %v4797
    %5332 = vmatpush.bf16.msra.mxu0 %v4789
    %5333 = vmatpush.bf16.msra.mxu0 %v4781
    %5334 = vmatpush.bf16.msra.mxu0 %v4773
    %5335 = vmatpush.bf16.msra.mxu0 %v4765
    %5336 = vmatmul.bf16.gmra.mxu0 %v3655
    %v5337 = vpop.f32.mrf.mxu0
    %v5338 = vadd.f32 %v5325, %v5337
    %v5339 = vpop.f32.mrf.mxu0
    %5340 = vdwg.mxu0
    %5341 = vmatpush.bf16.msra.mxu0 %v4885
    %5342 = vmatpush.bf16.msra.mxu0 %v4877
    %5343 = vmatpush.bf16.msra.mxu0 %v4869
    %5344 = vmatpush.bf16.msra.mxu0 %v4861
    %5345 = vmatpush.bf16.msra.mxu0 %v4853
    %5346 = vmatpush.bf16.msra.mxu0 %v4845
    %5347 = vmatpush.bf16.msra.mxu0 %v4837
    %5348 = vmatpush.bf16.msra.mxu0 %v4829
    %5349 = vmatmul.bf16.gmra.mxu0 %v3656
    %v5350 = vpop.f32.mrf.mxu0
    %v5351 = vadd.f32 %v5338, %v5350
    %v5352 = vpop.f32.mrf.mxu0
    %5353 = vdwg.mxu0
    %5354 = vmatpush.bf16.msra.mxu0 %v4949
    %5355 = vmatpush.bf16.msra.mxu0 %v4941
    %5356 = vmatpush.bf16.msra.mxu0 %v4933
    %5357 = vmatpush.bf16.msra.mxu0 %v4925
    %5358 = vmatpush.bf16.msra.mxu0 %v4917
    %5359 = vmatpush.bf16.msra.mxu0 %v4909
    %5360 = vmatpush.bf16.msra.mxu0 %v4901
    %5361 = vmatpush.bf16.msra.mxu0 %v4893
    %5362 = vmatmul.bf16.gmra.mxu0 %v3657
    %v5363 = vpop.f32.mrf.mxu0
    %v5364 = vadd.f32 %v5351, %v5363
    %v5365 = vpop.f32.mrf.mxu0
    %5366 = vdwg.mxu0
    %5367 = vmatpush.bf16.msra.mxu0 %v4758
    %5368 = vmatpush.bf16.msra.mxu0 %v4750
    %5369 = vmatpush.bf16.msra.mxu0 %v4742
    %5370 = vmatpush.bf16.msra.mxu0 %v4734
    %5371 = vmatpush.bf16.msra.mxu0 %v4726
    %5372 = vmatpush.bf16.msra.mxu0 %v4718
    %5373 = vmatpush.bf16.msra.mxu0 %v4710
    %5374 = vmatpush.bf16.msra.mxu0 %v4702
    %5375 = vmatmul.bf16.gmra.mxu0 %v3654
    %v5376 = vpop.f32.mrf.mxu0
    %v5377 = vadd.f32 %v3918, %v5376
    %v5378 = vpop.f32.mrf.mxu0
    %5379 = vdwg.mxu0
    %5380 = vmatpush.bf16.msra.mxu0 %v4822
    %5381 = vmatpush.bf16.msra.mxu0 %v4814
    %5382 = vmatpush.bf16.msra.mxu0 %v4806
    %5383 = vmatpush.bf16.msra.mxu0 %v4798
    %5384 = vmatpush.bf16.msra.mxu0 %v4790
    %5385 = vmatpush.bf16.msra.mxu0 %v4782
    %5386 = vmatpush.bf16.msra.mxu0 %v4774
    %5387 = vmatpush.bf16.msra.mxu0 %v4766
    %5388 = vmatmul.bf16.gmra.mxu0 %v3655
    %v5389 = vpop.f32.mrf.mxu0
    %v5390 = vadd.f32 %v5377, %v5389
    %v5391 = vpop.f32.mrf.mxu0
    %5392 = vdwg.mxu0
    %5393 = vmatpush.bf16.msra.mxu0 %v4886
    %5394 = vmatpush.bf16.msra.mxu0 %v4878
    %5395 = vmatpush.bf16.msra.mxu0 %v4870
    %5396 = vmatpush.bf16.msra.mxu0 %v4862
    %5397 = vmatpush.bf16.msra.mxu0 %v4854
    %5398 = vmatpush.bf16.msra.mxu0 %v4846
    %5399 = vmatpush.bf16.msra.mxu0 %v4838
    %5400 = vmatpush.bf16.msra.mxu0 %v4830
    %5401 = vmatmul.bf16.gmra.mxu0 %v3656
    %v5402 = vpop.f32.mrf.mxu0
    %v5403 = vadd.f32 %v5390, %v5402
    %v5404 = vpop.f32.mrf.mxu0
    %5405 = vdwg.mxu0
    %5406 = vmatpush.bf16.msra.mxu0 %v4950
    %5407 = vmatpush.bf16.msra.mxu0 %v4942
    %5408 = vmatpush.bf16.msra.mxu0 %v4934
    %5409 = vmatpush.bf16.msra.mxu0 %v4926
    %5410 = vmatpush.bf16.msra.mxu0 %v4918
    %5411 = vmatpush.bf16.msra.mxu0 %v4910
    %5412 = vmatpush.bf16.msra.mxu0 %v4902
    %5413 = vmatpush.bf16.msra.mxu0 %v4894
    %5414 = vmatmul.bf16.gmra.mxu0 %v3657
    %v5415 = vpop.f32.mrf.mxu0
    %v5416 = vadd.f32 %v5403, %v5415
    %v5417 = vpop.f32.mrf.mxu0
    %5418 = vdwg.mxu0
    %5419 = vmatpush.bf16.msra.mxu0 %v4759
    %5420 = vmatpush.bf16.msra.mxu0 %v4751
    %5421 = vmatpush.bf16.msra.mxu0 %v4743
    %5422 = vmatpush.bf16.msra.mxu0 %v4735
    %5423 = vmatpush.bf16.msra.mxu0 %v4727
    %5424 = vmatpush.bf16.msra.mxu0 %v4719
    %5425 = vmatpush.bf16.msra.mxu0 %v4711
    %5426 = vmatpush.bf16.msra.mxu0 %v4703
    %5427 = vmatmul.bf16.gmra.mxu0 %v3654
    %v5428 = vpop.f32.mrf.mxu0
    %v5429 = vadd.f32 %v3919, %v5428
    %v5430 = vpop.f32.mrf.mxu0
    %5431 = vdwg.mxu0
    %5432 = vmatpush.bf16.msra.mxu0 %v4823
    %5433 = vmatpush.bf16.msra.mxu0 %v4815
    %5434 = vmatpush.bf16.msra.mxu0 %v4807
    %5435 = vmatpush.bf16.msra.mxu0 %v4799
    %5436 = vmatpush.bf16.msra.mxu0 %v4791
    %5437 = vmatpush.bf16.msra.mxu0 %v4783
    %5438 = vmatpush.bf16.msra.mxu0 %v4775
    %5439 = vmatpush.bf16.msra.mxu0 %v4767
    %5440 = vmatmul.bf16.gmra.mxu0 %v3655
    %v5441 = vpop.f32.mrf.mxu0
    %v5442 = vadd.f32 %v5429, %v5441
    %v5443 = vpop.f32.mrf.mxu0
    %5444 = vdwg.mxu0
    %5445 = vmatpush.bf16.msra.mxu0 %v4887
    %5446 = vmatpush.bf16.msra.mxu0 %v4879
    %5447 = vmatpush.bf16.msra.mxu0 %v4871
    %5448 = vmatpush.bf16.msra.mxu0 %v4863
    %5449 = vmatpush.bf16.msra.mxu0 %v4855
    %5450 = vmatpush.bf16.msra.mxu0 %v4847
    %5451 = vmatpush.bf16.msra.mxu0 %v4839
    %5452 = vmatpush.bf16.msra.mxu0 %v4831
    %5453 = vmatmul.bf16.gmra.mxu0 %v3656
    %v5454 = vpop.f32.mrf.mxu0
    %v5455 = vadd.f32 %v5442, %v5454
    %v5456 = vpop.f32.mrf.mxu0
    %5457 = vdwg.mxu0
    %5458 = vmatpush.bf16.msra.mxu0 %v4951
    %5459 = vmatpush.bf16.msra.mxu0 %v4943
    %5460 = vmatpush.bf16.msra.mxu0 %v4935
    %5461 = vmatpush.bf16.msra.mxu0 %v4927
    %5462 = vmatpush.bf16.msra.mxu0 %v4919
    %5463 = vmatpush.bf16.msra.mxu0 %v4911
    %5464 = vmatpush.bf16.msra.mxu0 %v4903
    %5465 = vmatpush.bf16.msra.mxu0 %v4895
    %5466 = vmatmul.bf16.gmra.mxu0 %v3657
    %v5467 = vpop.f32.mrf.mxu0
    %v5468 = vadd.f32 %v5455, %v5467
    %v5469 = vpop.f32.mrf.mxu0
    %5470 = vdwg.mxu0
    %5471 = vmatpush.bf16.msra.mxu0 %v4760
    %5472 = vmatpush.bf16.msra.mxu0 %v4752
    %5473 = vmatpush.bf16.msra.mxu0 %v4744
    %5474 = vmatpush.bf16.msra.mxu0 %v4736
    %5475 = vmatpush.bf16.msra.mxu0 %v4728
    %5476 = vmatpush.bf16.msra.mxu0 %v4720
    %5477 = vmatpush.bf16.msra.mxu0 %v4712
    %5478 = vmatpush.bf16.msra.mxu0 %v4704
    %5479 = vmatmul.bf16.gmra.mxu0 %v3654
    %v5480 = vpop.f32.mrf.mxu0
    %v5481 = vadd.f32 %v3920, %v5480
    %v5482 = vpop.f32.mrf.mxu0
    %5483 = vdwg.mxu0
    %5484 = vmatpush.bf16.msra.mxu0 %v4824
    %5485 = vmatpush.bf16.msra.mxu0 %v4816
    %5486 = vmatpush.bf16.msra.mxu0 %v4808
    %5487 = vmatpush.bf16.msra.mxu0 %v4800
    %5488 = vmatpush.bf16.msra.mxu0 %v4792
    %5489 = vmatpush.bf16.msra.mxu0 %v4784
    %5490 = vmatpush.bf16.msra.mxu0 %v4776
    %5491 = vmatpush.bf16.msra.mxu0 %v4768
    %5492 = vmatmul.bf16.gmra.mxu0 %v3655
    %v5493 = vpop.f32.mrf.mxu0
    %v5494 = vadd.f32 %v5481, %v5493
    %v5495 = vpop.f32.mrf.mxu0
    %5496 = vdwg.mxu0
    %5497 = vmatpush.bf16.msra.mxu0 %v4888
    %5498 = vmatpush.bf16.msra.mxu0 %v4880
    %5499 = vmatpush.bf16.msra.mxu0 %v4872
    %5500 = vmatpush.bf16.msra.mxu0 %v4864
    %5501 = vmatpush.bf16.msra.mxu0 %v4856
    %5502 = vmatpush.bf16.msra.mxu0 %v4848
    %5503 = vmatpush.bf16.msra.mxu0 %v4840
    %5504 = vmatpush.bf16.msra.mxu0 %v4832
    %5505 = vmatmul.bf16.gmra.mxu0 %v3656
    %v5506 = vpop.f32.mrf.mxu0
    %v5507 = vadd.f32 %v5494, %v5506
    %v5508 = vpop.f32.mrf.mxu0
    %5509 = vdwg.mxu0
    %5510 = vmatpush.bf16.msra.mxu0 %v4952
    %5511 = vmatpush.bf16.msra.mxu0 %v4944
    %5512 = vmatpush.bf16.msra.mxu0 %v4936
    %5513 = vmatpush.bf16.msra.mxu0 %v4928
    %5514 = vmatpush.bf16.msra.mxu0 %v4920
    %5515 = vmatpush.bf16.msra.mxu0 %v4912
    %5516 = vmatpush.bf16.msra.mxu0 %v4904
    %5517 = vmatpush.bf16.msra.mxu0 %v4896
    %5518 = vmatmul.bf16.gmra.mxu0 %v3657
    %v5519 = vpop.f32.mrf.mxu0
    %v5520 = vadd.f32 %v5507, %v5519
    %v5521 = vpop.f32.mrf.mxu0
    %5522 = vdwg.mxu0
    %5523 = vmatpush.bf16.msra.mxu0 %v4761
    %5524 = vmatpush.bf16.msra.mxu0 %v4753
    %5525 = vmatpush.bf16.msra.mxu0 %v4745
    %5526 = vmatpush.bf16.msra.mxu0 %v4737
    %5527 = vmatpush.bf16.msra.mxu0 %v4729
    %5528 = vmatpush.bf16.msra.mxu0 %v4721
    %5529 = vmatpush.bf16.msra.mxu0 %v4713
    %5530 = vmatpush.bf16.msra.mxu0 %v4705
    %5531 = vmatmul.bf16.gmra.mxu0 %v3654
    %v5532 = vpop.f32.mrf.mxu0
    %v5533 = vadd.f32 %v3921, %v5532
    %v5534 = vpop.f32.mrf.mxu0
    %5535 = vdwg.mxu0
    %5536 = vmatpush.bf16.msra.mxu0 %v4825
    %5537 = vmatpush.bf16.msra.mxu0 %v4817
    %5538 = vmatpush.bf16.msra.mxu0 %v4809
    %5539 = vmatpush.bf16.msra.mxu0 %v4801
    %5540 = vmatpush.bf16.msra.mxu0 %v4793
    %5541 = vmatpush.bf16.msra.mxu0 %v4785
    %5542 = vmatpush.bf16.msra.mxu0 %v4777
    %5543 = vmatpush.bf16.msra.mxu0 %v4769
    %5544 = vmatmul.bf16.gmra.mxu0 %v3655
    %v5545 = vpop.f32.mrf.mxu0
    %v5546 = vadd.f32 %v5533, %v5545
    %v5547 = vpop.f32.mrf.mxu0
    %5548 = vdwg.mxu0
    %5549 = vmatpush.bf16.msra.mxu0 %v4889
    %5550 = vmatpush.bf16.msra.mxu0 %v4881
    %5551 = vmatpush.bf16.msra.mxu0 %v4873
    %5552 = vmatpush.bf16.msra.mxu0 %v4865
    %5553 = vmatpush.bf16.msra.mxu0 %v4857
    %5554 = vmatpush.bf16.msra.mxu0 %v4849
    %5555 = vmatpush.bf16.msra.mxu0 %v4841
    %5556 = vmatpush.bf16.msra.mxu0 %v4833
    %5557 = vmatmul.bf16.gmra.mxu0 %v3656
    %v5558 = vpop.f32.mrf.mxu0
    %v5559 = vadd.f32 %v5546, %v5558
    %v5560 = vpop.f32.mrf.mxu0
    %5561 = vdwg.mxu0
    %5562 = vmatpush.bf16.msra.mxu0 %v4953
    %5563 = vmatpush.bf16.msra.mxu0 %v4945
    %5564 = vmatpush.bf16.msra.mxu0 %v4937
    %5565 = vmatpush.bf16.msra.mxu0 %v4929
    %5566 = vmatpush.bf16.msra.mxu0 %v4921
    %5567 = vmatpush.bf16.msra.mxu0 %v4913
    %5568 = vmatpush.bf16.msra.mxu0 %v4905
    %5569 = vmatpush.bf16.msra.mxu0 %v4897
    %5570 = vmatmul.bf16.gmra.mxu0 %v3657
    %v5571 = vpop.f32.mrf.mxu0
    %v5572 = vadd.f32 %v5559, %v5571
    %v5573 = vpop.f32.mrf.mxu0
    %5574 = vdwg.mxu0
    %5575 = vmatpush.bf16.msra.mxu0 %v4762
    %5576 = vmatpush.bf16.msra.mxu0 %v4754
    %5577 = vmatpush.bf16.msra.mxu0 %v4746
    %5578 = vmatpush.bf16.msra.mxu0 %v4738
    %5579 = vmatpush.bf16.msra.mxu0 %v4730
    %5580 = vmatpush.bf16.msra.mxu0 %v4722
    %5581 = vmatpush.bf16.msra.mxu0 %v4714
    %5582 = vmatpush.bf16.msra.mxu0 %v4706
    %5583 = vmatmul.bf16.gmra.mxu0 %v3654
    %v5584 = vpop.f32.mrf.mxu0
    %v5585 = vadd.f32 %v3922, %v5584
    %v5586 = vpop.f32.mrf.mxu0
    %5587 = vdwg.mxu0
    %5588 = vmatpush.bf16.msra.mxu0 %v4826
    %5589 = vmatpush.bf16.msra.mxu0 %v4818
    %5590 = vmatpush.bf16.msra.mxu0 %v4810
    %5591 = vmatpush.bf16.msra.mxu0 %v4802
    %5592 = vmatpush.bf16.msra.mxu0 %v4794
    %5593 = vmatpush.bf16.msra.mxu0 %v4786
    %5594 = vmatpush.bf16.msra.mxu0 %v4778
    %5595 = vmatpush.bf16.msra.mxu0 %v4770
    %5596 = vmatmul.bf16.gmra.mxu0 %v3655
    %v5597 = vpop.f32.mrf.mxu0
    %v5598 = vadd.f32 %v5585, %v5597
    %v5599 = vpop.f32.mrf.mxu0
    %5600 = vdwg.mxu0
    %5601 = vmatpush.bf16.msra.mxu0 %v4890
    %5602 = vmatpush.bf16.msra.mxu0 %v4882
    %5603 = vmatpush.bf16.msra.mxu0 %v4874
    %5604 = vmatpush.bf16.msra.mxu0 %v4866
    %5605 = vmatpush.bf16.msra.mxu0 %v4858
    %5606 = vmatpush.bf16.msra.mxu0 %v4850
    %5607 = vmatpush.bf16.msra.mxu0 %v4842
    %5608 = vmatpush.bf16.msra.mxu0 %v4834
    %5609 = vmatmul.bf16.gmra.mxu0 %v3656
    %v5610 = vpop.f32.mrf.mxu0
    %v5611 = vadd.f32 %v5598, %v5610
    %v5612 = vpop.f32.mrf.mxu0
    %5613 = vdwg.mxu0
    %5614 = vmatpush.bf16.msra.mxu0 %v4954
    %5615 = vmatpush.bf16.msra.mxu0 %v4946
    %5616 = vmatpush.bf16.msra.mxu0 %v4938
    %5617 = vmatpush.bf16.msra.mxu0 %v4930
    %5618 = vmatpush.bf16.msra.mxu0 %v4922
    %5619 = vmatpush.bf16.msra.mxu0 %v4914
    %5620 = vmatpush.bf16.msra.mxu0 %v4906
    %5621 = vmatpush.bf16.msra.mxu0 %v4898
    %5622 = vmatmul.bf16.gmra.mxu0 %v3657
    %v5623 = vpop.f32.mrf.mxu0
    %v5624 = vadd.f32 %v5611, %v5623
    %v5625 = vpop.f32.mrf.mxu0
    %5626 = vdwg.mxu0
    %v5627 = vmax.f32 %v5260, 0.0
    %v5628 = vmax.f32 %v5312, 0.0
    %v5629 = vmax.f32 %v5364, 0.0
    %v5630 = vmax.f32 %v5416, 0.0
    %v5631 = vmax.f32 %v5468, 0.0
    %v5632 = vmax.f32 %v5520, 0.0
    %v5633 = vmax.f32 %v5572, 0.0
    %v5634 = vmax.f32 %v5624, 0.0
    %v5635 = vpack.c.bf16 %v5627, %v5627
    %v5636 = vpack.c.bf16 %v5628, %v5628
    %v5637 = vpack.c.bf16 %v5629, %v5629
    %v5638 = vpack.c.bf16 %v5630, %v5630
    %v5639 = vpack.c.bf16 %v5631, %v5631
    %v5640 = vpack.c.bf16 %v5632, %v5632
    %v5641 = vpack.c.bf16 %v5633, %v5633
    %v5642 = vpack.c.bf16 %v5634, %v5634
    %v5643 = vld [vmem:[#allocation7] sm:$0xff]
    %v5644 = vld [vmem:[#allocation7 + $0x8] sm:$0xff]
    %v5645 = vld [vmem:[#allocation7 + $0x10] sm:$0xff]
    %v5646 = vld [vmem:[#allocation7 + $0x18] sm:$0xff]
    %v5647 = vld [vmem:[#allocation7 + $0x20] sm:$0xff]
    %v5648 = vld [vmem:[#allocation7 + $0x28] sm:$0xff]
    %v5649 = vld [vmem:[#allocation7 + $0x30] sm:$0xff]
    %v5650 = vld [vmem:[#allocation7 + $0x38] sm:$0xff]
    %v5651 = vld [vmem:[#allocation7 + $0x40] sm:$0xff]
    %v5652 = vld [vmem:[#allocation7 + $0x48] sm:$0xff]
    %v5653 = vld [vmem:[#allocation7 + $0x50] sm:$0xff]
    %v5654 = vld [vmem:[#allocation7 + $0x58] sm:$0xff]
    %v5655 = vld [vmem:[#allocation7 + $0x60] sm:$0xff]
    %v5656 = vld [vmem:[#allocation7 + $0x68] sm:$0xff]
    %v5657 = vld [vmem:[#allocation7 + $0x70] sm:$0xff]
    %v5658 = vld [vmem:[#allocation7 + $0x78] sm:$0xff]
    %v5659 = vld [vmem:[#allocation7 + $0x80] sm:$0xff]
    %v5660 = vld [vmem:[#allocation7 + $0x88] sm:$0xff]
    %v5661 = vld [vmem:[#allocation7 + $0x90] sm:$0xff]
    %v5662 = vld [vmem:[#allocation7 + $0x98] sm:$0xff]
    %v5663 = vld [vmem:[#allocation7 + $0xa0] sm:$0xff]
    %v5664 = vld [vmem:[#allocation7 + $0xa8] sm:$0xff]
    %v5665 = vld [vmem:[#allocation7 + $0xb0] sm:$0xff]
    %v5666 = vld [vmem:[#allocation7 + $0xb8] sm:$0xff]
    %v5667 = vld [vmem:[#allocation7 + $0xc0] sm:$0xff]
    %v5668 = vld [vmem:[#allocation7 + $0xc8] sm:$0xff]
    %v5669 = vld [vmem:[#allocation7 + $0xd0] sm:$0xff]
    %v5670 = vld [vmem:[#allocation7 + $0xd8] sm:$0xff]
    %v5671 = vld [vmem:[#allocation7 + $0xe0] sm:$0xff]
    %v5672 = vld [vmem:[#allocation7 + $0xe8] sm:$0xff]
    %v5673 = vld [vmem:[#allocation7 + $0xf0] sm:$0xff]
    %v5674 = vld [vmem:[#allocation7 + $0xf8] sm:$0xff]
    %v5675 = vld [vmem:[#allocation7 + $0x100] sm:$0xff]
    %v5676 = vld [vmem:[#allocation7 + $0x108] sm:$0xff]
    %v5677 = vld [vmem:[#allocation7 + $0x110] sm:$0xff]
    %v5678 = vld [vmem:[#allocation7 + $0x118] sm:$0xff]
    %v5679 = vld [vmem:[#allocation7 + $0x120] sm:$0xff]
    %v5680 = vld [vmem:[#allocation7 + $0x128] sm:$0xff]
    %v5681 = vld [vmem:[#allocation7 + $0x130] sm:$0xff]
    %v5682 = vld [vmem:[#allocation7 + $0x138] sm:$0xff]
    %v5683 = vld [vmem:[#allocation7 + $0x140] sm:$0xff]
    %v5684 = vld [vmem:[#allocation7 + $0x148] sm:$0xff]
    %v5685 = vld [vmem:[#allocation7 + $0x150] sm:$0xff]
    %v5686 = vld [vmem:[#allocation7 + $0x158] sm:$0xff]
    %v5687 = vld [vmem:[#allocation7 + $0x160] sm:$0xff]
    %v5688 = vld [vmem:[#allocation7 + $0x168] sm:$0xff]
    %v5689 = vld [vmem:[#allocation7 + $0x170] sm:$0xff]
    %v5690 = vld [vmem:[#allocation7 + $0x178] sm:$0xff]
    %v5691 = vld [vmem:[#allocation7 + $0x180] sm:$0xff]
    %v5692 = vld [vmem:[#allocation7 + $0x188] sm:$0xff]
    %v5693 = vld [vmem:[#allocation7 + $0x190] sm:$0xff]
    %v5694 = vld [vmem:[#allocation7 + $0x198] sm:$0xff]
    %v5695 = vld [vmem:[#allocation7 + $0x1a0] sm:$0xff]
    %v5696 = vld [vmem:[#allocation7 + $0x1a8] sm:$0xff]
    %v5697 = vld [vmem:[#allocation7 + $0x1b0] sm:$0xff]
    %v5698 = vld [vmem:[#allocation7 + $0x1b8] sm:$0xff]
    %v5699 = vld [vmem:[#allocation7 + $0x1c0] sm:$0xff]
    %v5700 = vld [vmem:[#allocation7 + $0x1c8] sm:$0xff]
    %v5701 = vld [vmem:[#allocation7 + $0x1d0] sm:$0xff]
    %v5702 = vld [vmem:[#allocation7 + $0x1d8] sm:$0xff]
    %v5703 = vld [vmem:[#allocation7 + $0x1e0] sm:$0xff]
    %v5704 = vld [vmem:[#allocation7 + $0x1e8] sm:$0xff]
    %v5705 = vld [vmem:[#allocation7 + $0x1f0] sm:$0xff]
    %v5706 = vld [vmem:[#allocation7 + $0x1f8] sm:$0xff]
    %v5707 = vld [vmem:[#allocation7 + $0x200] sm:$0xff]
    %v5708 = vld [vmem:[#allocation7 + $0x208] sm:$0xff]
    %v5709 = vld [vmem:[#allocation7 + $0x210] sm:$0xff]
    %v5710 = vld [vmem:[#allocation7 + $0x218] sm:$0xff]
    %v5711 = vld [vmem:[#allocation7 + $0x220] sm:$0xff]
    %v5712 = vld [vmem:[#allocation7 + $0x228] sm:$0xff]
    %v5713 = vld [vmem:[#allocation7 + $0x230] sm:$0xff]
    %v5714 = vld [vmem:[#allocation7 + $0x238] sm:$0xff]
    %v5715 = vld [vmem:[#allocation7 + $0x240] sm:$0xff]
    %v5716 = vld [vmem:[#allocation7 + $0x248] sm:$0xff]
    %v5717 = vld [vmem:[#allocation7 + $0x250] sm:$0xff]
    %v5718 = vld [vmem:[#allocation7 + $0x258] sm:$0xff]
    %v5719 = vld [vmem:[#allocation7 + $0x260] sm:$0xff]
    %v5720 = vld [vmem:[#allocation7 + $0x268] sm:$0xff]
    %v5721 = vld [vmem:[#allocation7 + $0x270] sm:$0xff]
    %v5722 = vld [vmem:[#allocation7 + $0x278] sm:$0xff]
    %v5723 = vld [vmem:[#allocation7 + $0x280] sm:$0xff]
    %v5724 = vld [vmem:[#allocation7 + $0x288] sm:$0xff]
    %v5725 = vld [vmem:[#allocation7 + $0x290] sm:$0xff]
    %v5726 = vld [vmem:[#allocation7 + $0x298] sm:$0xff]
    %v5727 = vld [vmem:[#allocation7 + $0x2a0] sm:$0xff]
    %v5728 = vld [vmem:[#allocation7 + $0x2a8] sm:$0xff]
    %v5729 = vld [vmem:[#allocation7 + $0x2b0] sm:$0xff]
    %v5730 = vld [vmem:[#allocation7 + $0x2b8] sm:$0xff]
    %v5731 = vld [vmem:[#allocation7 + $0x2c0] sm:$0xff]
    %v5732 = vld [vmem:[#allocation7 + $0x2c8] sm:$0xff]
    %v5733 = vld [vmem:[#allocation7 + $0x2d0] sm:$0xff]
    %v5734 = vld [vmem:[#allocation7 + $0x2d8] sm:$0xff]
    %v5735 = vld [vmem:[#allocation7 + $0x2e0] sm:$0xff]
    %v5736 = vld [vmem:[#allocation7 + $0x2e8] sm:$0xff]
    %v5737 = vld [vmem:[#allocation7 + $0x2f0] sm:$0xff]
    %v5738 = vld [vmem:[#allocation7 + $0x2f8] sm:$0xff]
    %v5739 = vld [vmem:[#allocation7 + $0x300] sm:$0xff]
    %v5740 = vld [vmem:[#allocation7 + $0x308] sm:$0xff]
    %v5741 = vld [vmem:[#allocation7 + $0x310] sm:$0xff]
    %v5742 = vld [vmem:[#allocation7 + $0x318] sm:$0xff]
    %v5743 = vld [vmem:[#allocation7 + $0x320] sm:$0xff]
    %v5744 = vld [vmem:[#allocation7 + $0x328] sm:$0xff]
    %v5745 = vld [vmem:[#allocation7 + $0x330] sm:$0xff]
    %v5746 = vld [vmem:[#allocation7 + $0x338] sm:$0xff]
    %v5747 = vld [vmem:[#allocation7 + $0x340] sm:$0xff]
    %v5748 = vld [vmem:[#allocation7 + $0x348] sm:$0xff]
    %v5749 = vld [vmem:[#allocation7 + $0x350] sm:$0xff]
    %v5750 = vld [vmem:[#allocation7 + $0x358] sm:$0xff]
    %v5751 = vld [vmem:[#allocation7 + $0x360] sm:$0xff]
    %v5752 = vld [vmem:[#allocation7 + $0x368] sm:$0xff]
    %v5753 = vld [vmem:[#allocation7 + $0x370] sm:$0xff]
    %v5754 = vld [vmem:[#allocation7 + $0x378] sm:$0xff]
    %v5755 = vld [vmem:[#allocation7 + $0x380] sm:$0xff]
    %v5756 = vld [vmem:[#allocation7 + $0x388] sm:$0xff]
    %v5757 = vld [vmem:[#allocation7 + $0x390] sm:$0xff]
    %v5758 = vld [vmem:[#allocation7 + $0x398] sm:$0xff]
    %v5759 = vld [vmem:[#allocation7 + $0x3a0] sm:$0xff]
    %v5760 = vld [vmem:[#allocation7 + $0x3a8] sm:$0xff]
    %v5761 = vld [vmem:[#allocation7 + $0x3b0] sm:$0xff]
    %v5762 = vld [vmem:[#allocation7 + $0x3b8] sm:$0xff]
    %v5763 = vld [vmem:[#allocation7 + $0x3c0] sm:$0xff]
    %v5764 = vld [vmem:[#allocation7 + $0x3c8] sm:$0xff]
    %v5765 = vld [vmem:[#allocation7 + $0x3d0] sm:$0xff]
    %v5766 = vld [vmem:[#allocation7 + $0x3d8] sm:$0xff]
    %v5767 = vld [vmem:[#allocation7 + $0x3e0] sm:$0xff]
    %v5768 = vld [vmem:[#allocation7 + $0x3e8] sm:$0xff]
    %v5769 = vld [vmem:[#allocation7 + $0x3f0] sm:$0xff]
    %v5770 = vld [vmem:[#allocation7 + $0x3f8] sm:$0xff]
    %v5772 = vperm.slane %v164, 0
    %v5773 = vperm.slane %v164, 1
    %v5904 = vunpack.c.l.b16 %v5643
    %v5905 = vunpack.c.h.b16 %v5643
    %v5906 = vunpack.c.l.b16 %v5644
    %v5907 = vunpack.c.h.b16 %v5644
    %v5908 = vunpack.c.l.b16 %v5645
    %v5909 = vunpack.c.h.b16 %v5645
    %v5910 = vunpack.c.l.b16 %v5646
    %v5911 = vunpack.c.h.b16 %v5646
    %v5912 = vunpack.c.l.b16 %v5647
    %v5913 = vunpack.c.h.b16 %v5647
    %v5914 = vunpack.c.l.b16 %v5648
    %v5915 = vunpack.c.h.b16 %v5648
    %v5916 = vunpack.c.l.b16 %v5649
    %v5917 = vunpack.c.h.b16 %v5649
    %v5918 = vunpack.c.l.b16 %v5650
    %v5919 = vunpack.c.h.b16 %v5650
    %v5920 = vunpack.c.l.b16 %v5651
    %v5921 = vunpack.c.h.b16 %v5651
    %v5922 = vunpack.c.l.b16 %v5652
    %v5923 = vunpack.c.h.b16 %v5652
    %v5924 = vunpack.c.l.b16 %v5653
    %v5925 = vunpack.c.h.b16 %v5653
    %v5926 = vunpack.c.l.b16 %v5654
    %v5927 = vunpack.c.h.b16 %v5654
    %v5928 = vunpack.c.l.b16 %v5655
    %v5929 = vunpack.c.h.b16 %v5655
    %v5930 = vunpack.c.l.b16 %v5656
    %v5931 = vunpack.c.h.b16 %v5656
    %v5932 = vunpack.c.l.b16 %v5657
    %v5933 = vunpack.c.h.b16 %v5657
    %v5934 = vunpack.c.l.b16 %v5658
    %v5935 = vunpack.c.h.b16 %v5658
    %v5936 = vunpack.c.l.b16 %v5659
    %v5937 = vunpack.c.h.b16 %v5659
    %v5938 = vunpack.c.l.b16 %v5660
    %v5939 = vunpack.c.h.b16 %v5660
    %v5940 = vunpack.c.l.b16 %v5661
    %v5941 = vunpack.c.h.b16 %v5661
    %v5942 = vunpack.c.l.b16 %v5662
    %v5943 = vunpack.c.h.b16 %v5662
    %v5944 = vunpack.c.l.b16 %v5663
    %v5945 = vunpack.c.h.b16 %v5663
    %v5946 = vunpack.c.l.b16 %v5664
    %v5947 = vunpack.c.h.b16 %v5664
    %v5948 = vunpack.c.l.b16 %v5665
    %v5949 = vunpack.c.h.b16 %v5665
    %v5950 = vunpack.c.l.b16 %v5666
    %v5951 = vunpack.c.h.b16 %v5666
    %v5952 = vunpack.c.l.b16 %v5667
    %v5953 = vunpack.c.h.b16 %v5667
    %v5954 = vunpack.c.l.b16 %v5668
    %v5955 = vunpack.c.h.b16 %v5668
    %v5956 = vunpack.c.l.b16 %v5669
    %v5957 = vunpack.c.h.b16 %v5669
    %v5958 = vunpack.c.l.b16 %v5670
    %v5959 = vunpack.c.h.b16 %v5670
    %v5960 = vunpack.c.l.b16 %v5671
    %v5961 = vunpack.c.h.b16 %v5671
    %v5962 = vunpack.c.l.b16 %v5672
    %v5963 = vunpack.c.h.b16 %v5672
    %v5964 = vunpack.c.l.b16 %v5673
    %v5965 = vunpack.c.h.b16 %v5673
    %v5966 = vunpack.c.l.b16 %v5674
    %v5967 = vunpack.c.h.b16 %v5674
    %v5968 = vunpack.c.l.b16 %v5675
    %v5969 = vunpack.c.h.b16 %v5675
    %v5970 = vunpack.c.l.b16 %v5676
    %v5971 = vunpack.c.h.b16 %v5676
    %v5972 = vunpack.c.l.b16 %v5677
    %v5973 = vunpack.c.h.b16 %v5677
    %v5974 = vunpack.c.l.b16 %v5678
    %v5975 = vunpack.c.h.b16 %v5678
    %v5976 = vunpack.c.l.b16 %v5679
    %v5977 = vunpack.c.h.b16 %v5679
    %v5978 = vunpack.c.l.b16 %v5680
    %v5979 = vunpack.c.h.b16 %v5680
    %v5980 = vunpack.c.l.b16 %v5681
    %v5981 = vunpack.c.h.b16 %v5681
    %v5982 = vunpack.c.l.b16 %v5682
    %v5983 = vunpack.c.h.b16 %v5682
    %v5984 = vunpack.c.l.b16 %v5683
    %v5985 = vunpack.c.h.b16 %v5683
    %v5986 = vunpack.c.l.b16 %v5684
    %v5987 = vunpack.c.h.b16 %v5684
    %v5988 = vunpack.c.l.b16 %v5685
    %v5989 = vunpack.c.h.b16 %v5685
    %v5990 = vunpack.c.l.b16 %v5686
    %v5991 = vunpack.c.h.b16 %v5686
    %v5992 = vunpack.c.l.b16 %v5687
    %v5993 = vunpack.c.h.b16 %v5687
    %v5994 = vunpack.c.l.b16 %v5688
    %v5995 = vunpack.c.h.b16 %v5688
    %v5996 = vunpack.c.l.b16 %v5689
    %v5997 = vunpack.c.h.b16 %v5689
    %v5998 = vunpack.c.l.b16 %v5690
    %v5999 = vunpack.c.h.b16 %v5690
    %v6000 = vunpack.c.l.b16 %v5691
    %v6001 = vunpack.c.h.b16 %v5691
    %v6002 = vunpack.c.l.b16 %v5692
    %v6003 = vunpack.c.h.b16 %v5692
    %v6004 = vunpack.c.l.b16 %v5693
    %v6005 = vunpack.c.h.b16 %v5693
    %v6006 = vunpack.c.l.b16 %v5694
    %v6007 = vunpack.c.h.b16 %v5694
    %v6008 = vunpack.c.l.b16 %v5695
    %v6009 = vunpack.c.h.b16 %v5695
    %v6010 = vunpack.c.l.b16 %v5696
    %v6011 = vunpack.c.h.b16 %v5696
    %v6012 = vunpack.c.l.b16 %v5697
    %v6013 = vunpack.c.h.b16 %v5697
    %v6014 = vunpack.c.l.b16 %v5698
    %v6015 = vunpack.c.h.b16 %v5698
    %v6016 = vunpack.c.l.b16 %v5699
    %v6017 = vunpack.c.h.b16 %v5699
    %v6018 = vunpack.c.l.b16 %v5700
    %v6019 = vunpack.c.h.b16 %v5700
    %v6020 = vunpack.c.l.b16 %v5701
    %v6021 = vunpack.c.h.b16 %v5701
    %v6022 = vunpack.c.l.b16 %v5702
    %v6023 = vunpack.c.h.b16 %v5702
    %v6024 = vunpack.c.l.b16 %v5703
    %v6025 = vunpack.c.h.b16 %v5703
    %v6026 = vunpack.c.l.b16 %v5704
    %v6027 = vunpack.c.h.b16 %v5704
    %v6028 = vunpack.c.l.b16 %v5705
    %v6029 = vunpack.c.h.b16 %v5705
    %v6030 = vunpack.c.l.b16 %v5706
    %v6031 = vunpack.c.h.b16 %v5706
    %v6032 = vunpack.c.l.b16 %v5707
    %v6033 = vunpack.c.h.b16 %v5707
    %v6034 = vunpack.c.l.b16 %v5708
    %v6035 = vunpack.c.h.b16 %v5708
    %v6036 = vunpack.c.l.b16 %v5709
    %v6037 = vunpack.c.h.b16 %v5709
    %v6038 = vunpack.c.l.b16 %v5710
    %v6039 = vunpack.c.h.b16 %v5710
    %v6040 = vunpack.c.l.b16 %v5711
    %v6041 = vunpack.c.h.b16 %v5711
    %v6042 = vunpack.c.l.b16 %v5712
    %v6043 = vunpack.c.h.b16 %v5712
    %v6044 = vunpack.c.l.b16 %v5713
    %v6045 = vunpack.c.h.b16 %v5713
    %v6046 = vunpack.c.l.b16 %v5714
    %v6047 = vunpack.c.h.b16 %v5714
    %v6048 = vunpack.c.l.b16 %v5715
    %v6049 = vunpack.c.h.b16 %v5715
    %v6050 = vunpack.c.l.b16 %v5716
    %v6051 = vunpack.c.h.b16 %v5716
    %v6052 = vunpack.c.l.b16 %v5717
    %v6053 = vunpack.c.h.b16 %v5717
    %v6054 = vunpack.c.l.b16 %v5718
    %v6055 = vunpack.c.h.b16 %v5718
    %v6056 = vunpack.c.l.b16 %v5719
    %v6057 = vunpack.c.h.b16 %v5719
    %v6058 = vunpack.c.l.b16 %v5720
    %v6059 = vunpack.c.h.b16 %v5720
    %v6060 = vunpack.c.l.b16 %v5721
    %v6061 = vunpack.c.h.b16 %v5721
    %v6062 = vunpack.c.l.b16 %v5722
    %v6063 = vunpack.c.h.b16 %v5722
    %v6064 = vunpack.c.l.b16 %v5723
    %v6065 = vunpack.c.h.b16 %v5723
    %v6066 = vunpack.c.l.b16 %v5724
    %v6067 = vunpack.c.h.b16 %v5724
    %v6068 = vunpack.c.l.b16 %v5725
    %v6069 = vunpack.c.h.b16 %v5725
    %v6070 = vunpack.c.l.b16 %v5726
    %v6071 = vunpack.c.h.b16 %v5726
    %v6072 = vunpack.c.l.b16 %v5727
    %v6073 = vunpack.c.h.b16 %v5727
    %v6074 = vunpack.c.l.b16 %v5728
    %v6075 = vunpack.c.h.b16 %v5728
    %v6076 = vunpack.c.l.b16 %v5729
    %v6077 = vunpack.c.h.b16 %v5729
    %v6078 = vunpack.c.l.b16 %v5730
    %v6079 = vunpack.c.h.b16 %v5730
    %v6080 = vunpack.c.l.b16 %v5731
    %v6081 = vunpack.c.h.b16 %v5731
    %v6082 = vunpack.c.l.b16 %v5732
    %v6083 = vunpack.c.h.b16 %v5732
    %v6084 = vunpack.c.l.b16 %v5733
    %v6085 = vunpack.c.h.b16 %v5733
    %v6086 = vunpack.c.l.b16 %v5734
    %v6087 = vunpack.c.h.b16 %v5734
    %v6088 = vunpack.c.l.b16 %v5735
    %v6089 = vunpack.c.h.b16 %v5735
    %v6090 = vunpack.c.l.b16 %v5736
    %v6091 = vunpack.c.h.b16 %v5736
    %v6092 = vunpack.c.l.b16 %v5737
    %v6093 = vunpack.c.h.b16 %v5737
    %v6094 = vunpack.c.l.b16 %v5738
    %v6095 = vunpack.c.h.b16 %v5738
    %v6096 = vunpack.c.l.b16 %v5739
    %v6097 = vunpack.c.h.b16 %v5739
    %v6098 = vunpack.c.l.b16 %v5740
    %v6099 = vunpack.c.h.b16 %v5740
    %v6100 = vunpack.c.l.b16 %v5741
    %v6101 = vunpack.c.h.b16 %v5741
    %v6102 = vunpack.c.l.b16 %v5742
    %v6103 = vunpack.c.h.b16 %v5742
    %v6104 = vunpack.c.l.b16 %v5743
    %v6105 = vunpack.c.h.b16 %v5743
    %v6106 = vunpack.c.l.b16 %v5744
    %v6107 = vunpack.c.h.b16 %v5744
    %v6108 = vunpack.c.l.b16 %v5745
    %v6109 = vunpack.c.h.b16 %v5745
    %v6110 = vunpack.c.l.b16 %v5746
    %v6111 = vunpack.c.h.b16 %v5746
    %v6112 = vunpack.c.l.b16 %v5747
    %v6113 = vunpack.c.h.b16 %v5747
    %v6114 = vunpack.c.l.b16 %v5748
    %v6115 = vunpack.c.h.b16 %v5748
    %v6116 = vunpack.c.l.b16 %v5749
    %v6117 = vunpack.c.h.b16 %v5749
    %v6118 = vunpack.c.l.b16 %v5750
    %v6119 = vunpack.c.h.b16 %v5750
    %v6120 = vunpack.c.l.b16 %v5751
    %v6121 = vunpack.c.h.b16 %v5751
    %v6122 = vunpack.c.l.b16 %v5752
    %v6123 = vunpack.c.h.b16 %v5752
    %v6124 = vunpack.c.l.b16 %v5753
    %v6125 = vunpack.c.h.b16 %v5753
    %v6126 = vunpack.c.l.b16 %v5754
    %v6127 = vunpack.c.h.b16 %v5754
    %v6128 = vunpack.c.l.b16 %v5755
    %v6129 = vunpack.c.h.b16 %v5755
    %v6130 = vunpack.c.l.b16 %v5756
    %v6131 = vunpack.c.h.b16 %v5756
    %v6132 = vunpack.c.l.b16 %v5757
    %v6133 = vunpack.c.h.b16 %v5757
    %v6134 = vunpack.c.l.b16 %v5758
    %v6135 = vunpack.c.h.b16 %v5758
    %v6136 = vunpack.c.l.b16 %v5759
    %v6137 = vunpack.c.h.b16 %v5759
    %v6138 = vunpack.c.l.b16 %v5760
    %v6139 = vunpack.c.h.b16 %v5760
    %v6140 = vunpack.c.l.b16 %v5761
    %v6141 = vunpack.c.h.b16 %v5761
    %v6142 = vunpack.c.l.b16 %v5762
    %v6143 = vunpack.c.h.b16 %v5762
    %v6144 = vunpack.c.l.b16 %v5763
    %v6145 = vunpack.c.h.b16 %v5763
    %v6146 = vunpack.c.l.b16 %v5764
    %v6147 = vunpack.c.h.b16 %v5764
    %v6148 = vunpack.c.l.b16 %v5765
    %v6149 = vunpack.c.h.b16 %v5765
    %v6150 = vunpack.c.l.b16 %v5766
    %v6151 = vunpack.c.h.b16 %v5766
    %v6152 = vunpack.c.l.b16 %v5767
    %v6153 = vunpack.c.h.b16 %v5767
    %v6154 = vunpack.c.l.b16 %v5768
    %v6155 = vunpack.c.h.b16 %v5768
    %v6156 = vunpack.c.l.b16 %v5769
    %v6157 = vunpack.c.h.b16 %v5769
    %v6158 = vunpack.c.l.b16 %v5770
    %v6159 = vunpack.c.h.b16 %v5770
    %v6160 = vpack.c.b16 %v5906, %v5904
    %v6161 = vpack.c.b16 %v5907, %v5905
    %v6162 = vpack.c.b16 %v5910, %v5908
    %v6163 = vpack.c.b16 %v5911, %v5909
    %v6164 = vpack.c.b16 %v5914, %v5912
    %v6165 = vpack.c.b16 %v5915, %v5913
    %v6166 = vpack.c.b16 %v5918, %v5916
    %v6167 = vpack.c.b16 %v5919, %v5917
    %v6168 = vpack.c.b16 %v5922, %v5920
    %v6169 = vpack.c.b16 %v5923, %v5921
    %v6170 = vpack.c.b16 %v5926, %v5924
    %v6171 = vpack.c.b16 %v5927, %v5925
    %v6172 = vpack.c.b16 %v5930, %v5928
    %v6173 = vpack.c.b16 %v5931, %v5929
    %v6174 = vpack.c.b16 %v5934, %v5932
    %v6175 = vpack.c.b16 %v5935, %v5933
    %v6176 = vpack.c.b16 %v5938, %v5936
    %v6177 = vpack.c.b16 %v5939, %v5937
    %v6178 = vpack.c.b16 %v5942, %v5940
    %v6179 = vpack.c.b16 %v5943, %v5941
    %v6180 = vpack.c.b16 %v5946, %v5944
    %v6181 = vpack.c.b16 %v5947, %v5945
    %v6182 = vpack.c.b16 %v5950, %v5948
    %v6183 = vpack.c.b16 %v5951, %v5949
    %v6184 = vpack.c.b16 %v5954, %v5952
    %v6185 = vpack.c.b16 %v5955, %v5953
    %v6186 = vpack.c.b16 %v5958, %v5956
    %v6187 = vpack.c.b16 %v5959, %v5957
    %v6188 = vpack.c.b16 %v5962, %v5960
    %v6189 = vpack.c.b16 %v5963, %v5961
    %v6190 = vpack.c.b16 %v5966, %v5964
    %v6191 = vpack.c.b16 %v5967, %v5965
    %v6192 = vpack.c.b16 %v5970, %v5968
    %v6193 = vpack.c.b16 %v5971, %v5969
    %v6194 = vpack.c.b16 %v5974, %v5972
    %v6195 = vpack.c.b16 %v5975, %v5973
    %v6196 = vpack.c.b16 %v5978, %v5976
    %v6197 = vpack.c.b16 %v5979, %v5977
    %v6198 = vpack.c.b16 %v5982, %v5980
    %v6199 = vpack.c.b16 %v5983, %v5981
    %v6200 = vpack.c.b16 %v5986, %v5984
    %v6201 = vpack.c.b16 %v5987, %v5985
    %v6202 = vpack.c.b16 %v5990, %v5988
    %v6203 = vpack.c.b16 %v5991, %v5989
    %v6204 = vpack.c.b16 %v5994, %v5992
    %v6205 = vpack.c.b16 %v5995, %v5993
    %v6206 = vpack.c.b16 %v5998, %v5996
    %v6207 = vpack.c.b16 %v5999, %v5997
    %v6208 = vpack.c.b16 %v6002, %v6000
    %v6209 = vpack.c.b16 %v6003, %v6001
    %v6210 = vpack.c.b16 %v6006, %v6004
    %v6211 = vpack.c.b16 %v6007, %v6005
    %v6212 = vpack.c.b16 %v6010, %v6008
    %v6213 = vpack.c.b16 %v6011, %v6009
    %v6214 = vpack.c.b16 %v6014, %v6012
    %v6215 = vpack.c.b16 %v6015, %v6013
    %v6216 = vpack.c.b16 %v6018, %v6016
    %v6217 = vpack.c.b16 %v6019, %v6017
    %v6218 = vpack.c.b16 %v6022, %v6020
    %v6219 = vpack.c.b16 %v6023, %v6021
    %v6220 = vpack.c.b16 %v6026, %v6024
    %v6221 = vpack.c.b16 %v6027, %v6025
    %v6222 = vpack.c.b16 %v6030, %v6028
    %v6223 = vpack.c.b16 %v6031, %v6029
    %v6224 = vpack.c.b16 %v6034, %v6032
    %v6225 = vpack.c.b16 %v6035, %v6033
    %v6226 = vpack.c.b16 %v6038, %v6036
    %v6227 = vpack.c.b16 %v6039, %v6037
    %v6228 = vpack.c.b16 %v6042, %v6040
    %v6229 = vpack.c.b16 %v6043, %v6041
    %v6230 = vpack.c.b16 %v6046, %v6044
    %v6231 = vpack.c.b16 %v6047, %v6045
    %v6232 = vpack.c.b16 %v6050, %v6048
    %v6233 = vpack.c.b16 %v6051, %v6049
    %v6234 = vpack.c.b16 %v6054, %v6052
    %v6235 = vpack.c.b16 %v6055, %v6053
    %v6236 = vpack.c.b16 %v6058, %v6056
    %v6237 = vpack.c.b16 %v6059, %v6057
    %v6238 = vpack.c.b16 %v6062, %v6060
    %v6239 = vpack.c.b16 %v6063, %v6061
    %v6240 = vpack.c.b16 %v6066, %v6064
    %v6241 = vpack.c.b16 %v6067, %v6065
    %v6242 = vpack.c.b16 %v6070, %v6068
    %v6243 = vpack.c.b16 %v6071, %v6069
    %v6244 = vpack.c.b16 %v6074, %v6072
    %v6245 = vpack.c.b16 %v6075, %v6073
    %v6246 = vpack.c.b16 %v6078, %v6076
    %v6247 = vpack.c.b16 %v6079, %v6077
    %v6248 = vpack.c.b16 %v6082, %v6080
    %v6249 = vpack.c.b16 %v6083, %v6081
    %v6250 = vpack.c.b16 %v6086, %v6084
    %v6251 = vpack.c.b16 %v6087, %v6085
    %v6252 = vpack.c.b16 %v6090, %v6088
    %v6253 = vpack.c.b16 %v6091, %v6089
    %v6254 = vpack.c.b16 %v6094, %v6092
    %v6255 = vpack.c.b16 %v6095, %v6093
    %v6256 = vpack.c.b16 %v6098, %v6096
    %v6257 = vpack.c.b16 %v6099, %v6097
    %v6258 = vpack.c.b16 %v6102, %v6100
    %v6259 = vpack.c.b16 %v6103, %v6101
    %v6260 = vpack.c.b16 %v6106, %v6104
    %v6261 = vpack.c.b16 %v6107, %v6105
    %v6262 = vpack.c.b16 %v6110, %v6108
    %v6263 = vpack.c.b16 %v6111, %v6109
    %v6264 = vpack.c.b16 %v6114, %v6112
    %v6265 = vpack.c.b16 %v6115, %v6113
    %v6266 = vpack.c.b16 %v6118, %v6116
    %v6267 = vpack.c.b16 %v6119, %v6117
    %v6268 = vpack.c.b16 %v6122, %v6120
    %v6269 = vpack.c.b16 %v6123, %v6121
    %v6270 = vpack.c.b16 %v6126, %v6124
    %v6271 = vpack.c.b16 %v6127, %v6125
    %v6272 = vpack.c.b16 %v6130, %v6128
    %v6273 = vpack.c.b16 %v6131, %v6129
    %v6274 = vpack.c.b16 %v6134, %v6132
    %v6275 = vpack.c.b16 %v6135, %v6133
    %v6276 = vpack.c.b16 %v6138, %v6136
    %v6277 = vpack.c.b16 %v6139, %v6137
    %v6278 = vpack.c.b16 %v6142, %v6140
    %v6279 = vpack.c.b16 %v6143, %v6141
    %v6280 = vpack.c.b16 %v6146, %v6144
    %v6281 = vpack.c.b16 %v6147, %v6145
    %v6282 = vpack.c.b16 %v6150, %v6148
    %v6283 = vpack.c.b16 %v6151, %v6149
    %v6284 = vpack.c.b16 %v6154, %v6152
    %v6285 = vpack.c.b16 %v6155, %v6153
    %v6286 = vpack.c.b16 %v6158, %v6156
    %v6287 = vpack.c.b16 %v6159, %v6157
    %6416 = vmatpush.bf16.msra.mxu0 %v6174
    %6417 = vmatpush.bf16.msra.mxu0 %v6172
    %6418 = vmatpush.bf16.msra.mxu0 %v6170
    %6419 = vmatpush.bf16.msra.mxu0 %v6168
    %6420 = vmatpush.bf16.msra.mxu0 %v6166
    %6421 = vmatpush.bf16.msra.mxu0 %v6164
    %6422 = vmatpush.bf16.msra.mxu0 %v6162
    %6423 = vmatpush.bf16.msra.mxu0 %v6160
    %6424 = vmatmul.bf16.gmra.mxu0 %v5635
    %v6425 = vpop.f32.mrf.mxu0
    %v6426 = vadd.f32 %v5772, %v6425
    %v6427 = vpop.f32.mrf.mxu0
    %6428 = vdwg.mxu0
    %6429 = vmatpush.bf16.msra.mxu0 %v6190
    %6430 = vmatpush.bf16.msra.mxu0 %v6188
    %6431 = vmatpush.bf16.msra.mxu0 %v6186
    %6432 = vmatpush.bf16.msra.mxu0 %v6184
    %6433 = vmatpush.bf16.msra.mxu0 %v6182
    %6434 = vmatpush.bf16.msra.mxu0 %v6180
    %6435 = vmatpush.bf16.msra.mxu0 %v6178
    %6436 = vmatpush.bf16.msra.mxu0 %v6176
    %6437 = vmatmul.bf16.gmra.mxu0 %v5636
    %v6438 = vpop.f32.mrf.mxu0
    %v6439 = vadd.f32 %v6426, %v6438
    %v6440 = vpop.f32.mrf.mxu0
    %6441 = vdwg.mxu0
    %6442 = vmatpush.bf16.msra.mxu0 %v6206
    %6443 = vmatpush.bf16.msra.mxu0 %v6204
    %6444 = vmatpush.bf16.msra.mxu0 %v6202
    %6445 = vmatpush.bf16.msra.mxu0 %v6200
    %6446 = vmatpush.bf16.msra.mxu0 %v6198
    %6447 = vmatpush.bf16.msra.mxu0 %v6196
    %6448 = vmatpush.bf16.msra.mxu0 %v6194
    %6449 = vmatpush.bf16.msra.mxu0 %v6192
    %6450 = vmatmul.bf16.gmra.mxu0 %v5637
    %v6451 = vpop.f32.mrf.mxu0
    %v6452 = vadd.f32 %v6439, %v6451
    %v6453 = vpop.f32.mrf.mxu0
    %6454 = vdwg.mxu0
    %6455 = vmatpush.bf16.msra.mxu0 %v6222
    %6456 = vmatpush.bf16.msra.mxu0 %v6220
    %6457 = vmatpush.bf16.msra.mxu0 %v6218
    %6458 = vmatpush.bf16.msra.mxu0 %v6216
    %6459 = vmatpush.bf16.msra.mxu0 %v6214
    %6460 = vmatpush.bf16.msra.mxu0 %v6212
    %6461 = vmatpush.bf16.msra.mxu0 %v6210
    %6462 = vmatpush.bf16.msra.mxu0 %v6208
    %6463 = vmatmul.bf16.gmra.mxu0 %v5638
    %v6464 = vpop.f32.mrf.mxu0
    %v6465 = vadd.f32 %v6452, %v6464
    %v6466 = vpop.f32.mrf.mxu0
    %6467 = vdwg.mxu0
    %6468 = vmatpush.bf16.msra.mxu0 %v6238
    %6469 = vmatpush.bf16.msra.mxu0 %v6236
    %6470 = vmatpush.bf16.msra.mxu0 %v6234
    %6471 = vmatpush.bf16.msra.mxu0 %v6232
    %6472 = vmatpush.bf16.msra.mxu0 %v6230
    %6473 = vmatpush.bf16.msra.mxu0 %v6228
    %6474 = vmatpush.bf16.msra.mxu0 %v6226
    %6475 = vmatpush.bf16.msra.mxu0 %v6224
    %6476 = vmatmul.bf16.gmra.mxu0 %v5639
    %v6477 = vpop.f32.mrf.mxu0
    %v6478 = vadd.f32 %v6465, %v6477
    %v6479 = vpop.f32.mrf.mxu0
    %6480 = vdwg.mxu0
    %6481 = vmatpush.bf16.msra.mxu0 %v6254
    %6482 = vmatpush.bf16.msra.mxu0 %v6252
    %6483 = vmatpush.bf16.msra.mxu0 %v6250
    %6484 = vmatpush.bf16.msra.mxu0 %v6248
    %6485 = vmatpush.bf16.msra.mxu0 %v6246
    %6486 = vmatpush.bf16.msra.mxu0 %v6244
    %6487 = vmatpush.bf16.msra.mxu0 %v6242
    %6488 = vmatpush.bf16.msra.mxu0 %v6240
    %6489 = vmatmul.bf16.gmra.mxu0 %v5640
    %v6490 = vpop.f32.mrf.mxu0
    %v6491 = vadd.f32 %v6478, %v6490
    %v6492 = vpop.f32.mrf.mxu0
    %6493 = vdwg.mxu0
    %6494 = vmatpush.bf16.msra.mxu0 %v6270
    %6495 = vmatpush.bf16.msra.mxu0 %v6268
    %6496 = vmatpush.bf16.msra.mxu0 %v6266
    %6497 = vmatpush.bf16.msra.mxu0 %v6264
    %6498 = vmatpush.bf16.msra.mxu0 %v6262
    %6499 = vmatpush.bf16.msra.mxu0 %v6260
    %6500 = vmatpush.bf16.msra.mxu0 %v6258
    %6501 = vmatpush.bf16.msra.mxu0 %v6256
    %6502 = vmatmul.bf16.gmra.mxu0 %v5641
    %v6503 = vpop.f32.mrf.mxu0
    %v6504 = vadd.f32 %v6491, %v6503
    %v6505 = vpop.f32.mrf.mxu0
    %6506 = vdwg.mxu0
    %6507 = vmatpush.bf16.msra.mxu0 %v6286
    %6508 = vmatpush.bf16.msra.mxu0 %v6284
    %6509 = vmatpush.bf16.msra.mxu0 %v6282
    %6510 = vmatpush.bf16.msra.mxu0 %v6280
    %6511 = vmatpush.bf16.msra.mxu0 %v6278
    %6512 = vmatpush.bf16.msra.mxu0 %v6276
    %6513 = vmatpush.bf16.msra.mxu0 %v6274
    %6514 = vmatpush.bf16.msra.mxu0 %v6272
    %6515 = vmatmul.bf16.gmra.mxu0 %v5642
    %v6516 = vpop.f32.mrf.mxu0
    %v6517 = vadd.f32 %v6504, %v6516
    %v6518 = vpop.f32.mrf.mxu0
    %6519 = vdwg.mxu0
    %6520 = vmatpush.bf16.msra.mxu0 %v6175
    %6521 = vmatpush.bf16.msra.mxu0 %v6173
    %6522 = vmatpush.bf16.msra.mxu0 %v6171
    %6523 = vmatpush.bf16.msra.mxu0 %v6169
    %6524 = vmatpush.bf16.msra.mxu0 %v6167
    %6525 = vmatpush.bf16.msra.mxu0 %v6165
    %6526 = vmatpush.bf16.msra.mxu0 %v6163
    %6527 = vmatpush.bf16.msra.mxu0 %v6161
    %6528 = vmatmul.bf16.gmra.mxu0 %v5635
    %v6529 = vpop.f32.mrf.mxu0
    %v6530 = vadd.f32 %v5773, %v6529
    %v6531 = vpop.f32.mrf.mxu0
    %6532 = vdwg.mxu0
    %6533 = vmatpush.bf16.msra.mxu0 %v6191
    %6534 = vmatpush.bf16.msra.mxu0 %v6189
    %6535 = vmatpush.bf16.msra.mxu0 %v6187
    %6536 = vmatpush.bf16.msra.mxu0 %v6185
    %6537 = vmatpush.bf16.msra.mxu0 %v6183
    %6538 = vmatpush.bf16.msra.mxu0 %v6181
    %6539 = vmatpush.bf16.msra.mxu0 %v6179
    %6540 = vmatpush.bf16.msra.mxu0 %v6177
    %6541 = vmatmul.bf16.gmra.mxu0 %v5636
    %v6542 = vpop.f32.mrf.mxu0
    %v6543 = vadd.f32 %v6530, %v6542
    %v6544 = vpop.f32.mrf.mxu0
    %6545 = vdwg.mxu0
    %6546 = vmatpush.bf16.msra.mxu0 %v6207
    %6547 = vmatpush.bf16.msra.mxu0 %v6205
    %6548 = vmatpush.bf16.msra.mxu0 %v6203
    %6549 = vmatpush.bf16.msra.mxu0 %v6201
    %6550 = vmatpush.bf16.msra.mxu0 %v6199
    %6551 = vmatpush.bf16.msra.mxu0 %v6197
    %6552 = vmatpush.bf16.msra.mxu0 %v6195
    %6553 = vmatpush.bf16.msra.mxu0 %v6193
    %6554 = vmatmul.bf16.gmra.mxu0 %v5637
    %v6555 = vpop.f32.mrf.mxu0
    %v6556 = vadd.f32 %v6543, %v6555
    %v6557 = vpop.f32.mrf.mxu0
    %6558 = vdwg.mxu0
    %6559 = vmatpush.bf16.msra.mxu0 %v6223
    %6560 = vmatpush.bf16.msra.mxu0 %v6221
    %6561 = vmatpush.bf16.msra.mxu0 %v6219
    %6562 = vmatpush.bf16.msra.mxu0 %v6217
    %6563 = vmatpush.bf16.msra.mxu0 %v6215
    %6564 = vmatpush.bf16.msra.mxu0 %v6213
    %6565 = vmatpush.bf16.msra.mxu0 %v6211
    %6566 = vmatpush.bf16.msra.mxu0 %v6209
    %6567 = vmatmul.bf16.gmra.mxu0 %v5638
    %v6568 = vpop.f32.mrf.mxu0
    %v6569 = vadd.f32 %v6556, %v6568
    %v6570 = vpop.f32.mrf.mxu0
    %6571 = vdwg.mxu0
    %6572 = vmatpush.bf16.msra.mxu0 %v6239
    %6573 = vmatpush.bf16.msra.mxu0 %v6237
    %6574 = vmatpush.bf16.msra.mxu0 %v6235
    %6575 = vmatpush.bf16.msra.mxu0 %v6233
    %6576 = vmatpush.bf16.msra.mxu0 %v6231
    %6577 = vmatpush.bf16.msra.mxu0 %v6229
    %6578 = vmatpush.bf16.msra.mxu0 %v6227
    %6579 = vmatpush.bf16.msra.mxu0 %v6225
    %6580 = vmatmul.bf16.gmra.mxu0 %v5639
    %v6581 = vpop.f32.mrf.mxu0
    %v6582 = vadd.f32 %v6569, %v6581
    %v6583 = vpop.f32.mrf.mxu0
    %6584 = vdwg.mxu0
    %6585 = vmatpush.bf16.msra.mxu0 %v6255
    %6586 = vmatpush.bf16.msra.mxu0 %v6253
    %6587 = vmatpush.bf16.msra.mxu0 %v6251
    %6588 = vmatpush.bf16.msra.mxu0 %v6249
    %6589 = vmatpush.bf16.msra.mxu0 %v6247
    %6590 = vmatpush.bf16.msra.mxu0 %v6245
    %6591 = vmatpush.bf16.msra.mxu0 %v6243
    %6592 = vmatpush.bf16.msra.mxu0 %v6241
    %6593 = vmatmul.bf16.gmra.mxu0 %v5640
    %v6594 = vpop.f32.mrf.mxu0
    %v6595 = vadd.f32 %v6582, %v6594
    %v6596 = vpop.f32.mrf.mxu0
    %6597 = vdwg.mxu0
    %6598 = vmatpush.bf16.msra.mxu0 %v6271
    %6599 = vmatpush.bf16.msra.mxu0 %v6269
    %6600 = vmatpush.bf16.msra.mxu0 %v6267
    %6601 = vmatpush.bf16.msra.mxu0 %v6265
    %6602 = vmatpush.bf16.msra.mxu0 %v6263
    %6603 = vmatpush.bf16.msra.mxu0 %v6261
    %6604 = vmatpush.bf16.msra.mxu0 %v6259
    %6605 = vmatpush.bf16.msra.mxu0 %v6257
    %6606 = vmatmul.bf16.gmra.mxu0 %v5641
    %v6607 = vpop.f32.mrf.mxu0
    %v6608 = vadd.f32 %v6595, %v6607
    %v6609 = vpop.f32.mrf.mxu0
    %6610 = vdwg.mxu0
    %6611 = vmatpush.bf16.msra.mxu0 %v6287
    %6612 = vmatpush.bf16.msra.mxu0 %v6285
    %6613 = vmatpush.bf16.msra.mxu0 %v6283
    %6614 = vmatpush.bf16.msra.mxu0 %v6281
    %6615 = vmatpush.bf16.msra.mxu0 %v6279
    %6616 = vmatpush.bf16.msra.mxu0 %v6277
    %6617 = vmatpush.bf16.msra.mxu0 %v6275
    %6618 = vmatpush.bf16.msra.mxu0 %v6273
    %6619 = vmatmul.bf16.gmra.mxu0 %v5642
    %v6620 = vpop.f32.mrf.mxu0
    %v6621 = vadd.f32 %v6608, %v6620
    %v6622 = vpop.f32.mrf.mxu0
    %6623 = vdwg.mxu0
    %v6624 = vmax.f32 %v6517, 0.0
    %v6625 = vmax.f32 %v6621, 0.0
    %v6626 = vpack.c.bf16 %v6624, %v6624
    %v6627 = vpack.c.bf16 %v6625, %v6625
    %v6628 = vld [vmem:[#allocation9] sm:$0xf]
    %v6629 = vld [vmem:[#allocation9 + $0x4] sm:$0xf]
    %v6630 = vld [vmem:[#allocation9 + $0x8] sm:$0xf]
    %v6631 = vld [vmem:[#allocation9 + $0xc] sm:$0xf]
    %v6632 = vld [vmem:[#allocation9 + $0x10] sm:$0xf]
    %v6633 = vld [vmem:[#allocation9 + $0x14] sm:$0xf]
    %v6634 = vld [vmem:[#allocation9 + $0x18] sm:$0xf]
    %v6635 = vld [vmem:[#allocation9 + $0x1c] sm:$0xf]
    %v6636 = vld [vmem:[#allocation9 + $0x20] sm:$0xf]
    %v6637 = vld [vmem:[#allocation9 + $0x24] sm:$0xf]
    %v6638 = vld [vmem:[#allocation9 + $0x28] sm:$0xf]
    %v6639 = vld [vmem:[#allocation9 + $0x2c] sm:$0xf]
    %v6640 = vld [vmem:[#allocation9 + $0x30] sm:$0xf]
    %v6641 = vld [vmem:[#allocation9 + $0x34] sm:$0xf]
    %v6642 = vld [vmem:[#allocation9 + $0x38] sm:$0xf]
    %v6643 = vld [vmem:[#allocation9 + $0x3c] sm:$0xf]
    %v6644 = vld [vmem:[#allocation9 + $0x40] sm:$0xf]
    %v6645 = vld [vmem:[#allocation9 + $0x44] sm:$0xf]
    %v6646 = vld [vmem:[#allocation9 + $0x48] sm:$0xf]
    %v6647 = vld [vmem:[#allocation9 + $0x4c] sm:$0xf]
    %v6648 = vld [vmem:[#allocation9 + $0x50] sm:$0xf]
    %v6649 = vld [vmem:[#allocation9 + $0x54] sm:$0xf]
    %v6650 = vld [vmem:[#allocation9 + $0x58] sm:$0xf]
    %v6651 = vld [vmem:[#allocation9 + $0x5c] sm:$0xf]
    %v6652 = vld [vmem:[#allocation9 + $0x60] sm:$0xf]
    %v6653 = vld [vmem:[#allocation9 + $0x64] sm:$0xf]
    %v6654 = vld [vmem:[#allocation9 + $0x68] sm:$0xf]
    %v6655 = vld [vmem:[#allocation9 + $0x6c] sm:$0xf]
    %v6656 = vld [vmem:[#allocation9 + $0x70] sm:$0xf]
    %v6657 = vld [vmem:[#allocation9 + $0x74] sm:$0xf]
    %v6658 = vld [vmem:[#allocation9 + $0x78] sm:$0xf]
    %v6659 = vld [vmem:[#allocation9 + $0x7c] sm:$0xf]
    %v6692 = vunpack.c.l.b16 %v6628
    %v6693 = vunpack.c.l.b16 %v6629
    %v6694 = vunpack.c.l.b16 %v6630
    %v6695 = vunpack.c.l.b16 %v6631
    %v6696 = vunpack.c.l.b16 %v6632
    %v6697 = vunpack.c.l.b16 %v6633
    %v6698 = vunpack.c.l.b16 %v6634
    %v6699 = vunpack.c.l.b16 %v6635
    %v6700 = vunpack.c.l.b16 %v6636
    %v6701 = vunpack.c.l.b16 %v6637
    %v6702 = vunpack.c.l.b16 %v6638
    %v6703 = vunpack.c.l.b16 %v6639
    %v6704 = vunpack.c.l.b16 %v6640
    %v6705 = vunpack.c.l.b16 %v6641
    %v6706 = vunpack.c.l.b16 %v6642
    %v6707 = vunpack.c.l.b16 %v6643
    %v6708 = vunpack.c.l.b16 %v6644
    %v6709 = vunpack.c.l.b16 %v6645
    %v6710 = vunpack.c.l.b16 %v6646
    %v6711 = vunpack.c.l.b16 %v6647
    %v6712 = vunpack.c.l.b16 %v6648
    %v6713 = vunpack.c.l.b16 %v6649
    %v6714 = vunpack.c.l.b16 %v6650
    %v6715 = vunpack.c.l.b16 %v6651
    %v6716 = vunpack.c.l.b16 %v6652
    %v6717 = vunpack.c.l.b16 %v6653
    %v6718 = vunpack.c.l.b16 %v6654
    %v6719 = vunpack.c.l.b16 %v6655
    %v6720 = vunpack.c.l.b16 %v6656
    %v6721 = vunpack.c.l.b16 %v6657
    %v6722 = vunpack.c.l.b16 %v6658
    %v6723 = vunpack.c.l.b16 %v6659
    %v6724 = vpack.c.b16 %v6693, %v6692
    %v6725 = vpack.c.b16 %v6695, %v6694
    %v6726 = vpack.c.b16 %v6697, %v6696
    %v6727 = vpack.c.b16 %v6699, %v6698
    %v6728 = vpack.c.b16 %v6701, %v6700
    %v6729 = vpack.c.b16 %v6703, %v6702
    %v6730 = vpack.c.b16 %v6705, %v6704
    %v6731 = vpack.c.b16 %v6707, %v6706
    %v6732 = vpack.c.b16 %v6709, %v6708
    %v6733 = vpack.c.b16 %v6711, %v6710
    %v6734 = vpack.c.b16 %v6713, %v6712
    %v6735 = vpack.c.b16 %v6715, %v6714
    %v6736 = vpack.c.b16 %v6717, %v6716
    %v6737 = vpack.c.b16 %v6719, %v6718
    %v6738 = vpack.c.b16 %v6721, %v6720
    %v6739 = vpack.c.b16 %v6723, %v6722
    %6756 = vmatpush.bf16.msra.mxu0 %v6731
    %6757 = vmatpush.bf16.msra.mxu0 %v6730
    %6758 = vmatpush.bf16.msra.mxu0 %v6729
    %6759 = vmatpush.bf16.msra.mxu0 %v6728
    %6760 = vmatpush.bf16.msra.mxu0 %v6727
    %6761 = vmatpush.bf16.msra.mxu0 %v6726
    %6762 = vmatpush.bf16.msra.mxu0 %v6725
    %6763 = vmatpush.bf16.msra.mxu0 %v6724
    %6764 = vmatmul.bf16.gmra.mxu0 %v6626
    %v6765 = vpop.f32.mrf.mxu0
    %v6766 = vadd.f32 %v165, %v6765
    %v6767 = vpop.f32.mrf.mxu0
    %6768 = vdwg.mxu0
    %6769 = vmatpush.bf16.msra.mxu0 %v6739
    %6770 = vmatpush.bf16.msra.mxu0 %v6738
    %6771 = vmatpush.bf16.msra.mxu0 %v6737
    %6772 = vmatpush.bf16.msra.mxu0 %v6736
    %6773 = vmatpush.bf16.msra.mxu0 %v6735
    %6774 = vmatpush.bf16.msra.mxu0 %v6734
    %6775 = vmatpush.bf16.msra.mxu0 %v6733
    %6776 = vmatpush.bf16.msra.mxu0 %v6732
    %6777 = vmatmul.bf16.gmra.mxu0 %v6627
    %v6778 = vpop.f32.mrf.mxu0
    %v6779 = vadd.f32 %v6766, %v6778
    %v6780 = vpop.f32.mrf.mxu0
    %6781 = vdwg.mxu0
    %v6782 = vmax.f32 %v6779, 0.0
    %6783 = vst [vmem:[%s12] sm:$0xff] %v6782
    %v6784 = vpack.c.bf16 %v3648, %v3648
    %v6785 = vpack.c.bf16 %v3649, %v3649
    %v6786 = vld [vmem:[#allocation10] sm:$0xff]
    %v6787 = vld [vmem:[#allocation10 + $0x8] sm:$0xff]
    %v6788 = vld [vmem:[#allocation10 + $0x10] sm:$0xff]
    %v6789 = vld [vmem:[#allocation10 + $0x18] sm:$0xff]
    %v6790 = vld [vmem:[#allocation10 + $0x20] sm:$0xff]
    %v6791 = vld [vmem:[#allocation10 + $0x28] sm:$0xff]
    %v6792 = vld [vmem:[#allocation10 + $0x30] sm:$0xff]
    %v6793 = vld [vmem:[#allocation10 + $0x38] sm:$0xff]
    %v6794 = vld [vmem:[#allocation10 + $0x40] sm:$0xff]
    %v6795 = vld [vmem:[#allocation10 + $0x48] sm:$0xff]
    %v6796 = vld [vmem:[#allocation10 + $0x50] sm:$0xff]
    %v6797 = vld [vmem:[#allocation10 + $0x58] sm:$0xff]
    %v6798 = vld [vmem:[#allocation10 + $0x60] sm:$0xff]
    %v6799 = vld [vmem:[#allocation10 + $0x68] sm:$0xff]
    %v6800 = vld [vmem:[#allocation10 + $0x70] sm:$0xff]
    %v6801 = vld [vmem:[#allocation10 + $0x78] sm:$0xff]
    %v6802 = vld [vmem:[#allocation10 + $0x80] sm:$0xff]
    %v6803 = vld [vmem:[#allocation10 + $0x88] sm:$0xff]
    %v6804 = vld [vmem:[#allocation10 + $0x90] sm:$0xff]
    %v6805 = vld [vmem:[#allocation10 + $0x98] sm:$0xff]
    %v6806 = vld [vmem:[#allocation10 + $0xa0] sm:$0xff]
    %v6807 = vld [vmem:[#allocation10 + $0xa8] sm:$0xff]
    %v6808 = vld [vmem:[#allocation10 + $0xb0] sm:$0xff]
    %v6809 = vld [vmem:[#allocation10 + $0xb8] sm:$0xff]
    %v6810 = vld [vmem:[#allocation10 + $0xc0] sm:$0xff]
    %v6811 = vld [vmem:[#allocation10 + $0xc8] sm:$0xff]
    %v6812 = vld [vmem:[#allocation10 + $0xd0] sm:$0xff]
    %v6813 = vld [vmem:[#allocation10 + $0xd8] sm:$0xff]
    %v6814 = vld [vmem:[#allocation10 + $0xe0] sm:$0xff]
    %v6815 = vld [vmem:[#allocation10 + $0xe8] sm:$0xff]
    %v6816 = vld [vmem:[#allocation10 + $0xf0] sm:$0xff]
    %v6817 = vld [vmem:[#allocation10 + $0xf8] sm:$0xff]
    %v6818 = vld [vmem:[#allocation10 + $0x100] sm:$0xff]
    %v6819 = vld [vmem:[#allocation10 + $0x108] sm:$0xff]
    %v6820 = vld [vmem:[#allocation10 + $0x110] sm:$0xff]
    %v6821 = vld [vmem:[#allocation10 + $0x118] sm:$0xff]
    %v6822 = vld [vmem:[#allocation10 + $0x120] sm:$0xff]
    %v6823 = vld [vmem:[#allocation10 + $0x128] sm:$0xff]
    %v6824 = vld [vmem:[#allocation10 + $0x130] sm:$0xff]
    %v6825 = vld [vmem:[#allocation10 + $0x138] sm:$0xff]
    %v6826 = vld [vmem:[#allocation10 + $0x140] sm:$0xff]
    %v6827 = vld [vmem:[#allocation10 + $0x148] sm:$0xff]
    %v6828 = vld [vmem:[#allocation10 + $0x150] sm:$0xff]
    %v6829 = vld [vmem:[#allocation10 + $0x158] sm:$0xff]
    %v6830 = vld [vmem:[#allocation10 + $0x160] sm:$0xff]
    %v6831 = vld [vmem:[#allocation10 + $0x168] sm:$0xff]
    %v6832 = vld [vmem:[#allocation10 + $0x170] sm:$0xff]
    %v6833 = vld [vmem:[#allocation10 + $0x178] sm:$0xff]
    %v6834 = vld [vmem:[#allocation10 + $0x180] sm:$0xff]
    %v6835 = vld [vmem:[#allocation10 + $0x188] sm:$0xff]
    %v6836 = vld [vmem:[#allocation10 + $0x190] sm:$0xff]
    %v6837 = vld [vmem:[#allocation10 + $0x198] sm:$0xff]
    %v6838 = vld [vmem:[#allocation10 + $0x1a0] sm:$0xff]
    %v6839 = vld [vmem:[#allocation10 + $0x1a8] sm:$0xff]
    %v6840 = vld [vmem:[#allocation10 + $0x1b0] sm:$0xff]
    %v6841 = vld [vmem:[#allocation10 + $0x1b8] sm:$0xff]
    %v6842 = vld [vmem:[#allocation10 + $0x1c0] sm:$0xff]
    %v6843 = vld [vmem:[#allocation10 + $0x1c8] sm:$0xff]
    %v6844 = vld [vmem:[#allocation10 + $0x1d0] sm:$0xff]
    %v6845 = vld [vmem:[#allocation10 + $0x1d8] sm:$0xff]
    %v6846 = vld [vmem:[#allocation10 + $0x1e0] sm:$0xff]
    %v6847 = vld [vmem:[#allocation10 + $0x1e8] sm:$0xff]
    %v6848 = vld [vmem:[#allocation10 + $0x1f0] sm:$0xff]
    %v6849 = vld [vmem:[#allocation10 + $0x1f8] sm:$0xff]
    %v6850 = vld [vmem:[#allocation10 + $0x200] sm:$0xff]
    %v6851 = vld [vmem:[#allocation10 + $0x208] sm:$0xff]
    %v6852 = vld [vmem:[#allocation10 + $0x210] sm:$0xff]
    %v6853 = vld [vmem:[#allocation10 + $0x218] sm:$0xff]
    %v6854 = vld [vmem:[#allocation10 + $0x220] sm:$0xff]
    %v6855 = vld [vmem:[#allocation10 + $0x228] sm:$0xff]
    %v6856 = vld [vmem:[#allocation10 + $0x230] sm:$0xff]
    %v6857 = vld [vmem:[#allocation10 + $0x238] sm:$0xff]
    %v6858 = vld [vmem:[#allocation10 + $0x240] sm:$0xff]
    %v6859 = vld [vmem:[#allocation10 + $0x248] sm:$0xff]
    %v6860 = vld [vmem:[#allocation10 + $0x250] sm:$0xff]
    %v6861 = vld [vmem:[#allocation10 + $0x258] sm:$0xff]
    %v6862 = vld [vmem:[#allocation10 + $0x260] sm:$0xff]
    %v6863 = vld [vmem:[#allocation10 + $0x268] sm:$0xff]
    %v6864 = vld [vmem:[#allocation10 + $0x270] sm:$0xff]
    %v6865 = vld [vmem:[#allocation10 + $0x278] sm:$0xff]
    %v6866 = vld [vmem:[#allocation10 + $0x280] sm:$0xff]
    %v6867 = vld [vmem:[#allocation10 + $0x288] sm:$0xff]
    %v6868 = vld [vmem:[#allocation10 + $0x290] sm:$0xff]
    %v6869 = vld [vmem:[#allocation10 + $0x298] sm:$0xff]
    %v6870 = vld [vmem:[#allocation10 + $0x2a0] sm:$0xff]
    %v6871 = vld [vmem:[#allocation10 + $0x2a8] sm:$0xff]
    %v6872 = vld [vmem:[#allocation10 + $0x2b0] sm:$0xff]
    %v6873 = vld [vmem:[#allocation10 + $0x2b8] sm:$0xff]
    %v6874 = vld [vmem:[#allocation10 + $0x2c0] sm:$0xff]
    %v6875 = vld [vmem:[#allocation10 + $0x2c8] sm:$0xff]
    %v6876 = vld [vmem:[#allocation10 + $0x2d0] sm:$0xff]
    %v6877 = vld [vmem:[#allocation10 + $0x2d8] sm:$0xff]
    %v6878 = vld [vmem:[#allocation10 + $0x2e0] sm:$0xff]
    %v6879 = vld [vmem:[#allocation10 + $0x2e8] sm:$0xff]
    %v6880 = vld [vmem:[#allocation10 + $0x2f0] sm:$0xff]
    %v6881 = vld [vmem:[#allocation10 + $0x2f8] sm:$0xff]
    %v6882 = vld [vmem:[#allocation10 + $0x300] sm:$0xff]
    %v6883 = vld [vmem:[#allocation10 + $0x308] sm:$0xff]
    %v6884 = vld [vmem:[#allocation10 + $0x310] sm:$0xff]
    %v6885 = vld [vmem:[#allocation10 + $0x318] sm:$0xff]
    %v6886 = vld [vmem:[#allocation10 + $0x320] sm:$0xff]
    %v6887 = vld [vmem:[#allocation10 + $0x328] sm:$0xff]
    %v6888 = vld [vmem:[#allocation10 + $0x330] sm:$0xff]
    %v6889 = vld [vmem:[#allocation10 + $0x338] sm:$0xff]
    %v6890 = vld [vmem:[#allocation10 + $0x340] sm:$0xff]
    %v6891 = vld [vmem:[#allocation10 + $0x348] sm:$0xff]
    %v6892 = vld [vmem:[#allocation10 + $0x350] sm:$0xff]
    %v6893 = vld [vmem:[#allocation10 + $0x358] sm:$0xff]
    %v6894 = vld [vmem:[#allocation10 + $0x360] sm:$0xff]
    %v6895 = vld [vmem:[#allocation10 + $0x368] sm:$0xff]
    %v6896 = vld [vmem:[#allocation10 + $0x370] sm:$0xff]
    %v6897 = vld [vmem:[#allocation10 + $0x378] sm:$0xff]
    %v6898 = vld [vmem:[#allocation10 + $0x380] sm:$0xff]
    %v6899 = vld [vmem:[#allocation10 + $0x388] sm:$0xff]
    %v6900 = vld [vmem:[#allocation10 + $0x390] sm:$0xff]
    %v6901 = vld [vmem:[#allocation10 + $0x398] sm:$0xff]
    %v6902 = vld [vmem:[#allocation10 + $0x3a0] sm:$0xff]
    %v6903 = vld [vmem:[#allocation10 + $0x3a8] sm:$0xff]
    %v6904 = vld [vmem:[#allocation10 + $0x3b0] sm:$0xff]
    %v6905 = vld [vmem:[#allocation10 + $0x3b8] sm:$0xff]
    %v6906 = vld [vmem:[#allocation10 + $0x3c0] sm:$0xff]
    %v6907 = vld [vmem:[#allocation10 + $0x3c8] sm:$0xff]
    %v6908 = vld [vmem:[#allocation10 + $0x3d0] sm:$0xff]
    %v6909 = vld [vmem:[#allocation10 + $0x3d8] sm:$0xff]
    %v6910 = vld [vmem:[#allocation10 + $0x3e0] sm:$0xff]
    %v6911 = vld [vmem:[#allocation10 + $0x3e8] sm:$0xff]
    %v6912 = vld [vmem:[#allocation10 + $0x3f0] sm:$0xff]
    %v6913 = vld [vmem:[#allocation10 + $0x3f8] sm:$0xff]
    %v6914 = vpack.c.bf16 %v6782, %v6782
    %v6915 = vld [vmem:[#allocation10 + $0x400] sm:$0xff]
    %v6916 = vld [vmem:[#allocation10 + $0x408] sm:$0xff]
    %v6917 = vld [vmem:[#allocation10 + $0x410] sm:$0xff]
    %v6918 = vld [vmem:[#allocation10 + $0x418] sm:$0xff]
    %v6919 = vld [vmem:[#allocation10 + $0x420] sm:$0xff]
    %v6920 = vld [vmem:[#allocation10 + $0x428] sm:$0xff]
    %v6921 = vld [vmem:[#allocation10 + $0x430] sm:$0xff]
    %v6922 = vld [vmem:[#allocation10 + $0x438] sm:$0xff]
    %v6923 = vld [vmem:[#allocation10 + $0x440] sm:$0xff]
    %v6924 = vld [vmem:[#allocation10 + $0x448] sm:$0xff]
    %v6925 = vld [vmem:[#allocation10 + $0x450] sm:$0xff]
    %v6926 = vld [vmem:[#allocation10 + $0x458] sm:$0xff]
    %v6927 = vld [vmem:[#allocation10 + $0x460] sm:$0xff]
    %v6928 = vld [vmem:[#allocation10 + $0x468] sm:$0xff]
    %v6929 = vld [vmem:[#allocation10 + $0x470] sm:$0xff]
    %v6930 = vld [vmem:[#allocation10 + $0x478] sm:$0xff]
    %v6931 = vld [vmem:[#allocation10 + $0x480] sm:$0xff]
    %v6932 = vld [vmem:[#allocation10 + $0x488] sm:$0xff]
    %v6933 = vld [vmem:[#allocation10 + $0x490] sm:$0xff]
    %v6934 = vld [vmem:[#allocation10 + $0x498] sm:$0xff]
    %v6935 = vld [vmem:[#allocation10 + $0x4a0] sm:$0xff]
    %v6936 = vld [vmem:[#allocation10 + $0x4a8] sm:$0xff]
    %v6937 = vld [vmem:[#allocation10 + $0x4b0] sm:$0xff]
    %v6938 = vld [vmem:[#allocation10 + $0x4b8] sm:$0xff]
    %v6939 = vld [vmem:[#allocation10 + $0x4c0] sm:$0xff]
    %v6940 = vld [vmem:[#allocation10 + $0x4c8] sm:$0xff]
    %v6941 = vld [vmem:[#allocation10 + $0x4d0] sm:$0xff]
    %v6942 = vld [vmem:[#allocation10 + $0x4d8] sm:$0xff]
    %v6943 = vld [vmem:[#allocation10 + $0x4e0] sm:$0xff]
    %v6944 = vld [vmem:[#allocation10 + $0x4e8] sm:$0xff]
    %v6945 = vld [vmem:[#allocation10 + $0x4f0] sm:$0xff]
    %v6946 = vld [vmem:[#allocation10 + $0x4f8] sm:$0xff]
    %v6947 = vld [vmem:[#allocation10 + $0x500] sm:$0xff]
    %v6948 = vld [vmem:[#allocation10 + $0x508] sm:$0xff]
    %v6949 = vld [vmem:[#allocation10 + $0x510] sm:$0xff]
    %v6950 = vld [vmem:[#allocation10 + $0x518] sm:$0xff]
    %v6951 = vld [vmem:[#allocation10 + $0x520] sm:$0xff]
    %v6952 = vld [vmem:[#allocation10 + $0x528] sm:$0xff]
    %v6953 = vld [vmem:[#allocation10 + $0x530] sm:$0xff]
    %v6954 = vld [vmem:[#allocation10 + $0x538] sm:$0xff]
    %v6955 = vld [vmem:[#allocation10 + $0x540] sm:$0xff]
    %v6956 = vld [vmem:[#allocation10 + $0x548] sm:$0xff]
    %v6957 = vld [vmem:[#allocation10 + $0x550] sm:$0xff]
    %v6958 = vld [vmem:[#allocation10 + $0x558] sm:$0xff]
    %v6959 = vld [vmem:[#allocation10 + $0x560] sm:$0xff]
    %v6960 = vld [vmem:[#allocation10 + $0x568] sm:$0xff]
    %v6961 = vld [vmem:[#allocation10 + $0x570] sm:$0xff]
    %v6962 = vld [vmem:[#allocation10 + $0x578] sm:$0xff]
    %v6963 = vld [vmem:[#allocation10 + $0x580] sm:$0xff]
    %v6964 = vld [vmem:[#allocation10 + $0x588] sm:$0xff]
    %v6965 = vld [vmem:[#allocation10 + $0x590] sm:$0xff]
    %v6966 = vld [vmem:[#allocation10 + $0x598] sm:$0xff]
    %v6967 = vld [vmem:[#allocation10 + $0x5a0] sm:$0xff]
    %v6968 = vld [vmem:[#allocation10 + $0x5a8] sm:$0xff]
    %v6969 = vld [vmem:[#allocation10 + $0x5b0] sm:$0xff]
    %v6970 = vld [vmem:[#allocation10 + $0x5b8] sm:$0xff]
    %v6971 = vld [vmem:[#allocation10 + $0x5c0] sm:$0xff]
    %v6972 = vld [vmem:[#allocation10 + $0x5c8] sm:$0xff]
    %v6973 = vld [vmem:[#allocation10 + $0x5d0] sm:$0xff]
    %v6974 = vld [vmem:[#allocation10 + $0x5d8] sm:$0xff]
    %v6975 = vld [vmem:[#allocation10 + $0x5e0] sm:$0xff]
    %v6976 = vld [vmem:[#allocation10 + $0x5e8] sm:$0xff]
    %v6977 = vld [vmem:[#allocation10 + $0x5f0] sm:$0xff]
    %v6978 = vld [vmem:[#allocation10 + $0x5f8] sm:$0xff]
    %v7043 = vunpack.c.l.b16 %v6915
    %v7044 = vunpack.c.h.b16 %v6915
    %v7045 = vunpack.c.l.b16 %v6916
    %v7046 = vunpack.c.h.b16 %v6916
    %v7047 = vunpack.c.l.b16 %v6917
    %v7048 = vunpack.c.h.b16 %v6917
    %v7049 = vunpack.c.l.b16 %v6918
    %v7050 = vunpack.c.h.b16 %v6918
    %v7051 = vunpack.c.l.b16 %v6919
    %v7052 = vunpack.c.h.b16 %v6919
    %v7053 = vunpack.c.l.b16 %v6920
    %v7054 = vunpack.c.h.b16 %v6920
    %v7055 = vunpack.c.l.b16 %v6921
    %v7056 = vunpack.c.h.b16 %v6921
    %v7057 = vunpack.c.l.b16 %v6922
    %v7058 = vunpack.c.h.b16 %v6922
    %v7059 = vunpack.c.l.b16 %v6923
    %v7060 = vunpack.c.h.b16 %v6923
    %v7061 = vunpack.c.l.b16 %v6924
    %v7062 = vunpack.c.h.b16 %v6924
    %v7063 = vunpack.c.l.b16 %v6925
    %v7064 = vunpack.c.h.b16 %v6925
    %v7065 = vunpack.c.l.b16 %v6926
    %v7066 = vunpack.c.h.b16 %v6926
    %v7067 = vunpack.c.l.b16 %v6927
    %v7068 = vunpack.c.h.b16 %v6927
    %v7069 = vunpack.c.l.b16 %v6928
    %v7070 = vunpack.c.h.b16 %v6928
    %v7071 = vunpack.c.l.b16 %v6929
    %v7072 = vunpack.c.h.b16 %v6929
    %v7073 = vunpack.c.l.b16 %v6930
    %v7074 = vunpack.c.h.b16 %v6930
    %v7075 = vunpack.c.l.b16 %v6931
    %v7076 = vunpack.c.h.b16 %v6931
    %v7077 = vunpack.c.l.b16 %v6932
    %v7078 = vunpack.c.h.b16 %v6932
    %v7079 = vunpack.c.l.b16 %v6933
    %v7080 = vunpack.c.h.b16 %v6933
    %v7081 = vunpack.c.l.b16 %v6934
    %v7082 = vunpack.c.h.b16 %v6934
    %v7083 = vunpack.c.l.b16 %v6935
    %v7084 = vunpack.c.h.b16 %v6935
    %v7085 = vunpack.c.l.b16 %v6936
    %v7086 = vunpack.c.h.b16 %v6936
    %v7087 = vunpack.c.l.b16 %v6937
    %v7088 = vunpack.c.h.b16 %v6937
    %v7089 = vunpack.c.l.b16 %v6938
    %v7090 = vunpack.c.h.b16 %v6938
    %v7091 = vunpack.c.l.b16 %v6939
    %v7092 = vunpack.c.h.b16 %v6939
    %v7093 = vunpack.c.l.b16 %v6940
    %v7094 = vunpack.c.h.b16 %v6940
    %v7095 = vunpack.c.l.b16 %v6941
    %v7096 = vunpack.c.h.b16 %v6941
    %v7097 = vunpack.c.l.b16 %v6942
    %v7098 = vunpack.c.h.b16 %v6942
    %v7099 = vunpack.c.l.b16 %v6943
    %v7100 = vunpack.c.h.b16 %v6943
    %v7101 = vunpack.c.l.b16 %v6944
    %v7102 = vunpack.c.h.b16 %v6944
    %v7103 = vunpack.c.l.b16 %v6945
    %v7104 = vunpack.c.h.b16 %v6945
    %v7105 = vunpack.c.l.b16 %v6946
    %v7106 = vunpack.c.h.b16 %v6946
    %v7107 = vunpack.c.l.b16 %v6947
    %v7108 = vunpack.c.h.b16 %v6947
    %v7109 = vunpack.c.l.b16 %v6948
    %v7110 = vunpack.c.h.b16 %v6948
    %v7111 = vunpack.c.l.b16 %v6949
    %v7112 = vunpack.c.h.b16 %v6949
    %v7113 = vunpack.c.l.b16 %v6950
    %v7114 = vunpack.c.h.b16 %v6950
    %v7115 = vunpack.c.l.b16 %v6951
    %v7116 = vunpack.c.h.b16 %v6951
    %v7117 = vunpack.c.l.b16 %v6952
    %v7118 = vunpack.c.h.b16 %v6952
    %v7119 = vunpack.c.l.b16 %v6953
    %v7120 = vunpack.c.h.b16 %v6953
    %v7121 = vunpack.c.l.b16 %v6954
    %v7122 = vunpack.c.h.b16 %v6954
    %v7123 = vunpack.c.l.b16 %v6955
    %v7124 = vunpack.c.h.b16 %v6955
    %v7125 = vunpack.c.l.b16 %v6956
    %v7126 = vunpack.c.h.b16 %v6956
    %v7127 = vunpack.c.l.b16 %v6957
    %v7128 = vunpack.c.h.b16 %v6957
    %v7129 = vunpack.c.l.b16 %v6958
    %v7130 = vunpack.c.h.b16 %v6958
    %v7131 = vunpack.c.l.b16 %v6959
    %v7132 = vunpack.c.h.b16 %v6959
    %v7133 = vunpack.c.l.b16 %v6960
    %v7134 = vunpack.c.h.b16 %v6960
    %v7135 = vunpack.c.l.b16 %v6961
    %v7136 = vunpack.c.h.b16 %v6961
    %v7137 = vunpack.c.l.b16 %v6962
    %v7138 = vunpack.c.h.b16 %v6962
    %v7139 = vunpack.c.l.b16 %v6963
    %v7140 = vunpack.c.h.b16 %v6963
    %v7141 = vunpack.c.l.b16 %v6964
    %v7142 = vunpack.c.h.b16 %v6964
    %v7143 = vunpack.c.l.b16 %v6965
    %v7144 = vunpack.c.h.b16 %v6965
    %v7145 = vunpack.c.l.b16 %v6966
    %v7146 = vunpack.c.h.b16 %v6966
    %v7147 = vunpack.c.l.b16 %v6967
    %v7148 = vunpack.c.h.b16 %v6967
    %v7149 = vunpack.c.l.b16 %v6968
    %v7150 = vunpack.c.h.b16 %v6968
    %v7151 = vunpack.c.l.b16 %v6969
    %v7152 = vunpack.c.h.b16 %v6969
    %v7153 = vunpack.c.l.b16 %v6970
    %v7154 = vunpack.c.h.b16 %v6970
    %v7155 = vunpack.c.l.b16 %v6971
    %v7156 = vunpack.c.h.b16 %v6971
    %v7157 = vunpack.c.l.b16 %v6972
    %v7158 = vunpack.c.h.b16 %v6972
    %v7159 = vunpack.c.l.b16 %v6973
    %v7160 = vunpack.c.h.b16 %v6973
    %v7161 = vunpack.c.l.b16 %v6974
    %v7162 = vunpack.c.h.b16 %v6974
    %v7163 = vunpack.c.l.b16 %v6975
    %v7164 = vunpack.c.h.b16 %v6975
    %v7165 = vunpack.c.l.b16 %v6976
    %v7166 = vunpack.c.h.b16 %v6976
    %v7167 = vunpack.c.l.b16 %v6977
    %v7168 = vunpack.c.h.b16 %v6977
    %v7169 = vunpack.c.l.b16 %v6978
    %v7170 = vunpack.c.h.b16 %v6978
    %v7171 = vpack.c.b16 %v7051, %v7043
    %v7172 = vpack.c.b16 %v7052, %v7044
    %v7173 = vpack.c.b16 %v7053, %v7045
    %v7174 = vpack.c.b16 %v7054, %v7046
    %v7175 = vpack.c.b16 %v7055, %v7047
    %v7176 = vpack.c.b16 %v7056, %v7048
    %v7177 = vpack.c.b16 %v7057, %v7049
    %v7178 = vpack.c.b16 %v7058, %v7050
    %v7179 = vpack.c.b16 %v7067, %v7059
    %v7180 = vpack.c.b16 %v7068, %v7060
    %v7181 = vpack.c.b16 %v7069, %v7061
    %v7182 = vpack.c.b16 %v7070, %v7062
    %v7183 = vpack.c.b16 %v7071, %v7063
    %v7184 = vpack.c.b16 %v7072, %v7064
    %v7185 = vpack.c.b16 %v7073, %v7065
    %v7186 = vpack.c.b16 %v7074, %v7066
    %v7187 = vpack.c.b16 %v7083, %v7075
    %v7188 = vpack.c.b16 %v7084, %v7076
    %v7189 = vpack.c.b16 %v7085, %v7077
    %v7190 = vpack.c.b16 %v7086, %v7078
    %v7191 = vpack.c.b16 %v7087, %v7079
    %v7192 = vpack.c.b16 %v7088, %v7080
    %v7193 = vpack.c.b16 %v7089, %v7081
    %v7194 = vpack.c.b16 %v7090, %v7082
    %v7195 = vpack.c.b16 %v7099, %v7091
    %v7196 = vpack.c.b16 %v7100, %v7092
    %v7197 = vpack.c.b16 %v7101, %v7093
    %v7198 = vpack.c.b16 %v7102, %v7094
    %v7199 = vpack.c.b16 %v7103, %v7095
    %v7200 = vpack.c.b16 %v7104, %v7096
    %v7201 = vpack.c.b16 %v7105, %v7097
    %v7202 = vpack.c.b16 %v7106, %v7098
    %v7203 = vpack.c.b16 %v7115, %v7107
    %v7204 = vpack.c.b16 %v7116, %v7108
    %v7205 = vpack.c.b16 %v7117, %v7109
    %v7206 = vpack.c.b16 %v7118, %v7110
    %v7207 = vpack.c.b16 %v7119, %v7111
    %v7208 = vpack.c.b16 %v7120, %v7112
    %v7209 = vpack.c.b16 %v7121, %v7113
    %v7210 = vpack.c.b16 %v7122, %v7114
    %v7211 = vpack.c.b16 %v7131, %v7123
    %v7212 = vpack.c.b16 %v7132, %v7124
    %v7213 = vpack.c.b16 %v7133, %v7125
    %v7214 = vpack.c.b16 %v7134, %v7126
    %v7215 = vpack.c.b16 %v7135, %v7127
    %v7216 = vpack.c.b16 %v7136, %v7128
    %v7217 = vpack.c.b16 %v7137, %v7129
    %v7218 = vpack.c.b16 %v7138, %v7130
    %v7219 = vpack.c.b16 %v7147, %v7139
    %v7220 = vpack.c.b16 %v7148, %v7140
    %v7221 = vpack.c.b16 %v7149, %v7141
    %v7222 = vpack.c.b16 %v7150, %v7142
    %v7223 = vpack.c.b16 %v7151, %v7143
    %v7224 = vpack.c.b16 %v7152, %v7144
    %v7225 = vpack.c.b16 %v7153, %v7145
    %v7226 = vpack.c.b16 %v7154, %v7146
    %v7227 = vpack.c.b16 %v7163, %v7155
    %v7228 = vpack.c.b16 %v7164, %v7156
    %v7229 = vpack.c.b16 %v7165, %v7157
    %v7230 = vpack.c.b16 %v7166, %v7158
    %v7231 = vpack.c.b16 %v7167, %v7159
    %v7232 = vpack.c.b16 %v7168, %v7160
    %v7233 = vpack.c.b16 %v7169, %v7161
    %v7234 = vpack.c.b16 %v7170, %v7162
    %7299 = vmatpush.bf16.msra.mxu0 %v7227
    %7300 = vmatpush.bf16.msra.mxu0 %v7219
    %7301 = vmatpush.bf16.msra.mxu0 %v7211
    %7302 = vmatpush.bf16.msra.mxu0 %v7203
    %7303 = vmatpush.bf16.msra.mxu0 %v7195
    %7304 = vmatpush.bf16.msra.mxu0 %v7187
    %7305 = vmatpush.bf16.msra.mxu0 %v7179
    %7306 = vmatpush.bf16.msra.mxu0 %v7171
    %7307 = vmatmul.bf16.gmra.mxu0 %v6914
    %v7308 = vpop.f32.mrf.mxu0
    %v7309 = vadd.f32 0.0, %v7308
    %v7310 = vpop.f32.mrf.mxu0
    %7311 = vdwg.mxu0
    %7312 = vmatpush.bf16.msra.mxu0 %v7228
    %7313 = vmatpush.bf16.msra.mxu0 %v7220
    %7314 = vmatpush.bf16.msra.mxu0 %v7212
    %7315 = vmatpush.bf16.msra.mxu0 %v7204
    %7316 = vmatpush.bf16.msra.mxu0 %v7196
    %7317 = vmatpush.bf16.msra.mxu0 %v7188
    %7318 = vmatpush.bf16.msra.mxu0 %v7180
    %7319 = vmatpush.bf16.msra.mxu0 %v7172
    %7320 = vmatmul.bf16.gmra.mxu0 %v6914
    %v7321 = vpop.f32.mrf.mxu0
    %v7322 = vadd.f32 0.0, %v7321
    %v7323 = vpop.f32.mrf.mxu0
    %7324 = vdwg.mxu0
    %7325 = vmatpush.bf16.msra.mxu0 %v7229
    %7326 = vmatpush.bf16.msra.mxu0 %v7221
    %7327 = vmatpush.bf16.msra.mxu0 %v7213
    %7328 = vmatpush.bf16.msra.mxu0 %v7205
    %7329 = vmatpush.bf16.msra.mxu0 %v7197
    %7330 = vmatpush.bf16.msra.mxu0 %v7189
    %7331 = vmatpush.bf16.msra.mxu0 %v7181
    %7332 = vmatpush.bf16.msra.mxu0 %v7173
    %7333 = vmatmul.bf16.gmra.mxu0 %v6914
    %v7334 = vpop.f32.mrf.mxu0
    %v7335 = vadd.f32 0.0, %v7334
    %v7336 = vpop.f32.mrf.mxu0
    %7337 = vdwg.mxu0
    %7338 = vmatpush.bf16.msra.mxu0 %v7230
    %7339 = vmatpush.bf16.msra.mxu0 %v7222
    %7340 = vmatpush.bf16.msra.mxu0 %v7214
    %7341 = vmatpush.bf16.msra.mxu0 %v7206
    %7342 = vmatpush.bf16.msra.mxu0 %v7198
    %7343 = vmatpush.bf16.msra.mxu0 %v7190
    %7344 = vmatpush.bf16.msra.mxu0 %v7182
    %7345 = vmatpush.bf16.msra.mxu0 %v7174
    %7346 = vmatmul.bf16.gmra.mxu0 %v6914
    %v7347 = vpop.f32.mrf.mxu0
    %v7348 = vadd.f32 0.0, %v7347
    %v7349 = vpop.f32.mrf.mxu0
    %7350 = vdwg.mxu0
    %7351 = vmatpush.bf16.msra.mxu0 %v7231
    %7352 = vmatpush.bf16.msra.mxu0 %v7223
    %7353 = vmatpush.bf16.msra.mxu0 %v7215
    %7354 = vmatpush.bf16.msra.mxu0 %v7207
    %7355 = vmatpush.bf16.msra.mxu0 %v7199
    %7356 = vmatpush.bf16.msra.mxu0 %v7191
    %7357 = vmatpush.bf16.msra.mxu0 %v7183
    %7358 = vmatpush.bf16.msra.mxu0 %v7175
    %7359 = vmatmul.bf16.gmra.mxu0 %v6914
    %v7360 = vpop.f32.mrf.mxu0
    %v7361 = vadd.f32 0.0, %v7360
    %v7362 = vpop.f32.mrf.mxu0
    %7363 = vdwg.mxu0
    %7364 = vmatpush.bf16.msra.mxu0 %v7232
    %7365 = vmatpush.bf16.msra.mxu0 %v7224
    %7366 = vmatpush.bf16.msra.mxu0 %v7216
    %7367 = vmatpush.bf16.msra.mxu0 %v7208
    %7368 = vmatpush.bf16.msra.mxu0 %v7200
    %7369 = vmatpush.bf16.msra.mxu0 %v7192
    %7370 = vmatpush.bf16.msra.mxu0 %v7184
    %7371 = vmatpush.bf16.msra.mxu0 %v7176
    %7372 = vmatmul.bf16.gmra.mxu0 %v6914
    %v7373 = vpop.f32.mrf.mxu0
    %v7374 = vadd.f32 0.0, %v7373
    %v7375 = vpop.f32.mrf.mxu0
    %7376 = vdwg.mxu0
    %7377 = vmatpush.bf16.msra.mxu0 %v7233
    %7378 = vmatpush.bf16.msra.mxu0 %v7225
    %7379 = vmatpush.bf16.msra.mxu0 %v7217
    %7380 = vmatpush.bf16.msra.mxu0 %v7209
    %7381 = vmatpush.bf16.msra.mxu0 %v7201
    %7382 = vmatpush.bf16.msra.mxu0 %v7193
    %7383 = vmatpush.bf16.msra.mxu0 %v7185
    %7384 = vmatpush.bf16.msra.mxu0 %v7177
    %7385 = vmatmul.bf16.gmra.mxu0 %v6914
    %v7386 = vpop.f32.mrf.mxu0
    %v7387 = vadd.f32 0.0, %v7386
    %v7388 = vpop.f32.mrf.mxu0
    %7389 = vdwg.mxu0
    %7390 = vmatpush.bf16.msra.mxu0 %v7234
    %7391 = vmatpush.bf16.msra.mxu0 %v7226
    %7392 = vmatpush.bf16.msra.mxu0 %v7218
    %7393 = vmatpush.bf16.msra.mxu0 %v7210
    %7394 = vmatpush.bf16.msra.mxu0 %v7202
    %7395 = vmatpush.bf16.msra.mxu0 %v7194
    %7396 = vmatpush.bf16.msra.mxu0 %v7186
    %7397 = vmatpush.bf16.msra.mxu0 %v7178
    %7398 = vmatmul.bf16.gmra.mxu0 %v6914
    %v7399 = vpop.f32.mrf.mxu0
    %v7400 = vadd.f32 0.0, %v7399
    %v7401 = vpop.f32.mrf.mxu0
    %7402 = vdwg.mxu0
    %v7531 = vunpack.c.l.b16 %v6786
    %v7532 = vunpack.c.h.b16 %v6786
    %v7533 = vunpack.c.l.b16 %v6787
    %v7534 = vunpack.c.h.b16 %v6787
    %v7535 = vunpack.c.l.b16 %v6788
    %v7536 = vunpack.c.h.b16 %v6788
    %v7537 = vunpack.c.l.b16 %v6789
    %v7538 = vunpack.c.h.b16 %v6789
    %v7539 = vunpack.c.l.b16 %v6790
    %v7540 = vunpack.c.h.b16 %v6790
    %v7541 = vunpack.c.l.b16 %v6791
    %v7542 = vunpack.c.h.b16 %v6791
    %v7543 = vunpack.c.l.b16 %v6792
    %v7544 = vunpack.c.h.b16 %v6792
    %v7545 = vunpack.c.l.b16 %v6793
    %v7546 = vunpack.c.h.b16 %v6793
    %v7547 = vunpack.c.l.b16 %v6794
    %v7548 = vunpack.c.h.b16 %v6794
    %v7549 = vunpack.c.l.b16 %v6795
    %v7550 = vunpack.c.h.b16 %v6795
    %v7551 = vunpack.c.l.b16 %v6796
    %v7552 = vunpack.c.h.b16 %v6796
    %v7553 = vunpack.c.l.b16 %v6797
    %v7554 = vunpack.c.h.b16 %v6797
    %v7555 = vunpack.c.l.b16 %v6798
    %v7556 = vunpack.c.h.b16 %v6798
    %v7557 = vunpack.c.l.b16 %v6799
    %v7558 = vunpack.c.h.b16 %v6799
    %v7559 = vunpack.c.l.b16 %v6800
    %v7560 = vunpack.c.h.b16 %v6800
    %v7561 = vunpack.c.l.b16 %v6801
    %v7562 = vunpack.c.h.b16 %v6801
    %v7563 = vunpack.c.l.b16 %v6802
    %v7564 = vunpack.c.h.b16 %v6802
    %v7565 = vunpack.c.l.b16 %v6803
    %v7566 = vunpack.c.h.b16 %v6803
    %v7567 = vunpack.c.l.b16 %v6804
    %v7568 = vunpack.c.h.b16 %v6804
    %v7569 = vunpack.c.l.b16 %v6805
    %v7570 = vunpack.c.h.b16 %v6805
    %v7571 = vunpack.c.l.b16 %v6806
    %v7572 = vunpack.c.h.b16 %v6806
    %v7573 = vunpack.c.l.b16 %v6807
    %v7574 = vunpack.c.h.b16 %v6807
    %v7575 = vunpack.c.l.b16 %v6808
    %v7576 = vunpack.c.h.b16 %v6808
    %v7577 = vunpack.c.l.b16 %v6809
    %v7578 = vunpack.c.h.b16 %v6809
    %v7579 = vunpack.c.l.b16 %v6810
    %v7580 = vunpack.c.h.b16 %v6810
    %v7581 = vunpack.c.l.b16 %v6811
    %v7582 = vunpack.c.h.b16 %v6811
    %v7583 = vunpack.c.l.b16 %v6812
    %v7584 = vunpack.c.h.b16 %v6812
    %v7585 = vunpack.c.l.b16 %v6813
    %v7586 = vunpack.c.h.b16 %v6813
    %v7587 = vunpack.c.l.b16 %v6814
    %v7588 = vunpack.c.h.b16 %v6814
    %v7589 = vunpack.c.l.b16 %v6815
    %v7590 = vunpack.c.h.b16 %v6815
    %v7591 = vunpack.c.l.b16 %v6816
    %v7592 = vunpack.c.h.b16 %v6816
    %v7593 = vunpack.c.l.b16 %v6817
    %v7594 = vunpack.c.h.b16 %v6817
    %v7595 = vunpack.c.l.b16 %v6818
    %v7596 = vunpack.c.h.b16 %v6818
    %v7597 = vunpack.c.l.b16 %v6819
    %v7598 = vunpack.c.h.b16 %v6819
    %v7599 = vunpack.c.l.b16 %v6820
    %v7600 = vunpack.c.h.b16 %v6820
    %v7601 = vunpack.c.l.b16 %v6821
    %v7602 = vunpack.c.h.b16 %v6821
    %v7603 = vunpack.c.l.b16 %v6822
    %v7604 = vunpack.c.h.b16 %v6822
    %v7605 = vunpack.c.l.b16 %v6823
    %v7606 = vunpack.c.h.b16 %v6823
    %v7607 = vunpack.c.l.b16 %v6824
    %v7608 = vunpack.c.h.b16 %v6824
    %v7609 = vunpack.c.l.b16 %v6825
    %v7610 = vunpack.c.h.b16 %v6825
    %v7611 = vunpack.c.l.b16 %v6826
    %v7612 = vunpack.c.h.b16 %v6826
    %v7613 = vunpack.c.l.b16 %v6827
    %v7614 = vunpack.c.h.b16 %v6827
    %v7615 = vunpack.c.l.b16 %v6828
    %v7616 = vunpack.c.h.b16 %v6828
    %v7617 = vunpack.c.l.b16 %v6829
    %v7618 = vunpack.c.h.b16 %v6829
    %v7619 = vunpack.c.l.b16 %v6830
    %v7620 = vunpack.c.h.b16 %v6830
    %v7621 = vunpack.c.l.b16 %v6831
    %v7622 = vunpack.c.h.b16 %v6831
    %v7623 = vunpack.c.l.b16 %v6832
    %v7624 = vunpack.c.h.b16 %v6832
    %v7625 = vunpack.c.l.b16 %v6833
    %v7626 = vunpack.c.h.b16 %v6833
    %v7627 = vunpack.c.l.b16 %v6834
    %v7628 = vunpack.c.h.b16 %v6834
    %v7629 = vunpack.c.l.b16 %v6835
    %v7630 = vunpack.c.h.b16 %v6835
    %v7631 = vunpack.c.l.b16 %v6836
    %v7632 = vunpack.c.h.b16 %v6836
    %v7633 = vunpack.c.l.b16 %v6837
    %v7634 = vunpack.c.h.b16 %v6837
    %v7635 = vunpack.c.l.b16 %v6838
    %v7636 = vunpack.c.h.b16 %v6838
    %v7637 = vunpack.c.l.b16 %v6839
    %v7638 = vunpack.c.h.b16 %v6839
    %v7639 = vunpack.c.l.b16 %v6840
    %v7640 = vunpack.c.h.b16 %v6840
    %v7641 = vunpack.c.l.b16 %v6841
    %v7642 = vunpack.c.h.b16 %v6841
    %v7643 = vunpack.c.l.b16 %v6842
    %v7644 = vunpack.c.h.b16 %v6842
    %v7645 = vunpack.c.l.b16 %v6843
    %v7646 = vunpack.c.h.b16 %v6843
    %v7647 = vunpack.c.l.b16 %v6844
    %v7648 = vunpack.c.h.b16 %v6844
    %v7649 = vunpack.c.l.b16 %v6845
    %v7650 = vunpack.c.h.b16 %v6845
    %v7651 = vunpack.c.l.b16 %v6846
    %v7652 = vunpack.c.h.b16 %v6846
    %v7653 = vunpack.c.l.b16 %v6847
    %v7654 = vunpack.c.h.b16 %v6847
    %v7655 = vunpack.c.l.b16 %v6848
    %v7656 = vunpack.c.h.b16 %v6848
    %v7657 = vunpack.c.l.b16 %v6849
    %v7658 = vunpack.c.h.b16 %v6849
    %v7659 = vunpack.c.l.b16 %v6850
    %v7660 = vunpack.c.h.b16 %v6850
    %v7661 = vunpack.c.l.b16 %v6851
    %v7662 = vunpack.c.h.b16 %v6851
    %v7663 = vunpack.c.l.b16 %v6852
    %v7664 = vunpack.c.h.b16 %v6852
    %v7665 = vunpack.c.l.b16 %v6853
    %v7666 = vunpack.c.h.b16 %v6853
    %v7667 = vunpack.c.l.b16 %v6854
    %v7668 = vunpack.c.h.b16 %v6854
    %v7669 = vunpack.c.l.b16 %v6855
    %v7670 = vunpack.c.h.b16 %v6855
    %v7671 = vunpack.c.l.b16 %v6856
    %v7672 = vunpack.c.h.b16 %v6856
    %v7673 = vunpack.c.l.b16 %v6857
    %v7674 = vunpack.c.h.b16 %v6857
    %v7675 = vunpack.c.l.b16 %v6858
    %v7676 = vunpack.c.h.b16 %v6858
    %v7677 = vunpack.c.l.b16 %v6859
    %v7678 = vunpack.c.h.b16 %v6859
    %v7679 = vunpack.c.l.b16 %v6860
    %v7680 = vunpack.c.h.b16 %v6860
    %v7681 = vunpack.c.l.b16 %v6861
    %v7682 = vunpack.c.h.b16 %v6861
    %v7683 = vunpack.c.l.b16 %v6862
    %v7684 = vunpack.c.h.b16 %v6862
    %v7685 = vunpack.c.l.b16 %v6863
    %v7686 = vunpack.c.h.b16 %v6863
    %v7687 = vunpack.c.l.b16 %v6864
    %v7688 = vunpack.c.h.b16 %v6864
    %v7689 = vunpack.c.l.b16 %v6865
    %v7690 = vunpack.c.h.b16 %v6865
    %v7691 = vunpack.c.l.b16 %v6866
    %v7692 = vunpack.c.h.b16 %v6866
    %v7693 = vunpack.c.l.b16 %v6867
    %v7694 = vunpack.c.h.b16 %v6867
    %v7695 = vunpack.c.l.b16 %v6868
    %v7696 = vunpack.c.h.b16 %v6868
    %v7697 = vunpack.c.l.b16 %v6869
    %v7698 = vunpack.c.h.b16 %v6869
    %v7699 = vunpack.c.l.b16 %v6870
    %v7700 = vunpack.c.h.b16 %v6870
    %v7701 = vunpack.c.l.b16 %v6871
    %v7702 = vunpack.c.h.b16 %v6871
    %v7703 = vunpack.c.l.b16 %v6872
    %v7704 = vunpack.c.h.b16 %v6872
    %v7705 = vunpack.c.l.b16 %v6873
    %v7706 = vunpack.c.h.b16 %v6873
    %v7707 = vunpack.c.l.b16 %v6874
    %v7708 = vunpack.c.h.b16 %v6874
    %v7709 = vunpack.c.l.b16 %v6875
    %v7710 = vunpack.c.h.b16 %v6875
    %v7711 = vunpack.c.l.b16 %v6876
    %v7712 = vunpack.c.h.b16 %v6876
    %v7713 = vunpack.c.l.b16 %v6877
    %v7714 = vunpack.c.h.b16 %v6877
    %v7715 = vunpack.c.l.b16 %v6878
    %v7716 = vunpack.c.h.b16 %v6878
    %v7717 = vunpack.c.l.b16 %v6879
    %v7718 = vunpack.c.h.b16 %v6879
    %v7719 = vunpack.c.l.b16 %v6880
    %v7720 = vunpack.c.h.b16 %v6880
    %v7721 = vunpack.c.l.b16 %v6881
    %v7722 = vunpack.c.h.b16 %v6881
    %v7723 = vunpack.c.l.b16 %v6882
    %v7724 = vunpack.c.h.b16 %v6882
    %v7725 = vunpack.c.l.b16 %v6883
    %v7726 = vunpack.c.h.b16 %v6883
    %v7727 = vunpack.c.l.b16 %v6884
    %v7728 = vunpack.c.h.b16 %v6884
    %v7729 = vunpack.c.l.b16 %v6885
    %v7730 = vunpack.c.h.b16 %v6885
    %v7731 = vunpack.c.l.b16 %v6886
    %v7732 = vunpack.c.h.b16 %v6886
    %v7733 = vunpack.c.l.b16 %v6887
    %v7734 = vunpack.c.h.b16 %v6887
    %v7735 = vunpack.c.l.b16 %v6888
    %v7736 = vunpack.c.h.b16 %v6888
    %v7737 = vunpack.c.l.b16 %v6889
    %v7738 = vunpack.c.h.b16 %v6889
    %v7739 = vunpack.c.l.b16 %v6890
    %v7740 = vunpack.c.h.b16 %v6890
    %v7741 = vunpack.c.l.b16 %v6891
    %v7742 = vunpack.c.h.b16 %v6891
    %v7743 = vunpack.c.l.b16 %v6892
    %v7744 = vunpack.c.h.b16 %v6892
    %v7745 = vunpack.c.l.b16 %v6893
    %v7746 = vunpack.c.h.b16 %v6893
    %v7747 = vunpack.c.l.b16 %v6894
    %v7748 = vunpack.c.h.b16 %v6894
    %v7749 = vunpack.c.l.b16 %v6895
    %v7750 = vunpack.c.h.b16 %v6895
    %v7751 = vunpack.c.l.b16 %v6896
    %v7752 = vunpack.c.h.b16 %v6896
    %v7753 = vunpack.c.l.b16 %v6897
    %v7754 = vunpack.c.h.b16 %v6897
    %v7755 = vunpack.c.l.b16 %v6898
    %v7756 = vunpack.c.h.b16 %v6898
    %v7757 = vunpack.c.l.b16 %v6899
    %v7758 = vunpack.c.h.b16 %v6899
    %v7759 = vunpack.c.l.b16 %v6900
    %v7760 = vunpack.c.h.b16 %v6900
    %v7761 = vunpack.c.l.b16 %v6901
    %v7762 = vunpack.c.h.b16 %v6901
    %v7763 = vunpack.c.l.b16 %v6902
    %v7764 = vunpack.c.h.b16 %v6902
    %v7765 = vunpack.c.l.b16 %v6903
    %v7766 = vunpack.c.h.b16 %v6903
    %v7767 = vunpack.c.l.b16 %v6904
    %v7768 = vunpack.c.h.b16 %v6904
    %v7769 = vunpack.c.l.b16 %v6905
    %v7770 = vunpack.c.h.b16 %v6905
    %v7771 = vunpack.c.l.b16 %v6906
    %v7772 = vunpack.c.h.b16 %v6906
    %v7773 = vunpack.c.l.b16 %v6907
    %v7774 = vunpack.c.h.b16 %v6907
    %v7775 = vunpack.c.l.b16 %v6908
    %v7776 = vunpack.c.h.b16 %v6908
    %v7777 = vunpack.c.l.b16 %v6909
    %v7778 = vunpack.c.h.b16 %v6909
    %v7779 = vunpack.c.l.b16 %v6910
    %v7780 = vunpack.c.h.b16 %v6910
    %v7781 = vunpack.c.l.b16 %v6911
    %v7782 = vunpack.c.h.b16 %v6911
    %v7783 = vunpack.c.l.b16 %v6912
    %v7784 = vunpack.c.h.b16 %v6912
    %v7785 = vunpack.c.l.b16 %v6913
    %v7786 = vunpack.c.h.b16 %v6913
    %v7787 = vpack.c.b16 %v7539, %v7531
    %v7788 = vpack.c.b16 %v7540, %v7532
    %v7789 = vpack.c.b16 %v7541, %v7533
    %v7790 = vpack.c.b16 %v7542, %v7534
    %v7791 = vpack.c.b16 %v7543, %v7535
    %v7792 = vpack.c.b16 %v7544, %v7536
    %v7793 = vpack.c.b16 %v7545, %v7537
    %v7794 = vpack.c.b16 %v7546, %v7538
    %v7795 = vpack.c.b16 %v7555, %v7547
    %v7796 = vpack.c.b16 %v7556, %v7548
    %v7797 = vpack.c.b16 %v7557, %v7549
    %v7798 = vpack.c.b16 %v7558, %v7550
    %v7799 = vpack.c.b16 %v7559, %v7551
    %v7800 = vpack.c.b16 %v7560, %v7552
    %v7801 = vpack.c.b16 %v7561, %v7553
    %v7802 = vpack.c.b16 %v7562, %v7554
    %v7803 = vpack.c.b16 %v7571, %v7563
    %v7804 = vpack.c.b16 %v7572, %v7564
    %v7805 = vpack.c.b16 %v7573, %v7565
    %v7806 = vpack.c.b16 %v7574, %v7566
    %v7807 = vpack.c.b16 %v7575, %v7567
    %v7808 = vpack.c.b16 %v7576, %v7568
    %v7809 = vpack.c.b16 %v7577, %v7569
    %v7810 = vpack.c.b16 %v7578, %v7570
    %v7811 = vpack.c.b16 %v7587, %v7579
    %v7812 = vpack.c.b16 %v7588, %v7580
    %v7813 = vpack.c.b16 %v7589, %v7581
    %v7814 = vpack.c.b16 %v7590, %v7582
    %v7815 = vpack.c.b16 %v7591, %v7583
    %v7816 = vpack.c.b16 %v7592, %v7584
    %v7817 = vpack.c.b16 %v7593, %v7585
    %v7818 = vpack.c.b16 %v7594, %v7586
    %v7819 = vpack.c.b16 %v7603, %v7595
    %v7820 = vpack.c.b16 %v7604, %v7596
    %v7821 = vpack.c.b16 %v7605, %v7597
    %v7822 = vpack.c.b16 %v7606, %v7598
    %v7823 = vpack.c.b16 %v7607, %v7599
    %v7824 = vpack.c.b16 %v7608, %v7600
    %v7825 = vpack.c.b16 %v7609, %v7601
    %v7826 = vpack.c.b16 %v7610, %v7602
    %v7827 = vpack.c.b16 %v7619, %v7611
    %v7828 = vpack.c.b16 %v7620, %v7612
    %v7829 = vpack.c.b16 %v7621, %v7613
    %v7830 = vpack.c.b16 %v7622, %v7614
    %v7831 = vpack.c.b16 %v7623, %v7615
    %v7832 = vpack.c.b16 %v7624, %v7616
    %v7833 = vpack.c.b16 %v7625, %v7617
    %v7834 = vpack.c.b16 %v7626, %v7618
    %v7835 = vpack.c.b16 %v7635, %v7627
    %v7836 = vpack.c.b16 %v7636, %v7628
    %v7837 = vpack.c.b16 %v7637, %v7629
    %v7838 = vpack.c.b16 %v7638, %v7630
    %v7839 = vpack.c.b16 %v7639, %v7631
    %v7840 = vpack.c.b16 %v7640, %v7632
    %v7841 = vpack.c.b16 %v7641, %v7633
    %v7842 = vpack.c.b16 %v7642, %v7634
    %v7843 = vpack.c.b16 %v7651, %v7643
    %v7844 = vpack.c.b16 %v7652, %v7644
    %v7845 = vpack.c.b16 %v7653, %v7645
    %v7846 = vpack.c.b16 %v7654, %v7646
    %v7847 = vpack.c.b16 %v7655, %v7647
    %v7848 = vpack.c.b16 %v7656, %v7648
    %v7849 = vpack.c.b16 %v7657, %v7649
    %v7850 = vpack.c.b16 %v7658, %v7650
    %v7851 = vpack.c.b16 %v7667, %v7659
    %v7852 = vpack.c.b16 %v7668, %v7660
    %v7853 = vpack.c.b16 %v7669, %v7661
    %v7854 = vpack.c.b16 %v7670, %v7662
    %v7855 = vpack.c.b16 %v7671, %v7663
    %v7856 = vpack.c.b16 %v7672, %v7664
    %v7857 = vpack.c.b16 %v7673, %v7665
    %v7858 = vpack.c.b16 %v7674, %v7666
    %v7859 = vpack.c.b16 %v7683, %v7675
    %v7860 = vpack.c.b16 %v7684, %v7676
    %v7861 = vpack.c.b16 %v7685, %v7677
    %v7862 = vpack.c.b16 %v7686, %v7678
    %v7863 = vpack.c.b16 %v7687, %v7679
    %v7864 = vpack.c.b16 %v7688, %v7680
    %v7865 = vpack.c.b16 %v7689, %v7681
    %v7866 = vpack.c.b16 %v7690, %v7682
    %v7867 = vpack.c.b16 %v7699, %v7691
    %v7868 = vpack.c.b16 %v7700, %v7692
    %v7869 = vpack.c.b16 %v7701, %v7693
    %v7870 = vpack.c.b16 %v7702, %v7694
    %v7871 = vpack.c.b16 %v7703, %v7695
    %v7872 = vpack.c.b16 %v7704, %v7696
    %v7873 = vpack.c.b16 %v7705, %v7697
    %v7874 = vpack.c.b16 %v7706, %v7698
    %v7875 = vpack.c.b16 %v7715, %v7707
    %v7876 = vpack.c.b16 %v7716, %v7708
    %v7877 = vpack.c.b16 %v7717, %v7709
    %v7878 = vpack.c.b16 %v7718, %v7710
    %v7879 = vpack.c.b16 %v7719, %v7711
    %v7880 = vpack.c.b16 %v7720, %v7712
    %v7881 = vpack.c.b16 %v7721, %v7713
    %v7882 = vpack.c.b16 %v7722, %v7714
    %v7883 = vpack.c.b16 %v7731, %v7723
    %v7884 = vpack.c.b16 %v7732, %v7724
    %v7885 = vpack.c.b16 %v7733, %v7725
    %v7886 = vpack.c.b16 %v7734, %v7726
    %v7887 = vpack.c.b16 %v7735, %v7727
    %v7888 = vpack.c.b16 %v7736, %v7728
    %v7889 = vpack.c.b16 %v7737, %v7729
    %v7890 = vpack.c.b16 %v7738, %v7730
    %v7891 = vpack.c.b16 %v7747, %v7739
    %v7892 = vpack.c.b16 %v7748, %v7740
    %v7893 = vpack.c.b16 %v7749, %v7741
    %v7894 = vpack.c.b16 %v7750, %v7742
    %v7895 = vpack.c.b16 %v7751, %v7743
    %v7896 = vpack.c.b16 %v7752, %v7744
    %v7897 = vpack.c.b16 %v7753, %v7745
    %v7898 = vpack.c.b16 %v7754, %v7746
    %v7899 = vpack.c.b16 %v7763, %v7755
    %v7900 = vpack.c.b16 %v7764, %v7756
    %v7901 = vpack.c.b16 %v7765, %v7757
    %v7902 = vpack.c.b16 %v7766, %v7758
    %v7903 = vpack.c.b16 %v7767, %v7759
    %v7904 = vpack.c.b16 %v7768, %v7760
    %v7905 = vpack.c.b16 %v7769, %v7761
    %v7906 = vpack.c.b16 %v7770, %v7762
    %v7907 = vpack.c.b16 %v7779, %v7771
    %v7908 = vpack.c.b16 %v7780, %v7772
    %v7909 = vpack.c.b16 %v7781, %v7773
    %v7910 = vpack.c.b16 %v7782, %v7774
    %v7911 = vpack.c.b16 %v7783, %v7775
    %v7912 = vpack.c.b16 %v7784, %v7776
    %v7913 = vpack.c.b16 %v7785, %v7777
    %v7914 = vpack.c.b16 %v7786, %v7778
    %8043 = vmatpush.bf16.msra.mxu0 %v7843
    %8044 = vmatpush.bf16.msra.mxu0 %v7835
    %8045 = vmatpush.bf16.msra.mxu0 %v7827
    %8046 = vmatpush.bf16.msra.mxu0 %v7819
    %8047 = vmatpush.bf16.msra.mxu0 %v7811
    %8048 = vmatpush.bf16.msra.mxu0 %v7803
    %8049 = vmatpush.bf16.msra.mxu0 %v7795
    %8050 = vmatpush.bf16.msra.mxu0 %v7787
    %8051 = vmatmul.bf16.gmra.mxu0 %v6784
    %v8052 = vpop.f32.mrf.mxu0
    %v8053 = vadd.f32 %v7309, %v8052
    %v8054 = vpop.f32.mrf.mxu0
    %8055 = vdwg.mxu0
    %8056 = vmatpush.bf16.msra.mxu0 %v7907
    %8057 = vmatpush.bf16.msra.mxu0 %v7899
    %8058 = vmatpush.bf16.msra.mxu0 %v7891
    %8059 = vmatpush.bf16.msra.mxu0 %v7883
    %8060 = vmatpush.bf16.msra.mxu0 %v7875
    %8061 = vmatpush.bf16.msra.mxu0 %v7867
    %8062 = vmatpush.bf16.msra.mxu0 %v7859
    %8063 = vmatpush.bf16.msra.mxu0 %v7851
    %8064 = vmatmul.bf16.gmra.mxu0 %v6785
    %v8065 = vpop.f32.mrf.mxu0
    %v8066 = vadd.f32 %v8053, %v8065
    %v8067 = vpop.f32.mrf.mxu0
    %8068 = vdwg.mxu0
    %8069 = vmatpush.bf16.msra.mxu0 %v7844
    %8070 = vmatpush.bf16.msra.mxu0 %v7836
    %8071 = vmatpush.bf16.msra.mxu0 %v7828
    %8072 = vmatpush.bf16.msra.mxu0 %v7820
    %8073 = vmatpush.bf16.msra.mxu0 %v7812
    %8074 = vmatpush.bf16.msra.mxu0 %v7804
    %8075 = vmatpush.bf16.msra.mxu0 %v7796
    %8076 = vmatpush.bf16.msra.mxu0 %v7788
    %8077 = vmatmul.bf16.gmra.mxu0 %v6784
    %v8078 = vpop.f32.mrf.mxu0
    %v8079 = vadd.f32 %v7322, %v8078
    %v8080 = vpop.f32.mrf.mxu0
    %8081 = vdwg.mxu0
    %8082 = vmatpush.bf16.msra.mxu0 %v7908
    %8083 = vmatpush.bf16.msra.mxu0 %v7900
    %8084 = vmatpush.bf16.msra.mxu0 %v7892
    %8085 = vmatpush.bf16.msra.mxu0 %v7884
    %8086 = vmatpush.bf16.msra.mxu0 %v7876
    %8087 = vmatpush.bf16.msra.mxu0 %v7868
    %8088 = vmatpush.bf16.msra.mxu0 %v7860
    %8089 = vmatpush.bf16.msra.mxu0 %v7852
    %8090 = vmatmul.bf16.gmra.mxu0 %v6785
    %v8091 = vpop.f32.mrf.mxu0
    %v8092 = vadd.f32 %v8079, %v8091
    %v8093 = vpop.f32.mrf.mxu0
    %8094 = vdwg.mxu0
    %8095 = vmatpush.bf16.msra.mxu0 %v7845
    %8096 = vmatpush.bf16.msra.mxu0 %v7837
    %8097 = vmatpush.bf16.msra.mxu0 %v7829
    %8098 = vmatpush.bf16.msra.mxu0 %v7821
    %8099 = vmatpush.bf16.msra.mxu0 %v7813
    %8100 = vmatpush.bf16.msra.mxu0 %v7805
    %8101 = vmatpush.bf16.msra.mxu0 %v7797
    %8102 = vmatpush.bf16.msra.mxu0 %v7789
    %8103 = vmatmul.bf16.gmra.mxu0 %v6784
    %v8104 = vpop.f32.mrf.mxu0
    %v8105 = vadd.f32 %v7335, %v8104
    %v8106 = vpop.f32.mrf.mxu0
    %8107 = vdwg.mxu0
    %8108 = vmatpush.bf16.msra.mxu0 %v7909
    %8109 = vmatpush.bf16.msra.mxu0 %v7901
    %8110 = vmatpush.bf16.msra.mxu0 %v7893
    %8111 = vmatpush.bf16.msra.mxu0 %v7885
    %8112 = vmatpush.bf16.msra.mxu0 %v7877
    %8113 = vmatpush.bf16.msra.mxu0 %v7869
    %8114 = vmatpush.bf16.msra.mxu0 %v7861
    %8115 = vmatpush.bf16.msra.mxu0 %v7853
    %8116 = vmatmul.bf16.gmra.mxu0 %v6785
    %v8117 = vpop.f32.mrf.mxu0
    %v8118 = vadd.f32 %v8105, %v8117
    %v8119 = vpop.f32.mrf.mxu0
    %8120 = vdwg.mxu0
    %8121 = vmatpush.bf16.msra.mxu0 %v7846
    %8122 = vmatpush.bf16.msra.mxu0 %v7838
    %8123 = vmatpush.bf16.msra.mxu0 %v7830
    %8124 = vmatpush.bf16.msra.mxu0 %v7822
    %8125 = vmatpush.bf16.msra.mxu0 %v7814
    %8126 = vmatpush.bf16.msra.mxu0 %v7806
    %8127 = vmatpush.bf16.msra.mxu0 %v7798
    %8128 = vmatpush.bf16.msra.mxu0 %v7790
    %8129 = vmatmul.bf16.gmra.mxu0 %v6784
    %v8130 = vpop.f32.mrf.mxu0
    %v8131 = vadd.f32 %v7348, %v8130
    %v8132 = vpop.f32.mrf.mxu0
    %8133 = vdwg.mxu0
    %8134 = vmatpush.bf16.msra.mxu0 %v7910
    %8135 = vmatpush.bf16.msra.mxu0 %v7902
    %8136 = vmatpush.bf16.msra.mxu0 %v7894
    %8137 = vmatpush.bf16.msra.mxu0 %v7886
    %8138 = vmatpush.bf16.msra.mxu0 %v7878
    %8139 = vmatpush.bf16.msra.mxu0 %v7870
    %8140 = vmatpush.bf16.msra.mxu0 %v7862
    %8141 = vmatpush.bf16.msra.mxu0 %v7854
    %8142 = vmatmul.bf16.gmra.mxu0 %v6785
    %v8143 = vpop.f32.mrf.mxu0
    %v8144 = vadd.f32 %v8131, %v8143
    %v8145 = vpop.f32.mrf.mxu0
    %8146 = vdwg.mxu0
    %8147 = vmatpush.bf16.msra.mxu0 %v7847
    %8148 = vmatpush.bf16.msra.mxu0 %v7839
    %8149 = vmatpush.bf16.msra.mxu0 %v7831
    %8150 = vmatpush.bf16.msra.mxu0 %v7823
    %8151 = vmatpush.bf16.msra.mxu0 %v7815
    %8152 = vmatpush.bf16.msra.mxu0 %v7807
    %8153 = vmatpush.bf16.msra.mxu0 %v7799
    %8154 = vmatpush.bf16.msra.mxu0 %v7791
    %8155 = vmatmul.bf16.gmra.mxu0 %v6784
    %v8156 = vpop.f32.mrf.mxu0
    %v8157 = vadd.f32 %v7361, %v8156
    %v8158 = vpop.f32.mrf.mxu0
    %8159 = vdwg.mxu0
    %8160 = vmatpush.bf16.msra.mxu0 %v7911
    %8161 = vmatpush.bf16.msra.mxu0 %v7903
    %8162 = vmatpush.bf16.msra.mxu0 %v7895
    %8163 = vmatpush.bf16.msra.mxu0 %v7887
    %8164 = vmatpush.bf16.msra.mxu0 %v7879
    %8165 = vmatpush.bf16.msra.mxu0 %v7871
    %8166 = vmatpush.bf16.msra.mxu0 %v7863
    %8167 = vmatpush.bf16.msra.mxu0 %v7855
    %8168 = vmatmul.bf16.gmra.mxu0 %v6785
    %v8169 = vpop.f32.mrf.mxu0
    %v8170 = vadd.f32 %v8157, %v8169
    %v8171 = vpop.f32.mrf.mxu0
    %8172 = vdwg.mxu0
    %8173 = vmatpush.bf16.msra.mxu0 %v7848
    %8174 = vmatpush.bf16.msra.mxu0 %v7840
    %8175 = vmatpush.bf16.msra.mxu0 %v7832
    %8176 = vmatpush.bf16.msra.mxu0 %v7824
    %8177 = vmatpush.bf16.msra.mxu0 %v7816
    %8178 = vmatpush.bf16.msra.mxu0 %v7808
    %8179 = vmatpush.bf16.msra.mxu0 %v7800
    %8180 = vmatpush.bf16.msra.mxu0 %v7792
    %8181 = vmatmul.bf16.gmra.mxu0 %v6784
    %v8182 = vpop.f32.mrf.mxu0
    %v8183 = vadd.f32 %v7374, %v8182
    %v8184 = vpop.f32.mrf.mxu0
    %8185 = vdwg.mxu0
    %8186 = vmatpush.bf16.msra.mxu0 %v7912
    %8187 = vmatpush.bf16.msra.mxu0 %v7904
    %8188 = vmatpush.bf16.msra.mxu0 %v7896
    %8189 = vmatpush.bf16.msra.mxu0 %v7888
    %8190 = vmatpush.bf16.msra.mxu0 %v7880
    %8191 = vmatpush.bf16.msra.mxu0 %v7872
    %8192 = vmatpush.bf16.msra.mxu0 %v7864
    %8193 = vmatpush.bf16.msra.mxu0 %v7856
    %8194 = vmatmul.bf16.gmra.mxu0 %v6785
    %v8195 = vpop.f32.mrf.mxu0
    %v8196 = vadd.f32 %v8183, %v8195
    %v8197 = vpop.f32.mrf.mxu0
    %8198 = vdwg.mxu0
    %8199 = vmatpush.bf16.msra.mxu0 %v7849
    %8200 = vmatpush.bf16.msra.mxu0 %v7841
    %8201 = vmatpush.bf16.msra.mxu0 %v7833
    %8202 = vmatpush.bf16.msra.mxu0 %v7825
    %8203 = vmatpush.bf16.msra.mxu0 %v7817
    %8204 = vmatpush.bf16.msra.mxu0 %v7809
    %8205 = vmatpush.bf16.msra.mxu0 %v7801
    %8206 = vmatpush.bf16.msra.mxu0 %v7793
    %8207 = vmatmul.bf16.gmra.mxu0 %v6784
    %v8208 = vpop.f32.mrf.mxu0
    %v8209 = vadd.f32 %v7387, %v8208
    %v8210 = vpop.f32.mrf.mxu0
    %8211 = vdwg.mxu0
    %8212 = vmatpush.bf16.msra.mxu0 %v7913
    %8213 = vmatpush.bf16.msra.mxu0 %v7905
    %8214 = vmatpush.bf16.msra.mxu0 %v7897
    %8215 = vmatpush.bf16.msra.mxu0 %v7889
    %8216 = vmatpush.bf16.msra.mxu0 %v7881
    %8217 = vmatpush.bf16.msra.mxu0 %v7873
    %8218 = vmatpush.bf16.msra.mxu0 %v7865
    %8219 = vmatpush.bf16.msra.mxu0 %v7857
    %8220 = vmatmul.bf16.gmra.mxu0 %v6785
    %v8221 = vpop.f32.mrf.mxu0
    %v8222 = vadd.f32 %v8209, %v8221
    %v8223 = vpop.f32.mrf.mxu0
    %8224 = vdwg.mxu0
    %8225 = vmatpush.bf16.msra.mxu0 %v7850
    %8226 = vmatpush.bf16.msra.mxu0 %v7842
    %8227 = vmatpush.bf16.msra.mxu0 %v7834
    %8228 = vmatpush.bf16.msra.mxu0 %v7826
    %8229 = vmatpush.bf16.msra.mxu0 %v7818
    %8230 = vmatpush.bf16.msra.mxu0 %v7810
    %8231 = vmatpush.bf16.msra.mxu0 %v7802
    %8232 = vmatpush.bf16.msra.mxu0 %v7794
    %8233 = vmatmul.bf16.gmra.mxu0 %v6784
    %v8234 = vpop.f32.mrf.mxu0
    %v8235 = vadd.f32 %v7400, %v8234
    %v8236 = vpop.f32.mrf.mxu0
    %8237 = vdwg.mxu0
    %8238 = vmatpush.bf16.msra.mxu0 %v7914
    %8239 = vmatpush.bf16.msra.mxu0 %v7906
    %8240 = vmatpush.bf16.msra.mxu0 %v7898
    %8241 = vmatpush.bf16.msra.mxu0 %v7890
    %8242 = vmatpush.bf16.msra.mxu0 %v7882
    %8243 = vmatpush.bf16.msra.mxu0 %v7874
    %8244 = vmatpush.bf16.msra.mxu0 %v7866
    %8245 = vmatpush.bf16.msra.mxu0 %v7858
    %8246 = vmatmul.bf16.gmra.mxu0 %v6785
    %v8247 = vpop.f32.mrf.mxu0
    %v8248 = vadd.f32 %v8235, %v8247
    %v8249 = vpop.f32.mrf.mxu0
    %8250 = vdwg.mxu0
    %v8252 = vperm.slane %v169, 0
    %v8253 = vperm.slane %v169, 1
    %v8254 = vperm.slane %v169, 2
    %v8255 = vperm.slane %v169, 3
    %v8256 = vperm.slane %v169, 4
    %v8257 = vperm.slane %v169, 5
    %v8258 = vperm.slane %v169, 6
    %v8259 = vperm.slane %v169, 7
    %v8268 = vadd.f32 %v8066, %v8252
    %v8269 = vadd.f32 %v8092, %v8253
    %v8270 = vadd.f32 %v8118, %v8254
    %v8271 = vadd.f32 %v8144, %v8255
    %v8272 = vadd.f32 %v8170, %v8256
    %v8273 = vadd.f32 %v8196, %v8257
    %v8274 = vadd.f32 %v8222, %v8258
    %v8275 = vadd.f32 %v8248, %v8259
    %vm8276 = vcmp.gt.f32.partialorder %v8268, 0.0
    %vm8277 = vcmp.gt.f32.partialorder %v8269, 0.0
    %vm8278 = vcmp.gt.f32.partialorder %v8270, 0.0
    %vm8279 = vcmp.gt.f32.partialorder %v8271, 0.0
    %vm8280 = vcmp.gt.f32.partialorder %v8272, 0.0
    %vm8281 = vcmp.gt.f32.partialorder %v8273, 0.0
    %vm8282 = vcmp.gt.f32.partialorder %v8274, 0.0
    %vm8283 = vcmp.gt.f32.partialorder %v8275, 0.0
    %v8284 = vmin.f32 %v8268, 0.0
    %v8285 = vmin.f32 %v8269, 0.0
    %v8286 = vmin.f32 %v8270, 0.0
    %v8287 = vmin.f32 %v8271, 0.0
    %v8288 = vmin.f32 %v8272, 0.0
    %v8289 = vmin.f32 %v8273, 0.0
    %v8290 = vmin.f32 %v8274, 0.0
    %v8291 = vmin.f32 %v8275, 0.0
    %v8292 = vmul.f32 %v8284, 1.442695
    %v8293 = vpow.pop %v8292
    %v8294 = vmul.f32 %v8285, 1.442695
    %v8295 = vpow.pop %v8294
    %v8296 = vmul.f32 %v8286, 1.442695
    %v8297 = vpow.pop %v8296
    %v8298 = vmul.f32 %v8287, 1.442695
    %v8299 = vpow.pop %v8298
    %v8300 = vmul.f32 %v8288, 1.442695
    %v8301 = vpow.pop %v8300
    %v8302 = vmul.f32 %v8289, 1.442695
    %v8303 = vpow.pop %v8302
    %v8304 = vmul.f32 %v8290, 1.442695
    %v8305 = vpow.pop %v8304
    %v8306 = vmul.f32 %v8291, 1.442695
    %v8307 = vpow.pop %v8306
    %v8308 = vsub.f32 %v8293, 1.0
    %v8309 = vsub.f32 %v8295, 1.0
    %v8310 = vsub.f32 %v8297, 1.0
    %v8311 = vsub.f32 %v8299, 1.0
    %v8312 = vsub.f32 %v8301, 1.0
    %v8313 = vsub.f32 %v8303, 1.0
    %v8314 = vsub.f32 %v8305, 1.0
    %v8315 = vsub.f32 %v8307, 1.0
    %v8316 = vsel %vm8276, %v8268, %v8308
    %v8317 = vsel %vm8277, %v8269, %v8309
    %v8318 = vsel %vm8278, %v8270, %v8310
    %v8319 = vsel %vm8279, %v8271, %v8311
    %v8320 = vsel %vm8280, %v8272, %v8312
    %v8321 = vsel %vm8281, %v8273, %v8313
    %v8322 = vsel %vm8282, %v8274, %v8314
    %v8323 = vsel %vm8283, %v8275, %v8315
    %v8324 = vpack.c.bf16 %v8316, %v8316
    %v8325 = vpack.c.bf16 %v8317, %v8317
    %v8326 = vpack.c.bf16 %v8318, %v8318
    %v8327 = vpack.c.bf16 %v8319, %v8319
    %v8328 = vpack.c.bf16 %v8320, %v8320
    %v8329 = vpack.c.bf16 %v8321, %v8321
    %v8330 = vpack.c.bf16 %v8322, %v8322
    %v8331 = vpack.c.bf16 %v8323, %v8323
    %v8332 = vld [vmem:[#allocation12] sm:$0xff]
    %v8333 = vld [vmem:[#allocation12 + $0x8] sm:$0xff]
    %v8334 = vld [vmem:[#allocation12 + $0x10] sm:$0xff]
    %v8335 = vld [vmem:[#allocation12 + $0x18] sm:$0xff]
    %v8336 = vld [vmem:[#allocation12 + $0x20] sm:$0xff]
    %v8337 = vld [vmem:[#allocation12 + $0x28] sm:$0xff]
    %v8338 = vld [vmem:[#allocation12 + $0x30] sm:$0xff]
    %v8339 = vld [vmem:[#allocation12 + $0x38] sm:$0xff]
    %v8340 = vld [vmem:[#allocation12 + $0x40] sm:$0xff]
    %v8341 = vld [vmem:[#allocation12 + $0x48] sm:$0xff]
    %v8342 = vld [vmem:[#allocation12 + $0x50] sm:$0xff]
    %v8343 = vld [vmem:[#allocation12 + $0x58] sm:$0xff]
    %v8344 = vld [vmem:[#allocation12 + $0x60] sm:$0xff]
    %v8345 = vld [vmem:[#allocation12 + $0x68] sm:$0xff]
    %v8346 = vld [vmem:[#allocation12 + $0x70] sm:$0xff]
    %v8347 = vld [vmem:[#allocation12 + $0x78] sm:$0xff]
    %v8348 = vld [vmem:[#allocation12 + $0x80] sm:$0xff]
    %v8349 = vld [vmem:[#allocation12 + $0x88] sm:$0xff]
    %v8350 = vld [vmem:[#allocation12 + $0x90] sm:$0xff]
    %v8351 = vld [vmem:[#allocation12 + $0x98] sm:$0xff]
    %v8352 = vld [vmem:[#allocation12 + $0xa0] sm:$0xff]
    %v8353 = vld [vmem:[#allocation12 + $0xa8] sm:$0xff]
    %v8354 = vld [vmem:[#allocation12 + $0xb0] sm:$0xff]
    %v8355 = vld [vmem:[#allocation12 + $0xb8] sm:$0xff]
    %v8356 = vld [vmem:[#allocation12 + $0xc0] sm:$0xff]
    %v8357 = vld [vmem:[#allocation12 + $0xc8] sm:$0xff]
    %v8358 = vld [vmem:[#allocation12 + $0xd0] sm:$0xff]
    %v8359 = vld [vmem:[#allocation12 + $0xd8] sm:$0xff]
    %v8360 = vld [vmem:[#allocation12 + $0xe0] sm:$0xff]
    %v8361 = vld [vmem:[#allocation12 + $0xe8] sm:$0xff]
    %v8362 = vld [vmem:[#allocation12 + $0xf0] sm:$0xff]
    %v8363 = vld [vmem:[#allocation12 + $0xf8] sm:$0xff]
    %v8364 = vld [vmem:[#allocation12 + $0x100] sm:$0xff]
    %v8365 = vld [vmem:[#allocation12 + $0x108] sm:$0xff]
    %v8366 = vld [vmem:[#allocation12 + $0x110] sm:$0xff]
    %v8367 = vld [vmem:[#allocation12 + $0x118] sm:$0xff]
    %v8368 = vld [vmem:[#allocation12 + $0x120] sm:$0xff]
    %v8369 = vld [vmem:[#allocation12 + $0x128] sm:$0xff]
    %v8370 = vld [vmem:[#allocation12 + $0x130] sm:$0xff]
    %v8371 = vld [vmem:[#allocation12 + $0x138] sm:$0xff]
    %v8372 = vld [vmem:[#allocation12 + $0x140] sm:$0xff]
    %v8373 = vld [vmem:[#allocation12 + $0x148] sm:$0xff]
    %v8374 = vld [vmem:[#allocation12 + $0x150] sm:$0xff]
    %v8375 = vld [vmem:[#allocation12 + $0x158] sm:$0xff]
    %v8376 = vld [vmem:[#allocation12 + $0x160] sm:$0xff]
    %v8377 = vld [vmem:[#allocation12 + $0x168] sm:$0xff]
    %v8378 = vld [vmem:[#allocation12 + $0x170] sm:$0xff]
    %v8379 = vld [vmem:[#allocation12 + $0x178] sm:$0xff]
    %v8380 = vld [vmem:[#allocation12 + $0x180] sm:$0xff]
    %v8381 = vld [vmem:[#allocation12 + $0x188] sm:$0xff]
    %v8382 = vld [vmem:[#allocation12 + $0x190] sm:$0xff]
    %v8383 = vld [vmem:[#allocation12 + $0x198] sm:$0xff]
    %v8384 = vld [vmem:[#allocation12 + $0x1a0] sm:$0xff]
    %v8385 = vld [vmem:[#allocation12 + $0x1a8] sm:$0xff]
    %v8386 = vld [vmem:[#allocation12 + $0x1b0] sm:$0xff]
    %v8387 = vld [vmem:[#allocation12 + $0x1b8] sm:$0xff]
    %v8388 = vld [vmem:[#allocation12 + $0x1c0] sm:$0xff]
    %v8389 = vld [vmem:[#allocation12 + $0x1c8] sm:$0xff]
    %v8390 = vld [vmem:[#allocation12 + $0x1d0] sm:$0xff]
    %v8391 = vld [vmem:[#allocation12 + $0x1d8] sm:$0xff]
    %v8392 = vld [vmem:[#allocation12 + $0x1e0] sm:$0xff]
    %v8393 = vld [vmem:[#allocation12 + $0x1e8] sm:$0xff]
    %v8394 = vld [vmem:[#allocation12 + $0x1f0] sm:$0xff]
    %v8395 = vld [vmem:[#allocation12 + $0x1f8] sm:$0xff]
    %v8396 = vld [vmem:[#allocation12 + $0x200] sm:$0xff]
    %v8397 = vld [vmem:[#allocation12 + $0x208] sm:$0xff]
    %v8398 = vld [vmem:[#allocation12 + $0x210] sm:$0xff]
    %v8399 = vld [vmem:[#allocation12 + $0x218] sm:$0xff]
    %v8400 = vld [vmem:[#allocation12 + $0x220] sm:$0xff]
    %v8401 = vld [vmem:[#allocation12 + $0x228] sm:$0xff]
    %v8402 = vld [vmem:[#allocation12 + $0x230] sm:$0xff]
    %v8403 = vld [vmem:[#allocation12 + $0x238] sm:$0xff]
    %v8404 = vld [vmem:[#allocation12 + $0x240] sm:$0xff]
    %v8405 = vld [vmem:[#allocation12 + $0x248] sm:$0xff]
    %v8406 = vld [vmem:[#allocation12 + $0x250] sm:$0xff]
    %v8407 = vld [vmem:[#allocation12 + $0x258] sm:$0xff]
    %v8408 = vld [vmem:[#allocation12 + $0x260] sm:$0xff]
    %v8409 = vld [vmem:[#allocation12 + $0x268] sm:$0xff]
    %v8410 = vld [vmem:[#allocation12 + $0x270] sm:$0xff]
    %v8411 = vld [vmem:[#allocation12 + $0x278] sm:$0xff]
    %v8412 = vld [vmem:[#allocation12 + $0x280] sm:$0xff]
    %v8413 = vld [vmem:[#allocation12 + $0x288] sm:$0xff]
    %v8414 = vld [vmem:[#allocation12 + $0x290] sm:$0xff]
    %v8415 = vld [vmem:[#allocation12 + $0x298] sm:$0xff]
    %v8416 = vld [vmem:[#allocation12 + $0x2a0] sm:$0xff]
    %v8417 = vld [vmem:[#allocation12 + $0x2a8] sm:$0xff]
    %v8418 = vld [vmem:[#allocation12 + $0x2b0] sm:$0xff]
    %v8419 = vld [vmem:[#allocation12 + $0x2b8] sm:$0xff]
    %v8420 = vld [vmem:[#allocation12 + $0x2c0] sm:$0xff]
    %v8421 = vld [vmem:[#allocation12 + $0x2c8] sm:$0xff]
    %v8422 = vld [vmem:[#allocation12 + $0x2d0] sm:$0xff]
    %v8423 = vld [vmem:[#allocation12 + $0x2d8] sm:$0xff]
    %v8424 = vld [vmem:[#allocation12 + $0x2e0] sm:$0xff]
    %v8425 = vld [vmem:[#allocation12 + $0x2e8] sm:$0xff]
    %v8426 = vld [vmem:[#allocation12 + $0x2f0] sm:$0xff]
    %v8427 = vld [vmem:[#allocation12 + $0x2f8] sm:$0xff]
    %v8428 = vld [vmem:[#allocation12 + $0x300] sm:$0xff]
    %v8429 = vld [vmem:[#allocation12 + $0x308] sm:$0xff]
    %v8430 = vld [vmem:[#allocation12 + $0x310] sm:$0xff]
    %v8431 = vld [vmem:[#allocation12 + $0x318] sm:$0xff]
    %v8432 = vld [vmem:[#allocation12 + $0x320] sm:$0xff]
    %v8433 = vld [vmem:[#allocation12 + $0x328] sm:$0xff]
    %v8434 = vld [vmem:[#allocation12 + $0x330] sm:$0xff]
    %v8435 = vld [vmem:[#allocation12 + $0x338] sm:$0xff]
    %v8436 = vld [vmem:[#allocation12 + $0x340] sm:$0xff]
    %v8437 = vld [vmem:[#allocation12 + $0x348] sm:$0xff]
    %v8438 = vld [vmem:[#allocation12 + $0x350] sm:$0xff]
    %v8439 = vld [vmem:[#allocation12 + $0x358] sm:$0xff]
    %v8440 = vld [vmem:[#allocation12 + $0x360] sm:$0xff]
    %v8441 = vld [vmem:[#allocation12 + $0x368] sm:$0xff]
    %v8442 = vld [vmem:[#allocation12 + $0x370] sm:$0xff]
    %v8443 = vld [vmem:[#allocation12 + $0x378] sm:$0xff]
    %v8444 = vld [vmem:[#allocation12 + $0x380] sm:$0xff]
    %v8445 = vld [vmem:[#allocation12 + $0x388] sm:$0xff]
    %v8446 = vld [vmem:[#allocation12 + $0x390] sm:$0xff]
    %v8447 = vld [vmem:[#allocation12 + $0x398] sm:$0xff]
    %v8448 = vld [vmem:[#allocation12 + $0x3a0] sm:$0xff]
    %v8449 = vld [vmem:[#allocation12 + $0x3a8] sm:$0xff]
    %v8450 = vld [vmem:[#allocation12 + $0x3b0] sm:$0xff]
    %v8451 = vld [vmem:[#allocation12 + $0x3b8] sm:$0xff]
    %v8452 = vld [vmem:[#allocation12 + $0x3c0] sm:$0xff]
    %v8453 = vld [vmem:[#allocation12 + $0x3c8] sm:$0xff]
    %v8454 = vld [vmem:[#allocation12 + $0x3d0] sm:$0xff]
    %v8455 = vld [vmem:[#allocation12 + $0x3d8] sm:$0xff]
    %v8456 = vld [vmem:[#allocation12 + $0x3e0] sm:$0xff]
    %v8457 = vld [vmem:[#allocation12 + $0x3e8] sm:$0xff]
    %v8458 = vld [vmem:[#allocation12 + $0x3f0] sm:$0xff]
    %v8459 = vld [vmem:[#allocation12 + $0x3f8] sm:$0xff]
    %v8460 = vld [vmem:[#allocation12 + $0x400] sm:$0xff]
    %v8461 = vld [vmem:[#allocation12 + $0x408] sm:$0xff]
    %v8462 = vld [vmem:[#allocation12 + $0x410] sm:$0xff]
    %v8463 = vld [vmem:[#allocation12 + $0x418] sm:$0xff]
    %v8464 = vld [vmem:[#allocation12 + $0x420] sm:$0xff]
    %v8465 = vld [vmem:[#allocation12 + $0x428] sm:$0xff]
    %v8466 = vld [vmem:[#allocation12 + $0x430] sm:$0xff]
    %v8467 = vld [vmem:[#allocation12 + $0x438] sm:$0xff]
    %v8468 = vld [vmem:[#allocation12 + $0x440] sm:$0xff]
    %v8469 = vld [vmem:[#allocation12 + $0x448] sm:$0xff]
    %v8470 = vld [vmem:[#allocation12 + $0x450] sm:$0xff]
    %v8471 = vld [vmem:[#allocation12 + $0x458] sm:$0xff]
    %v8472 = vld [vmem:[#allocation12 + $0x460] sm:$0xff]
    %v8473 = vld [vmem:[#allocation12 + $0x468] sm:$0xff]
    %v8474 = vld [vmem:[#allocation12 + $0x470] sm:$0xff]
    %v8475 = vld [vmem:[#allocation12 + $0x478] sm:$0xff]
    %v8476 = vld [vmem:[#allocation12 + $0x480] sm:$0xff]
    %v8477 = vld [vmem:[#allocation12 + $0x488] sm:$0xff]
    %v8478 = vld [vmem:[#allocation12 + $0x490] sm:$0xff]
    %v8479 = vld [vmem:[#allocation12 + $0x498] sm:$0xff]
    %v8480 = vld [vmem:[#allocation12 + $0x4a0] sm:$0xff]
    %v8481 = vld [vmem:[#allocation12 + $0x4a8] sm:$0xff]
    %v8482 = vld [vmem:[#allocation12 + $0x4b0] sm:$0xff]
    %v8483 = vld [vmem:[#allocation12 + $0x4b8] sm:$0xff]
    %v8484 = vld [vmem:[#allocation12 + $0x4c0] sm:$0xff]
    %v8485 = vld [vmem:[#allocation12 + $0x4c8] sm:$0xff]
    %v8486 = vld [vmem:[#allocation12 + $0x4d0] sm:$0xff]
    %v8487 = vld [vmem:[#allocation12 + $0x4d8] sm:$0xff]
    %v8488 = vld [vmem:[#allocation12 + $0x4e0] sm:$0xff]
    %v8489 = vld [vmem:[#allocation12 + $0x4e8] sm:$0xff]
    %v8490 = vld [vmem:[#allocation12 + $0x4f0] sm:$0xff]
    %v8491 = vld [vmem:[#allocation12 + $0x4f8] sm:$0xff]
    %v8492 = vld [vmem:[#allocation12 + $0x500] sm:$0xff]
    %v8493 = vld [vmem:[#allocation12 + $0x508] sm:$0xff]
    %v8494 = vld [vmem:[#allocation12 + $0x510] sm:$0xff]
    %v8495 = vld [vmem:[#allocation12 + $0x518] sm:$0xff]
    %v8496 = vld [vmem:[#allocation12 + $0x520] sm:$0xff]
    %v8497 = vld [vmem:[#allocation12 + $0x528] sm:$0xff]
    %v8498 = vld [vmem:[#allocation12 + $0x530] sm:$0xff]
    %v8499 = vld [vmem:[#allocation12 + $0x538] sm:$0xff]
    %v8500 = vld [vmem:[#allocation12 + $0x540] sm:$0xff]
    %v8501 = vld [vmem:[#allocation12 + $0x548] sm:$0xff]
    %v8502 = vld [vmem:[#allocation12 + $0x550] sm:$0xff]
    %v8503 = vld [vmem:[#allocation12 + $0x558] sm:$0xff]
    %v8504 = vld [vmem:[#allocation12 + $0x560] sm:$0xff]
    %v8505 = vld [vmem:[#allocation12 + $0x568] sm:$0xff]
    %v8506 = vld [vmem:[#allocation12 + $0x570] sm:$0xff]
    %v8507 = vld [vmem:[#allocation12 + $0x578] sm:$0xff]
    %v8508 = vld [vmem:[#allocation12 + $0x580] sm:$0xff]
    %v8509 = vld [vmem:[#allocation12 + $0x588] sm:$0xff]
    %v8510 = vld [vmem:[#allocation12 + $0x590] sm:$0xff]
    %v8511 = vld [vmem:[#allocation12 + $0x598] sm:$0xff]
    %v8512 = vld [vmem:[#allocation12 + $0x5a0] sm:$0xff]
    %v8513 = vld [vmem:[#allocation12 + $0x5a8] sm:$0xff]
    %v8514 = vld [vmem:[#allocation12 + $0x5b0] sm:$0xff]
    %v8515 = vld [vmem:[#allocation12 + $0x5b8] sm:$0xff]
    %v8516 = vld [vmem:[#allocation12 + $0x5c0] sm:$0xff]
    %v8517 = vld [vmem:[#allocation12 + $0x5c8] sm:$0xff]
    %v8518 = vld [vmem:[#allocation12 + $0x5d0] sm:$0xff]
    %v8519 = vld [vmem:[#allocation12 + $0x5d8] sm:$0xff]
    %v8520 = vld [vmem:[#allocation12 + $0x5e0] sm:$0xff]
    %v8521 = vld [vmem:[#allocation12 + $0x5e8] sm:$0xff]
    %v8522 = vld [vmem:[#allocation12 + $0x5f0] sm:$0xff]
    %v8523 = vld [vmem:[#allocation12 + $0x5f8] sm:$0xff]
    %v8524 = vld [vmem:[#allocation12 + $0x600] sm:$0xff]
    %v8525 = vld [vmem:[#allocation12 + $0x608] sm:$0xff]
    %v8526 = vld [vmem:[#allocation12 + $0x610] sm:$0xff]
    %v8527 = vld [vmem:[#allocation12 + $0x618] sm:$0xff]
    %v8528 = vld [vmem:[#allocation12 + $0x620] sm:$0xff]
    %v8529 = vld [vmem:[#allocation12 + $0x628] sm:$0xff]
    %v8530 = vld [vmem:[#allocation12 + $0x630] sm:$0xff]
    %v8531 = vld [vmem:[#allocation12 + $0x638] sm:$0xff]
    %v8532 = vld [vmem:[#allocation12 + $0x640] sm:$0xff]
    %v8533 = vld [vmem:[#allocation12 + $0x648] sm:$0xff]
    %v8534 = vld [vmem:[#allocation12 + $0x650] sm:$0xff]
    %v8535 = vld [vmem:[#allocation12 + $0x658] sm:$0xff]
    %v8536 = vld [vmem:[#allocation12 + $0x660] sm:$0xff]
    %v8537 = vld [vmem:[#allocation12 + $0x668] sm:$0xff]
    %v8538 = vld [vmem:[#allocation12 + $0x670] sm:$0xff]
    %v8539 = vld [vmem:[#allocation12 + $0x678] sm:$0xff]
    %v8540 = vld [vmem:[#allocation12 + $0x680] sm:$0xff]
    %v8541 = vld [vmem:[#allocation12 + $0x688] sm:$0xff]
    %v8542 = vld [vmem:[#allocation12 + $0x690] sm:$0xff]
    %v8543 = vld [vmem:[#allocation12 + $0x698] sm:$0xff]
    %v8544 = vld [vmem:[#allocation12 + $0x6a0] sm:$0xff]
    %v8545 = vld [vmem:[#allocation12 + $0x6a8] sm:$0xff]
    %v8546 = vld [vmem:[#allocation12 + $0x6b0] sm:$0xff]
    %v8547 = vld [vmem:[#allocation12 + $0x6b8] sm:$0xff]
    %v8548 = vld [vmem:[#allocation12 + $0x6c0] sm:$0xff]
    %v8549 = vld [vmem:[#allocation12 + $0x6c8] sm:$0xff]
    %v8550 = vld [vmem:[#allocation12 + $0x6d0] sm:$0xff]
    %v8551 = vld [vmem:[#allocation12 + $0x6d8] sm:$0xff]
    %v8552 = vld [vmem:[#allocation12 + $0x6e0] sm:$0xff]
    %v8553 = vld [vmem:[#allocation12 + $0x6e8] sm:$0xff]
    %v8554 = vld [vmem:[#allocation12 + $0x6f0] sm:$0xff]
    %v8555 = vld [vmem:[#allocation12 + $0x6f8] sm:$0xff]
    %v8556 = vld [vmem:[#allocation12 + $0x700] sm:$0xff]
    %v8557 = vld [vmem:[#allocation12 + $0x708] sm:$0xff]
    %v8558 = vld [vmem:[#allocation12 + $0x710] sm:$0xff]
    %v8559 = vld [vmem:[#allocation12 + $0x718] sm:$0xff]
    %v8560 = vld [vmem:[#allocation12 + $0x720] sm:$0xff]
    %v8561 = vld [vmem:[#allocation12 + $0x728] sm:$0xff]
    %v8562 = vld [vmem:[#allocation12 + $0x730] sm:$0xff]
    %v8563 = vld [vmem:[#allocation12 + $0x738] sm:$0xff]
    %v8564 = vld [vmem:[#allocation12 + $0x740] sm:$0xff]
    %v8565 = vld [vmem:[#allocation12 + $0x748] sm:$0xff]
    %v8566 = vld [vmem:[#allocation12 + $0x750] sm:$0xff]
    %v8567 = vld [vmem:[#allocation12 + $0x758] sm:$0xff]
    %v8568 = vld [vmem:[#allocation12 + $0x760] sm:$0xff]
    %v8569 = vld [vmem:[#allocation12 + $0x768] sm:$0xff]
    %v8570 = vld [vmem:[#allocation12 + $0x770] sm:$0xff]
    %v8571 = vld [vmem:[#allocation12 + $0x778] sm:$0xff]
    %v8572 = vld [vmem:[#allocation12 + $0x780] sm:$0xff]
    %v8573 = vld [vmem:[#allocation12 + $0x788] sm:$0xff]
    %v8574 = vld [vmem:[#allocation12 + $0x790] sm:$0xff]
    %v8575 = vld [vmem:[#allocation12 + $0x798] sm:$0xff]
    %v8576 = vld [vmem:[#allocation12 + $0x7a0] sm:$0xff]
    %v8577 = vld [vmem:[#allocation12 + $0x7a8] sm:$0xff]
    %v8578 = vld [vmem:[#allocation12 + $0x7b0] sm:$0xff]
    %v8579 = vld [vmem:[#allocation12 + $0x7b8] sm:$0xff]
    %v8580 = vld [vmem:[#allocation12 + $0x7c0] sm:$0xff]
    %v8581 = vld [vmem:[#allocation12 + $0x7c8] sm:$0xff]
    %v8582 = vld [vmem:[#allocation12 + $0x7d0] sm:$0xff]
    %v8583 = vld [vmem:[#allocation12 + $0x7d8] sm:$0xff]
    %v8584 = vld [vmem:[#allocation12 + $0x7e0] sm:$0xff]
    %v8585 = vld [vmem:[#allocation12 + $0x7e8] sm:$0xff]
    %v8586 = vld [vmem:[#allocation12 + $0x7f0] sm:$0xff]
    %v8587 = vld [vmem:[#allocation12 + $0x7f8] sm:$0xff]
    %v8589 = vperm.slane %v171, 0
    %v8590 = vperm.slane %v171, 1
    %v8591 = vperm.slane %v171, 2
    %v8592 = vperm.slane %v171, 3
    %v8853 = vunpack.c.l.b16 %v8332
    %v8854 = vunpack.c.h.b16 %v8332
    %v8855 = vunpack.c.l.b16 %v8333
    %v8856 = vunpack.c.h.b16 %v8333
    %v8857 = vunpack.c.l.b16 %v8334
    %v8858 = vunpack.c.h.b16 %v8334
    %v8859 = vunpack.c.l.b16 %v8335
    %v8860 = vunpack.c.h.b16 %v8335
    %v8861 = vunpack.c.l.b16 %v8336
    %v8862 = vunpack.c.h.b16 %v8336
    %v8863 = vunpack.c.l.b16 %v8337
    %v8864 = vunpack.c.h.b16 %v8337
    %v8865 = vunpack.c.l.b16 %v8338
    %v8866 = vunpack.c.h.b16 %v8338
    %v8867 = vunpack.c.l.b16 %v8339
    %v8868 = vunpack.c.h.b16 %v8339
    %v8869 = vunpack.c.l.b16 %v8340
    %v8870 = vunpack.c.h.b16 %v8340
    %v8871 = vunpack.c.l.b16 %v8341
    %v8872 = vunpack.c.h.b16 %v8341
    %v8873 = vunpack.c.l.b16 %v8342
    %v8874 = vunpack.c.h.b16 %v8342
    %v8875 = vunpack.c.l.b16 %v8343
    %v8876 = vunpack.c.h.b16 %v8343
    %v8877 = vunpack.c.l.b16 %v8344
    %v8878 = vunpack.c.h.b16 %v8344
    %v8879 = vunpack.c.l.b16 %v8345
    %v8880 = vunpack.c.h.b16 %v8345
    %v8881 = vunpack.c.l.b16 %v8346
    %v8882 = vunpack.c.h.b16 %v8346
    %v8883 = vunpack.c.l.b16 %v8347
    %v8884 = vunpack.c.h.b16 %v8347
    %v8885 = vunpack.c.l.b16 %v8348
    %v8886 = vunpack.c.h.b16 %v8348
    %v8887 = vunpack.c.l.b16 %v8349
    %v8888 = vunpack.c.h.b16 %v8349
    %v8889 = vunpack.c.l.b16 %v8350
    %v8890 = vunpack.c.h.b16 %v8350
    %v8891 = vunpack.c.l.b16 %v8351
    %v8892 = vunpack.c.h.b16 %v8351
    %v8893 = vunpack.c.l.b16 %v8352
    %v8894 = vunpack.c.h.b16 %v8352
    %v8895 = vunpack.c.l.b16 %v8353
    %v8896 = vunpack.c.h.b16 %v8353
    %v8897 = vunpack.c.l.b16 %v8354
    %v8898 = vunpack.c.h.b16 %v8354
    %v8899 = vunpack.c.l.b16 %v8355
    %v8900 = vunpack.c.h.b16 %v8355
    %v8901 = vunpack.c.l.b16 %v8356
    %v8902 = vunpack.c.h.b16 %v8356
    %v8903 = vunpack.c.l.b16 %v8357
    %v8904 = vunpack.c.h.b16 %v8357
    %v8905 = vunpack.c.l.b16 %v8358
    %v8906 = vunpack.c.h.b16 %v8358
    %v8907 = vunpack.c.l.b16 %v8359
    %v8908 = vunpack.c.h.b16 %v8359
    %v8909 = vunpack.c.l.b16 %v8360
    %v8910 = vunpack.c.h.b16 %v8360
    %v8911 = vunpack.c.l.b16 %v8361
    %v8912 = vunpack.c.h.b16 %v8361
    %v8913 = vunpack.c.l.b16 %v8362
    %v8914 = vunpack.c.h.b16 %v8362
    %v8915 = vunpack.c.l.b16 %v8363
    %v8916 = vunpack.c.h.b16 %v8363
    %v8917 = vunpack.c.l.b16 %v8364
    %v8918 = vunpack.c.h.b16 %v8364
    %v8919 = vunpack.c.l.b16 %v8365
    %v8920 = vunpack.c.h.b16 %v8365
    %v8921 = vunpack.c.l.b16 %v8366
    %v8922 = vunpack.c.h.b16 %v8366
    %v8923 = vunpack.c.l.b16 %v8367
    %v8924 = vunpack.c.h.b16 %v8367
    %v8925 = vunpack.c.l.b16 %v8368
    %v8926 = vunpack.c.h.b16 %v8368
    %v8927 = vunpack.c.l.b16 %v8369
    %v8928 = vunpack.c.h.b16 %v8369
    %v8929 = vunpack.c.l.b16 %v8370
    %v8930 = vunpack.c.h.b16 %v8370
    %v8931 = vunpack.c.l.b16 %v8371
    %v8932 = vunpack.c.h.b16 %v8371
    %v8933 = vunpack.c.l.b16 %v8372
    %v8934 = vunpack.c.h.b16 %v8372
    %v8935 = vunpack.c.l.b16 %v8373
    %v8936 = vunpack.c.h.b16 %v8373
    %v8937 = vunpack.c.l.b16 %v8374
    %v8938 = vunpack.c.h.b16 %v8374
    %v8939 = vunpack.c.l.b16 %v8375
    %v8940 = vunpack.c.h.b16 %v8375
    %v8941 = vunpack.c.l.b16 %v8376
    %v8942 = vunpack.c.h.b16 %v8376
    %v8943 = vunpack.c.l.b16 %v8377
    %v8944 = vunpack.c.h.b16 %v8377
    %v8945 = vunpack.c.l.b16 %v8378
    %v8946 = vunpack.c.h.b16 %v8378
    %v8947 = vunpack.c.l.b16 %v8379
    %v8948 = vunpack.c.h.b16 %v8379
    %v8949 = vunpack.c.l.b16 %v8380
    %v8950 = vunpack.c.h.b16 %v8380
    %v8951 = vunpack.c.l.b16 %v8381
    %v8952 = vunpack.c.h.b16 %v8381
    %v8953 = vunpack.c.l.b16 %v8382
    %v8954 = vunpack.c.h.b16 %v8382
    %v8955 = vunpack.c.l.b16 %v8383
    %v8956 = vunpack.c.h.b16 %v8383
    %v8957 = vunpack.c.l.b16 %v8384
    %v8958 = vunpack.c.h.b16 %v8384
    %v8959 = vunpack.c.l.b16 %v8385
    %v8960 = vunpack.c.h.b16 %v8385
    %v8961 = vunpack.c.l.b16 %v8386
    %v8962 = vunpack.c.h.b16 %v8386
    %v8963 = vunpack.c.l.b16 %v8387
    %v8964 = vunpack.c.h.b16 %v8387
    %v8965 = vunpack.c.l.b16 %v8388
    %v8966 = vunpack.c.h.b16 %v8388
    %v8967 = vunpack.c.l.b16 %v8389
    %v8968 = vunpack.c.h.b16 %v8389
    %v8969 = vunpack.c.l.b16 %v8390
    %v8970 = vunpack.c.h.b16 %v8390
    %v8971 = vunpack.c.l.b16 %v8391
    %v8972 = vunpack.c.h.b16 %v8391
    %v8973 = vunpack.c.l.b16 %v8392
    %v8974 = vunpack.c.h.b16 %v8392
    %v8975 = vunpack.c.l.b16 %v8393
    %v8976 = vunpack.c.h.b16 %v8393
    %v8977 = vunpack.c.l.b16 %v8394
    %v8978 = vunpack.c.h.b16 %v8394
    %v8979 = vunpack.c.l.b16 %v8395
    %v8980 = vunpack.c.h.b16 %v8395
    %v8981 = vunpack.c.l.b16 %v8396
    %v8982 = vunpack.c.h.b16 %v8396
    %v8983 = vunpack.c.l.b16 %v8397
    %v8984 = vunpack.c.h.b16 %v8397
    %v8985 = vunpack.c.l.b16 %v8398
    %v8986 = vunpack.c.h.b16 %v8398
    %v8987 = vunpack.c.l.b16 %v8399
    %v8988 = vunpack.c.h.b16 %v8399
    %v8989 = vunpack.c.l.b16 %v8400
    %v8990 = vunpack.c.h.b16 %v8400
    %v8991 = vunpack.c.l.b16 %v8401
    %v8992 = vunpack.c.h.b16 %v8401
    %v8993 = vunpack.c.l.b16 %v8402
    %v8994 = vunpack.c.h.b16 %v8402
    %v8995 = vunpack.c.l.b16 %v8403
    %v8996 = vunpack.c.h.b16 %v8403
    %v8997 = vunpack.c.l.b16 %v8404
    %v8998 = vunpack.c.h.b16 %v8404
    %v8999 = vunpack.c.l.b16 %v8405
    %v9000 = vunpack.c.h.b16 %v8405
    %v9001 = vunpack.c.l.b16 %v8406
    %v9002 = vunpack.c.h.b16 %v8406
    %v9003 = vunpack.c.l.b16 %v8407
    %v9004 = vunpack.c.h.b16 %v8407
    %v9005 = vunpack.c.l.b16 %v8408
    %v9006 = vunpack.c.h.b16 %v8408
    %v9007 = vunpack.c.l.b16 %v8409
    %v9008 = vunpack.c.h.b16 %v8409
    %v9009 = vunpack.c.l.b16 %v8410
    %v9010 = vunpack.c.h.b16 %v8410
    %v9011 = vunpack.c.l.b16 %v8411
    %v9012 = vunpack.c.h.b16 %v8411
    %v9013 = vunpack.c.l.b16 %v8412
    %v9014 = vunpack.c.h.b16 %v8412
    %v9015 = vunpack.c.l.b16 %v8413
    %v9016 = vunpack.c.h.b16 %v8413
    %v9017 = vunpack.c.l.b16 %v8414
    %v9018 = vunpack.c.h.b16 %v8414
    %v9019 = vunpack.c.l.b16 %v8415
    %v9020 = vunpack.c.h.b16 %v8415
    %v9021 = vunpack.c.l.b16 %v8416
    %v9022 = vunpack.c.h.b16 %v8416
    %v9023 = vunpack.c.l.b16 %v8417
    %v9024 = vunpack.c.h.b16 %v8417
    %v9025 = vunpack.c.l.b16 %v8418
    %v9026 = vunpack.c.h.b16 %v8418
    %v9027 = vunpack.c.l.b16 %v8419
    %v9028 = vunpack.c.h.b16 %v8419
    %v9029 = vunpack.c.l.b16 %v8420
    %v9030 = vunpack.c.h.b16 %v8420
    %v9031 = vunpack.c.l.b16 %v8421
    %v9032 = vunpack.c.h.b16 %v8421
    %v9033 = vunpack.c.l.b16 %v8422
    %v9034 = vunpack.c.h.b16 %v8422
    %v9035 = vunpack.c.l.b16 %v8423
    %v9036 = vunpack.c.h.b16 %v8423
    %v9037 = vunpack.c.l.b16 %v8424
    %v9038 = vunpack.c.h.b16 %v8424
    %v9039 = vunpack.c.l.b16 %v8425
    %v9040 = vunpack.c.h.b16 %v8425
    %v9041 = vunpack.c.l.b16 %v8426
    %v9042 = vunpack.c.h.b16 %v8426
    %v9043 = vunpack.c.l.b16 %v8427
    %v9044 = vunpack.c.h.b16 %v8427
    %v9045 = vunpack.c.l.b16 %v8428
    %v9046 = vunpack.c.h.b16 %v8428
    %v9047 = vunpack.c.l.b16 %v8429
    %v9048 = vunpack.c.h.b16 %v8429
    %v9049 = vunpack.c.l.b16 %v8430
    %v9050 = vunpack.c.h.b16 %v8430
    %v9051 = vunpack.c.l.b16 %v8431
    %v9052 = vunpack.c.h.b16 %v8431
    %v9053 = vunpack.c.l.b16 %v8432
    %v9054 = vunpack.c.h.b16 %v8432
    %v9055 = vunpack.c.l.b16 %v8433
    %v9056 = vunpack.c.h.b16 %v8433
    %v9057 = vunpack.c.l.b16 %v8434
    %v9058 = vunpack.c.h.b16 %v8434
    %v9059 = vunpack.c.l.b16 %v8435
    %v9060 = vunpack.c.h.b16 %v8435
    %v9061 = vunpack.c.l.b16 %v8436
    %v9062 = vunpack.c.h.b16 %v8436
    %v9063 = vunpack.c.l.b16 %v8437
    %v9064 = vunpack.c.h.b16 %v8437
    %v9065 = vunpack.c.l.b16 %v8438
    %v9066 = vunpack.c.h.b16 %v8438
    %v9067 = vunpack.c.l.b16 %v8439
    %v9068 = vunpack.c.h.b16 %v8439
    %v9069 = vunpack.c.l.b16 %v8440
    %v9070 = vunpack.c.h.b16 %v8440
    %v9071 = vunpack.c.l.b16 %v8441
    %v9072 = vunpack.c.h.b16 %v8441
    %v9073 = vunpack.c.l.b16 %v8442
    %v9074 = vunpack.c.h.b16 %v8442
    %v9075 = vunpack.c.l.b16 %v8443
    %v9076 = vunpack.c.h.b16 %v8443
    %v9077 = vunpack.c.l.b16 %v8444
    %v9078 = vunpack.c.h.b16 %v8444
    %v9079 = vunpack.c.l.b16 %v8445
    %v9080 = vunpack.c.h.b16 %v8445
    %v9081 = vunpack.c.l.b16 %v8446
    %v9082 = vunpack.c.h.b16 %v8446
    %v9083 = vunpack.c.l.b16 %v8447
    %v9084 = vunpack.c.h.b16 %v8447
    %v9085 = vunpack.c.l.b16 %v8448
    %v9086 = vunpack.c.h.b16 %v8448
    %v9087 = vunpack.c.l.b16 %v8449
    %v9088 = vunpack.c.h.b16 %v8449
    %v9089 = vunpack.c.l.b16 %v8450
    %v9090 = vunpack.c.h.b16 %v8450
    %v9091 = vunpack.c.l.b16 %v8451
    %v9092 = vunpack.c.h.b16 %v8451
    %v9093 = vunpack.c.l.b16 %v8452
    %v9094 = vunpack.c.h.b16 %v8452
    %v9095 = vunpack.c.l.b16 %v8453
    %v9096 = vunpack.c.h.b16 %v8453
    %v9097 = vunpack.c.l.b16 %v8454
    %v9098 = vunpack.c.h.b16 %v8454
    %v9099 = vunpack.c.l.b16 %v8455
    %v9100 = vunpack.c.h.b16 %v8455
    %v9101 = vunpack.c.l.b16 %v8456
    %v9102 = vunpack.c.h.b16 %v8456
    %v9103 = vunpack.c.l.b16 %v8457
    %v9104 = vunpack.c.h.b16 %v8457
    %v9105 = vunpack.c.l.b16 %v8458
    %v9106 = vunpack.c.h.b16 %v8458
    %v9107 = vunpack.c.l.b16 %v8459
    %v9108 = vunpack.c.h.b16 %v8459
    %v9109 = vunpack.c.l.b16 %v8460
    %v9110 = vunpack.c.h.b16 %v8460
    %v9111 = vunpack.c.l.b16 %v8461
    %v9112 = vunpack.c.h.b16 %v8461
    %v9113 = vunpack.c.l.b16 %v8462
    %v9114 = vunpack.c.h.b16 %v8462
    %v9115 = vunpack.c.l.b16 %v8463
    %v9116 = vunpack.c.h.b16 %v8463
    %v9117 = vunpack.c.l.b16 %v8464
    %v9118 = vunpack.c.h.b16 %v8464
    %v9119 = vunpack.c.l.b16 %v8465
    %v9120 = vunpack.c.h.b16 %v8465
    %v9121 = vunpack.c.l.b16 %v8466
    %v9122 = vunpack.c.h.b16 %v8466
    %v9123 = vunpack.c.l.b16 %v8467
    %v9124 = vunpack.c.h.b16 %v8467
    %v9125 = vunpack.c.l.b16 %v8468
    %v9126 = vunpack.c.h.b16 %v8468
    %v9127 = vunpack.c.l.b16 %v8469
    %v9128 = vunpack.c.h.b16 %v8469
    %v9129 = vunpack.c.l.b16 %v8470
    %v9130 = vunpack.c.h.b16 %v8470
    %v9131 = vunpack.c.l.b16 %v8471
    %v9132 = vunpack.c.h.b16 %v8471
    %v9133 = vunpack.c.l.b16 %v8472
    %v9134 = vunpack.c.h.b16 %v8472
    %v9135 = vunpack.c.l.b16 %v8473
    %v9136 = vunpack.c.h.b16 %v8473
    %v9137 = vunpack.c.l.b16 %v8474
    %v9138 = vunpack.c.h.b16 %v8474
    %v9139 = vunpack.c.l.b16 %v8475
    %v9140 = vunpack.c.h.b16 %v8475
    %v9141 = vunpack.c.l.b16 %v8476
    %v9142 = vunpack.c.h.b16 %v8476
    %v9143 = vunpack.c.l.b16 %v8477
    %v9144 = vunpack.c.h.b16 %v8477
    %v9145 = vunpack.c.l.b16 %v8478
    %v9146 = vunpack.c.h.b16 %v8478
    %v9147 = vunpack.c.l.b16 %v8479
    %v9148 = vunpack.c.h.b16 %v8479
    %v9149 = vunpack.c.l.b16 %v8480
    %v9150 = vunpack.c.h.b16 %v8480
    %v9151 = vunpack.c.l.b16 %v8481
    %v9152 = vunpack.c.h.b16 %v8481
    %v9153 = vunpack.c.l.b16 %v8482
    %v9154 = vunpack.c.h.b16 %v8482
    %v9155 = vunpack.c.l.b16 %v8483
    %v9156 = vunpack.c.h.b16 %v8483
    %v9157 = vunpack.c.l.b16 %v8484
    %v9158 = vunpack.c.h.b16 %v8484
    %v9159 = vunpack.c.l.b16 %v8485
    %v9160 = vunpack.c.h.b16 %v8485
    %v9161 = vunpack.c.l.b16 %v8486
    %v9162 = vunpack.c.h.b16 %v8486
    %v9163 = vunpack.c.l.b16 %v8487
    %v9164 = vunpack.c.h.b16 %v8487
    %v9165 = vunpack.c.l.b16 %v8488
    %v9166 = vunpack.c.h.b16 %v8488
    %v9167 = vunpack.c.l.b16 %v8489
    %v9168 = vunpack.c.h.b16 %v8489
    %v9169 = vunpack.c.l.b16 %v8490
    %v9170 = vunpack.c.h.b16 %v8490
    %v9171 = vunpack.c.l.b16 %v8491
    %v9172 = vunpack.c.h.b16 %v8491
    %v9173 = vunpack.c.l.b16 %v8492
    %v9174 = vunpack.c.h.b16 %v8492
    %v9175 = vunpack.c.l.b16 %v8493
    %v9176 = vunpack.c.h.b16 %v8493
    %v9177 = vunpack.c.l.b16 %v8494
    %v9178 = vunpack.c.h.b16 %v8494
    %v9179 = vunpack.c.l.b16 %v8495
    %v9180 = vunpack.c.h.b16 %v8495
    %v9181 = vunpack.c.l.b16 %v8496
    %v9182 = vunpack.c.h.b16 %v8496
    %v9183 = vunpack.c.l.b16 %v8497
    %v9184 = vunpack.c.h.b16 %v8497
    %v9185 = vunpack.c.l.b16 %v8498
    %v9186 = vunpack.c.h.b16 %v8498
    %v9187 = vunpack.c.l.b16 %v8499
    %v9188 = vunpack.c.h.b16 %v8499
    %v9189 = vunpack.c.l.b16 %v8500
    %v9190 = vunpack.c.h.b16 %v8500
    %v9191 = vunpack.c.l.b16 %v8501
    %v9192 = vunpack.c.h.b16 %v8501
    %v9193 = vunpack.c.l.b16 %v8502
    %v9194 = vunpack.c.h.b16 %v8502
    %v9195 = vunpack.c.l.b16 %v8503
    %v9196 = vunpack.c.h.b16 %v8503
    %v9197 = vunpack.c.l.b16 %v8504
    %v9198 = vunpack.c.h.b16 %v8504
    %v9199 = vunpack.c.l.b16 %v8505
    %v9200 = vunpack.c.h.b16 %v8505
    %v9201 = vunpack.c.l.b16 %v8506
    %v9202 = vunpack.c.h.b16 %v8506
    %v9203 = vunpack.c.l.b16 %v8507
    %v9204 = vunpack.c.h.b16 %v8507
    %v9205 = vunpack.c.l.b16 %v8508
    %v9206 = vunpack.c.h.b16 %v8508
    %v9207 = vunpack.c.l.b16 %v8509
    %v9208 = vunpack.c.h.b16 %v8509
    %v9209 = vunpack.c.l.b16 %v8510
    %v9210 = vunpack.c.h.b16 %v8510
    %v9211 = vunpack.c.l.b16 %v8511
    %v9212 = vunpack.c.h.b16 %v8511
    %v9213 = vunpack.c.l.b16 %v8512
    %v9214 = vunpack.c.h.b16 %v8512
    %v9215 = vunpack.c.l.b16 %v8513
    %v9216 = vunpack.c.h.b16 %v8513
    %v9217 = vunpack.c.l.b16 %v8514
    %v9218 = vunpack.c.h.b16 %v8514
    %v9219 = vunpack.c.l.b16 %v8515
    %v9220 = vunpack.c.h.b16 %v8515
    %v9221 = vunpack.c.l.b16 %v8516
    %v9222 = vunpack.c.h.b16 %v8516
    %v9223 = vunpack.c.l.b16 %v8517
    %v9224 = vunpack.c.h.b16 %v8517
    %v9225 = vunpack.c.l.b16 %v8518
    %v9226 = vunpack.c.h.b16 %v8518
    %v9227 = vunpack.c.l.b16 %v8519
    %v9228 = vunpack.c.h.b16 %v8519
    %v9229 = vunpack.c.l.b16 %v8520
    %v9230 = vunpack.c.h.b16 %v8520
    %v9231 = vunpack.c.l.b16 %v8521
    %v9232 = vunpack.c.h.b16 %v8521
    %v9233 = vunpack.c.l.b16 %v8522
    %v9234 = vunpack.c.h.b16 %v8522
    %v9235 = vunpack.c.l.b16 %v8523
    %v9236 = vunpack.c.h.b16 %v8523
    %v9237 = vunpack.c.l.b16 %v8524
    %v9238 = vunpack.c.h.b16 %v8524
    %v9239 = vunpack.c.l.b16 %v8525
    %v9240 = vunpack.c.h.b16 %v8525
    %v9241 = vunpack.c.l.b16 %v8526
    %v9242 = vunpack.c.h.b16 %v8526
    %v9243 = vunpack.c.l.b16 %v8527
    %v9244 = vunpack.c.h.b16 %v8527
    %v9245 = vunpack.c.l.b16 %v8528
    %v9246 = vunpack.c.h.b16 %v8528
    %v9247 = vunpack.c.l.b16 %v8529
    %v9248 = vunpack.c.h.b16 %v8529
    %v9249 = vunpack.c.l.b16 %v8530
    %v9250 = vunpack.c.h.b16 %v8530
    %v9251 = vunpack.c.l.b16 %v8531
    %v9252 = vunpack.c.h.b16 %v8531
    %v9253 = vunpack.c.l.b16 %v8532
    %v9254 = vunpack.c.h.b16 %v8532
    %v9255 = vunpack.c.l.b16 %v8533
    %v9256 = vunpack.c.h.b16 %v8533
    %v9257 = vunpack.c.l.b16 %v8534
    %v9258 = vunpack.c.h.b16 %v8534
    %v9259 = vunpack.c.l.b16 %v8535
    %v9260 = vunpack.c.h.b16 %v8535
    %v9261 = vunpack.c.l.b16 %v8536
    %v9262 = vunpack.c.h.b16 %v8536
    %v9263 = vunpack.c.l.b16 %v8537
    %v9264 = vunpack.c.h.b16 %v8537
    %v9265 = vunpack.c.l.b16 %v8538
    %v9266 = vunpack.c.h.b16 %v8538
    %v9267 = vunpack.c.l.b16 %v8539
    %v9268 = vunpack.c.h.b16 %v8539
    %v9269 = vunpack.c.l.b16 %v8540
    %v9270 = vunpack.c.h.b16 %v8540
    %v9271 = vunpack.c.l.b16 %v8541
    %v9272 = vunpack.c.h.b16 %v8541
    %v9273 = vunpack.c.l.b16 %v8542
    %v9274 = vunpack.c.h.b16 %v8542
    %v9275 = vunpack.c.l.b16 %v8543
    %v9276 = vunpack.c.h.b16 %v8543
    %v9277 = vunpack.c.l.b16 %v8544
    %v9278 = vunpack.c.h.b16 %v8544
    %v9279 = vunpack.c.l.b16 %v8545
    %v9280 = vunpack.c.h.b16 %v8545
    %v9281 = vunpack.c.l.b16 %v8546
    %v9282 = vunpack.c.h.b16 %v8546
    %v9283 = vunpack.c.l.b16 %v8547
    %v9284 = vunpack.c.h.b16 %v8547
    %v9285 = vunpack.c.l.b16 %v8548
    %v9286 = vunpack.c.h.b16 %v8548
    %v9287 = vunpack.c.l.b16 %v8549
    %v9288 = vunpack.c.h.b16 %v8549
    %v9289 = vunpack.c.l.b16 %v8550
    %v9290 = vunpack.c.h.b16 %v8550
    %v9291 = vunpack.c.l.b16 %v8551
    %v9292 = vunpack.c.h.b16 %v8551
    %v9293 = vunpack.c.l.b16 %v8552
    %v9294 = vunpack.c.h.b16 %v8552
    %v9295 = vunpack.c.l.b16 %v8553
    %v9296 = vunpack.c.h.b16 %v8553
    %v9297 = vunpack.c.l.b16 %v8554
    %v9298 = vunpack.c.h.b16 %v8554
    %v9299 = vunpack.c.l.b16 %v8555
    %v9300 = vunpack.c.h.b16 %v8555
    %v9301 = vunpack.c.l.b16 %v8556
    %v9302 = vunpack.c.h.b16 %v8556
    %v9303 = vunpack.c.l.b16 %v8557
    %v9304 = vunpack.c.h.b16 %v8557
    %v9305 = vunpack.c.l.b16 %v8558
    %v9306 = vunpack.c.h.b16 %v8558
    %v9307 = vunpack.c.l.b16 %v8559
    %v9308 = vunpack.c.h.b16 %v8559
    %v9309 = vunpack.c.l.b16 %v8560
    %v9310 = vunpack.c.h.b16 %v8560
    %v9311 = vunpack.c.l.b16 %v8561
    %v9312 = vunpack.c.h.b16 %v8561
    %v9313 = vunpack.c.l.b16 %v8562
    %v9314 = vunpack.c.h.b16 %v8562
    %v9315 = vunpack.c.l.b16 %v8563
    %v9316 = vunpack.c.h.b16 %v8563
    %v9317 = vunpack.c.l.b16 %v8564
    %v9318 = vunpack.c.h.b16 %v8564
    %v9319 = vunpack.c.l.b16 %v8565
    %v9320 = vunpack.c.h.b16 %v8565
    %v9321 = vunpack.c.l.b16 %v8566
    %v9322 = vunpack.c.h.b16 %v8566
    %v9323 = vunpack.c.l.b16 %v8567
    %v9324 = vunpack.c.h.b16 %v8567
    %v9325 = vunpack.c.l.b16 %v8568
    %v9326 = vunpack.c.h.b16 %v8568
    %v9327 = vunpack.c.l.b16 %v8569
    %v9328 = vunpack.c.h.b16 %v8569
    %v9329 = vunpack.c.l.b16 %v8570
    %v9330 = vunpack.c.h.b16 %v8570
    %v9331 = vunpack.c.l.b16 %v8571
    %v9332 = vunpack.c.h.b16 %v8571
    %v9333 = vunpack.c.l.b16 %v8572
    %v9334 = vunpack.c.h.b16 %v8572
    %v9335 = vunpack.c.l.b16 %v8573
    %v9336 = vunpack.c.h.b16 %v8573
    %v9337 = vunpack.c.l.b16 %v8574
    %v9338 = vunpack.c.h.b16 %v8574
    %v9339 = vunpack.c.l.b16 %v8575
    %v9340 = vunpack.c.h.b16 %v8575
    %v9341 = vunpack.c.l.b16 %v8576
    %v9342 = vunpack.c.h.b16 %v8576
    %v9343 = vunpack.c.l.b16 %v8577
    %v9344 = vunpack.c.h.b16 %v8577
    %v9345 = vunpack.c.l.b16 %v8578
    %v9346 = vunpack.c.h.b16 %v8578
    %v9347 = vunpack.c.l.b16 %v8579
    %v9348 = vunpack.c.h.b16 %v8579
    %v9349 = vunpack.c.l.b16 %v8580
    %v9350 = vunpack.c.h.b16 %v8580
    %v9351 = vunpack.c.l.b16 %v8581
    %v9352 = vunpack.c.h.b16 %v8581
    %v9353 = vunpack.c.l.b16 %v8582
    %v9354 = vunpack.c.h.b16 %v8582
    %v9355 = vunpack.c.l.b16 %v8583
    %v9356 = vunpack.c.h.b16 %v8583
    %v9357 = vunpack.c.l.b16 %v8584
    %v9358 = vunpack.c.h.b16 %v8584
    %v9359 = vunpack.c.l.b16 %v8585
    %v9360 = vunpack.c.h.b16 %v8585
    %v9361 = vunpack.c.l.b16 %v8586
    %v9362 = vunpack.c.h.b16 %v8586
    %v9363 = vunpack.c.l.b16 %v8587
    %v9364 = vunpack.c.h.b16 %v8587
    %v9365 = vpack.c.b16 %v8857, %v8853
    %v9366 = vpack.c.b16 %v8858, %v8854
    %v9367 = vpack.c.b16 %v8859, %v8855
    %v9368 = vpack.c.b16 %v8860, %v8856
    %v9369 = vpack.c.b16 %v8865, %v8861
    %v9370 = vpack.c.b16 %v8866, %v8862
    %v9371 = vpack.c.b16 %v8867, %v8863
    %v9372 = vpack.c.b16 %v8868, %v8864
    %v9373 = vpack.c.b16 %v8873, %v8869
    %v9374 = vpack.c.b16 %v8874, %v8870
    %v9375 = vpack.c.b16 %v8875, %v8871
    %v9376 = vpack.c.b16 %v8876, %v8872
    %v9377 = vpack.c.b16 %v8881, %v8877
    %v9378 = vpack.c.b16 %v8882, %v8878
    %v9379 = vpack.c.b16 %v8883, %v8879
    %v9380 = vpack.c.b16 %v8884, %v8880
    %v9381 = vpack.c.b16 %v8889, %v8885
    %v9382 = vpack.c.b16 %v8890, %v8886
    %v9383 = vpack.c.b16 %v8891, %v8887
    %v9384 = vpack.c.b16 %v8892, %v8888
    %v9385 = vpack.c.b16 %v8897, %v8893
    %v9386 = vpack.c.b16 %v8898, %v8894
    %v9387 = vpack.c.b16 %v8899, %v8895
    %v9388 = vpack.c.b16 %v8900, %v8896
    %v9389 = vpack.c.b16 %v8905, %v8901
    %v9390 = vpack.c.b16 %v8906, %v8902
    %v9391 = vpack.c.b16 %v8907, %v8903
    %v9392 = vpack.c.b16 %v8908, %v8904
    %v9393 = vpack.c.b16 %v8913, %v8909
    %v9394 = vpack.c.b16 %v8914, %v8910
    %v9395 = vpack.c.b16 %v8915, %v8911
    %v9396 = vpack.c.b16 %v8916, %v8912
    %v9397 = vpack.c.b16 %v8921, %v8917
    %v9398 = vpack.c.b16 %v8922, %v8918
    %v9399 = vpack.c.b16 %v8923, %v8919
    %v9400 = vpack.c.b16 %v8924, %v8920
    %v9401 = vpack.c.b16 %v8929, %v8925
    %v9402 = vpack.c.b16 %v8930, %v8926
    %v9403 = vpack.c.b16 %v8931, %v8927
    %v9404 = vpack.c.b16 %v8932, %v8928
    %v9405 = vpack.c.b16 %v8937, %v8933
    %v9406 = vpack.c.b16 %v8938, %v8934
    %v9407 = vpack.c.b16 %v8939, %v8935
    %v9408 = vpack.c.b16 %v8940, %v8936
    %v9409 = vpack.c.b16 %v8945, %v8941
    %v9410 = vpack.c.b16 %v8946, %v8942
    %v9411 = vpack.c.b16 %v8947, %v8943
    %v9412 = vpack.c.b16 %v8948, %v8944
    %v9413 = vpack.c.b16 %v8953, %v8949
    %v9414 = vpack.c.b16 %v8954, %v8950
    %v9415 = vpack.c.b16 %v8955, %v8951
    %v9416 = vpack.c.b16 %v8956, %v8952
    %v9417 = vpack.c.b16 %v8961, %v8957
    %v9418 = vpack.c.b16 %v8962, %v8958
    %v9419 = vpack.c.b16 %v8963, %v8959
    %v9420 = vpack.c.b16 %v8964, %v8960
    %v9421 = vpack.c.b16 %v8969, %v8965
    %v9422 = vpack.c.b16 %v8970, %v8966
    %v9423 = vpack.c.b16 %v8971, %v8967
    %v9424 = vpack.c.b16 %v8972, %v8968
    %v9425 = vpack.c.b16 %v8977, %v8973
    %v9426 = vpack.c.b16 %v8978, %v8974
    %v9427 = vpack.c.b16 %v8979, %v8975
    %v9428 = vpack.c.b16 %v8980, %v8976
    %v9429 = vpack.c.b16 %v8985, %v8981
    %v9430 = vpack.c.b16 %v8986, %v8982
    %v9431 = vpack.c.b16 %v8987, %v8983
    %v9432 = vpack.c.b16 %v8988, %v8984
    %v9433 = vpack.c.b16 %v8993, %v8989
    %v9434 = vpack.c.b16 %v8994, %v8990
    %v9435 = vpack.c.b16 %v8995, %v8991
    %v9436 = vpack.c.b16 %v8996, %v8992
    %v9437 = vpack.c.b16 %v9001, %v8997
    %v9438 = vpack.c.b16 %v9002, %v8998
    %v9439 = vpack.c.b16 %v9003, %v8999
    %v9440 = vpack.c.b16 %v9004, %v9000
    %v9441 = vpack.c.b16 %v9009, %v9005
    %v9442 = vpack.c.b16 %v9010, %v9006
    %v9443 = vpack.c.b16 %v9011, %v9007
    %v9444 = vpack.c.b16 %v9012, %v9008
    %v9445 = vpack.c.b16 %v9017, %v9013
    %v9446 = vpack.c.b16 %v9018, %v9014
    %v9447 = vpack.c.b16 %v9019, %v9015
    %v9448 = vpack.c.b16 %v9020, %v9016
    %v9449 = vpack.c.b16 %v9025, %v9021
    %v9450 = vpack.c.b16 %v9026, %v9022
    %v9451 = vpack.c.b16 %v9027, %v9023
    %v9452 = vpack.c.b16 %v9028, %v9024
    %v9453 = vpack.c.b16 %v9033, %v9029
    %v9454 = vpack.c.b16 %v9034, %v9030
    %v9455 = vpack.c.b16 %v9035, %v9031
    %v9456 = vpack.c.b16 %v9036, %v9032
    %v9457 = vpack.c.b16 %v9041, %v9037
    %v9458 = vpack.c.b16 %v9042, %v9038
    %v9459 = vpack.c.b16 %v9043, %v9039
    %v9460 = vpack.c.b16 %v9044, %v9040
    %v9461 = vpack.c.b16 %v9049, %v9045
    %v9462 = vpack.c.b16 %v9050, %v9046
    %v9463 = vpack.c.b16 %v9051, %v9047
    %v9464 = vpack.c.b16 %v9052, %v9048
    %v9465 = vpack.c.b16 %v9057, %v9053
    %v9466 = vpack.c.b16 %v9058, %v9054
    %v9467 = vpack.c.b16 %v9059, %v9055
    %v9468 = vpack.c.b16 %v9060, %v9056
    %v9469 = vpack.c.b16 %v9065, %v9061
    %v9470 = vpack.c.b16 %v9066, %v9062
    %v9471 = vpack.c.b16 %v9067, %v9063
    %v9472 = vpack.c.b16 %v9068, %v9064
    %v9473 = vpack.c.b16 %v9073, %v9069
    %v9474 = vpack.c.b16 %v9074, %v9070
    %v9475 = vpack.c.b16 %v9075, %v9071
    %v9476 = vpack.c.b16 %v9076, %v9072
    %v9477 = vpack.c.b16 %v9081, %v9077
    %v9478 = vpack.c.b16 %v9082, %v9078
    %v9479 = vpack.c.b16 %v9083, %v9079
    %v9480 = vpack.c.b16 %v9084, %v9080
    %v9481 = vpack.c.b16 %v9089, %v9085
    %v9482 = vpack.c.b16 %v9090, %v9086
    %v9483 = vpack.c.b16 %v9091, %v9087
    %v9484 = vpack.c.b16 %v9092, %v9088
    %v9485 = vpack.c.b16 %v9097, %v9093
    %v9486 = vpack.c.b16 %v9098, %v9094
    %v9487 = vpack.c.b16 %v9099, %v9095
    %v9488 = vpack.c.b16 %v9100, %v9096
    %v9489 = vpack.c.b16 %v9105, %v9101
    %v9490 = vpack.c.b16 %v9106, %v9102
    %v9491 = vpack.c.b16 %v9107, %v9103
    %v9492 = vpack.c.b16 %v9108, %v9104
    %v9493 = vpack.c.b16 %v9113, %v9109
    %v9494 = vpack.c.b16 %v9114, %v9110
    %v9495 = vpack.c.b16 %v9115, %v9111
    %v9496 = vpack.c.b16 %v9116, %v9112
    %v9497 = vpack.c.b16 %v9121, %v9117
    %v9498 = vpack.c.b16 %v9122, %v9118
    %v9499 = vpack.c.b16 %v9123, %v9119
    %v9500 = vpack.c.b16 %v9124, %v9120
    %v9501 = vpack.c.b16 %v9129, %v9125
    %v9502 = vpack.c.b16 %v9130, %v9126
    %v9503 = vpack.c.b16 %v9131, %v9127
    %v9504 = vpack.c.b16 %v9132, %v9128
    %v9505 = vpack.c.b16 %v9137, %v9133
    %v9506 = vpack.c.b16 %v9138, %v9134
    %v9507 = vpack.c.b16 %v9139, %v9135
    %v9508 = vpack.c.b16 %v9140, %v9136
    %v9509 = vpack.c.b16 %v9145, %v9141
    %v9510 = vpack.c.b16 %v9146, %v9142
    %v9511 = vpack.c.b16 %v9147, %v9143
    %v9512 = vpack.c.b16 %v9148, %v9144
    %v9513 = vpack.c.b16 %v9153, %v9149
    %v9514 = vpack.c.b16 %v9154, %v9150
    %v9515 = vpack.c.b16 %v9155, %v9151
    %v9516 = vpack.c.b16 %v9156, %v9152
    %v9517 = vpack.c.b16 %v9161, %v9157
    %v9518 = vpack.c.b16 %v9162, %v9158
    %v9519 = vpack.c.b16 %v9163, %v9159
    %v9520 = vpack.c.b16 %v9164, %v9160
    %v9521 = vpack.c.b16 %v9169, %v9165
    %v9522 = vpack.c.b16 %v9170, %v9166
    %v9523 = vpack.c.b16 %v9171, %v9167
    %v9524 = vpack.c.b16 %v9172, %v9168
    %v9525 = vpack.c.b16 %v9177, %v9173
    %v9526 = vpack.c.b16 %v9178, %v9174
    %v9527 = vpack.c.b16 %v9179, %v9175
    %v9528 = vpack.c.b16 %v9180, %v9176
    %v9529 = vpack.c.b16 %v9185, %v9181
    %v9530 = vpack.c.b16 %v9186, %v9182
    %v9531 = vpack.c.b16 %v9187, %v9183
    %v9532 = vpack.c.b16 %v9188, %v9184
    %v9533 = vpack.c.b16 %v9193, %v9189
    %v9534 = vpack.c.b16 %v9194, %v9190
    %v9535 = vpack.c.b16 %v9195, %v9191
    %v9536 = vpack.c.b16 %v9196, %v9192
    %v9537 = vpack.c.b16 %v9201, %v9197
    %v9538 = vpack.c.b16 %v9202, %v9198
    %v9539 = vpack.c.b16 %v9203, %v9199
    %v9540 = vpack.c.b16 %v9204, %v9200
    %v9541 = vpack.c.b16 %v9209, %v9205
    %v9542 = vpack.c.b16 %v9210, %v9206
    %v9543 = vpack.c.b16 %v9211, %v9207
    %v9544 = vpack.c.b16 %v9212, %v9208
    %v9545 = vpack.c.b16 %v9217, %v9213
    %v9546 = vpack.c.b16 %v9218, %v9214
    %v9547 = vpack.c.b16 %v9219, %v9215
    %v9548 = vpack.c.b16 %v9220, %v9216
    %v9549 = vpack.c.b16 %v9225, %v9221
    %v9550 = vpack.c.b16 %v9226, %v9222
    %v9551 = vpack.c.b16 %v9227, %v9223
    %v9552 = vpack.c.b16 %v9228, %v9224
    %v9553 = vpack.c.b16 %v9233, %v9229
    %v9554 = vpack.c.b16 %v9234, %v9230
    %v9555 = vpack.c.b16 %v9235, %v9231
    %v9556 = vpack.c.b16 %v9236, %v9232
    %v9557 = vpack.c.b16 %v9241, %v9237
    %v9558 = vpack.c.b16 %v9242, %v9238
    %v9559 = vpack.c.b16 %v9243, %v9239
    %v9560 = vpack.c.b16 %v9244, %v9240
    %v9561 = vpack.c.b16 %v9249, %v9245
    %v9562 = vpack.c.b16 %v9250, %v9246
    %v9563 = vpack.c.b16 %v9251, %v9247
    %v9564 = vpack.c.b16 %v9252, %v9248
    %v9565 = vpack.c.b16 %v9257, %v9253
    %v9566 = vpack.c.b16 %v9258, %v9254
    %v9567 = vpack.c.b16 %v9259, %v9255
    %v9568 = vpack.c.b16 %v9260, %v9256
    %v9569 = vpack.c.b16 %v9265, %v9261
    %v9570 = vpack.c.b16 %v9266, %v9262
    %v9571 = vpack.c.b16 %v9267, %v9263
    %v9572 = vpack.c.b16 %v9268, %v9264
    %v9573 = vpack.c.b16 %v9273, %v9269
    %v9574 = vpack.c.b16 %v9274, %v9270
    %v9575 = vpack.c.b16 %v9275, %v9271
    %v9576 = vpack.c.b16 %v9276, %v9272
    %v9577 = vpack.c.b16 %v9281, %v9277
    %v9578 = vpack.c.b16 %v9282, %v9278
    %v9579 = vpack.c.b16 %v9283, %v9279
    %v9580 = vpack.c.b16 %v9284, %v9280
    %v9581 = vpack.c.b16 %v9289, %v9285
    %v9582 = vpack.c.b16 %v9290, %v9286
    %v9583 = vpack.c.b16 %v9291, %v9287
    %v9584 = vpack.c.b16 %v9292, %v9288
    %v9585 = vpack.c.b16 %v9297, %v9293
    %v9586 = vpack.c.b16 %v9298, %v9294
    %v9587 = vpack.c.b16 %v9299, %v9295
    %v9588 = vpack.c.b16 %v9300, %v9296
    %v9589 = vpack.c.b16 %v9305, %v9301
    %v9590 = vpack.c.b16 %v9306, %v9302
    %v9591 = vpack.c.b16 %v9307, %v9303
    %v9592 = vpack.c.b16 %v9308, %v9304
    %v9593 = vpack.c.b16 %v9313, %v9309
    %v9594 = vpack.c.b16 %v9314, %v9310
    %v9595 = vpack.c.b16 %v9315, %v9311
    %v9596 = vpack.c.b16 %v9316, %v9312
    %v9597 = vpack.c.b16 %v9321, %v9317
    %v9598 = vpack.c.b16 %v9322, %v9318
    %v9599 = vpack.c.b16 %v9323, %v9319
    %v9600 = vpack.c.b16 %v9324, %v9320
    %v9601 = vpack.c.b16 %v9329, %v9325
    %v9602 = vpack.c.b16 %v9330, %v9326
    %v9603 = vpack.c.b16 %v9331, %v9327
    %v9604 = vpack.c.b16 %v9332, %v9328
    %v9605 = vpack.c.b16 %v9337, %v9333
    %v9606 = vpack.c.b16 %v9338, %v9334
    %v9607 = vpack.c.b16 %v9339, %v9335
    %v9608 = vpack.c.b16 %v9340, %v9336
    %v9609 = vpack.c.b16 %v9345, %v9341
    %v9610 = vpack.c.b16 %v9346, %v9342
    %v9611 = vpack.c.b16 %v9347, %v9343
    %v9612 = vpack.c.b16 %v9348, %v9344
    %v9613 = vpack.c.b16 %v9353, %v9349
    %v9614 = vpack.c.b16 %v9354, %v9350
    %v9615 = vpack.c.b16 %v9355, %v9351
    %v9616 = vpack.c.b16 %v9356, %v9352
    %v9617 = vpack.c.b16 %v9361, %v9357
    %v9618 = vpack.c.b16 %v9362, %v9358
    %v9619 = vpack.c.b16 %v9363, %v9359
    %v9620 = vpack.c.b16 %v9364, %v9360
    %9877 = vmatpush.bf16.msra.mxu0 %v9393
    %9878 = vmatpush.bf16.msra.mxu0 %v9389
    %9879 = vmatpush.bf16.msra.mxu0 %v9385
    %9880 = vmatpush.bf16.msra.mxu0 %v9381
    %9881 = vmatpush.bf16.msra.mxu0 %v9377
    %9882 = vmatpush.bf16.msra.mxu0 %v9373
    %9883 = vmatpush.bf16.msra.mxu0 %v9369
    %9884 = vmatpush.bf16.msra.mxu0 %v9365
    %9885 = vmatmul.bf16.gmra.mxu0 %v8324
    %v9886 = vpop.f32.mrf.mxu0
    %v9887 = vadd.f32 %v8589, %v9886
    %v9888 = vpop.f32.mrf.mxu0
    %9889 = vdwg.mxu0
    %9890 = vmatpush.bf16.msra.mxu0 %v9425
    %9891 = vmatpush.bf16.msra.mxu0 %v9421
    %9892 = vmatpush.bf16.msra.mxu0 %v9417
    %9893 = vmatpush.bf16.msra.mxu0 %v9413
    %9894 = vmatpush.bf16.msra.mxu0 %v9409
    %9895 = vmatpush.bf16.msra.mxu0 %v9405
    %9896 = vmatpush.bf16.msra.mxu0 %v9401
    %9897 = vmatpush.bf16.msra.mxu0 %v9397
    %9898 = vmatmul.bf16.gmra.mxu0 %v8325
    %v9899 = vpop.f32.mrf.mxu0
    %v9900 = vadd.f32 %v9887, %v9899
    %v9901 = vpop.f32.mrf.mxu0
    %9902 = vdwg.mxu0
    %9903 = vmatpush.bf16.msra.mxu0 %v9457
    %9904 = vmatpush.bf16.msra.mxu0 %v9453
    %9905 = vmatpush.bf16.msra.mxu0 %v9449
    %9906 = vmatpush.bf16.msra.mxu0 %v9445
    %9907 = vmatpush.bf16.msra.mxu0 %v9441
    %9908 = vmatpush.bf16.msra.mxu0 %v9437
    %9909 = vmatpush.bf16.msra.mxu0 %v9433
    %9910 = vmatpush.bf16.msra.mxu0 %v9429
    %9911 = vmatmul.bf16.gmra.mxu0 %v8326
    %v9912 = vpop.f32.mrf.mxu0
    %v9913 = vadd.f32 %v9900, %v9912
    %v9914 = vpop.f32.mrf.mxu0
    %9915 = vdwg.mxu0
    %9916 = vmatpush.bf16.msra.mxu0 %v9489
    %9917 = vmatpush.bf16.msra.mxu0 %v9485
    %9918 = vmatpush.bf16.msra.mxu0 %v9481
    %9919 = vmatpush.bf16.msra.mxu0 %v9477
    %9920 = vmatpush.bf16.msra.mxu0 %v9473
    %9921 = vmatpush.bf16.msra.mxu0 %v9469
    %9922 = vmatpush.bf16.msra.mxu0 %v9465
    %9923 = vmatpush.bf16.msra.mxu0 %v9461
    %9924 = vmatmul.bf16.gmra.mxu0 %v8327
    %v9925 = vpop.f32.mrf.mxu0
    %v9926 = vadd.f32 %v9913, %v9925
    %v9927 = vpop.f32.mrf.mxu0
    %9928 = vdwg.mxu0
    %9929 = vmatpush.bf16.msra.mxu0 %v9521
    %9930 = vmatpush.bf16.msra.mxu0 %v9517
    %9931 = vmatpush.bf16.msra.mxu0 %v9513
    %9932 = vmatpush.bf16.msra.mxu0 %v9509
    %9933 = vmatpush.bf16.msra.mxu0 %v9505
    %9934 = vmatpush.bf16.msra.mxu0 %v9501
    %9935 = vmatpush.bf16.msra.mxu0 %v9497
    %9936 = vmatpush.bf16.msra.mxu0 %v9493
    %9937 = vmatmul.bf16.gmra.mxu0 %v8328
    %v9938 = vpop.f32.mrf.mxu0
    %v9939 = vadd.f32 %v9926, %v9938
    %v9940 = vpop.f32.mrf.mxu0
    %9941 = vdwg.mxu0
    %9942 = vmatpush.bf16.msra.mxu0 %v9553
    %9943 = vmatpush.bf16.msra.mxu0 %v9549
    %9944 = vmatpush.bf16.msra.mxu0 %v9545
    %9945 = vmatpush.bf16.msra.mxu0 %v9541
    %9946 = vmatpush.bf16.msra.mxu0 %v9537
    %9947 = vmatpush.bf16.msra.mxu0 %v9533
    %9948 = vmatpush.bf16.msra.mxu0 %v9529
    %9949 = vmatpush.bf16.msra.mxu0 %v9525
    %9950 = vmatmul.bf16.gmra.mxu0 %v8329
    %v9951 = vpop.f32.mrf.mxu0
    %v9952 = vadd.f32 %v9939, %v9951
    %v9953 = vpop.f32.mrf.mxu0
    %9954 = vdwg.mxu0
    %9955 = vmatpush.bf16.msra.mxu0 %v9585
    %9956 = vmatpush.bf16.msra.mxu0 %v9581
    %9957 = vmatpush.bf16.msra.mxu0 %v9577
    %9958 = vmatpush.bf16.msra.mxu0 %v9573
    %9959 = vmatpush.bf16.msra.mxu0 %v9569
    %9960 = vmatpush.bf16.msra.mxu0 %v9565
    %9961 = vmatpush.bf16.msra.mxu0 %v9561
    %9962 = vmatpush.bf16.msra.mxu0 %v9557
    %9963 = vmatmul.bf16.gmra.mxu0 %v8330
    %v9964 = vpop.f32.mrf.mxu0
    %v9965 = vadd.f32 %v9952, %v9964
    %v9966 = vpop.f32.mrf.mxu0
    %9967 = vdwg.mxu0
    %9968 = vmatpush.bf16.msra.mxu0 %v9617
    %9969 = vmatpush.bf16.msra.mxu0 %v9613
    %9970 = vmatpush.bf16.msra.mxu0 %v9609
    %9971 = vmatpush.bf16.msra.mxu0 %v9605
    %9972 = vmatpush.bf16.msra.mxu0 %v9601
    %9973 = vmatpush.bf16.msra.mxu0 %v9597
    %9974 = vmatpush.bf16.msra.mxu0 %v9593
    %9975 = vmatpush.bf16.msra.mxu0 %v9589
    %9976 = vmatmul.bf16.gmra.mxu0 %v8331
    %v9977 = vpop.f32.mrf.mxu0
    %v9978 = vadd.f32 %v9965, %v9977
    %v9979 = vpop.f32.mrf.mxu0
    %9980 = vdwg.mxu0
    %9981 = vmatpush.bf16.msra.mxu0 %v9394
    %9982 = vmatpush.bf16.msra.mxu0 %v9390
    %9983 = vmatpush.bf16.msra.mxu0 %v9386
    %9984 = vmatpush.bf16.msra.mxu0 %v9382
    %9985 = vmatpush.bf16.msra.mxu0 %v9378
    %9986 = vmatpush.bf16.msra.mxu0 %v9374
    %9987 = vmatpush.bf16.msra.mxu0 %v9370
    %9988 = vmatpush.bf16.msra.mxu0 %v9366
    %9989 = vmatmul.bf16.gmra.mxu0 %v8324
    %v9990 = vpop.f32.mrf.mxu0
    %v9991 = vadd.f32 %v8590, %v9990
    %v9992 = vpop.f32.mrf.mxu0
    %9993 = vdwg.mxu0
    %9994 = vmatpush.bf16.msra.mxu0 %v9426
    %9995 = vmatpush.bf16.msra.mxu0 %v9422
    %9996 = vmatpush.bf16.msra.mxu0 %v9418
    %9997 = vmatpush.bf16.msra.mxu0 %v9414
    %9998 = vmatpush.bf16.msra.mxu0 %v9410
    %9999 = vmatpush.bf16.msra.mxu0 %v9406
    %10000 = vmatpush.bf16.msra.mxu0 %v9402
    %10001 = vmatpush.bf16.msra.mxu0 %v9398
    %10002 = vmatmul.bf16.gmra.mxu0 %v8325
    %v10003 = vpop.f32.mrf.mxu0
    %v10004 = vadd.f32 %v9991, %v10003
    %v10005 = vpop.f32.mrf.mxu0
    %10006 = vdwg.mxu0
    %10007 = vmatpush.bf16.msra.mxu0 %v9458
    %10008 = vmatpush.bf16.msra.mxu0 %v9454
    %10009 = vmatpush.bf16.msra.mxu0 %v9450
    %10010 = vmatpush.bf16.msra.mxu0 %v9446
    %10011 = vmatpush.bf16.msra.mxu0 %v9442
    %10012 = vmatpush.bf16.msra.mxu0 %v9438
    %10013 = vmatpush.bf16.msra.mxu0 %v9434
    %10014 = vmatpush.bf16.msra.mxu0 %v9430
    %10015 = vmatmul.bf16.gmra.mxu0 %v8326
    %v10016 = vpop.f32.mrf.mxu0
    %v10017 = vadd.f32 %v10004, %v10016
    %v10018 = vpop.f32.mrf.mxu0
    %10019 = vdwg.mxu0
    %10020 = vmatpush.bf16.msra.mxu0 %v9490
    %10021 = vmatpush.bf16.msra.mxu0 %v9486
    %10022 = vmatpush.bf16.msra.mxu0 %v9482
    %10023 = vmatpush.bf16.msra.mxu0 %v9478
    %10024 = vmatpush.bf16.msra.mxu0 %v9474
    %10025 = vmatpush.bf16.msra.mxu0 %v9470
    %10026 = vmatpush.bf16.msra.mxu0 %v9466
    %10027 = vmatpush.bf16.msra.mxu0 %v9462
    %10028 = vmatmul.bf16.gmra.mxu0 %v8327
    %v10029 = vpop.f32.mrf.mxu0
    %v10030 = vadd.f32 %v10017, %v10029
    %v10031 = vpop.f32.mrf.mxu0
    %10032 = vdwg.mxu0
    %10033 = vmatpush.bf16.msra.mxu0 %v9522
    %10034 = vmatpush.bf16.msra.mxu0 %v9518
    %10035 = vmatpush.bf16.msra.mxu0 %v9514
    %10036 = vmatpush.bf16.msra.mxu0 %v9510
    %10037 = vmatpush.bf16.msra.mxu0 %v9506
    %10038 = vmatpush.bf16.msra.mxu0 %v9502
    %10039 = vmatpush.bf16.msra.mxu0 %v9498
    %10040 = vmatpush.bf16.msra.mxu0 %v9494
    %10041 = vmatmul.bf16.gmra.mxu0 %v8328
    %v10042 = vpop.f32.mrf.mxu0
    %v10043 = vadd.f32 %v10030, %v10042
    %v10044 = vpop.f32.mrf.mxu0
    %10045 = vdwg.mxu0
    %10046 = vmatpush.bf16.msra.mxu0 %v9554
    %10047 = vmatpush.bf16.msra.mxu0 %v9550
    %10048 = vmatpush.bf16.msra.mxu0 %v9546
    %10049 = vmatpush.bf16.msra.mxu0 %v9542
    %10050 = vmatpush.bf16.msra.mxu0 %v9538
    %10051 = vmatpush.bf16.msra.mxu0 %v9534
    %10052 = vmatpush.bf16.msra.mxu0 %v9530
    %10053 = vmatpush.bf16.msra.mxu0 %v9526
    %10054 = vmatmul.bf16.gmra.mxu0 %v8329
    %v10055 = vpop.f32.mrf.mxu0
    %v10056 = vadd.f32 %v10043, %v10055
    %v10057 = vpop.f32.mrf.mxu0
    %10058 = vdwg.mxu0
    %10059 = vmatpush.bf16.msra.mxu0 %v9586
    %10060 = vmatpush.bf16.msra.mxu0 %v9582
    %10061 = vmatpush.bf16.msra.mxu0 %v9578
    %10062 = vmatpush.bf16.msra.mxu0 %v9574
    %10063 = vmatpush.bf16.msra.mxu0 %v9570
    %10064 = vmatpush.bf16.msra.mxu0 %v9566
    %10065 = vmatpush.bf16.msra.mxu0 %v9562
    %10066 = vmatpush.bf16.msra.mxu0 %v9558
    %10067 = vmatmul.bf16.gmra.mxu0 %v8330
    %v10068 = vpop.f32.mrf.mxu0
    %v10069 = vadd.f32 %v10056, %v10068
    %v10070 = vpop.f32.mrf.mxu0
    %10071 = vdwg.mxu0
    %10072 = vmatpush.bf16.msra.mxu0 %v9618
    %10073 = vmatpush.bf16.msra.mxu0 %v9614
    %10074 = vmatpush.bf16.msra.mxu0 %v9610
    %10075 = vmatpush.bf16.msra.mxu0 %v9606
    %10076 = vmatpush.bf16.msra.mxu0 %v9602
    %10077 = vmatpush.bf16.msra.mxu0 %v9598
    %10078 = vmatpush.bf16.msra.mxu0 %v9594
    %10079 = vmatpush.bf16.msra.mxu0 %v9590
    %10080 = vmatmul.bf16.gmra.mxu0 %v8331
    %v10081 = vpop.f32.mrf.mxu0
    %v10082 = vadd.f32 %v10069, %v10081
    %v10083 = vpop.f32.mrf.mxu0
    %10084 = vdwg.mxu0
    %10085 = vmatpush.bf16.msra.mxu0 %v9395
    %10086 = vmatpush.bf16.msra.mxu0 %v9391
    %10087 = vmatpush.bf16.msra.mxu0 %v9387
    %10088 = vmatpush.bf16.msra.mxu0 %v9383
    %10089 = vmatpush.bf16.msra.mxu0 %v9379
    %10090 = vmatpush.bf16.msra.mxu0 %v9375
    %10091 = vmatpush.bf16.msra.mxu0 %v9371
    %10092 = vmatpush.bf16.msra.mxu0 %v9367
    %10093 = vmatmul.bf16.gmra.mxu0 %v8324
    %v10094 = vpop.f32.mrf.mxu0
    %v10095 = vadd.f32 %v8591, %v10094
    %v10096 = vpop.f32.mrf.mxu0
    %10097 = vdwg.mxu0
    %10098 = vmatpush.bf16.msra.mxu0 %v9427
    %10099 = vmatpush.bf16.msra.mxu0 %v9423
    %10100 = vmatpush.bf16.msra.mxu0 %v9419
    %10101 = vmatpush.bf16.msra.mxu0 %v9415
    %10102 = vmatpush.bf16.msra.mxu0 %v9411
    %10103 = vmatpush.bf16.msra.mxu0 %v9407
    %10104 = vmatpush.bf16.msra.mxu0 %v9403
    %10105 = vmatpush.bf16.msra.mxu0 %v9399
    %10106 = vmatmul.bf16.gmra.mxu0 %v8325
    %v10107 = vpop.f32.mrf.mxu0
    %v10108 = vadd.f32 %v10095, %v10107
    %v10109 = vpop.f32.mrf.mxu0
    %10110 = vdwg.mxu0
    %10111 = vmatpush.bf16.msra.mxu0 %v9459
    %10112 = vmatpush.bf16.msra.mxu0 %v9455
    %10113 = vmatpush.bf16.msra.mxu0 %v9451
    %10114 = vmatpush.bf16.msra.mxu0 %v9447
    %10115 = vmatpush.bf16.msra.mxu0 %v9443
    %10116 = vmatpush.bf16.msra.mxu0 %v9439
    %10117 = vmatpush.bf16.msra.mxu0 %v9435
    %10118 = vmatpush.bf16.msra.mxu0 %v9431
    %10119 = vmatmul.bf16.gmra.mxu0 %v8326
    %v10120 = vpop.f32.mrf.mxu0
    %v10121 = vadd.f32 %v10108, %v10120
    %v10122 = vpop.f32.mrf.mxu0
    %10123 = vdwg.mxu0
    %10124 = vmatpush.bf16.msra.mxu0 %v9491
    %10125 = vmatpush.bf16.msra.mxu0 %v9487
    %10126 = vmatpush.bf16.msra.mxu0 %v9483
    %10127 = vmatpush.bf16.msra.mxu0 %v9479
    %10128 = vmatpush.bf16.msra.mxu0 %v9475
    %10129 = vmatpush.bf16.msra.mxu0 %v9471
    %10130 = vmatpush.bf16.msra.mxu0 %v9467
    %10131 = vmatpush.bf16.msra.mxu0 %v9463
    %10132 = vmatmul.bf16.gmra.mxu0 %v8327
    %v10133 = vpop.f32.mrf.mxu0
    %v10134 = vadd.f32 %v10121, %v10133
    %v10135 = vpop.f32.mrf.mxu0
    %10136 = vdwg.mxu0
    %10137 = vmatpush.bf16.msra.mxu0 %v9523
    %10138 = vmatpush.bf16.msra.mxu0 %v9519
    %10139 = vmatpush.bf16.msra.mxu0 %v9515
    %10140 = vmatpush.bf16.msra.mxu0 %v9511
    %10141 = vmatpush.bf16.msra.mxu0 %v9507
    %10142 = vmatpush.bf16.msra.mxu0 %v9503
    %10143 = vmatpush.bf16.msra.mxu0 %v9499
    %10144 = vmatpush.bf16.msra.mxu0 %v9495
    %10145 = vmatmul.bf16.gmra.mxu0 %v8328
    %v10146 = vpop.f32.mrf.mxu0
    %v10147 = vadd.f32 %v10134, %v10146
    %v10148 = vpop.f32.mrf.mxu0
    %10149 = vdwg.mxu0
    %10150 = vmatpush.bf16.msra.mxu0 %v9555
    %10151 = vmatpush.bf16.msra.mxu0 %v9551
    %10152 = vmatpush.bf16.msra.mxu0 %v9547
    %10153 = vmatpush.bf16.msra.mxu0 %v9543
    %10154 = vmatpush.bf16.msra.mxu0 %v9539
    %10155 = vmatpush.bf16.msra.mxu0 %v9535
    %10156 = vmatpush.bf16.msra.mxu0 %v9531
    %10157 = vmatpush.bf16.msra.mxu0 %v9527
    %10158 = vmatmul.bf16.gmra.mxu0 %v8329
    %v10159 = vpop.f32.mrf.mxu0
    %v10160 = vadd.f32 %v10147, %v10159
    %v10161 = vpop.f32.mrf.mxu0
    %10162 = vdwg.mxu0
    %10163 = vmatpush.bf16.msra.mxu0 %v9587
    %10164 = vmatpush.bf16.msra.mxu0 %v9583
    %10165 = vmatpush.bf16.msra.mxu0 %v9579
    %10166 = vmatpush.bf16.msra.mxu0 %v9575
    %10167 = vmatpush.bf16.msra.mxu0 %v9571
    %10168 = vmatpush.bf16.msra.mxu0 %v9567
    %10169 = vmatpush.bf16.msra.mxu0 %v9563
    %10170 = vmatpush.bf16.msra.mxu0 %v9559
    %10171 = vmatmul.bf16.gmra.mxu0 %v8330
    %v10172 = vpop.f32.mrf.mxu0
    %v10173 = vadd.f32 %v10160, %v10172
    %v10174 = vpop.f32.mrf.mxu0
    %10175 = vdwg.mxu0
    %10176 = vmatpush.bf16.msra.mxu0 %v9619
    %10177 = vmatpush.bf16.msra.mxu0 %v9615
    %10178 = vmatpush.bf16.msra.mxu0 %v9611
    %10179 = vmatpush.bf16.msra.mxu0 %v9607
    %10180 = vmatpush.bf16.msra.mxu0 %v9603
    %10181 = vmatpush.bf16.msra.mxu0 %v9599
    %10182 = vmatpush.bf16.msra.mxu0 %v9595
    %10183 = vmatpush.bf16.msra.mxu0 %v9591
    %10184 = vmatmul.bf16.gmra.mxu0 %v8331
    %v10185 = vpop.f32.mrf.mxu0
    %v10186 = vadd.f32 %v10173, %v10185
    %v10187 = vpop.f32.mrf.mxu0
    %10188 = vdwg.mxu0
    %10189 = vmatpush.bf16.msra.mxu0 %v9396
    %10190 = vmatpush.bf16.msra.mxu0 %v9392
    %10191 = vmatpush.bf16.msra.mxu0 %v9388
    %10192 = vmatpush.bf16.msra.mxu0 %v9384
    %10193 = vmatpush.bf16.msra.mxu0 %v9380
    %10194 = vmatpush.bf16.msra.mxu0 %v9376
    %10195 = vmatpush.bf16.msra.mxu0 %v9372
    %10196 = vmatpush.bf16.msra.mxu0 %v9368
    %10197 = vmatmul.bf16.gmra.mxu0 %v8324
    %v10198 = vpop.f32.mrf.mxu0
    %v10199 = vadd.f32 %v8592, %v10198
    %v10200 = vpop.f32.mrf.mxu0
    %10201 = vdwg.mxu0
    %10202 = vmatpush.bf16.msra.mxu0 %v9428
    %10203 = vmatpush.bf16.msra.mxu0 %v9424
    %10204 = vmatpush.bf16.msra.mxu0 %v9420
    %10205 = vmatpush.bf16.msra.mxu0 %v9416
    %10206 = vmatpush.bf16.msra.mxu0 %v9412
    %10207 = vmatpush.bf16.msra.mxu0 %v9408
    %10208 = vmatpush.bf16.msra.mxu0 %v9404
    %10209 = vmatpush.bf16.msra.mxu0 %v9400
    %10210 = vmatmul.bf16.gmra.mxu0 %v8325
    %v10211 = vpop.f32.mrf.mxu0
    %v10212 = vadd.f32 %v10199, %v10211
    %v10213 = vpop.f32.mrf.mxu0
    %10214 = vdwg.mxu0
    %10215 = vmatpush.bf16.msra.mxu0 %v9460
    %10216 = vmatpush.bf16.msra.mxu0 %v9456
    %10217 = vmatpush.bf16.msra.mxu0 %v9452
    %10218 = vmatpush.bf16.msra.mxu0 %v9448
    %10219 = vmatpush.bf16.msra.mxu0 %v9444
    %10220 = vmatpush.bf16.msra.mxu0 %v9440
    %10221 = vmatpush.bf16.msra.mxu0 %v9436
    %10222 = vmatpush.bf16.msra.mxu0 %v9432
    %10223 = vmatmul.bf16.gmra.mxu0 %v8326
    %v10224 = vpop.f32.mrf.mxu0
    %v10225 = vadd.f32 %v10212, %v10224
    %v10226 = vpop.f32.mrf.mxu0
    %10227 = vdwg.mxu0
    %10228 = vmatpush.bf16.msra.mxu0 %v9492
    %10229 = vmatpush.bf16.msra.mxu0 %v9488
    %10230 = vmatpush.bf16.msra.mxu0 %v9484
    %10231 = vmatpush.bf16.msra.mxu0 %v9480
    %10232 = vmatpush.bf16.msra.mxu0 %v9476
    %10233 = vmatpush.bf16.msra.mxu0 %v9472
    %10234 = vmatpush.bf16.msra.mxu0 %v9468
    %10235 = vmatpush.bf16.msra.mxu0 %v9464
    %10236 = vmatmul.bf16.gmra.mxu0 %v8327
    %v10237 = vpop.f32.mrf.mxu0
    %v10238 = vadd.f32 %v10225, %v10237
    %v10239 = vpop.f32.mrf.mxu0
    %10240 = vdwg.mxu0
    %10241 = vmatpush.bf16.msra.mxu0 %v9524
    %10242 = vmatpush.bf16.msra.mxu0 %v9520
    %10243 = vmatpush.bf16.msra.mxu0 %v9516
    %10244 = vmatpush.bf16.msra.mxu0 %v9512
    %10245 = vmatpush.bf16.msra.mxu0 %v9508
    %10246 = vmatpush.bf16.msra.mxu0 %v9504
    %10247 = vmatpush.bf16.msra.mxu0 %v9500
    %10248 = vmatpush.bf16.msra.mxu0 %v9496
    %10249 = vmatmul.bf16.gmra.mxu0 %v8328
    %v10250 = vpop.f32.mrf.mxu0
    %v10251 = vadd.f32 %v10238, %v10250
    %v10252 = vpop.f32.mrf.mxu0
    %10253 = vdwg.mxu0
    %10254 = vmatpush.bf16.msra.mxu0 %v9556
    %10255 = vmatpush.bf16.msra.mxu0 %v9552
    %10256 = vmatpush.bf16.msra.mxu0 %v9548
    %10257 = vmatpush.bf16.msra.mxu0 %v9544
    %10258 = vmatpush.bf16.msra.mxu0 %v9540
    %10259 = vmatpush.bf16.msra.mxu0 %v9536
    %10260 = vmatpush.bf16.msra.mxu0 %v9532
    %10261 = vmatpush.bf16.msra.mxu0 %v9528
    %10262 = vmatmul.bf16.gmra.mxu0 %v8329
    %v10263 = vpop.f32.mrf.mxu0
    %v10264 = vadd.f32 %v10251, %v10263
    %v10265 = vpop.f32.mrf.mxu0
    %10266 = vdwg.mxu0
    %10267 = vmatpush.bf16.msra.mxu0 %v9588
    %10268 = vmatpush.bf16.msra.mxu0 %v9584
    %10269 = vmatpush.bf16.msra.mxu0 %v9580
    %10270 = vmatpush.bf16.msra.mxu0 %v9576
    %10271 = vmatpush.bf16.msra.mxu0 %v9572
    %10272 = vmatpush.bf16.msra.mxu0 %v9568
    %10273 = vmatpush.bf16.msra.mxu0 %v9564
    %10274 = vmatpush.bf16.msra.mxu0 %v9560
    %10275 = vmatmul.bf16.gmra.mxu0 %v8330
    %v10276 = vpop.f32.mrf.mxu0
    %v10277 = vadd.f32 %v10264, %v10276
    %v10278 = vpop.f32.mrf.mxu0
    %10279 = vdwg.mxu0
    %10280 = vmatpush.bf16.msra.mxu0 %v9620
    %10281 = vmatpush.bf16.msra.mxu0 %v9616
    %10282 = vmatpush.bf16.msra.mxu0 %v9612
    %10283 = vmatpush.bf16.msra.mxu0 %v9608
    %10284 = vmatpush.bf16.msra.mxu0 %v9604
    %10285 = vmatpush.bf16.msra.mxu0 %v9600
    %10286 = vmatpush.bf16.msra.mxu0 %v9596
    %10287 = vmatpush.bf16.msra.mxu0 %v9592
    %10288 = vmatmul.bf16.gmra.mxu0 %v8331
    %v10289 = vpop.f32.mrf.mxu0
    %v10290 = vadd.f32 %v10277, %v10289
    %v10291 = vpop.f32.mrf.mxu0
    %10292 = vdwg.mxu0
    %vm10293 = vcmp.gt.f32.partialorder %v9978, 0.0
    %vm10294 = vcmp.gt.f32.partialorder %v10082, 0.0
    %vm10295 = vcmp.gt.f32.partialorder %v10186, 0.0
    %vm10296 = vcmp.gt.f32.partialorder %v10290, 0.0
    %v10297 = vmin.f32 %v9978, 0.0
    %v10298 = vmin.f32 %v10082, 0.0
    %v10299 = vmin.f32 %v10186, 0.0
    %v10300 = vmin.f32 %v10290, 0.0
    %v10301 = vmul.f32 %v10297, 1.442695
    %v10302 = vpow.pop %v10301
    %v10303 = vmul.f32 %v10298, 1.442695
    %v10304 = vpow.pop %v10303
    %v10305 = vmul.f32 %v10299, 1.442695
    %v10306 = vpow.pop %v10305
    %v10307 = vmul.f32 %v10300, 1.442695
    %v10308 = vpow.pop %v10307
    %v10309 = vsub.f32 %v10302, 1.0
    %v10310 = vsub.f32 %v10304, 1.0
    %v10311 = vsub.f32 %v10306, 1.0
    %v10312 = vsub.f32 %v10308, 1.0
    %v10313 = vsel %vm10293, %v9978, %v10309
    %v10314 = vsel %vm10294, %v10082, %v10310
    %v10315 = vsel %vm10295, %v10186, %v10311
    %v10316 = vsel %vm10296, %v10290, %v10312
    %v10317 = vld [vmem:[%s10] sm:$0xf]
    %v10319 = vperm.slane %v10317, 0
    %v10320 = vperm.slane %v10317, 1
    %v10321 = vperm.slane %v10317, 2
    %v10322 = vperm.slane %v10317, 3
    %v10327 = vmul.f32 %v10313, %v10319
    %v10328 = vmul.f32 %v10314, %v10320
    %v10329 = vmul.f32 %v10315, %v10321
    %v10330 = vmul.f32 %v10316, %v10322
    %v10331 = vadd.f32 %v10327, %v10328
    %v10332 = vadd.f32 %v10331, %v10329
    %v10333 = vadd.f32 %v10332, %v10330
    %10334 = vadd.xlane.f32.xlu0 %v10333
    %v10335 = vpop.xlane.xlu0 %10334
    %v10336 = vadd.f32 %v10335, %v172
    %10338 = vset.pattern.permute.xlu0 0
    %10339 = vperm.xlu0 %10338, %v10336
    %v10340 = vpop.permute.xlu0 %10339
    %10342 = vst [vmem:[%s13] sm:$0xff] %v10340
    // Predicated region
    $region78: #{dtlcdr_cellexp_forward.1} parent=1 // pred_check
      _
    $region79: #{dtlcdr_cellexp_forward.1} parent=1 // pred_check_branch
      %10344 = sbr.rel (0) target = $region81
    $region80: #{dtlcdr_cellexp_forward.1} parent=1 // pred_region
      _
    $region81: #{dtlcdr_cellexp_forward.1} parent=1 // pred_fallthru
      _
    // Predicated region
    $region82: #{dtlcdr_cellexp_forward.1} parent=1 // pred_check
      _
    $region83: #{dtlcdr_cellexp_forward.1} parent=1 // pred_check_branch
      %10346 = sbr.rel (0) target = $region85
    $region84: #{dtlcdr_cellexp_forward.1} parent=1 // pred_region
      _
    $region85: #{dtlcdr_cellexp_forward.1} parent=1 // pred_fallthru
      _
    // Predicated region
    $region86: #{dtlcdr_cellexp_forward.1} parent=1 // pred_check
      _
    $region87: #{dtlcdr_cellexp_forward.1} parent=1 // pred_check_branch
      %10348 = sbr.rel (0) target = $region89
    $region88: #{dtlcdr_cellexp_forward.1} parent=1 // pred_region
      _
    $region89: #{dtlcdr_cellexp_forward.1} parent=1 // pred_fallthru
      _
    // Predicated region
    $region90: #{dtlcdr_cellexp_forward.1} parent=1 // pred_check
      _
    $region91: #{dtlcdr_cellexp_forward.1} parent=1 // pred_check_branch
      %10350 = sbr.rel (0) target = $region93
    $region92: #{dtlcdr_cellexp_forward.1} parent=1 // pred_region
      _
    $region93: #{dtlcdr_cellexp_forward.1} parent=1 // pred_fallthru
      _
    %10351 = vsyncpa [#allocation3], 1
    %10352 = vsyncpa [#allocation5], 1
    %10353 = vsyncpa [#allocation8], 1
    %10354 = vsyncpa [#allocation11], 1

</llo_original>
